<compile_context>
chip_gen: v5e
topology: v5e:2x2
jax: 0.10.0
libtpu: 0.0.40
codegen_flags: <defaults>
</compile_context>

<pallas_src>
import numpy as np
import jax
import jax.numpy as jnp
from jax.experimental import pallas as pl
from jax.experimental.pallas import tpu as pltpu

Z = 32                      # bottleneck width
C_IN = 4                    # image channels
IMG = 16                    # image spatial size
S_IMG = IMG * IMG           # 256 flattened spatial (lane axis, per item)
ENC_FLAT = 32 * 4 * 4       # 512 encoder flatten length
DEC_C, DEC_S = 64, 16       # decoder fc output viewed as (64, 4*4)
PAD = IMG + 1               # halo width needed by the 16x16 convs (largest)


# ----------------------------------------------------------------------------
# In-kernel 3x3 conv: halo scratch + 9 masked taps + ONE deep bf16 matmul
# ----------------------------------------------------------------------------
def _conv3x3(x, w_ref, mask, width, pad_ref):
    """3x3 / stride-1 / pad-1 conv on batch-major lane-packed activations.

    x:       (Cin, L) activation, L = B_TILE * width * width.
    w_ref:   (Cout, 9*Cin) bf16 ref, column = (di*3+dj)*Cin + ci.
    mask:    (9, L) bf16 0/1 boundary masks (precomputed, one row per tap).
    pad_ref: bf16 VMEM scratch with >= Cin rows and >= L + 2*(width+1) cols.
    Returns (Cout, L) f32 (bias not applied)."""
    cin, L = x.shape
    p = width + 1
    zeros = jnp.zeros((cin, p), jnp.bfloat16)
    pad_ref[pl.ds(0, cin), pl.ds(0, p)] = zeros                 # left halo
    pad_ref[pl.ds(0, cin), pl.ds(p + L, p)] = zeros             # right halo
    pad_ref[pl.ds(0, cin), pl.ds(p, L)] = x.astype(jnp.bfloat16)  # one cast

    taps = []
    for t in range(9):
        delta = (t // 3 - 1) * width + (t % 3 - 1)
        shifted = pad_ref[pl.ds(0, cin), pl.ds(p + delta, L)]   # offset load
        taps.append(shifted * mask[t:t + 1, :])                 # 0/1 bf16 mask
    stack = jnp.concatenate(taps, axis=0)                       # (9*Cin, L) bf16
    return jnp.dot(w_ref[...], stack, preferred_element_type=jnp.float32)


# ----------------------------------------------------------------------------
# The whole Generator forward as one Pallas kernel (B_TILE items / grid step)
# ----------------------------------------------------------------------------
def _generator_kernel(x_ref, m16_ref, m8_ref,
                      w1_ref, b1_ref, d1_ref,
                      w2_ref, b2_ref, d2_ref,
                      wfce_ref, bfce_ref,
                      wfcd_ref, bfcd_ref,
                      u1_ref, w3_ref, b3_ref,
                      u2_ref, w4_ref, b4_ref,
                      bneck_ref, img_ref,
                      pad_sc, flat_sc, dfc_sc):
    f32, bf16 = jnp.float32, jnp.bfloat16
    bt = flat_sc.shape[1]                 # items per grid step
    m16 = m16_ref[...]                    # (9, bt*256) bf16
    m8 = m8_ref[...]                      # (9, bt*64)  bf16

    # ------------------------------ encoder ------------------------------
    x = x_ref[...]                                                # (4, bt*256)
    c1 = _conv3x3(x, w1_ref, m16, IMG, pad_sc)                    # (16, bt*256)
    h1 = jnp.maximum(
        jnp.dot(c1.astype(bf16), d1_ref[...], preferred_element_type=f32)
        + b1_ref[...], 0.0)                                       # (16, bt*64)

    c2 = _conv3x3(h1, w2_ref, m8, 8, pad_sc)                      # (32, bt*64)
    h2 = jnp.maximum(
        jnp.dot(c2.astype(bf16), d2_ref[...], preferred_element_type=f32)
        + b2_ref[...], 0.0)                  # (32, 16*bt), column = s*bt + b

    # encoder fc: gather the channel-major flatten into (512, bt) and run one
    # deep (Z,512)@(512,bt) matmul (the permutation lives in wfce's prep).
    for s in range(16):
        flat_sc[pl.ds(32 * s, 32), :] = h2[:, s * bt:(s + 1) * bt]
    zt = (jnp.dot(wfce_ref[...], flat_sc[...].astype(bf16),
                  preferred_element_type=f32) + bfce_ref[...])    # (Z, bt)
    bneck_ref[0] = zt

    # ------------------------------ decoder ------------------------------
    zb = zt.astype(bf16)                                          # (Z, bt)
    bfcd = bfcd_ref[...]                                          # (64, 16)
    for s in range(16):                    # exact (64,Z)@(Z,bt) per position
        col = jnp.dot(wfcd_ref[s], zb, preferred_element_type=f32)
        dfc_sc[:, pl.ds(s * bt, bt)] = jnp.maximum(col + bfcd[:, s:s + 1], 0.0)
    d = dfc_sc[...].astype(bf16)                                  # (64, 16*bt)

    h3 = jnp.dot(d, u1_ref[...], preferred_element_type=f32)      # (64, bt*64)
    h4 = jnp.maximum(_conv3x3(h3, w3_ref, m8, 8, pad_sc)
                     + b3_ref[...], 0.0)                          # (32, bt*64)
    h5 = jnp.dot(h4.astype(bf16), u2_ref[...],
                 preferred_element_type=f32)                      # (32, bt*256)
    img_ref[...] = jnp.tanh(_conv3x3(h5, w4_ref, m16, IMG, pad_sc)
                            + b4_ref[...])                        # (4, bt*256)


# ----------------------------------------------------------------------------
# Prep-time constants (numpy, built once per batch-tile size)
# ----------------------------------------------------------------------------
def _conv_mask(h, w, bt):
    s = h * w
    p = np.arange(s)
    pi, pj = p // w, p % w
    m = np.zeros((9, s), np.float32)
    for t in range(9):
        ri, rj = t // 3 - 1, t % 3 - 1
        m[t] = ((pi + ri >= 0) & (pi + ri < h) & (pj + rj >= 0) & (pj + rj < w))
    return np.tile(m, (1, bt))              # periodic per item (batch-major)


def _down_matrix(h, w, bt, spatial_major_out):
    """0/1 matrix: stride-2 spatial selection on batch-major lane-packed maps."""
    s_in, s_out = h * w, (h // 2) * (w // 2)
    m = np.zeros((bt * s_in, bt * s_out), np.float32)
    for b in range(bt):
        for oi in range(h // 2):
            for oj in range(w // 2):
                o = oi * (w // 2) + oj
                src = b * s_in + (2 * oi) * w + (2 * oj)
                dst = o * bt + b if spatial_major_out else b * s_out + o
                m[src, dst] = 1.0
    return m


def _up_matrix(h, w, bt, spatial_major_in):
    """0/1 matrix: nearest 2x upsample; output is batch-major lane-packed."""
    s_in, s_out = h * w, (2 * h) * (2 * w)
    m = np.zeros((bt * s_in, bt * s_out), np.float32)
    for b in range(bt):
        for oi in range(2 * h):
            for oj in range(2 * w):
                s = (oi // 2) * w + (oj // 2)
                src = s * bt + b if spatial_major_in else b * s_in + s
                dst = b * s_out + oi * (2 * w) + oj
                m[src, dst] = 1.0
    return m


def _pick_btile(batch):
    # Largest per-step batch tile that still leaves >= 2 grid steps (keep both
    # v7x TensorCores busy); falls back to 1 for tiny / odd batch sizes.
    for bt in (8, 4, 2):
        if batch % bt == 0 and batch // bt >= 2:
            return bt
    return 1


# ----------------------------------------------------------------------------
# Parameters (deterministic init) + one-time kernel-layout preparation
# ----------------------------------------------------------------------------
def init_params(key):
    ks = jax.random.split(key, 6)
    s = 0.05
    return {
        "e_conv1_w": jax.random.normal(ks[0], (16, C_IN, 3, 3), jnp.float32) * s,
        "e_conv1_b": jnp.zeros((16,), jnp.float32),
        "e_conv2_w": jax.random.normal(ks[1], (32, 16, 3, 3), jnp.float32) * s,
        "e_conv2_b": jnp.zeros((32,), jnp.float32),
        "e_fc_w": jax.random.normal(ks[2], (ENC_FLAT, Z), jnp.float32) * s,
        "e_fc_b": jnp.zeros((Z,), jnp.float32),
        "d_fc_w": jax.random.normal(ks[3], (Z, DEC_C * DEC_S), jnp.float32) * s,
        "d_fc_b": jnp.zeros((DEC_C * DEC_S,), jnp.float32),
        "d_conv1_w": jax.random.normal(ks[4], (32, 64, 3, 3), jnp.float32) * s,
        "d_conv1_b": jnp.zeros((32,), jnp.float32),
        "d_conv2_w": jax.random.normal(ks[5], (C_IN, 32, 3, 3), jnp.float32) * s,
        "d_conv2_b": jnp.zeros((C_IN,), jnp.float32),
    }


def prepare_params(p):
    """One-time rearrangement of weights into kernel layouts (bf16 matmul
    operands, f32 biases).  Done at init, NOT per forward call."""
    def conv_w(w):
        co, ci = w.shape[0], w.shape[1]
        # (Cout, Cin, 3, 3) -> (Cout, 9*Cin), column = (di*3+dj)*Cin + ci
        return jnp.transpose(w, (0, 2, 3, 1)).reshape(co, 9 * ci).astype(jnp.bfloat16)

    return {
        "w1": conv_w(p["e_conv1_w"]), "b1": p["e_conv1_b"].reshape(16, 1),
        "w2": conv_w(p["e_conv2_w"]), "b2": p["e_conv2_b"].reshape(32, 1),
        # encoder fc: torch flatten index c*16+s  ->  kernel flatten row s*32+c
        "wfce": p["e_fc_w"].reshape(32, 16, Z).transpose(2, 1, 0)
                           .reshape(Z, ENC_FLAT).astype(jnp.bfloat16),
        "bfce": p["e_fc_b"].reshape(Z, 1),
        # decoder fc: per-4x4-position weight slabs, wfcd[s, n, k] = Wd[k, n*16+s]
        "wfcd": p["d_fc_w"].reshape(Z, DEC_C, DEC_S).transpose(2, 1, 0)
                           .astype(jnp.bfloat16),
        "bfcd": p["d_fc_b"].reshape(DEC_C, DEC_S),
        "w3": conv_w(p["d_conv1_w"]), "b3": p["d_conv1_b"].reshape(32, 1),
        "w4": conv_w(p["d_conv2_w"]), "b4": p["d_conv2_b"].reshape(C_IN, 1),
    }


# ----------------------------------------------------------------------------
# Wrapper: one pallas_call for the whole forward, grid over batch tiles
# ----------------------------------------------------------------------------
@jax.jit
def generator_forward(kp, x):
    batch = x.shape[0]
    bt = _pick_btile(batch)
    grid = batch // bt
    l16 = bt * S_IMG

    # Lane-pack the batch: (B, C, H, W) -> (C, B*H*W), item-contiguous lanes.
    xp = jnp.transpose(x, (1, 0, 2, 3)).reshape(C_IN, batch * S_IMG)
    xp = xp.astype(jnp.bfloat16)

    # Prep-time bf16 constants (built on host for this batch-tile size).
    m16 = jnp.asarray(_conv_mask(IMG, IMG, bt), jnp.bfloat16)
    m8 = jnp.asarray(_conv_mask(8, 8, bt), jnp.bfloat16)
    d1 = jnp.asarray(_down_matrix(IMG, IMG, bt, False), jnp.bfloat16)
    d2 = jnp.asarray(_down_matrix(8, 8, bt, True), jnp.bfloat16)
    u1 = jnp.asarray(_up_matrix(4, 4, bt, True), jnp.bfloat16)
    u2 = jnp.asarray(_up_matrix(8, 8, bt, False), jnp.bfloat16)

    def full2(a):
        return pl.BlockSpec(a.shape, lambda g: (0, 0))

    def full3(a):
        return pl.BlockSpec(a.shape, lambda g: (0, 0, 0))

    bneck, img = pl.pallas_call(
        _generator_kernel,
        out_shape=[
            jax.ShapeDtypeStruct((grid, Z, bt), jnp.float32),
            jax.ShapeDtypeStruct((C_IN, batch * S_IMG), jnp.float32),
        ],
        grid=(grid,),
        in_specs=[
            pl.BlockSpec((C_IN, l16), lambda g: (0, g)),
            full2(m16), full2(m8),
            full2(kp["w1"]), full2(kp["b1"]), full2(d1),
            full2(kp["w2"]), full2(kp["b2"]), full2(d2),
            full2(kp["wfce"]), full2(kp["bfce"]),
            full3(kp["wfcd"]), full2(kp["bfcd"]),
            full2(u1), full2(kp["w3"]), full2(kp["b3"]),
            full2(u2), full2(kp["w4"]), full2(kp["b4"]),
        ],
        out_specs=[
            pl.BlockSpec((1, Z, bt), lambda g: (g, 0, 0)),
            pl.BlockSpec((C_IN, l16), lambda g: (0, g)),
        ],
        scratch_shapes=[
            pltpu.VMEM((64, l16 + 2 * PAD), jnp.bfloat16),   # conv halo scratch
            pltpu.VMEM((ENC_FLAT, bt), jnp.float32),         # encoder-fc flatten
            pltpu.VMEM((DEC_C, DEC_S * bt), jnp.float32),    # decoder-fc output
        ],
        compiler_params=pltpu.CompilerParams(
            dimension_semantics=("parallel",)),
    )(xp, m16, m8,
      kp["w1"], kp["b1"], d1, kp["w2"], kp["b2"], d2,
      kp["wfce"], kp["bfce"], kp["wfcd"], kp["bfcd"],
      u1, kp["w3"], kp["b3"], u2, kp["w4"], kp["b4"])

    bottleneck = jnp.transpose(bneck, (0, 2, 1)).reshape(batch, 1, Z)
    img = img.reshape(C_IN, batch, IMG, IMG).transpose(1, 0, 2, 3)
    return bottleneck, img


if __name__ == "__main__":
    key = jax.random.PRNGKey(0)
    pkey, xkey = jax.random.split(key)
    params = init_params(pkey)
    kparams = prepare_params(params)
    x = jax.random.normal(xkey, (2, C_IN, IMG, IMG), jnp.float32)

    bottleneck, img = generator_forward(kparams, x)
    jax.block_until_ready((bottleneck, img))

    assert bottleneck.shape == (2, 1, Z), bottleneck.shape
    assert img.shape == (2, C_IN, IMG, IMG), img.shape
    assert bool(jnp.all(jnp.isfinite(bottleneck))) and bool(jnp.all(jnp.isfinite(img)))
    print("KERNEL_OK")
</pallas_src>

<mosaic_0001>
module attributes {stable_mosaic.version = 11 : i64} {
  func.func @_generator_kernel(%arg0: i32, %arg1: memref<4x256xbf16, #tpu.memory_space<vmem>>, %arg2: memref<9x256xbf16, #tpu.memory_space<vmem>>, %arg3: memref<9x64xbf16, #tpu.memory_space<vmem>>, %arg4: memref<16x36xbf16, #tpu.memory_space<vmem>>, %arg5: memref<16x1xf32, #tpu.memory_space<vmem>>, %arg6: memref<256x64xbf16, #tpu.memory_space<vmem>>, %arg7: memref<32x144xbf16, #tpu.memory_space<vmem>>, %arg8: memref<32x1xf32, #tpu.memory_space<vmem>>, %arg9: memref<64x16xbf16, #tpu.memory_space<vmem>>, %arg10: memref<32x512xbf16, #tpu.memory_space<vmem>>, %arg11: memref<32x1xf32, #tpu.memory_space<vmem>>, %arg12: memref<16x64x32xbf16, #tpu.memory_space<vmem>>, %arg13: memref<64x16xf32, #tpu.memory_space<vmem>>, %arg14: memref<16x64xbf16, #tpu.memory_space<vmem>>, %arg15: memref<32x576xbf16, #tpu.memory_space<vmem>>, %arg16: memref<32x1xf32, #tpu.memory_space<vmem>>, %arg17: memref<64x256xbf16, #tpu.memory_space<vmem>>, %arg18: memref<4x288xbf16, #tpu.memory_space<vmem>>, %arg19: memref<4x1xf32, #tpu.memory_space<vmem>>, %arg20: memref<1x32x1xf32, #tpu.memory_space<vmem>>, %arg21: memref<4x256xf32, #tpu.memory_space<vmem>>, %arg22: memref<64x290xbf16, #tpu.memory_space<vmem>>, %arg23: memref<512x1xf32, #tpu.memory_space<vmem>>, %arg24: memref<64x16xf32, #tpu.memory_space<vmem>>) attributes {dimension_semantics = [#tpu.dimension_semantics<parallel>], iteration_bounds = array<i64: 2>, scalar_prefetch = 0 : i64, scratch_operands = 3 : i64, tpu.core_type = #tpu.core_type<tc>, window_params = [{transform_indices = @transform_0, window_bounds = array<i64: 4, 256>}, {pipeline_mode = #tpu.pipeline_mode<synchronous>, transform_indices = @transform_1, window_bounds = array<i64: 9, 256>}, {pipeline_mode = #tpu.pipeline_mode<synchronous>, transform_indices = @transform_2, window_bounds = array<i64: 9, 64>}, {pipeline_mode = #tpu.pipeline_mode<synchronous>, transform_indices = @transform_3, window_bounds = array<i64: 16, 36>}, {pipeline_mode = #tpu.pipeline_mode<synchronous>, transform_indices = @transform_4, window_bounds = array<i64: 16, 1>}, {pipeline_mode = #tpu.pipeline_mode<synchronous>, transform_indices = @transform_5, window_bounds = array<i64: 256, 64>}, {pipeline_mode = #tpu.pipeline_mode<synchronous>, transform_indices = @transform_6, window_bounds = array<i64: 32, 144>}, {pipeline_mode = #tpu.pipeline_mode<synchronous>, transform_indices = @transform_7, window_bounds = array<i64: 32, 1>}, {pipeline_mode = #tpu.pipeline_mode<synchronous>, transform_indices = @transform_8, window_bounds = array<i64: 64, 16>}, {pipeline_mode = #tpu.pipeline_mode<synchronous>, transform_indices = @transform_9, window_bounds = array<i64: 32, 512>}, {pipeline_mode = #tpu.pipeline_mode<synchronous>, transform_indices = @transform_10, window_bounds = array<i64: 32, 1>}, {pipeline_mode = #tpu.pipeline_mode<synchronous>, transform_indices = @transform_11, window_bounds = array<i64: 16, 64, 32>}, {pipeline_mode = #tpu.pipeline_mode<synchronous>, transform_indices = @transform_12, window_bounds = array<i64: 64, 16>}, {pipeline_mode = #tpu.pipeline_mode<synchronous>, transform_indices = @transform_13, window_bounds = array<i64: 16, 64>}, {pipeline_mode = #tpu.pipeline_mode<synchronous>, transform_indices = @transform_14, window_bounds = array<i64: 32, 576>}, {pipeline_mode = #tpu.pipeline_mode<synchronous>, transform_indices = @transform_15, window_bounds = array<i64: 32, 1>}, {pipeline_mode = #tpu.pipeline_mode<synchronous>, transform_indices = @transform_16, window_bounds = array<i64: 64, 256>}, {pipeline_mode = #tpu.pipeline_mode<synchronous>, transform_indices = @transform_17, window_bounds = array<i64: 4, 288>}, {pipeline_mode = #tpu.pipeline_mode<synchronous>, transform_indices = @transform_18, window_bounds = array<i64: 4, 1>}, {transform_indices = @transform_19, window_bounds = array<i64: 1, 32, 1>}, {transform_indices = @transform_20, window_bounds = array<i64: 4, 256>}]} {
    %c0 = arith.constant 0 : index
    %c0_0 = arith.constant 0 : index
    %0 = vector.load %arg2[%c0, %c0_0] : memref<9x256xbf16, #tpu.memory_space<vmem>>, vector<9x256xbf16>
    %c0_1 = arith.constant 0 : index
    %c0_2 = arith.constant 0 : index
    %1 = vector.load %arg3[%c0_1, %c0_2] : memref<9x64xbf16, #tpu.memory_space<vmem>>, vector<9x64xbf16>
    %c0_3 = arith.constant 0 : index
    %c0_4 = arith.constant 0 : index
    %2 = vector.load %arg1[%c0_3, %c0_4] : memref<4x256xbf16, #tpu.memory_space<vmem>>, vector<4x256xbf16>
    %cst = arith.constant 0.000000e+00 : bf16
    %3 = vector.broadcast %cst : bf16 to vector<4x17xbf16>
    %c0_5 = arith.constant 0 : index
    %c0_6 = arith.constant 0 : index
    %4 = vector.load %arg22[%c0_5, %c0_6] : memref<64x290xbf16, #tpu.memory_space<vmem>>, vector<4x17xbf16>
    tpu.vector_store %arg22[%c0_5, %c0_6], %3 {strides = array<i32>} : memref<64x290xbf16, #tpu.memory_space<vmem>>, vector<4x17xbf16>,
    %c0_7 = arith.constant 0 : index
    %c273 = arith.constant 273 : index
    %5 = vector.load %arg22[%c0_7, %c273] : memref<64x290xbf16, #tpu.memory_space<vmem>>, vector<4x17xbf16>
    tpu.vector_store %arg22[%c0_7, %c273], %3 {strides = array<i32>} : memref<64x290xbf16, #tpu.memory_space<vmem>>, vector<4x17xbf16>,
    %c0_8 = arith.constant 0 : index
    %c17 = arith.constant 17 : index
    %6 = vector.load %arg22[%c0_8, %c17] : memref<64x290xbf16, #tpu.memory_space<vmem>>, vector<4x256xbf16>
    tpu.vector_store %arg22[%c0_8, %c17], %2 {strides = array<i32>} : memref<64x290xbf16, #tpu.memory_space<vmem>>, vector<4x256xbf16>,
    %c0_9 = arith.constant 0 : index
    %c0_10 = arith.constant 0 : index
    %7 = vector.load %arg22[%c0_9, %c0_10] : memref<64x290xbf16, #tpu.memory_space<vmem>>, vector<4x256xbf16>
    %8 = vector.extract_strided_slice %0 {offsets = [0, 0], sizes = [1, 256], strides = [1, 1]} : vector<9x256xbf16> to vector<1x256xbf16>
    %9 = vector.broadcast %8 : vector<1x256xbf16> to vector<4x256xbf16>
    %10 = arith.mulf %7, %9 : vector<4x256xbf16>
    %c0_11 = arith.constant 0 : index
    %c1 = arith.constant 1 : index
    %11 = vector.load %arg22[%c0_11, %c1] : memref<64x290xbf16, #tpu.memory_space<vmem>>, vector<4x256xbf16>
    %12 = vector.extract_strided_slice %0 {offsets = [1, 0], sizes = [1, 256], strides = [1, 1]} : vector<9x256xbf16> to vector<1x256xbf16>
    %13 = vector.broadcast %12 : vector<1x256xbf16> to vector<4x256xbf16>
    %14 = arith.mulf %11, %13 : vector<4x256xbf16>
    %c0_12 = arith.constant 0 : index
    %c2 = arith.constant 2 : index
    %15 = vector.load %arg22[%c0_12, %c2] : memref<64x290xbf16, #tpu.memory_space<vmem>>, vector<4x256xbf16>
    %16 = vector.extract_strided_slice %0 {offsets = [2, 0], sizes = [1, 256], strides = [1, 1]} : vector<9x256xbf16> to vector<1x256xbf16>
    %17 = vector.broadcast %16 : vector<1x256xbf16> to vector<4x256xbf16>
    %18 = arith.mulf %15, %17 : vector<4x256xbf16>
    %c0_13 = arith.constant 0 : index
    %c16 = arith.constant 16 : index
    %19 = vector.load %arg22[%c0_13, %c16] : memref<64x290xbf16, #tpu.memory_space<vmem>>, vector<4x256xbf16>
    %20 = vector.extract_strided_slice %0 {offsets = [3, 0], sizes = [1, 256], strides = [1, 1]} : vector<9x256xbf16> to vector<1x256xbf16>
    %21 = vector.broadcast %20 : vector<1x256xbf16> to vector<4x256xbf16>
    %22 = arith.mulf %19, %21 : vector<4x256xbf16>
    %c0_14 = arith.constant 0 : index
    %c17_15 = arith.constant 17 : index
    %23 = vector.load %arg22[%c0_14, %c17_15] : memref<64x290xbf16, #tpu.memory_space<vmem>>, vector<4x256xbf16>
    %24 = vector.extract_strided_slice %0 {offsets = [4, 0], sizes = [1, 256], strides = [1, 1]} : vector<9x256xbf16> to vector<1x256xbf16>
    %25 = vector.broadcast %24 : vector<1x256xbf16> to vector<4x256xbf16>
    %26 = arith.mulf %23, %25 : vector<4x256xbf16>
    %c0_16 = arith.constant 0 : index
    %c18 = arith.constant 18 : index
    %27 = vector.load %arg22[%c0_16, %c18] : memref<64x290xbf16, #tpu.memory_space<vmem>>, vector<4x256xbf16>
    %28 = vector.extract_strided_slice %0 {offsets = [5, 0], sizes = [1, 256], strides = [1, 1]} : vector<9x256xbf16> to vector<1x256xbf16>
    %29 = vector.broadcast %28 : vector<1x256xbf16> to vector<4x256xbf16>
    %30 = arith.mulf %27, %29 : vector<4x256xbf16>
    %c0_17 = arith.constant 0 : index
    %c32 = arith.constant 32 : index
    %31 = vector.load %arg22[%c0_17, %c32] : memref<64x290xbf16, #tpu.memory_space<vmem>>, vector<4x256xbf16>
    %32 = vector.extract_strided_slice %0 {offsets = [6, 0], sizes = [1, 256], strides = [1, 1]} : vector<9x256xbf16> to vector<1x256xbf16>
    %33 = vector.broadcast %32 : vector<1x256xbf16> to vector<4x256xbf16>
    %34 = arith.mulf %31, %33 : vector<4x256xbf16>
    %c0_18 = arith.constant 0 : index
    %c33 = arith.constant 33 : index
    %35 = vector.load %arg22[%c0_18, %c33] : memref<64x290xbf16, #tpu.memory_space<vmem>>, vector<4x256xbf16>
    %36 = vector.extract_strided_slice %0 {offsets = [7, 0], sizes = [1, 256], strides = [1, 1]} : vector<9x256xbf16> to vector<1x256xbf16>
    %37 = vector.broadcast %36 : vector<1x256xbf16> to vector<4x256xbf16>
    %38 = arith.mulf %35, %37 : vector<4x256xbf16>
    %c0_19 = arith.constant 0 : index
    %c34 = arith.constant 34 : index
    %39 = vector.load %arg22[%c0_19, %c34] : memref<64x290xbf16, #tpu.memory_space<vmem>>, vector<4x256xbf16>
    %40 = vector.extract_strided_slice %0 {offsets = [8, 0], sizes = [1, 256], strides = [1, 1]} : vector<9x256xbf16> to vector<1x256xbf16>
    %41 = vector.broadcast %40 : vector<1x256xbf16> to vector<4x256xbf16>
    %42 = arith.mulf %39, %41 : vector<4x256xbf16>
    %43 = tpu.concatenate %10, %14, %18, %22, %26, %30, %34, %38, %42 in 0 : vector<4x256xbf16>, vector<4x256xbf16>, vector<4x256xbf16>, vector<4x256xbf16>, vector<4x256xbf16>, vector<4x256xbf16>, vector<4x256xbf16>, vector<4x256xbf16>, vector<4x256xbf16> -> vector<36x256xbf16>
    %c0_20 = arith.constant 0 : index
    %c0_21 = arith.constant 0 : index
    %44 = vector.load %arg4[%c0_20, %c0_21] : memref<16x36xbf16, #tpu.memory_space<vmem>>, vector<16x36xbf16>
    %cst_22 = arith.constant dense<0.000000e+00> : vector<16x256xf32>
    %45 = tpu.matmul %44, %43, %cst_22 {dimension_numbers = #tpu.dot_dimension_numbers<[1], [0], [0], [1], [0, 0, 1, 1], [], []>} : vector<16x36xbf16>, vector<36x256xbf16>, vector<16x256xf32> -> vector<16x256xf32>
    %46 = arith.truncf %45 : vector<16x256xf32> to vector<16x256xbf16>
    %c0_23 = arith.constant 0 : index
    %c0_24 = arith.constant 0 : index
    %47 = vector.load %arg6[%c0_23, %c0_24] : memref<256x64xbf16, #tpu.memory_space<vmem>>, vector<256x64xbf16>
    %cst_25 = arith.constant dense<0.000000e+00> : vector<16x64xf32>
    %48 = tpu.matmul %46, %47, %cst_25 {dimension_numbers = #tpu.dot_dimension_numbers<[1], [0], [0], [1], [0, 0, 1, 1], [], []>} : vector<16x256xbf16>, vector<256x64xbf16>, vector<16x64xf32> -> vector<16x64xf32>
    %c0_26 = arith.constant 0 : index
    %c0_27 = arith.constant 0 : index
    %49 = vector.load %arg5[%c0_26, %c0_27] : memref<16x1xf32, #tpu.memory_space<vmem>>, vector<16x1xf32>
    %50 = vector.broadcast %49 : vector<16x1xf32> to vector<16x64xf32>
    %51 = arith.addf %48, %50 : vector<16x64xf32>
    %cst_28 = arith.constant 0.000000e+00 : f32
    %52 = vector.broadcast %cst_28 : f32 to vector<16x64xf32>
    %53 = arith.maximumf %51, %52 : vector<16x64xf32>
    %cst_29 = arith.constant 0.000000e+00 : bf16
    %54 = vector.broadcast %cst_29 : bf16 to vector<16x9xbf16>
    %c0_30 = arith.constant 0 : index
    %c0_31 = arith.constant 0 : index
    %55 = vector.load %arg22[%c0_30, %c0_31] : memref<64x290xbf16, #tpu.memory_space<vmem>>, vector<16x9xbf16>
    tpu.vector_store %arg22[%c0_30, %c0_31], %54 {strides = array<i32>} : memref<64x290xbf16, #tpu.memory_space<vmem>>, vector<16x9xbf16>,
    %c0_32 = arith.constant 0 : index
    %c73 = arith.constant 73 : index
    %56 = vector.load %arg22[%c0_32, %c73] : memref<64x290xbf16, #tpu.memory_space<vmem>>, vector<16x9xbf16>
    tpu.vector_store %arg22[%c0_32, %c73], %54 {strides = array<i32>} : memref<64x290xbf16, #tpu.memory_space<vmem>>, vector<16x9xbf16>,
    %57 = arith.truncf %53 : vector<16x64xf32> to vector<16x64xbf16>
    %c0_33 = arith.constant 0 : index
    %c9 = arith.constant 9 : index
    %58 = vector.load %arg22[%c0_33, %c9] : memref<64x290xbf16, #tpu.memory_space<vmem>>, vector<16x64xbf16>
    tpu.vector_store %arg22[%c0_33, %c9], %57 {strides = array<i32>} : memref<64x290xbf16, #tpu.memory_space<vmem>>, vector<16x64xbf16>,
    %c0_34 = arith.constant 0 : index
    %c0_35 = arith.constant 0 : index
    %59 = vector.load %arg22[%c0_34, %c0_35] : memref<64x290xbf16, #tpu.memory_space<vmem>>, vector<16x64xbf16>
    %60 = vector.extract_strided_slice %1 {offsets = [0, 0], sizes = [1, 64], strides = [1, 1]} : vector<9x64xbf16> to vector<1x64xbf16>
    %61 = vector.broadcast %60 : vector<1x64xbf16> to vector<16x64xbf16>
    %62 = arith.mulf %59, %61 : vector<16x64xbf16>
    %c0_36 = arith.constant 0 : index
    %c1_37 = arith.constant 1 : index
    %63 = vector.load %arg22[%c0_36, %c1_37] : memref<64x290xbf16, #tpu.memory_space<vmem>>, vector<16x64xbf16>
    %64 = vector.extract_strided_slice %1 {offsets = [1, 0], sizes = [1, 64], strides = [1, 1]} : vector<9x64xbf16> to vector<1x64xbf16>
    %65 = vector.broadcast %64 : vector<1x64xbf16> to vector<16x64xbf16>
    %66 = arith.mulf %63, %65 : vector<16x64xbf16>
    %c0_38 = arith.constant 0 : index
    %c2_39 = arith.constant 2 : index
    %67 = vector.load %arg22[%c0_38, %c2_39] : memref<64x290xbf16, #tpu.memory_space<vmem>>, vector<16x64xbf16>
    %68 = vector.extract_strided_slice %1 {offsets = [2, 0], sizes = [1, 64], strides = [1, 1]} : vector<9x64xbf16> to vector<1x64xbf16>
    %69 = vector.broadcast %68 : vector<1x64xbf16> to vector<16x64xbf16>
    %70 = arith.mulf %67, %69 : vector<16x64xbf16>
    %c0_40 = arith.constant 0 : index
    %c8 = arith.constant 8 : index
    %71 = vector.load %arg22[%c0_40, %c8] : memref<64x290xbf16, #tpu.memory_space<vmem>>, vector<16x64xbf16>
    %72 = vector.extract_strided_slice %1 {offsets = [3, 0], sizes = [1, 64], strides = [1, 1]} : vector<9x64xbf16> to vector<1x64xbf16>
    %73 = vector.broadcast %72 : vector<1x64xbf16> to vector<16x64xbf16>
    %74 = arith.mulf %71, %73 : vector<16x64xbf16>
    %c0_41 = arith.constant 0 : index
    %c9_42 = arith.constant 9 : index
    %75 = vector.load %arg22[%c0_41, %c9_42] : memref<64x290xbf16, #tpu.memory_space<vmem>>, vector<16x64xbf16>
    %76 = vector.extract_strided_slice %1 {offsets = [4, 0], sizes = [1, 64], strides = [1, 1]} : vector<9x64xbf16> to vector<1x64xbf16>
    %77 = vector.broadcast %76 : vector<1x64xbf16> to vector<16x64xbf16>
    %78 = arith.mulf %75, %77 : vector<16x64xbf16>
    %c0_43 = arith.constant 0 : index
    %c10 = arith.constant 10 : index
    %79 = vector.load %arg22[%c0_43, %c10] : memref<64x290xbf16, #tpu.memory_space<vmem>>, vector<16x64xbf16>
    %80 = vector.extract_strided_slice %1 {offsets = [5, 0], sizes = [1, 64], strides = [1, 1]} : vector<9x64xbf16> to vector<1x64xbf16>
    %81 = vector.broadcast %80 : vector<1x64xbf16> to vector<16x64xbf16>
    %82 = arith.mulf %79, %81 : vector<16x64xbf16>
    %c0_44 = arith.constant 0 : index
    %c16_45 = arith.constant 16 : index
    %83 = vector.load %arg22[%c0_44, %c16_45] : memref<64x290xbf16, #tpu.memory_space<vmem>>, vector<16x64xbf16>
    %84 = vector.extract_strided_slice %1 {offsets = [6, 0], sizes = [1, 64], strides = [1, 1]} : vector<9x64xbf16> to vector<1x64xbf16>
    %85 = vector.broadcast %84 : vector<1x64xbf16> to vector<16x64xbf16>
    %86 = arith.mulf %83, %85 : vector<16x64xbf16>
    %c0_46 = arith.constant 0 : index
    %c17_47 = arith.constant 17 : index
    %87 = vector.load %arg22[%c0_46, %c17_47] : memref<64x290xbf16, #tpu.memory_space<vmem>>, vector<16x64xbf16>
    %88 = vector.extract_strided_slice %1 {offsets = [7, 0], sizes = [1, 64], strides = [1, 1]} : vector<9x64xbf16> to vector<1x64xbf16>
    %89 = vector.broadcast %88 : vector<1x64xbf16> to vector<16x64xbf16>
    %90 = arith.mulf %87, %89 : vector<16x64xbf16>
    %c0_48 = arith.constant 0 : index
    %c18_49 = arith.constant 18 : index
    %91 = vector.load %arg22[%c0_48, %c18_49] : memref<64x290xbf16, #tpu.memory_space<vmem>>, vector<16x64xbf16>
    %92 = vector.extract_strided_slice %1 {offsets = [8, 0], sizes = [1, 64], strides = [1, 1]} : vector<9x64xbf16> to vector<1x64xbf16>
    %93 = vector.broadcast %92 : vector<1x64xbf16> to vector<16x64xbf16>
    %94 = arith.mulf %91, %93 : vector<16x64xbf16>
    %95 = tpu.concatenate %62, %66, %70, %74, %78, %82, %86, %90, %94 in 0 : vector<16x64xbf16>, vector<16x64xbf16>, vector<16x64xbf16>, vector<16x64xbf16>, vector<16x64xbf16>, vector<16x64xbf16>, vector<16x64xbf16>, vector<16x64xbf16>, vector<16x64xbf16> -> vector<144x64xbf16>
    %c0_50 = arith.constant 0 : index
    %c0_51 = arith.constant 0 : index
    %96 = vector.load %arg7[%c0_50, %c0_51] : memref<32x144xbf16, #tpu.memory_space<vmem>>, vector<32x144xbf16>
    %cst_52 = arith.constant dense<0.000000e+00> : vector<32x64xf32>
    %97 = tpu.matmul %96, %95, %cst_52 {dimension_numbers = #tpu.dot_dimension_numbers<[1], [0], [0], [1], [0, 0, 1, 1], [], []>} : vector<32x144xbf16>, vector<144x64xbf16>, vector<32x64xf32> -> vector<32x64xf32>
    %98 = arith.truncf %97 : vector<32x64xf32> to vector<32x64xbf16>
    %c0_53 = arith.constant 0 : index
    %c0_54 = arith.constant 0 : index
    %99 = vector.load %arg9[%c0_53, %c0_54] : memref<64x16xbf16, #tpu.memory_space<vmem>>, vector<64x16xbf16>
    %cst_55 = arith.constant dense<0.000000e+00> : vector<32x16xf32>
    %100 = tpu.matmul %98, %99, %cst_55 {dimension_numbers = #tpu.dot_dimension_numbers<[1], [0], [0], [1], [0, 0, 1, 1], [], []>} : vector<32x64xbf16>, vector<64x16xbf16>, vector<32x16xf32> -> vector<32x16xf32>
    %c0_56 = arith.constant 0 : index
    %c0_57 = arith.constant 0 : index
    %101 = vector.load %arg8[%c0_56, %c0_57] : memref<32x1xf32, #tpu.memory_space<vmem>>, vector<32x1xf32>
    %102 = vector.broadcast %101 : vector<32x1xf32> to vector<32x16xf32>
    %103 = arith.addf %100, %102 : vector<32x16xf32>
    %cst_58 = arith.constant 0.000000e+00 : f32
    %104 = vector.broadcast %cst_58 : f32 to vector<32x16xf32>
    %105 = arith.maximumf %103, %104 : vector<32x16xf32>
    %106 = vector.extract_strided_slice %105 {offsets = [0, 0], sizes = [32, 1], strides = [1, 1]} : vector<32x16xf32> to vector<32x1xf32>
    %c0_59 = arith.constant 0 : index
    %c0_60 = arith.constant 0 : index
    %107 = vector.load %arg23[%c0_59, %c0_60] : memref<512x1xf32, #tpu.memory_space<vmem>>, vector<32x1xf32>
    tpu.vector_store %arg23[%c0_59, %c0_60], %106 {strides = array<i32>} : memref<512x1xf32, #tpu.memory_space<vmem>>, vector<32x1xf32>,
    %108 = vector.extract_strided_slice %105 {offsets = [0, 1], sizes = [32, 1], strides = [1, 1]} : vector<32x16xf32> to vector<32x1xf32>
    %c32_61 = arith.constant 32 : index
    %c0_62 = arith.constant 0 : index
    %109 = vector.load %arg23[%c32_61, %c0_62] : memref<512x1xf32, #tpu.memory_space<vmem>>, vector<32x1xf32>
    tpu.vector_store %arg23[%c32_61, %c0_62], %108 {strides = array<i32>} : memref<512x1xf32, #tpu.memory_space<vmem>>, vector<32x1xf32>,
    %110 = vector.extract_strided_slice %105 {offsets = [0, 2], sizes = [32, 1], strides = [1, 1]} : vector<32x16xf32> to vector<32x1xf32>
    %c64 = arith.constant 64 : index
    %c0_63 = arith.constant 0 : index
    %111 = vector.load %arg23[%c64, %c0_63] : memref<512x1xf32, #tpu.memory_space<vmem>>, vector<32x1xf32>
    tpu.vector_store %arg23[%c64, %c0_63], %110 {strides = array<i32>} : memref<512x1xf32, #tpu.memory_space<vmem>>, vector<32x1xf32>,
    %112 = vector.extract_strided_slice %105 {offsets = [0, 3], sizes = [32, 1], strides = [1, 1]} : vector<32x16xf32> to vector<32x1xf32>
    %c96 = arith.constant 96 : index
    %c0_64 = arith.constant 0 : index
    %113 = vector.load %arg23[%c96, %c0_64] : memref<512x1xf32, #tpu.memory_space<vmem>>, vector<32x1xf32>
    tpu.vector_store %arg23[%c96, %c0_64], %112 {strides = array<i32>} : memref<512x1xf32, #tpu.memory_space<vmem>>, vector<32x1xf32>,
    %114 = vector.extract_strided_slice %105 {offsets = [0, 4], sizes = [32, 1], strides = [1, 1]} : vector<32x16xf32> to vector<32x1xf32>
    %c128 = arith.constant 128 : index
    %c0_65 = arith.constant 0 : index
    %115 = vector.load %arg23[%c128, %c0_65] : memref<512x1xf32, #tpu.memory_space<vmem>>, vector<32x1xf32>
    tpu.vector_store %arg23[%c128, %c0_65], %114 {strides = array<i32>} : memref<512x1xf32, #tpu.memory_space<vmem>>, vector<32x1xf32>,
    %116 = vector.extract_strided_slice %105 {offsets = [0, 5], sizes = [32, 1], strides = [1, 1]} : vector<32x16xf32> to vector<32x1xf32>
    %c160 = arith.constant 160 : index
    %c0_66 = arith.constant 0 : index
    %117 = vector.load %arg23[%c160, %c0_66] : memref<512x1xf32, #tpu.memory_space<vmem>>, vector<32x1xf32>
    tpu.vector_store %arg23[%c160, %c0_66], %116 {strides = array<i32>} : memref<512x1xf32, #tpu.memory_space<vmem>>, vector<32x1xf32>,
    %118 = vector.extract_strided_slice %105 {offsets = [0, 6], sizes = [32, 1], strides = [1, 1]} : vector<32x16xf32> to vector<32x1xf32>
    %c192 = arith.constant 192 : index
    %c0_67 = arith.constant 0 : index
    %119 = vector.load %arg23[%c192, %c0_67] : memref<512x1xf32, #tpu.memory_space<vmem>>, vector<32x1xf32>
    tpu.vector_store %arg23[%c192, %c0_67], %118 {strides = array<i32>} : memref<512x1xf32, #tpu.memory_space<vmem>>, vector<32x1xf32>,
    %120 = vector.extract_strided_slice %105 {offsets = [0, 7], sizes = [32, 1], strides = [1, 1]} : vector<32x16xf32> to vector<32x1xf32>
    %c224 = arith.constant 224 : index
    %c0_68 = arith.constant 0 : index
    %121 = vector.load %arg23[%c224, %c0_68] : memref<512x1xf32, #tpu.memory_space<vmem>>, vector<32x1xf32>
    tpu.vector_store %arg23[%c224, %c0_68], %120 {strides = array<i32>} : memref<512x1xf32, #tpu.memory_space<vmem>>, vector<32x1xf32>,
    %122 = vector.extract_strided_slice %105 {offsets = [0, 8], sizes = [32, 1], strides = [1, 1]} : vector<32x16xf32> to vector<32x1xf32>
    %c256 = arith.constant 256 : index
    %c0_69 = arith.constant 0 : index
    %123 = vector.load %arg23[%c256, %c0_69] : memref<512x1xf32, #tpu.memory_space<vmem>>, vector<32x1xf32>
    tpu.vector_store %arg23[%c256, %c0_69], %122 {strides = array<i32>} : memref<512x1xf32, #tpu.memory_space<vmem>>, vector<32x1xf32>,
    %124 = vector.extract_strided_slice %105 {offsets = [0, 9], sizes = [32, 1], strides = [1, 1]} : vector<32x16xf32> to vector<32x1xf32>
    %c288 = arith.constant 288 : index
    %c0_70 = arith.constant 0 : index
    %125 = vector.load %arg23[%c288, %c0_70] : memref<512x1xf32, #tpu.memory_space<vmem>>, vector<32x1xf32>
    tpu.vector_store %arg23[%c288, %c0_70], %124 {strides = array<i32>} : memref<512x1xf32, #tpu.memory_space<vmem>>, vector<32x1xf32>,
    %126 = vector.extract_strided_slice %105 {offsets = [0, 10], sizes = [32, 1], strides = [1, 1]} : vector<32x16xf32> to vector<32x1xf32>
    %c320 = arith.constant 320 : index
    %c0_71 = arith.constant 0 : index
    %127 = vector.load %arg23[%c320, %c0_71] : memref<512x1xf32, #tpu.memory_space<vmem>>, vector<32x1xf32>
    tpu.vector_store %arg23[%c320, %c0_71], %126 {strides = array<i32>} : memref<512x1xf32, #tpu.memory_space<vmem>>, vector<32x1xf32>,
    %128 = vector.extract_strided_slice %105 {offsets = [0, 11], sizes = [32, 1], strides = [1, 1]} : vector<32x16xf32> to vector<32x1xf32>
    %c352 = arith.constant 352 : index
    %c0_72 = arith.constant 0 : index
    %129 = vector.load %arg23[%c352, %c0_72] : memref<512x1xf32, #tpu.memory_space<vmem>>, vector<32x1xf32>
    tpu.vector_store %arg23[%c352, %c0_72], %128 {strides = array<i32>} : memref<512x1xf32, #tpu.memory_space<vmem>>, vector<32x1xf32>,
    %130 = vector.extract_strided_slice %105 {offsets = [0, 12], sizes = [32, 1], strides = [1, 1]} : vector<32x16xf32> to vector<32x1xf32>
    %c384 = arith.constant 384 : index
    %c0_73 = arith.constant 0 : index
    %131 = vector.load %arg23[%c384, %c0_73] : memref<512x1xf32, #tpu.memory_space<vmem>>, vector<32x1xf32>
    tpu.vector_store %arg23[%c384, %c0_73], %130 {strides = array<i32>} : memref<512x1xf32, #tpu.memory_space<vmem>>, vector<32x1xf32>,
    %132 = vector.extract_strided_slice %105 {offsets = [0, 13], sizes = [32, 1], strides = [1, 1]} : vector<32x16xf32> to vector<32x1xf32>
    %c416 = arith.constant 416 : index
    %c0_74 = arith.constant 0 : index
    %133 = vector.load %arg23[%c416, %c0_74] : memref<512x1xf32, #tpu.memory_space<vmem>>, vector<32x1xf32>
    tpu.vector_store %arg23[%c416, %c0_74], %132 {strides = array<i32>} : memref<512x1xf32, #tpu.memory_space<vmem>>, vector<32x1xf32>,
    %134 = vector.extract_strided_slice %105 {offsets = [0, 14], sizes = [32, 1], strides = [1, 1]} : vector<32x16xf32> to vector<32x1xf32>
    %c448 = arith.constant 448 : index
    %c0_75 = arith.constant 0 : index
    %135 = vector.load %arg23[%c448, %c0_75] : memref<512x1xf32, #tpu.memory_space<vmem>>, vector<32x1xf32>
    tpu.vector_store %arg23[%c448, %c0_75], %134 {strides = array<i32>} : memref<512x1xf32, #tpu.memory_space<vmem>>, vector<32x1xf32>,
    %136 = vector.extract_strided_slice %105 {offsets = [0, 15], sizes = [32, 1], strides = [1, 1]} : vector<32x16xf32> to vector<32x1xf32>
    %c480 = arith.constant 480 : index
    %c0_76 = arith.constant 0 : index
    %137 = vector.load %arg23[%c480, %c0_76] : memref<512x1xf32, #tpu.memory_space<vmem>>, vector<32x1xf32>
    tpu.vector_store %arg23[%c480, %c0_76], %136 {strides = array<i32>} : memref<512x1xf32, #tpu.memory_space<vmem>>, vector<32x1xf32>,
    %c0_77 = arith.constant 0 : index
    %c0_78 = arith.constant 0 : index
    %138 = vector.load %arg10[%c0_77, %c0_78] : memref<32x512xbf16, #tpu.memory_space<vmem>>, vector<32x512xbf16>
    %c0_79 = arith.constant 0 : index
    %c0_80 = arith.constant 0 : index
    %139 = vector.load %arg23[%c0_79, %c0_80] : memref<512x1xf32, #tpu.memory_space<vmem>>, vector<512x1xf32>
    %140 = arith.truncf %139 : vector<512x1xf32> to vector<512x1xbf16>
    %cst_81 = arith.constant dense<0.000000e+00> : vector<32x1xf32>
    %141 = tpu.matmul %138, %140, %cst_81 {dimension_numbers = #tpu.dot_dimension_numbers<[1], [0], [0], [1], [0, 0, 1, 1], [], []>} : vector<32x512xbf16>, vector<512x1xbf16>, vector<32x1xf32> -> vector<32x1xf32>
    %c0_82 = arith.constant 0 : index
    %c0_83 = arith.constant 0 : index
    %142 = vector.load %arg11[%c0_82, %c0_83] : memref<32x1xf32, #tpu.memory_space<vmem>>, vector<32x1xf32>
    %143 = arith.addf %141, %142 : vector<32x1xf32>
    %c0_84 = arith.constant 0 : index
    %c0_85 = arith.constant 0 : index
    %c0_86 = arith.constant 0 : index
    %144 = vector.load %arg20[%c0_84, %c0_85, %c0_86] : memref<1x32x1xf32, #tpu.memory_space<vmem>>, vector<1x32x1xf32>
    %145 = vector.shape_cast %144 : vector<1x32x1xf32> to vector<32x1xf32>
    %146 = vector.shape_cast %143 : vector<32x1xf32> to vector<1x32x1xf32>
    tpu.vector_store %arg20[%c0_84, %c0_85, %c0_86], %146 {strides = array<i32>} : memref<1x32x1xf32, #tpu.memory_space<vmem>>, vector<1x32x1xf32>,
    %147 = arith.truncf %143 : vector<32x1xf32> to vector<32x1xbf16>
    %c0_87 = arith.constant 0 : index
    %c0_88 = arith.constant 0 : index
    %148 = vector.load %arg13[%c0_87, %c0_88] : memref<64x16xf32, #tpu.memory_space<vmem>>, vector<64x16xf32>
    %c0_89 = arith.constant 0 : index
    %c0_90 = arith.constant 0 : index
    %c0_91 = arith.constant 0 : index
    %149 = vector.load %arg12[%c0_89, %c0_90, %c0_91] : memref<16x64x32xbf16, #tpu.memory_space<vmem>>, vector<1x64x32xbf16>
    %150 = vector.shape_cast %149 : vector<1x64x32xbf16> to vector<64x32xbf16>
    %cst_92 = arith.constant dense<0.000000e+00> : vector<64x1xf32>
    %151 = tpu.matmul %150, %147, %cst_92 {dimension_numbers = #tpu.dot_dimension_numbers<[1], [0], [0], [1], [0, 0, 1, 1], [], []>} : vector<64x32xbf16>, vector<32x1xbf16>, vector<64x1xf32> -> vector<64x1xf32>
    %152 = vector.extract_strided_slice %148 {offsets = [0, 0], sizes = [64, 1], strides = [1, 1]} : vector<64x16xf32> to vector<64x1xf32>
    %153 = arith.addf %151, %152 : vector<64x1xf32>
    %cst_93 = arith.constant 0.000000e+00 : f32
    %154 = vector.broadcast %cst_93 : f32 to vector<64x1xf32>
    %155 = arith.maximumf %153, %154 : vector<64x1xf32>
    %c0_94 = arith.constant 0 : index
    %c0_95 = arith.constant 0 : index
    %156 = vector.load %arg24[%c0_94, %c0_95] : memref<64x16xf32, #tpu.memory_space<vmem>>, vector<64x1xf32>
    tpu.vector_store %arg24[%c0_94, %c0_95], %155 {strides = array<i32>} : memref<64x16xf32, #tpu.memory_space<vmem>>, vector<64x1xf32>,
    %c1_96 = arith.constant 1 : index
    %c0_97 = arith.constant 0 : index
    %c0_98 = arith.constant 0 : index
    %157 = vector.load %arg12[%c1_96, %c0_97, %c0_98] : memref<16x64x32xbf16, #tpu.memory_space<vmem>>, vector<1x64x32xbf16>
    %158 = vector.shape_cast %157 : vector<1x64x32xbf16> to vector<64x32xbf16>
    %cst_99 = arith.constant dense<0.000000e+00> : vector<64x1xf32>
    %159 = tpu.matmul %158, %147, %cst_99 {dimension_numbers = #tpu.dot_dimension_numbers<[1], [0], [0], [1], [0, 0, 1, 1], [], []>} : vector<64x32xbf16>, vector<32x1xbf16>, vector<64x1xf32> -> vector<64x1xf32>
    %160 = vector.extract_strided_slice %148 {offsets = [0, 1], sizes = [64, 1], strides = [1, 1]} : vector<64x16xf32> to vector<64x1xf32>
    %161 = arith.addf %159, %160 : vector<64x1xf32>
    %cst_100 = arith.constant 0.000000e+00 : f32
    %162 = vector.broadcast %cst_100 : f32 to vector<64x1xf32>
    %163 = arith.maximumf %161, %162 : vector<64x1xf32>
    %c0_101 = arith.constant 0 : index
    %c1_102 = arith.constant 1 : index
    %164 = vector.load %arg24[%c0_101, %c1_102] : memref<64x16xf32, #tpu.memory_space<vmem>>, vector<64x1xf32>
    tpu.vector_store %arg24[%c0_101, %c1_102], %163 {strides = array<i32>} : memref<64x16xf32, #tpu.memory_space<vmem>>, vector<64x1xf32>,
    %c2_103 = arith.constant 2 : index
    %c0_104 = arith.constant 0 : index
    %c0_105 = arith.constant 0 : index
    %165 = vector.load %arg12[%c2_103, %c0_104, %c0_105] : memref<16x64x32xbf16, #tpu.memory_space<vmem>>, vector<1x64x32xbf16>
    %166 = vector.shape_cast %165 : vector<1x64x32xbf16> to vector<64x32xbf16>
    %cst_106 = arith.constant dense<0.000000e+00> : vector<64x1xf32>
    %167 = tpu.matmul %166, %147, %cst_106 {dimension_numbers = #tpu.dot_dimension_numbers<[1], [0], [0], [1], [0, 0, 1, 1], [], []>} : vector<64x32xbf16>, vector<32x1xbf16>, vector<64x1xf32> -> vector<64x1xf32>
    %168 = vector.extract_strided_slice %148 {offsets = [0, 2], sizes = [64, 1], strides = [1, 1]} : vector<64x16xf32> to vector<64x1xf32>
    %169 = arith.addf %167, %168 : vector<64x1xf32>
    %cst_107 = arith.constant 0.000000e+00 : f32
    %170 = vector.broadcast %cst_107 : f32 to vector<64x1xf32>
    %171 = arith.maximumf %169, %170 : vector<64x1xf32>
    %c0_108 = arith.constant 0 : index
    %c2_109 = arith.constant 2 : index
    %172 = vector.load %arg24[%c0_108, %c2_109] : memref<64x16xf32, #tpu.memory_space<vmem>>, vector<64x1xf32>
    tpu.vector_store %arg24[%c0_108, %c2_109], %171 {strides = array<i32>} : memref<64x16xf32, #tpu.memory_space<vmem>>, vector<64x1xf32>,
    %c3 = arith.constant 3 : index
    %c0_110 = arith.constant 0 : index
    %c0_111 = arith.constant 0 : index
    %173 = vector.load %arg12[%c3, %c0_110, %c0_111] : memref<16x64x32xbf16, #tpu.memory_space<vmem>>, vector<1x64x32xbf16>
    %174 = vector.shape_cast %173 : vector<1x64x32xbf16> to vector<64x32xbf16>
    %cst_112 = arith.constant dense<0.000000e+00> : vector<64x1xf32>
    %175 = tpu.matmul %174, %147, %cst_112 {dimension_numbers = #tpu.dot_dimension_numbers<[1], [0], [0], [1], [0, 0, 1, 1], [], []>} : vector<64x32xbf16>, vector<32x1xbf16>, vector<64x1xf32> -> vector<64x1xf32>
    %176 = vector.extract_strided_slice %148 {offsets = [0, 3], sizes = [64, 1], strides = [1, 1]} : vector<64x16xf32> to vector<64x1xf32>
    %177 = arith.addf %175, %176 : vector<64x1xf32>
    %cst_113 = arith.constant 0.000000e+00 : f32
    %178 = vector.broadcast %cst_113 : f32 to vector<64x1xf32>
    %179 = arith.maximumf %177, %178 : vector<64x1xf32>
    %c0_114 = arith.constant 0 : index
    %c3_115 = arith.constant 3 : index
    %180 = vector.load %arg24[%c0_114, %c3_115] : memref<64x16xf32, #tpu.memory_space<vmem>>, vector<64x1xf32>
    tpu.vector_store %arg24[%c0_114, %c3_115], %179 {strides = array<i32>} : memref<64x16xf32, #tpu.memory_space<vmem>>, vector<64x1xf32>,
    %c4 = arith.constant 4 : index
    %c0_116 = arith.constant 0 : index
    %c0_117 = arith.constant 0 : index
    %181 = vector.load %arg12[%c4, %c0_116, %c0_117] : memref<16x64x32xbf16, #tpu.memory_space<vmem>>, vector<1x64x32xbf16>
    %182 = vector.shape_cast %181 : vector<1x64x32xbf16> to vector<64x32xbf16>
    %cst_118 = arith.constant dense<0.000000e+00> : vector<64x1xf32>
    %183 = tpu.matmul %182, %147, %cst_118 {dimension_numbers = #tpu.dot_dimension_numbers<[1], [0], [0], [1], [0, 0, 1, 1], [], []>} : vector<64x32xbf16>, vector<32x1xbf16>, vector<64x1xf32> -> vector<64x1xf32>
    %184 = vector.extract_strided_slice %148 {offsets = [0, 4], sizes = [64, 1], strides = [1, 1]} : vector<64x16xf32> to vector<64x1xf32>
    %185 = arith.addf %183, %184 : vector<64x1xf32>
    %cst_119 = arith.constant 0.000000e+00 : f32
    %186 = vector.broadcast %cst_119 : f32 to vector<64x1xf32>
    %187 = arith.maximumf %185, %186 : vector<64x1xf32>
    %c0_120 = arith.constant 0 : index
    %c4_121 = arith.constant 4 : index
    %188 = vector.load %arg24[%c0_120, %c4_121] : memref<64x16xf32, #tpu.memory_space<vmem>>, vector<64x1xf32>
    tpu.vector_store %arg24[%c0_120, %c4_121], %187 {strides = array<i32>} : memref<64x16xf32, #tpu.memory_space<vmem>>, vector<64x1xf32>,
    %c5 = arith.constant 5 : index
    %c0_122 = arith.constant 0 : index
    %c0_123 = arith.constant 0 : index
    %189 = vector.load %arg12[%c5, %c0_122, %c0_123] : memref<16x64x32xbf16, #tpu.memory_space<vmem>>, vector<1x64x32xbf16>
    %190 = vector.shape_cast %189 : vector<1x64x32xbf16> to vector<64x32xbf16>
    %cst_124 = arith.constant dense<0.000000e+00> : vector<64x1xf32>
    %191 = tpu.matmul %190, %147, %cst_124 {dimension_numbers = #tpu.dot_dimension_numbers<[1], [0], [0], [1], [0, 0, 1, 1], [], []>} : vector<64x32xbf16>, vector<32x1xbf16>, vector<64x1xf32> -> vector<64x1xf32>
    %192 = vector.extract_strided_slice %148 {offsets = [0, 5], sizes = [64, 1], strides = [1, 1]} : vector<64x16xf32> to vector<64x1xf32>
    %193 = arith.addf %191, %192 : vector<64x1xf32>
    %cst_125 = arith.constant 0.000000e+00 : f32
    %194 = vector.broadcast %cst_125 : f32 to vector<64x1xf32>
    %195 = arith.maximumf %193, %194 : vector<64x1xf32>
    %c0_126 = arith.constant 0 : index
    %c5_127 = arith.constant 5 : index
    %196 = vector.load %arg24[%c0_126, %c5_127] : memref<64x16xf32, #tpu.memory_space<vmem>>, vector<64x1xf32>
    tpu.vector_store %arg24[%c0_126, %c5_127], %195 {strides = array<i32>} : memref<64x16xf32, #tpu.memory_space<vmem>>, vector<64x1xf32>,
    %c6 = arith.constant 6 : index
    %c0_128 = arith.constant 0 : index
    %c0_129 = arith.constant 0 : index
    %197 = vector.load %arg12[%c6, %c0_128, %c0_129] : memref<16x64x32xbf16, #tpu.memory_space<vmem>>, vector<1x64x32xbf16>
    %198 = vector.shape_cast %197 : vector<1x64x32xbf16> to vector<64x32xbf16>
    %cst_130 = arith.constant dense<0.000000e+00> : vector<64x1xf32>
    %199 = tpu.matmul %198, %147, %cst_130 {dimension_numbers = #tpu.dot_dimension_numbers<[1], [0], [0], [1], [0, 0, 1, 1], [], []>} : vector<64x32xbf16>, vector<32x1xbf16>, vector<64x1xf32> -> vector<64x1xf32>
    %200 = vector.extract_strided_slice %148 {offsets = [0, 6], sizes = [64, 1], strides = [1, 1]} : vector<64x16xf32> to vector<64x1xf32>
    %201 = arith.addf %199, %200 : vector<64x1xf32>
    %cst_131 = arith.constant 0.000000e+00 : f32
    %202 = vector.broadcast %cst_131 : f32 to vector<64x1xf32>
    %203 = arith.maximumf %201, %202 : vector<64x1xf32>
    %c0_132 = arith.constant 0 : index
    %c6_133 = arith.constant 6 : index
    %204 = vector.load %arg24[%c0_132, %c6_133] : memref<64x16xf32, #tpu.memory_space<vmem>>, vector<64x1xf32>
    tpu.vector_store %arg24[%c0_132, %c6_133], %203 {strides = array<i32>} : memref<64x16xf32, #tpu.memory_space<vmem>>, vector<64x1xf32>,
    %c7 = arith.constant 7 : index
    %c0_134 = arith.constant 0 : index
    %c0_135 = arith.constant 0 : index
    %205 = vector.load %arg12[%c7, %c0_134, %c0_135] : memref<16x64x32xbf16, #tpu.memory_space<vmem>>, vector<1x64x32xbf16>
    %206 = vector.shape_cast %205 : vector<1x64x32xbf16> to vector<64x32xbf16>
    %cst_136 = arith.constant dense<0.000000e+00> : vector<64x1xf32>
    %207 = tpu.matmul %206, %147, %cst_136 {dimension_numbers = #tpu.dot_dimension_numbers<[1], [0], [0], [1], [0, 0, 1, 1], [], []>} : vector<64x32xbf16>, vector<32x1xbf16>, vector<64x1xf32> -> vector<64x1xf32>
    %208 = vector.extract_strided_slice %148 {offsets = [0, 7], sizes = [64, 1], strides = [1, 1]} : vector<64x16xf32> to vector<64x1xf32>
    %209 = arith.addf %207, %208 : vector<64x1xf32>
    %cst_137 = arith.constant 0.000000e+00 : f32
    %210 = vector.broadcast %cst_137 : f32 to vector<64x1xf32>
    %211 = arith.maximumf %209, %210 : vector<64x1xf32>
    %c0_138 = arith.constant 0 : index
    %c7_139 = arith.constant 7 : index
    %212 = vector.load %arg24[%c0_138, %c7_139] : memref<64x16xf32, #tpu.memory_space<vmem>>, vector<64x1xf32>
    tpu.vector_store %arg24[%c0_138, %c7_139], %211 {strides = array<i32>} : memref<64x16xf32, #tpu.memory_space<vmem>>, vector<64x1xf32>,
    %c8_140 = arith.constant 8 : index
    %c0_141 = arith.constant 0 : index
    %c0_142 = arith.constant 0 : index
    %213 = vector.load %arg12[%c8_140, %c0_141, %c0_142] : memref<16x64x32xbf16, #tpu.memory_space<vmem>>, vector<1x64x32xbf16>
    %214 = vector.shape_cast %213 : vector<1x64x32xbf16> to vector<64x32xbf16>
    %cst_143 = arith.constant dense<0.000000e+00> : vector<64x1xf32>
    %215 = tpu.matmul %214, %147, %cst_143 {dimension_numbers = #tpu.dot_dimension_numbers<[1], [0], [0], [1], [0, 0, 1, 1], [], []>} : vector<64x32xbf16>, vector<32x1xbf16>, vector<64x1xf32> -> vector<64x1xf32>
    %216 = vector.extract_strided_slice %148 {offsets = [0, 8], sizes = [64, 1], strides = [1, 1]} : vector<64x16xf32> to vector<64x1xf32>
    %217 = arith.addf %215, %216 : vector<64x1xf32>
    %cst_144 = arith.constant 0.000000e+00 : f32
    %218 = vector.broadcast %cst_144 : f32 to vector<64x1xf32>
    %219 = arith.maximumf %217, %218 : vector<64x1xf32>
    %c0_145 = arith.constant 0 : index
    %c8_146 = arith.constant 8 : index
    %220 = vector.load %arg24[%c0_145, %c8_146] : memref<64x16xf32, #tpu.memory_space<vmem>>, vector<64x1xf32>
    tpu.vector_store %arg24[%c0_145, %c8_146], %219 {strides = array<i32>} : memref<64x16xf32, #tpu.memory_space<vmem>>, vector<64x1xf32>,
    %c9_147 = arith.constant 9 : index
    %c0_148 = arith.constant 0 : index
    %c0_149 = arith.constant 0 : index
    %221 = vector.load %arg12[%c9_147, %c0_148, %c0_149] : memref<16x64x32xbf16, #tpu.memory_space<vmem>>, vector<1x64x32xbf16>
    %222 = vector.shape_cast %221 : vector<1x64x32xbf16> to vector<64x32xbf16>
    %cst_150 = arith.constant dense<0.000000e+00> : vector<64x1xf32>
    %223 = tpu.matmul %222, %147, %cst_150 {dimension_numbers = #tpu.dot_dimension_numbers<[1], [0], [0], [1], [0, 0, 1, 1], [], []>} : vector<64x32xbf16>, vector<32x1xbf16>, vector<64x1xf32> -> vector<64x1xf32>
    %224 = vector.extract_strided_slice %148 {offsets = [0, 9], sizes = [64, 1], strides = [1, 1]} : vector<64x16xf32> to vector<64x1xf32>
    %225 = arith.addf %223, %224 : vector<64x1xf32>
    %cst_151 = arith.constant 0.000000e+00 : f32
    %226 = vector.broadcast %cst_151 : f32 to vector<64x1xf32>
    %227 = arith.maximumf %225, %226 : vector<64x1xf32>
    %c0_152 = arith.constant 0 : index
    %c9_153 = arith.constant 9 : index
    %228 = vector.load %arg24[%c0_152, %c9_153] : memref<64x16xf32, #tpu.memory_space<vmem>>, vector<64x1xf32>
    tpu.vector_store %arg24[%c0_152, %c9_153], %227 {strides = array<i32>} : memref<64x16xf32, #tpu.memory_space<vmem>>, vector<64x1xf32>,
    %c10_154 = arith.constant 10 : index
    %c0_155 = arith.constant 0 : index
    %c0_156 = arith.constant 0 : index
    %229 = vector.load %arg12[%c10_154, %c0_155, %c0_156] : memref<16x64x32xbf16, #tpu.memory_space<vmem>>, vector<1x64x32xbf16>
    %230 = vector.shape_cast %229 : vector<1x64x32xbf16> to vector<64x32xbf16>
    %cst_157 = arith.constant dense<0.000000e+00> : vector<64x1xf32>
    %231 = tpu.matmul %230, %147, %cst_157 {dimension_numbers = #tpu.dot_dimension_numbers<[1], [0], [0], [1], [0, 0, 1, 1], [], []>} : vector<64x32xbf16>, vector<32x1xbf16>, vector<64x1xf32> -> vector<64x1xf32>
    %232 = vector.extract_strided_slice %148 {offsets = [0, 10], sizes = [64, 1], strides = [1, 1]} : vector<64x16xf32> to vector<64x1xf32>
    %233 = arith.addf %231, %232 : vector<64x1xf32>
    %cst_158 = arith.constant 0.000000e+00 : f32
    %234 = vector.broadcast %cst_158 : f32 to vector<64x1xf32>
    %235 = arith.maximumf %233, %234 : vector<64x1xf32>
    %c0_159 = arith.constant 0 : index
    %c10_160 = arith.constant 10 : index
    %236 = vector.load %arg24[%c0_159, %c10_160] : memref<64x16xf32, #tpu.memory_space<vmem>>, vector<64x1xf32>
    tpu.vector_store %arg24[%c0_159, %c10_160], %235 {strides = array<i32>} : memref<64x16xf32, #tpu.memory_space<vmem>>, vector<64x1xf32>,
    %c11 = arith.constant 11 : index
    %c0_161 = arith.constant 0 : index
    %c0_162 = arith.constant 0 : index
    %237 = vector.load %arg12[%c11, %c0_161, %c0_162] : memref<16x64x32xbf16, #tpu.memory_space<vmem>>, vector<1x64x32xbf16>
    %238 = vector.shape_cast %237 : vector<1x64x32xbf16> to vector<64x32xbf16>
    %cst_163 = arith.constant dense<0.000000e+00> : vector<64x1xf32>
    %239 = tpu.matmul %238, %147, %cst_163 {dimension_numbers = #tpu.dot_dimension_numbers<[1], [0], [0], [1], [0, 0, 1, 1], [], []>} : vector<64x32xbf16>, vector<32x1xbf16>, vector<64x1xf32> -> vector<64x1xf32>
    %240 = vector.extract_strided_slice %148 {offsets = [0, 11], sizes = [64, 1], strides = [1, 1]} : vector<64x16xf32> to vector<64x1xf32>
    %241 = arith.addf %239, %240 : vector<64x1xf32>
    %cst_164 = arith.constant 0.000000e+00 : f32
    %242 = vector.broadcast %cst_164 : f32 to vector<64x1xf32>
    %243 = arith.maximumf %241, %242 : vector<64x1xf32>
    %c0_165 = arith.constant 0 : index
    %c11_166 = arith.constant 11 : index
    %244 = vector.load %arg24[%c0_165, %c11_166] : memref<64x16xf32, #tpu.memory_space<vmem>>, vector<64x1xf32>
    tpu.vector_store %arg24[%c0_165, %c11_166], %243 {strides = array<i32>} : memref<64x16xf32, #tpu.memory_space<vmem>>, vector<64x1xf32>,
    %c12 = arith.constant 12 : index
    %c0_167 = arith.constant 0 : index
    %c0_168 = arith.constant 0 : index
    %245 = vector.load %arg12[%c12, %c0_167, %c0_168] : memref<16x64x32xbf16, #tpu.memory_space<vmem>>, vector<1x64x32xbf16>
    %246 = vector.shape_cast %245 : vector<1x64x32xbf16> to vector<64x32xbf16>
    %cst_169 = arith.constant dense<0.000000e+00> : vector<64x1xf32>
    %247 = tpu.matmul %246, %147, %cst_169 {dimension_numbers = #tpu.dot_dimension_numbers<[1], [0], [0], [1], [0, 0, 1, 1], [], []>} : vector<64x32xbf16>, vector<32x1xbf16>, vector<64x1xf32> -> vector<64x1xf32>
    %248 = vector.extract_strided_slice %148 {offsets = [0, 12], sizes = [64, 1], strides = [1, 1]} : vector<64x16xf32> to vector<64x1xf32>
    %249 = arith.addf %247, %248 : vector<64x1xf32>
    %cst_170 = arith.constant 0.000000e+00 : f32
    %250 = vector.broadcast %cst_170 : f32 to vector<64x1xf32>
    %251 = arith.maximumf %249, %250 : vector<64x1xf32>
    %c0_171 = arith.constant 0 : index
    %c12_172 = arith.constant 12 : index
    %252 = vector.load %arg24[%c0_171, %c12_172] : memref<64x16xf32, #tpu.memory_space<vmem>>, vector<64x1xf32>
    tpu.vector_store %arg24[%c0_171, %c12_172], %251 {strides = array<i32>} : memref<64x16xf32, #tpu.memory_space<vmem>>, vector<64x1xf32>,
    %c13 = arith.constant 13 : index
    %c0_173 = arith.constant 0 : index
    %c0_174 = arith.constant 0 : index
    %253 = vector.load %arg12[%c13, %c0_173, %c0_174] : memref<16x64x32xbf16, #tpu.memory_space<vmem>>, vector<1x64x32xbf16>
    %254 = vector.shape_cast %253 : vector<1x64x32xbf16> to vector<64x32xbf16>
    %cst_175 = arith.constant dense<0.000000e+00> : vector<64x1xf32>
    %255 = tpu.matmul %254, %147, %cst_175 {dimension_numbers = #tpu.dot_dimension_numbers<[1], [0], [0], [1], [0, 0, 1, 1], [], []>} : vector<64x32xbf16>, vector<32x1xbf16>, vector<64x1xf32> -> vector<64x1xf32>
    %256 = vector.extract_strided_slice %148 {offsets = [0, 13], sizes = [64, 1], strides = [1, 1]} : vector<64x16xf32> to vector<64x1xf32>
    %257 = arith.addf %255, %256 : vector<64x1xf32>
    %cst_176 = arith.constant 0.000000e+00 : f32
    %258 = vector.broadcast %cst_176 : f32 to vector<64x1xf32>
    %259 = arith.maximumf %257, %258 : vector<64x1xf32>
    %c0_177 = arith.constant 0 : index
    %c13_178 = arith.constant 13 : index
    %260 = vector.load %arg24[%c0_177, %c13_178] : memref<64x16xf32, #tpu.memory_space<vmem>>, vector<64x1xf32>
    tpu.vector_store %arg24[%c0_177, %c13_178], %259 {strides = array<i32>} : memref<64x16xf32, #tpu.memory_space<vmem>>, vector<64x1xf32>,
    %c14 = arith.constant 14 : index
    %c0_179 = arith.constant 0 : index
    %c0_180 = arith.constant 0 : index
    %261 = vector.load %arg12[%c14, %c0_179, %c0_180] : memref<16x64x32xbf16, #tpu.memory_space<vmem>>, vector<1x64x32xbf16>
    %262 = vector.shape_cast %261 : vector<1x64x32xbf16> to vector<64x32xbf16>
    %cst_181 = arith.constant dense<0.000000e+00> : vector<64x1xf32>
    %263 = tpu.matmul %262, %147, %cst_181 {dimension_numbers = #tpu.dot_dimension_numbers<[1], [0], [0], [1], [0, 0, 1, 1], [], []>} : vector<64x32xbf16>, vector<32x1xbf16>, vector<64x1xf32> -> vector<64x1xf32>
    %264 = vector.extract_strided_slice %148 {offsets = [0, 14], sizes = [64, 1], strides = [1, 1]} : vector<64x16xf32> to vector<64x1xf32>
    %265 = arith.addf %263, %264 : vector<64x1xf32>
    %cst_182 = arith.constant 0.000000e+00 : f32
    %266 = vector.broadcast %cst_182 : f32 to vector<64x1xf32>
    %267 = arith.maximumf %265, %266 : vector<64x1xf32>
    %c0_183 = arith.constant 0 : index
    %c14_184 = arith.constant 14 : index
    %268 = vector.load %arg24[%c0_183, %c14_184] : memref<64x16xf32, #tpu.memory_space<vmem>>, vector<64x1xf32>
    tpu.vector_store %arg24[%c0_183, %c14_184], %267 {strides = array<i32>} : memref<64x16xf32, #tpu.memory_space<vmem>>, vector<64x1xf32>,
    %c15 = arith.constant 15 : index
    %c0_185 = arith.constant 0 : index
    %c0_186 = arith.constant 0 : index
    %269 = vector.load %arg12[%c15, %c0_185, %c0_186] : memref<16x64x32xbf16, #tpu.memory_space<vmem>>, vector<1x64x32xbf16>
    %270 = vector.shape_cast %269 : vector<1x64x32xbf16> to vector<64x32xbf16>
    %cst_187 = arith.constant dense<0.000000e+00> : vector<64x1xf32>
    %271 = tpu.matmul %270, %147, %cst_187 {dimension_numbers = #tpu.dot_dimension_numbers<[1], [0], [0], [1], [0, 0, 1, 1], [], []>} : vector<64x32xbf16>, vector<32x1xbf16>, vector<64x1xf32> -> vector<64x1xf32>
    %272 = vector.extract_strided_slice %148 {offsets = [0, 15], sizes = [64, 1], strides = [1, 1]} : vector<64x16xf32> to vector<64x1xf32>
    %273 = arith.addf %271, %272 : vector<64x1xf32>
    %cst_188 = arith.constant 0.000000e+00 : f32
    %274 = vector.broadcast %cst_188 : f32 to vector<64x1xf32>
    %275 = arith.maximumf %273, %274 : vector<64x1xf32>
    %c0_189 = arith.constant 0 : index
    %c15_190 = arith.constant 15 : index
    %276 = vector.load %arg24[%c0_189, %c15_190] : memref<64x16xf32, #tpu.memory_space<vmem>>, vector<64x1xf32>
    tpu.vector_store %arg24[%c0_189, %c15_190], %275 {strides = array<i32>} : memref<64x16xf32, #tpu.memory_space<vmem>>, vector<64x1xf32>,
    %c0_191 = arith.constant 0 : index
    %c0_192 = arith.constant 0 : index
    %277 = vector.load %arg24[%c0_191, %c0_192] : memref<64x16xf32, #tpu.memory_space<vmem>>, vector<64x16xf32>
    %278 = arith.truncf %277 : vector<64x16xf32> to vector<64x16xbf16>
    %c0_193 = arith.constant 0 : index
    %c0_194 = arith.constant 0 : index
    %279 = vector.load %arg14[%c0_193, %c0_194] : memref<16x64xbf16, #tpu.memory_space<vmem>>, vector<16x64xbf16>
    %cst_195 = arith.constant dense<0.000000e+00> : vector<64x64xf32>
    %280 = tpu.matmul %278, %279, %cst_195 {dimension_numbers = #tpu.dot_dimension_numbers<[1], [0], [0], [1], [0, 0, 1, 1], [], []>} : vector<64x16xbf16>, vector<16x64xbf16>, vector<64x64xf32> -> vector<64x64xf32>
    %cst_196 = arith.constant 0.000000e+00 : bf16
    %281 = vector.broadcast %cst_196 : bf16 to vector<64x9xbf16>
    %c0_197 = arith.constant 0 : index
    %c0_198 = arith.constant 0 : index
    %282 = vector.load %arg22[%c0_197, %c0_198] : memref<64x290xbf16, #tpu.memory_space<vmem>>, vector<64x9xbf16>
    tpu.vector_store %arg22[%c0_197, %c0_198], %281 {strides = array<i32>} : memref<64x290xbf16, #tpu.memory_space<vmem>>, vector<64x9xbf16>,
    %c0_199 = arith.constant 0 : index
    %c73_200 = arith.constant 73 : index
    %283 = vector.load %arg22[%c0_199, %c73_200] : memref<64x290xbf16, #tpu.memory_space<vmem>>, vector<64x9xbf16>
    tpu.vector_store %arg22[%c0_199, %c73_200], %281 {strides = array<i32>} : memref<64x290xbf16, #tpu.memory_space<vmem>>, vector<64x9xbf16>,
    %284 = arith.truncf %280 : vector<64x64xf32> to vector<64x64xbf16>
    %c0_201 = arith.constant 0 : index
    %c9_202 = arith.constant 9 : index
    %285 = vector.load %arg22[%c0_201, %c9_202] : memref<64x290xbf16, #tpu.memory_space<vmem>>, vector<64x64xbf16>
    tpu.vector_store %arg22[%c0_201, %c9_202], %284 {strides = array<i32>} : memref<64x290xbf16, #tpu.memory_space<vmem>>, vector<64x64xbf16>,
    %c0_203 = arith.constant 0 : index
    %c0_204 = arith.constant 0 : index
    %286 = vector.load %arg22[%c0_203, %c0_204] : memref<64x290xbf16, #tpu.memory_space<vmem>>, vector<64x64xbf16>
    %287 = vector.extract_strided_slice %1 {offsets = [0, 0], sizes = [1, 64], strides = [1, 1]} : vector<9x64xbf16> to vector<1x64xbf16>
    %288 = vector.broadcast %287 : vector<1x64xbf16> to vector<64x64xbf16>
    %289 = arith.mulf %286, %288 : vector<64x64xbf16>
    %c0_205 = arith.constant 0 : index
    %c1_206 = arith.constant 1 : index
    %290 = vector.load %arg22[%c0_205, %c1_206] : memref<64x290xbf16, #tpu.memory_space<vmem>>, vector<64x64xbf16>
    %291 = vector.extract_strided_slice %1 {offsets = [1, 0], sizes = [1, 64], strides = [1, 1]} : vector<9x64xbf16> to vector<1x64xbf16>
    %292 = vector.broadcast %291 : vector<1x64xbf16> to vector<64x64xbf16>
    %293 = arith.mulf %290, %292 : vector<64x64xbf16>
    %c0_207 = arith.constant 0 : index
    %c2_208 = arith.constant 2 : index
    %294 = vector.load %arg22[%c0_207, %c2_208] : memref<64x290xbf16, #tpu.memory_space<vmem>>, vector<64x64xbf16>
    %295 = vector.extract_strided_slice %1 {offsets = [2, 0], sizes = [1, 64], strides = [1, 1]} : vector<9x64xbf16> to vector<1x64xbf16>
    %296 = vector.broadcast %295 : vector<1x64xbf16> to vector<64x64xbf16>
    %297 = arith.mulf %294, %296 : vector<64x64xbf16>
    %c0_209 = arith.constant 0 : index
    %c8_210 = arith.constant 8 : index
    %298 = vector.load %arg22[%c0_209, %c8_210] : memref<64x290xbf16, #tpu.memory_space<vmem>>, vector<64x64xbf16>
    %299 = vector.extract_strided_slice %1 {offsets = [3, 0], sizes = [1, 64], strides = [1, 1]} : vector<9x64xbf16> to vector<1x64xbf16>
    %300 = vector.broadcast %299 : vector<1x64xbf16> to vector<64x64xbf16>
    %301 = arith.mulf %298, %300 : vector<64x64xbf16>
    %c0_211 = arith.constant 0 : index
    %c9_212 = arith.constant 9 : index
    %302 = vector.load %arg22[%c0_211, %c9_212] : memref<64x290xbf16, #tpu.memory_space<vmem>>, vector<64x64xbf16>
    %303 = vector.extract_strided_slice %1 {offsets = [4, 0], sizes = [1, 64], strides = [1, 1]} : vector<9x64xbf16> to vector<1x64xbf16>
    %304 = vector.broadcast %303 : vector<1x64xbf16> to vector<64x64xbf16>
    %305 = arith.mulf %302, %304 : vector<64x64xbf16>
    %c0_213 = arith.constant 0 : index
    %c10_214 = arith.constant 10 : index
    %306 = vector.load %arg22[%c0_213, %c10_214] : memref<64x290xbf16, #tpu.memory_space<vmem>>, vector<64x64xbf16>
    %307 = vector.extract_strided_slice %1 {offsets = [5, 0], sizes = [1, 64], strides = [1, 1]} : vector<9x64xbf16> to vector<1x64xbf16>
    %308 = vector.broadcast %307 : vector<1x64xbf16> to vector<64x64xbf16>
    %309 = arith.mulf %306, %308 : vector<64x64xbf16>
    %c0_215 = arith.constant 0 : index
    %c16_216 = arith.constant 16 : index
    %310 = vector.load %arg22[%c0_215, %c16_216] : memref<64x290xbf16, #tpu.memory_space<vmem>>, vector<64x64xbf16>
    %311 = vector.extract_strided_slice %1 {offsets = [6, 0], sizes = [1, 64], strides = [1, 1]} : vector<9x64xbf16> to vector<1x64xbf16>
    %312 = vector.broadcast %311 : vector<1x64xbf16> to vector<64x64xbf16>
    %313 = arith.mulf %310, %312 : vector<64x64xbf16>
    %c0_217 = arith.constant 0 : index
    %c17_218 = arith.constant 17 : index
    %314 = vector.load %arg22[%c0_217, %c17_218] : memref<64x290xbf16, #tpu.memory_space<vmem>>, vector<64x64xbf16>
    %315 = vector.extract_strided_slice %1 {offsets = [7, 0], sizes = [1, 64], strides = [1, 1]} : vector<9x64xbf16> to vector<1x64xbf16>
    %316 = vector.broadcast %315 : vector<1x64xbf16> to vector<64x64xbf16>
    %317 = arith.mulf %314, %316 : vector<64x64xbf16>
    %c0_219 = arith.constant 0 : index
    %c18_220 = arith.constant 18 : index
    %318 = vector.load %arg22[%c0_219, %c18_220] : memref<64x290xbf16, #tpu.memory_space<vmem>>, vector<64x64xbf16>
    %319 = vector.extract_strided_slice %1 {offsets = [8, 0], sizes = [1, 64], strides = [1, 1]} : vector<9x64xbf16> to vector<1x64xbf16>
    %320 = vector.broadcast %319 : vector<1x64xbf16> to vector<64x64xbf16>
    %321 = arith.mulf %318, %320 : vector<64x64xbf16>
    %322 = tpu.concatenate %289, %293, %297, %301, %305, %309, %313, %317, %321 in 0 : vector<64x64xbf16>, vector<64x64xbf16>, vector<64x64xbf16>, vector<64x64xbf16>, vector<64x64xbf16>, vector<64x64xbf16>, vector<64x64xbf16>, vector<64x64xbf16>, vector<64x64xbf16> -> vector<576x64xbf16>
    %c0_221 = arith.constant 0 : index
    %c0_222 = arith.constant 0 : index
    %323 = vector.load %arg15[%c0_221, %c0_222] : memref<32x576xbf16, #tpu.memory_space<vmem>>, vector<32x576xbf16>
    %cst_223 = arith.constant dense<0.000000e+00> : vector<32x64xf32>
    %324 = tpu.matmul %323, %322, %cst_223 {dimension_numbers = #tpu.dot_dimension_numbers<[1], [0], [0], [1], [0, 0, 1, 1], [], []>} : vector<32x576xbf16>, vector<576x64xbf16>, vector<32x64xf32> -> vector<32x64xf32>
    %c0_224 = arith.constant 0 : index
    %c0_225 = arith.constant 0 : index
    %325 = vector.load %arg16[%c0_224, %c0_225] : memref<32x1xf32, #tpu.memory_space<vmem>>, vector<32x1xf32>
    %326 = vector.broadcast %325 : vector<32x1xf32> to vector<32x64xf32>
    %327 = arith.addf %324, %326 : vector<32x64xf32>
    %cst_226 = arith.constant 0.000000e+00 : f32
    %328 = vector.broadcast %cst_226 : f32 to vector<32x64xf32>
    %329 = arith.maximumf %327, %328 : vector<32x64xf32>
    %330 = arith.truncf %329 : vector<32x64xf32> to vector<32x64xbf16>
    %c0_227 = arith.constant 0 : index
    %c0_228 = arith.constant 0 : index
    %331 = vector.load %arg17[%c0_227, %c0_228] : memref<64x256xbf16, #tpu.memory_space<vmem>>, vector<64x256xbf16>
    %cst_229 = arith.constant dense<0.000000e+00> : vector<32x256xf32>
    %332 = tpu.matmul %330, %331, %cst_229 {dimension_numbers = #tpu.dot_dimension_numbers<[1], [0], [0], [1], [0, 0, 1, 1], [], []>} : vector<32x64xbf16>, vector<64x256xbf16>, vector<32x256xf32> -> vector<32x256xf32>
    %cst_230 = arith.constant 0.000000e+00 : bf16
    %333 = vector.broadcast %cst_230 : bf16 to vector<32x17xbf16>
    %c0_231 = arith.constant 0 : index
    %c0_232 = arith.constant 0 : index
    %334 = vector.load %arg22[%c0_231, %c0_232] : memref<64x290xbf16, #tpu.memory_space<vmem>>, vector<32x17xbf16>
    tpu.vector_store %arg22[%c0_231, %c0_232], %333 {strides = array<i32>} : memref<64x290xbf16, #tpu.memory_space<vmem>>, vector<32x17xbf16>,
    %c0_233 = arith.constant 0 : index
    %c273_234 = arith.constant 273 : index
    %335 = vector.load %arg22[%c0_233, %c273_234] : memref<64x290xbf16, #tpu.memory_space<vmem>>, vector<32x17xbf16>
    tpu.vector_store %arg22[%c0_233, %c273_234], %333 {strides = array<i32>} : memref<64x290xbf16, #tpu.memory_space<vmem>>, vector<32x17xbf16>,
    %336 = arith.truncf %332 : vector<32x256xf32> to vector<32x256xbf16>
    %c0_235 = arith.constant 0 : index
    %c17_236 = arith.constant 17 : index
    %337 = vector.load %arg22[%c0_235, %c17_236] : memref<64x290xbf16, #tpu.memory_space<vmem>>, vector<32x256xbf16>
    tpu.vector_store %arg22[%c0_235, %c17_236], %336 {strides = array<i32>} : memref<64x290xbf16, #tpu.memory_space<vmem>>, vector<32x256xbf16>,
    %c0_237 = arith.constant 0 : index
    %c0_238 = arith.constant 0 : index
    %338 = vector.load %arg22[%c0_237, %c0_238] : memref<64x290xbf16, #tpu.memory_space<vmem>>, vector<32x256xbf16>
    %339 = vector.extract_strided_slice %0 {offsets = [0, 0], sizes = [1, 256], strides = [1, 1]} : vector<9x256xbf16> to vector<1x256xbf16>
    %340 = vector.broadcast %339 : vector<1x256xbf16> to vector<32x256xbf16>
    %341 = arith.mulf %338, %340 : vector<32x256xbf16>
    %c0_239 = arith.constant 0 : index
    %c1_240 = arith.constant 1 : index
    %342 = vector.load %arg22[%c0_239, %c1_240] : memref<64x290xbf16, #tpu.memory_space<vmem>>, vector<32x256xbf16>
    %343 = vector.extract_strided_slice %0 {offsets = [1, 0], sizes = [1, 256], strides = [1, 1]} : vector<9x256xbf16> to vector<1x256xbf16>
    %344 = vector.broadcast %343 : vector<1x256xbf16> to vector<32x256xbf16>
    %345 = arith.mulf %342, %344 : vector<32x256xbf16>
    %c0_241 = arith.constant 0 : index
    %c2_242 = arith.constant 2 : index
    %346 = vector.load %arg22[%c0_241, %c2_242] : memref<64x290xbf16, #tpu.memory_space<vmem>>, vector<32x256xbf16>
    %347 = vector.extract_strided_slice %0 {offsets = [2, 0], sizes = [1, 256], strides = [1, 1]} : vector<9x256xbf16> to vector<1x256xbf16>
    %348 = vector.broadcast %347 : vector<1x256xbf16> to vector<32x256xbf16>
    %349 = arith.mulf %346, %348 : vector<32x256xbf16>
    %c0_243 = arith.constant 0 : index
    %c16_244 = arith.constant 16 : index
    %350 = vector.load %arg22[%c0_243, %c16_244] : memref<64x290xbf16, #tpu.memory_space<vmem>>, vector<32x256xbf16>
    %351 = vector.extract_strided_slice %0 {offsets = [3, 0], sizes = [1, 256], strides = [1, 1]} : vector<9x256xbf16> to vector<1x256xbf16>
    %352 = vector.broadcast %351 : vector<1x256xbf16> to vector<32x256xbf16>
    %353 = arith.mulf %350, %352 : vector<32x256xbf16>
    %c0_245 = arith.constant 0 : index
    %c17_246 = arith.constant 17 : index
    %354 = vector.load %arg22[%c0_245, %c17_246] : memref<64x290xbf16, #tpu.memory_space<vmem>>, vector<32x256xbf16>
    %355 = vector.extract_strided_slice %0 {offsets = [4, 0], sizes = [1, 256], strides = [1, 1]} : vector<9x256xbf16> to vector<1x256xbf16>
    %356 = vector.broadcast %355 : vector<1x256xbf16> to vector<32x256xbf16>
    %357 = arith.mulf %354, %356 : vector<32x256xbf16>
    %c0_247 = arith.constant 0 : index
    %c18_248 = arith.constant 18 : index
    %358 = vector.load %arg22[%c0_247, %c18_248] : memref<64x290xbf16, #tpu.memory_space<vmem>>, vector<32x256xbf16>
    %359 = vector.extract_strided_slice %0 {offsets = [5, 0], sizes = [1, 256], strides = [1, 1]} : vector<9x256xbf16> to vector<1x256xbf16>
    %360 = vector.broadcast %359 : vector<1x256xbf16> to vector<32x256xbf16>
    %361 = arith.mulf %358, %360 : vector<32x256xbf16>
    %c0_249 = arith.constant 0 : index
    %c32_250 = arith.constant 32 : index
    %362 = vector.load %arg22[%c0_249, %c32_250] : memref<64x290xbf16, #tpu.memory_space<vmem>>, vector<32x256xbf16>
    %363 = vector.extract_strided_slice %0 {offsets = [6, 0], sizes = [1, 256], strides = [1, 1]} : vector<9x256xbf16> to vector<1x256xbf16>
    %364 = vector.broadcast %363 : vector<1x256xbf16> to vector<32x256xbf16>
    %365 = arith.mulf %362, %364 : vector<32x256xbf16>
    %c0_251 = arith.constant 0 : index
    %c33_252 = arith.constant 33 : index
    %366 = vector.load %arg22[%c0_251, %c33_252] : memref<64x290xbf16, #tpu.memory_space<vmem>>, vector<32x256xbf16>
    %367 = vector.extract_strided_slice %0 {offsets = [7, 0], sizes = [1, 256], strides = [1, 1]} : vector<9x256xbf16> to vector<1x256xbf16>
    %368 = vector.broadcast %367 : vector<1x256xbf16> to vector<32x256xbf16>
    %369 = arith.mulf %366, %368 : vector<32x256xbf16>
    %c0_253 = arith.constant 0 : index
    %c34_254 = arith.constant 34 : index
    %370 = vector.load %arg22[%c0_253, %c34_254] : memref<64x290xbf16, #tpu.memory_space<vmem>>, vector<32x256xbf16>
    %371 = vector.extract_strided_slice %0 {offsets = [8, 0], sizes = [1, 256], strides = [1, 1]} : vector<9x256xbf16> to vector<1x256xbf16>
    %372 = vector.broadcast %371 : vector<1x256xbf16> to vector<32x256xbf16>
    %373 = arith.mulf %370, %372 : vector<32x256xbf16>
    %374 = tpu.concatenate %341, %345, %349, %353, %357, %361, %365, %369, %373 in 0 : vector<32x256xbf16>, vector<32x256xbf16>, vector<32x256xbf16>, vector<32x256xbf16>, vector<32x256xbf16>, vector<32x256xbf16>, vector<32x256xbf16>, vector<32x256xbf16>, vector<32x256xbf16> -> vector<288x256xbf16>
    %c0_255 = arith.constant 0 : index
    %c0_256 = arith.constant 0 : index
    %375 = vector.load %arg18[%c0_255, %c0_256] : memref<4x288xbf16, #tpu.memory_space<vmem>>, vector<4x288xbf16>
    %cst_257 = arith.constant dense<0.000000e+00> : vector<4x256xf32>
    %376 = tpu.matmul %375, %374, %cst_257 {dimension_numbers = #tpu.dot_dimension_numbers<[1], [0], [0], [1], [0, 0, 1, 1], [], []>} : vector<4x288xbf16>, vector<288x256xbf16>, vector<4x256xf32> -> vector<4x256xf32>
    %c0_258 = arith.constant 0 : index
    %c0_259 = arith.constant 0 : index
    %377 = vector.load %arg19[%c0_258, %c0_259] : memref<4x1xf32, #tpu.memory_space<vmem>>, vector<4x1xf32>
    %378 = vector.broadcast %377 : vector<4x1xf32> to vector<4x256xf32>
    %379 = arith.addf %376, %378 : vector<4x256xf32>
    %380 = math.tanh %379 : vector<4x256xf32>
    %c0_260 = arith.constant 0 : index
    %c0_261 = arith.constant 0 : index
    %381 = vector.load %arg21[%c0_260, %c0_261] : memref<4x256xf32, #tpu.memory_space<vmem>>, vector<4x256xf32>
    tpu.vector_store %arg21[%c0_260, %c0_261], %380 {strides = array<i32>} : memref<4x256xf32, #tpu.memory_space<vmem>>, vector<4x256xf32>,
    return
  }
  func.func @transform_0(%arg0: i32) -> (i32, i32) {
    %c0_i32 = arith.constant 0 : i32
    %c0_i32_0 = arith.constant 0 : i32
    return %c0_i32, %arg0 : i32, i32
  }
  func.func @transform_1(%arg0: i32) -> (i32, i32) {
    %c0_i32 = arith.constant 0 : i32
    %c0_i32_0 = arith.constant 0 : i32
    %c0_i32_1 = arith.constant 0 : i32
    return %c0_i32, %c0_i32_0 : i32, i32
  }
  func.func @transform_2(%arg0: i32) -> (i32, i32) {
    %c0_i32 = arith.constant 0 : i32
    %c0_i32_0 = arith.constant 0 : i32
    %c0_i32_1 = arith.constant 0 : i32
    return %c0_i32, %c0_i32_0 : i32, i32
  }
  func.func @transform_3(%arg0: i32) -> (i32, i32) {
    %c0_i32 = arith.constant 0 : i32
    %c0_i32_0 = arith.constant 0 : i32
    %c0_i32_1 = arith.constant 0 : i32
    return %c0_i32, %c0_i32_0 : i32, i32
  }
  func.func @transform_4(%arg0: i32) -> (i32, i32) {
    %c0_i32 = arith.constant 0 : i32
    %c0_i32_0 = arith.constant 0 : i32
    %c0_i32_1 = arith.constant 0 : i32
    return %c0_i32, %c0_i32_0 : i32, i32
  }
  func.func @transform_5(%arg0: i32) -> (i32, i32) {
    %c0_i32 = arith.constant 0 : i32
    %c0_i32_0 = arith.constant 0 : i32
    %c0_i32_1 = arith.constant 0 : i32
    return %c0_i32, %c0_i32_0 : i32, i32
  }
  func.func @transform_6(%arg0: i32) -> (i32, i32) {
    %c0_i32 = arith.constant 0 : i32
    %c0_i32_0 = arith.constant 0 : i32
    %c0_i32_1 = arith.constant 0 : i32
    return %c0_i32, %c0_i32_0 : i32, i32
  }
  func.func @transform_7(%arg0: i32) -> (i32, i32) {
    %c0_i32 = arith.constant 0 : i32
    %c0_i32_0 = arith.constant 0 : i32
    %c0_i32_1 = arith.constant 0 : i32
    return %c0_i32, %c0_i32_0 : i32, i32
  }
  func.func @transform_8(%arg0: i32) -> (i32, i32) {
    %c0_i32 = arith.constant 0 : i32
    %c0_i32_0 = arith.constant 0 : i32
    %c0_i32_1 = arith.constant 0 : i32
    return %c0_i32, %c0_i32_0 : i32, i32
  }
  func.func @transform_9(%arg0: i32) -> (i32, i32) {
    %c0_i32 = arith.constant 0 : i32
    %c0_i32_0 = arith.constant 0 : i32
    %c0_i32_1 = arith.constant 0 : i32
    return %c0_i32, %c0_i32_0 : i32, i32
  }
  func.func @transform_10(%arg0: i32) -> (i32, i32) {
    %c0_i32 = arith.constant 0 : i32
    %c0_i32_0 = arith.constant 0 : i32
    %c0_i32_1 = arith.constant 0 : i32
    return %c0_i32, %c0_i32_0 : i32, i32
  }
  func.func @transform_11(%arg0: i32) -> (i32, i32, i32) {
    %c0_i32 = arith.constant 0 : i32
    %c0_i32_0 = arith.constant 0 : i32
    %c0_i32_1 = arith.constant 0 : i32
    %c0_i32_2 = arith.constant 0 : i32
    return %c0_i32, %c0_i32_0, %c0_i32_1 : i32, i32, i32
  }
  func.func @transform_12(%arg0: i32) -> (i32, i32) {
    %c0_i32 = arith.constant 0 : i32
    %c0_i32_0 = arith.constant 0 : i32
    %c0_i32_1 = arith.constant 0 : i32
    return %c0_i32, %c0_i32_0 : i32, i32
  }
  func.func @transform_13(%arg0: i32) -> (i32, i32) {
    %c0_i32 = arith.constant 0 : i32
    %c0_i32_0 = arith.constant 0 : i32
    %c0_i32_1 = arith.constant 0 : i32
    return %c0_i32, %c0_i32_0 : i32, i32
  }
  func.func @transform_14(%arg0: i32) -> (i32, i32) {
    %c0_i32 = arith.constant 0 : i32
    %c0_i32_0 = arith.constant 0 : i32
    %c0_i32_1 = arith.constant 0 : i32
    return %c0_i32, %c0_i32_0 : i32, i32
  }
  func.func @transform_15(%arg0: i32) -> (i32, i32) {
    %c0_i32 = arith.constant 0 : i32
    %c0_i32_0 = arith.constant 0 : i32
    %c0_i32_1 = arith.constant 0 : i32
    return %c0_i32, %c0_i32_0 : i32, i32
  }
  func.func @transform_16(%arg0: i32) -> (i32, i32) {
    %c0_i32 = arith.constant 0 : i32
    %c0_i32_0 = arith.constant 0 : i32
    %c0_i32_1 = arith.constant 0 : i32
    return %c0_i32, %c0_i32_0 : i32, i32
  }
  func.func @transform_17(%arg0: i32) -> (i32, i32) {
    %c0_i32 = arith.constant 0 : i32
    %c0_i32_0 = arith.constant 0 : i32
    %c0_i32_1 = arith.constant 0 : i32
    return %c0_i32, %c0_i32_0 : i32, i32
  }
  func.func @transform_18(%arg0: i32) -> (i32, i32) {
    %c0_i32 = arith.constant 0 : i32
    %c0_i32_0 = arith.constant 0 : i32
    %c0_i32_1 = arith.constant 0 : i32
    return %c0_i32, %c0_i32_0 : i32, i32
  }
  func.func @transform_19(%arg0: i32) -> (i32, i32, i32) {
    %c0_i32 = arith.constant 0 : i32
    %c0_i32_0 = arith.constant 0 : i32
    %c0_i32_1 = arith.constant 0 : i32
    return %arg0, %c0_i32, %c0_i32_0 : i32, i32, i32
  }
  func.func @transform_20(%arg0: i32) -> (i32, i32) {
    %c0_i32 = arith.constant 0 : i32
    %c0_i32_0 = arith.constant 0 : i32
    return %c0_i32, %arg0 : i32, i32
  }
}

</mosaic_0001>

<llo_original>
// kernel: generator_forward.1
$region0: #{generator_forward.1}
  #allocation0 [shape = 'u32[]', space=smem, size = 0x4, offset = 0x4, fixed_abs, tag = 'smem constant byte address 0x4 - core index']
  #allocation1 [shape = 'u32[72,128]{1,0:T(1,128)}', space=vmem, size = 0x9000, scoped, tag = 'internal scratch']
  #allocation2 [shape = 'bf16[64,290]{1,0:T(8,128)(2,1)}', space=vmem, size = 0xc000, scoped, tag = 'scratch operand']
  #allocation3 [shape = 'f32[512,1]{1,0:T(8,128)}', space=vmem, size = 0x40000, scoped, tag = 'scratch operand']
  #allocation4 [shape = 'f32[64,16]{1,0:T(8,128)}', space=vmem, size = 0x8000, scoped, tag = 'scratch operand']
  %s0 = inlined_call_operand.vmem [shape: bf16[4,512], index: 0, kind: input, shape index: {}]
  %s1 = inlined_call_operand.vmem [shape: bf16[9,256], index: 1, kind: input, shape index: {}]
  %s2 = inlined_call_operand.vmem [shape: bf16[9,64], index: 2, kind: input, shape index: {}]
  %s3 = inlined_call_operand.vmem [shape: bf16[16,36], index: 3, kind: input, shape index: {}]
  %s4 = inlined_call_operand.vmem [shape: f32[16,1], index: 4, kind: input, shape index: {}]
  %s5 = inlined_call_operand.vmem [shape: bf16[256,64], index: 5, kind: input, shape index: {}]
  %s6 = inlined_call_operand.vmem [shape: bf16[32,144], index: 6, kind: input, shape index: {}]
  %s7 = inlined_call_operand.vmem [shape: f32[32,1], index: 7, kind: input, shape index: {}]
  %s8 = inlined_call_operand.vmem [shape: bf16[64,16], index: 8, kind: input, shape index: {}]
  %s9 = inlined_call_operand.vmem [shape: bf16[32,512], index: 9, kind: input, shape index: {}]
  %s10 = inlined_call_operand.vmem [shape: f32[32,1], index: 10, kind: input, shape index: {}]
  %s11 = inlined_call_operand.vmem [shape: bf16[16,64,32], index: 11, kind: input, shape index: {}]
  %s12 = inlined_call_operand.vmem [shape: f32[64,16], index: 12, kind: input, shape index: {}]
  %s13 = inlined_call_operand.vmem [shape: bf16[16,64], index: 13, kind: input, shape index: {}]
  %s14 = inlined_call_operand.vmem [shape: bf16[32,576], index: 14, kind: input, shape index: {}]
  %s15 = inlined_call_operand.vmem [shape: f32[32,1], index: 15, kind: input, shape index: {}]
  %s16 = inlined_call_operand.vmem [shape: bf16[64,256], index: 16, kind: input, shape index: {}]
  %s17 = inlined_call_operand.vmem [shape: bf16[4,288], index: 17, kind: input, shape index: {}]
  %s18 = inlined_call_operand.vmem [shape: f32[4,1], index: 18, kind: input, shape index: {}]
  %s19 = inlined_call_operand.vmem [shape: f32[2,32,1], index: 19, kind: output, shape index: {0}]
  %s20 = inlined_call_operand.vmem [shape: f32[4,512], index: 20, kind: output, shape index: {1}]
  %21 = xla_tuple %s19, %s20
  %s22 = sld [smem:[#allocation0]]
  $region117: #{generator_forward.1} parent=0
    _
  %s24 = ssub.s32 1, %s22
  %s25 = scalar_select 0, %s24, %s22
  loop: start=0, step=1, limit=4
  $region2: #{generator_forward.1} parent=0 // loop_pre_header
    _
  $region3: #{generator_forward.1} parent=0 // loop_header
    %s27 = sphi 0, %s31
    %p28 = scmp.ge.s32.totalorder %s27, 4
    %s37 = sphi 0, %s39
    %s40 = sphi 0, %s37
    %s41 = sphi 0, %s40
    %s57 = sphi 0, %s41
    %s61 = sphi 0, %s61
    %s63 = sphi 0, %s61
    %s64 = sphi 0, %s63
    %s78 = sphi 0, %s64
    %s82 = sphi 0, %s82
    %s84 = sphi 0, %s82
    %s85 = sphi 0, %s84
    %s99 = sphi 0, %s85
    %s103 = sphi 0, %s103
    %s105 = sphi 0, %s103
    %s106 = sphi 0, %s105
    %s120 = sphi 0, %s106
    %s124 = sphi 0, %s124
    %s126 = sphi 0, %s124
    %s127 = sphi 0, %s126
    %s141 = sphi 0, %s127
    %s145 = sphi 0, %s145
    %s147 = sphi 0, %s145
    %s148 = sphi 0, %s147
    %s162 = sphi 0, %s148
    %s166 = sphi 0, %s166
    %s168 = sphi 0, %s166
    %s169 = sphi 0, %s168
    %s183 = sphi 0, %s169
    %s187 = sphi 0, %s187
    %s189 = sphi 0, %s187
    %s190 = sphi 0, %s189
    %s204 = sphi 0, %s190
    %s208 = sphi 0, %s208
    %s210 = sphi 0, %s208
    %s211 = sphi 0, %s210
    %s225 = sphi 0, %s211
    %s229 = sphi 0, %s229
    %s231 = sphi 0, %s229
    %s232 = sphi 0, %s231
    %s246 = sphi 0, %s232
    %s250 = sphi 0, %s250
    %s252 = sphi 0, %s250
    %s253 = sphi 0, %s252
    %s267 = sphi 0, %s253
    %s271 = sphi 0, %s271
    %s273 = sphi 0, %s271
    %s274 = sphi 0, %s273
    %s288 = sphi 0, %s274
    %s292 = sphi 0, %s292
    %s294 = sphi 0, %s292
    %s295 = sphi 0, %s294
    %s309 = sphi 0, %s295
    %s313 = sphi 0, %s313
    %s315 = sphi 0, %s313
    %s316 = sphi 0, %s315
    %s330 = sphi 0, %s316
    %s334 = sphi 0, %s334
    %s336 = sphi 0, %s334
    %s337 = sphi 0, %s336
    %s351 = sphi 0, %s337
    %s355 = sphi 0, %s355
    %s357 = sphi 0, %s355
    %s358 = sphi 0, %s357
    %s372 = sphi 0, %s358
    %s376 = sphi 0, %s376
    %s378 = sphi 0, %s376
    %s379 = sphi 0, %s378
    %s393 = sphi 0, %s379
    %s397 = sphi 0, %s397
    %s399 = sphi 0, %s397
    %s400 = sphi 0, %s399
    %s414 = sphi 0, %s400
    %s418 = sphi 0, %s418
    %s420 = sphi 0, %s418
    %s421 = sphi 0, %s420
    %s435 = sphi 0, %s421
    %s441 = sphi 0, %s443
    %s444 = sphi 0, %s441
    %s445 = sphi 0, %s444
    %s461 = sphi 0, %s445
    %s467 = sphi 0, %s469
    %s470 = sphi 0, %s467
    %s471 = sphi 0, %s470
    %s487 = sphi 0, %s471
  $region4: #{generator_forward.1} parent=0 // loop_header_branch
    %30 = sbr.rel (%p28) target = $region8
  $region5: #{generator_forward.1} parent=0 // loop_body
    %s32 = ssub.s32 %s27, 1
    %s33 = ssub.s32 %s27, 2
    %s34 = sadd.s32 %s27, 1
    %s35 = ssub.s32 %s27, %s34
    %p36 = scmp.eq.s32.totalorder %s35, 0
    %s38 = sadd.s32 %s37, 1
    %s39 = scalar_select %p36, %s37, %s38
    %p42 = pneg %p36
    %p43 = scmp.eq.s32.totalorder %s27, 1
    %p44 = por %p42, %p43
    %p45 = scmp.ne.s32.totalorder %s37, %s40
    %p46 = scmp.eq.s32.totalorder %s27, 0
    %p47 = por %p45, %p46
    %p48 = scmp.ne.s32.totalorder %s37, %s40
    %p49 = scmp.eq.s32.totalorder %s32, 1
    %p50 = por %p48, %p49
    %p51 = scmp.ne.s32.totalorder %s40, %s41
    %p52 = scmp.eq.s32.totalorder %s32, 0
    %p53 = por %p51, %p52
    %p54 = scmp.ne.s32.totalorder %s40, %s41
    %p55 = scmp.eq.s32.totalorder %s33, 1
    %p56 = por %p54, %p55
    %p58 = scmp.ne.s32.totalorder %s41, %s57
    %p59 = scmp.eq.s32.totalorder %s33, 0
    %p60 = por %p58, %p59
    %s62 = sadd.s32 %s61, 1
    %p65 = scmp.eq.s32.totalorder %s27, 1
    %p66 = scmp.ne.s32.totalorder %s61, %s63
    %p67 = scmp.eq.s32.totalorder %s27, 0
    %p68 = por %p66, %p67
    %p69 = scmp.ne.s32.totalorder %s61, %s63
    %p70 = scmp.eq.s32.totalorder %s32, 1
    %p71 = por %p69, %p70
    %p72 = scmp.ne.s32.totalorder %s63, %s64
    %p73 = scmp.eq.s32.totalorder %s32, 0
    %p74 = por %p72, %p73
    %p75 = scmp.ne.s32.totalorder %s63, %s64
    %p76 = scmp.eq.s32.totalorder %s33, 1
    %p77 = por %p75, %p76
    %p79 = scmp.ne.s32.totalorder %s64, %s78
    %p80 = scmp.eq.s32.totalorder %s33, 0
    %p81 = por %p79, %p80
    %s83 = sadd.s32 %s82, 1
    %p86 = scmp.eq.s32.totalorder %s27, 1
    %p87 = scmp.ne.s32.totalorder %s82, %s84
    %p88 = scmp.eq.s32.totalorder %s27, 0
    %p89 = por %p87, %p88
    %p90 = scmp.ne.s32.totalorder %s82, %s84
    %p91 = scmp.eq.s32.totalorder %s32, 1
    %p92 = por %p90, %p91
    %p93 = scmp.ne.s32.totalorder %s84, %s85
    %p94 = scmp.eq.s32.totalorder %s32, 0
    %p95 = por %p93, %p94
    %p96 = scmp.ne.s32.totalorder %s84, %s85
    %p97 = scmp.eq.s32.totalorder %s33, 1
    %p98 = por %p96, %p97
    %p100 = scmp.ne.s32.totalorder %s85, %s99
    %p101 = scmp.eq.s32.totalorder %s33, 0
    %p102 = por %p100, %p101
    %s104 = sadd.s32 %s103, 1
    %p107 = scmp.eq.s32.totalorder %s27, 1
    %p108 = scmp.ne.s32.totalorder %s103, %s105
    %p109 = scmp.eq.s32.totalorder %s27, 0
    %p110 = por %p108, %p109
    %p111 = scmp.ne.s32.totalorder %s103, %s105
    %p112 = scmp.eq.s32.totalorder %s32, 1
    %p113 = por %p111, %p112
    %p114 = scmp.ne.s32.totalorder %s105, %s106
    %p115 = scmp.eq.s32.totalorder %s32, 0
    %p116 = por %p114, %p115
    %p117 = scmp.ne.s32.totalorder %s105, %s106
    %p118 = scmp.eq.s32.totalorder %s33, 1
    %p119 = por %p117, %p118
    %p121 = scmp.ne.s32.totalorder %s106, %s120
    %p122 = scmp.eq.s32.totalorder %s33, 0
    %p123 = por %p121, %p122
    %s125 = sadd.s32 %s124, 1
    %p128 = scmp.eq.s32.totalorder %s27, 1
    %p129 = scmp.ne.s32.totalorder %s124, %s126
    %p130 = scmp.eq.s32.totalorder %s27, 0
    %p131 = por %p129, %p130
    %p132 = scmp.ne.s32.totalorder %s124, %s126
    %p133 = scmp.eq.s32.totalorder %s32, 1
    %p134 = por %p132, %p133
    %p135 = scmp.ne.s32.totalorder %s126, %s127
    %p136 = scmp.eq.s32.totalorder %s32, 0
    %p137 = por %p135, %p136
    %p138 = scmp.ne.s32.totalorder %s126, %s127
    %p139 = scmp.eq.s32.totalorder %s33, 1
    %p140 = por %p138, %p139
    %p142 = scmp.ne.s32.totalorder %s127, %s141
    %p143 = scmp.eq.s32.totalorder %s33, 0
    %p144 = por %p142, %p143
    %s146 = sadd.s32 %s145, 1
    %p149 = scmp.eq.s32.totalorder %s27, 1
    %p150 = scmp.ne.s32.totalorder %s145, %s147
    %p151 = scmp.eq.s32.totalorder %s27, 0
    %p152 = por %p150, %p151
    %p153 = scmp.ne.s32.totalorder %s145, %s147
    %p154 = scmp.eq.s32.totalorder %s32, 1
    %p155 = por %p153, %p154
    %p156 = scmp.ne.s32.totalorder %s147, %s148
    %p157 = scmp.eq.s32.totalorder %s32, 0
    %p158 = por %p156, %p157
    %p159 = scmp.ne.s32.totalorder %s147, %s148
    %p160 = scmp.eq.s32.totalorder %s33, 1
    %p161 = por %p159, %p160
    %p163 = scmp.ne.s32.totalorder %s148, %s162
    %p164 = scmp.eq.s32.totalorder %s33, 0
    %p165 = por %p163, %p164
    %s167 = sadd.s32 %s166, 1
    %p170 = scmp.eq.s32.totalorder %s27, 1
    %p171 = scmp.ne.s32.totalorder %s166, %s168
    %p172 = scmp.eq.s32.totalorder %s27, 0
    %p173 = por %p171, %p172
    %p174 = scmp.ne.s32.totalorder %s166, %s168
    %p175 = scmp.eq.s32.totalorder %s32, 1
    %p176 = por %p174, %p175
    %p177 = scmp.ne.s32.totalorder %s168, %s169
    %p178 = scmp.eq.s32.totalorder %s32, 0
    %p179 = por %p177, %p178
    %p180 = scmp.ne.s32.totalorder %s168, %s169
    %p181 = scmp.eq.s32.totalorder %s33, 1
    %p182 = por %p180, %p181
    %p184 = scmp.ne.s32.totalorder %s169, %s183
    %p185 = scmp.eq.s32.totalorder %s33, 0
    %p186 = por %p184, %p185
    %s188 = sadd.s32 %s187, 1
    %p191 = scmp.eq.s32.totalorder %s27, 1
    %p192 = scmp.ne.s32.totalorder %s187, %s189
    %p193 = scmp.eq.s32.totalorder %s27, 0
    %p194 = por %p192, %p193
    %p195 = scmp.ne.s32.totalorder %s187, %s189
    %p196 = scmp.eq.s32.totalorder %s32, 1
    %p197 = por %p195, %p196
    %p198 = scmp.ne.s32.totalorder %s189, %s190
    %p199 = scmp.eq.s32.totalorder %s32, 0
    %p200 = por %p198, %p199
    %p201 = scmp.ne.s32.totalorder %s189, %s190
    %p202 = scmp.eq.s32.totalorder %s33, 1
    %p203 = por %p201, %p202
    %p205 = scmp.ne.s32.totalorder %s190, %s204
    %p206 = scmp.eq.s32.totalorder %s33, 0
    %p207 = por %p205, %p206
    %s209 = sadd.s32 %s208, 1
    %p212 = scmp.eq.s32.totalorder %s27, 1
    %p213 = scmp.ne.s32.totalorder %s208, %s210
    %p214 = scmp.eq.s32.totalorder %s27, 0
    %p215 = por %p213, %p214
    %p216 = scmp.ne.s32.totalorder %s208, %s210
    %p217 = scmp.eq.s32.totalorder %s32, 1
    %p218 = por %p216, %p217
    %p219 = scmp.ne.s32.totalorder %s210, %s211
    %p220 = scmp.eq.s32.totalorder %s32, 0
    %p221 = por %p219, %p220
    %p222 = scmp.ne.s32.totalorder %s210, %s211
    %p223 = scmp.eq.s32.totalorder %s33, 1
    %p224 = por %p222, %p223
    %p226 = scmp.ne.s32.totalorder %s211, %s225
    %p227 = scmp.eq.s32.totalorder %s33, 0
    %p228 = por %p226, %p227
    %s230 = sadd.s32 %s229, 1
    %p233 = scmp.eq.s32.totalorder %s27, 1
    %p234 = scmp.ne.s32.totalorder %s229, %s231
    %p235 = scmp.eq.s32.totalorder %s27, 0
    %p236 = por %p234, %p235
    %p237 = scmp.ne.s32.totalorder %s229, %s231
    %p238 = scmp.eq.s32.totalorder %s32, 1
    %p239 = por %p237, %p238
    %p240 = scmp.ne.s32.totalorder %s231, %s232
    %p241 = scmp.eq.s32.totalorder %s32, 0
    %p242 = por %p240, %p241
    %p243 = scmp.ne.s32.totalorder %s231, %s232
    %p244 = scmp.eq.s32.totalorder %s33, 1
    %p245 = por %p243, %p244
    %p247 = scmp.ne.s32.totalorder %s232, %s246
    %p248 = scmp.eq.s32.totalorder %s33, 0
    %p249 = por %p247, %p248
    %s251 = sadd.s32 %s250, 1
    %p254 = scmp.eq.s32.totalorder %s27, 1
    %p255 = scmp.ne.s32.totalorder %s250, %s252
    %p256 = scmp.eq.s32.totalorder %s27, 0
    %p257 = por %p255, %p256
    %p258 = scmp.ne.s32.totalorder %s250, %s252
    %p259 = scmp.eq.s32.totalorder %s32, 1
    %p260 = por %p258, %p259
    %p261 = scmp.ne.s32.totalorder %s252, %s253
    %p262 = scmp.eq.s32.totalorder %s32, 0
    %p263 = por %p261, %p262
    %p264 = scmp.ne.s32.totalorder %s252, %s253
    %p265 = scmp.eq.s32.totalorder %s33, 1
    %p266 = por %p264, %p265
    %p268 = scmp.ne.s32.totalorder %s253, %s267
    %p269 = scmp.eq.s32.totalorder %s33, 0
    %p270 = por %p268, %p269
    %s272 = sadd.s32 %s271, 1
    %p275 = scmp.eq.s32.totalorder %s27, 1
    %p276 = scmp.ne.s32.totalorder %s271, %s273
    %p277 = scmp.eq.s32.totalorder %s27, 0
    %p278 = por %p276, %p277
    %p279 = scmp.ne.s32.totalorder %s271, %s273
    %p280 = scmp.eq.s32.totalorder %s32, 1
    %p281 = por %p279, %p280
    %p282 = scmp.ne.s32.totalorder %s273, %s274
    %p283 = scmp.eq.s32.totalorder %s32, 0
    %p284 = por %p282, %p283
    %p285 = scmp.ne.s32.totalorder %s273, %s274
    %p286 = scmp.eq.s32.totalorder %s33, 1
    %p287 = por %p285, %p286
    %p289 = scmp.ne.s32.totalorder %s274, %s288
    %p290 = scmp.eq.s32.totalorder %s33, 0
    %p291 = por %p289, %p290
    %s293 = sadd.s32 %s292, 1
    %p296 = scmp.eq.s32.totalorder %s27, 1
    %p297 = scmp.ne.s32.totalorder %s292, %s294
    %p298 = scmp.eq.s32.totalorder %s27, 0
    %p299 = por %p297, %p298
    %p300 = scmp.ne.s32.totalorder %s292, %s294
    %p301 = scmp.eq.s32.totalorder %s32, 1
    %p302 = por %p300, %p301
    %p303 = scmp.ne.s32.totalorder %s294, %s295
    %p304 = scmp.eq.s32.totalorder %s32, 0
    %p305 = por %p303, %p304
    %p306 = scmp.ne.s32.totalorder %s294, %s295
    %p307 = scmp.eq.s32.totalorder %s33, 1
    %p308 = por %p306, %p307
    %p310 = scmp.ne.s32.totalorder %s295, %s309
    %p311 = scmp.eq.s32.totalorder %s33, 0
    %p312 = por %p310, %p311
    %s314 = sadd.s32 %s313, 1
    %p317 = scmp.eq.s32.totalorder %s27, 1
    %p318 = scmp.ne.s32.totalorder %s313, %s315
    %p319 = scmp.eq.s32.totalorder %s27, 0
    %p320 = por %p318, %p319
    %p321 = scmp.ne.s32.totalorder %s313, %s315
    %p322 = scmp.eq.s32.totalorder %s32, 1
    %p323 = por %p321, %p322
    %p324 = scmp.ne.s32.totalorder %s315, %s316
    %p325 = scmp.eq.s32.totalorder %s32, 0
    %p326 = por %p324, %p325
    %p327 = scmp.ne.s32.totalorder %s315, %s316
    %p328 = scmp.eq.s32.totalorder %s33, 1
    %p329 = por %p327, %p328
    %p331 = scmp.ne.s32.totalorder %s316, %s330
    %p332 = scmp.eq.s32.totalorder %s33, 0
    %p333 = por %p331, %p332
    %s335 = sadd.s32 %s334, 1
    %p338 = scmp.eq.s32.totalorder %s27, 1
    %p339 = scmp.ne.s32.totalorder %s334, %s336
    %p340 = scmp.eq.s32.totalorder %s27, 0
    %p341 = por %p339, %p340
    %p342 = scmp.ne.s32.totalorder %s334, %s336
    %p343 = scmp.eq.s32.totalorder %s32, 1
    %p344 = por %p342, %p343
    %p345 = scmp.ne.s32.totalorder %s336, %s337
    %p346 = scmp.eq.s32.totalorder %s32, 0
    %p347 = por %p345, %p346
    %p348 = scmp.ne.s32.totalorder %s336, %s337
    %p349 = scmp.eq.s32.totalorder %s33, 1
    %p350 = por %p348, %p349
    %p352 = scmp.ne.s32.totalorder %s337, %s351
    %p353 = scmp.eq.s32.totalorder %s33, 0
    %p354 = por %p352, %p353
    %s356 = sadd.s32 %s355, 1
    %p359 = scmp.eq.s32.totalorder %s27, 1
    %p360 = scmp.ne.s32.totalorder %s355, %s357
    %p361 = scmp.eq.s32.totalorder %s27, 0
    %p362 = por %p360, %p361
    %p363 = scmp.ne.s32.totalorder %s355, %s357
    %p364 = scmp.eq.s32.totalorder %s32, 1
    %p365 = por %p363, %p364
    %p366 = scmp.ne.s32.totalorder %s357, %s358
    %p367 = scmp.eq.s32.totalorder %s32, 0
    %p368 = por %p366, %p367
    %p369 = scmp.ne.s32.totalorder %s357, %s358
    %p370 = scmp.eq.s32.totalorder %s33, 1
    %p371 = por %p369, %p370
    %p373 = scmp.ne.s32.totalorder %s358, %s372
    %p374 = scmp.eq.s32.totalorder %s33, 0
    %p375 = por %p373, %p374
    %s377 = sadd.s32 %s376, 1
    %p380 = scmp.eq.s32.totalorder %s27, 1
    %p381 = scmp.ne.s32.totalorder %s376, %s378
    %p382 = scmp.eq.s32.totalorder %s27, 0
    %p383 = por %p381, %p382
    %p384 = scmp.ne.s32.totalorder %s376, %s378
    %p385 = scmp.eq.s32.totalorder %s32, 1
    %p386 = por %p384, %p385
    %p387 = scmp.ne.s32.totalorder %s378, %s379
    %p388 = scmp.eq.s32.totalorder %s32, 0
    %p389 = por %p387, %p388
    %p390 = scmp.ne.s32.totalorder %s378, %s379
    %p391 = scmp.eq.s32.totalorder %s33, 1
    %p392 = por %p390, %p391
    %p394 = scmp.ne.s32.totalorder %s379, %s393
    %p395 = scmp.eq.s32.totalorder %s33, 0
    %p396 = por %p394, %p395
    %s398 = sadd.s32 %s397, 1
    %p401 = scmp.eq.s32.totalorder %s27, 1
    %p402 = scmp.ne.s32.totalorder %s397, %s399
    %p403 = scmp.eq.s32.totalorder %s27, 0
    %p404 = por %p402, %p403
    %p405 = scmp.ne.s32.totalorder %s397, %s399
    %p406 = scmp.eq.s32.totalorder %s32, 1
    %p407 = por %p405, %p406
    %p408 = scmp.ne.s32.totalorder %s399, %s400
    %p409 = scmp.eq.s32.totalorder %s32, 0
    %p410 = por %p408, %p409
    %p411 = scmp.ne.s32.totalorder %s399, %s400
    %p412 = scmp.eq.s32.totalorder %s33, 1
    %p413 = por %p411, %p412
    %p415 = scmp.ne.s32.totalorder %s400, %s414
    %p416 = scmp.eq.s32.totalorder %s33, 0
    %p417 = por %p415, %p416
    %s419 = sadd.s32 %s418, 1
    %p422 = scmp.eq.s32.totalorder %s27, 1
    %p423 = scmp.ne.s32.totalorder %s418, %s420
    %p424 = scmp.eq.s32.totalorder %s27, 0
    %p425 = por %p423, %p424
    %p426 = scmp.ne.s32.totalorder %s418, %s420
    %p427 = scmp.eq.s32.totalorder %s32, 1
    %p428 = por %p426, %p427
    %p429 = scmp.ne.s32.totalorder %s420, %s421
    %p430 = scmp.eq.s32.totalorder %s32, 0
    %p431 = por %p429, %p430
    %p432 = scmp.ne.s32.totalorder %s420, %s421
    %p433 = scmp.eq.s32.totalorder %s33, 1
    %p434 = por %p432, %p433
    %p436 = scmp.ne.s32.totalorder %s421, %s435
    %p437 = scmp.eq.s32.totalorder %s33, 0
    %p438 = por %p436, %p437
    %s439 = ssub.s32 %s27, %s34
    %p440 = scmp.eq.s32.totalorder %s439, 0
    %s442 = sadd.s32 %s441, 1
    %s443 = scalar_select %p440, %s441, %s442
    %p446 = pneg %p440
    %p447 = scmp.eq.s32.totalorder %s27, 1
    %p448 = por %p446, %p447
    %p449 = scmp.ne.s32.totalorder %s441, %s444
    %p450 = scmp.eq.s32.totalorder %s27, 0
    %p451 = por %p449, %p450
    %p452 = scmp.ne.s32.totalorder %s441, %s444
    %p453 = scmp.eq.s32.totalorder %s32, 1
    %p454 = por %p452, %p453
    %p455 = scmp.ne.s32.totalorder %s444, %s445
    %p456 = scmp.eq.s32.totalorder %s32, 0
    %p457 = por %p455, %p456
    %p458 = scmp.ne.s32.totalorder %s444, %s445
    %p459 = scmp.eq.s32.totalorder %s33, 1
    %p460 = por %p458, %p459
    %p462 = scmp.ne.s32.totalorder %s445, %s461
    %p463 = scmp.eq.s32.totalorder %s33, 0
    %p464 = por %p462, %p463
    %s465 = ssub.s32 %s27, %s34
    %p466 = scmp.eq.s32.totalorder %s465, 0
    %s468 = sadd.s32 %s467, 1
    %s469 = scalar_select %p466, %s467, %s468
    %p472 = pneg %p466
    %p473 = scmp.eq.s32.totalorder %s27, 1
    %p474 = por %p472, %p473
    %p475 = scmp.ne.s32.totalorder %s467, %s470
    %p476 = scmp.eq.s32.totalorder %s27, 0
    %p477 = por %p475, %p476
    %p478 = scmp.ne.s32.totalorder %s467, %s470
    %p479 = scmp.eq.s32.totalorder %s32, 1
    %p480 = por %p478, %p479
    %p481 = scmp.ne.s32.totalorder %s470, %s471
    %p482 = scmp.eq.s32.totalorder %s32, 0
    %p483 = por %p481, %p482
    %p484 = scmp.ne.s32.totalorder %s470, %s471
    %p485 = scmp.eq.s32.totalorder %s33, 1
    %p486 = por %p484, %p485
    %p488 = scmp.ne.s32.totalorder %s471, %s487
    %p489 = scmp.eq.s32.totalorder %s33, 0
    %p490 = por %p488, %p489
    %p491 = scmp.le.s32.totalorder 1, %s27
    %p492 = scmp.lt.s32.totalorder %s27, 3
    %p493 = pnand %p491, %p492
    %p494 = pneg %p493
    // Predicated region
    $region9: #{generator_forward.1} parent=5 // pred_check
      _
    $region10: #{generator_forward.1} parent=5 // pred_check_branch
      %496 = sbr.rel (%p493) target = $region12
    $region11: #{generator_forward.1} parent=5 // pred_region
      %s497 = ssub.s32 %s27, 1
      // Predicated region
      $region13: #{generator_forward.1} parent=11 // pred_check
        %p498 = pneg %p74
      $region14: #{generator_forward.1} parent=11 // pred_check_branch
        %500 = sbr.rel (%p498) target = $region16
      $region15: #{generator_forward.1} parent=11 // pred_region
        _
      $region16: #{generator_forward.1} parent=11 // pred_fallthru
        _
      // Predicated region
      $region17: #{generator_forward.1} parent=11 // pred_check
        %p501 = pneg %p95
      $region18: #{generator_forward.1} parent=11 // pred_check_branch
        %503 = sbr.rel (%p501) target = $region20
      $region19: #{generator_forward.1} parent=11 // pred_region
        _
      $region20: #{generator_forward.1} parent=11 // pred_fallthru
        _
      // Predicated region
      $region21: #{generator_forward.1} parent=11 // pred_check
        %p504 = pneg %p116
      $region22: #{generator_forward.1} parent=11 // pred_check_branch
        %506 = sbr.rel (%p504) target = $region24
      $region23: #{generator_forward.1} parent=11 // pred_region
        _
      $region24: #{generator_forward.1} parent=11 // pred_fallthru
        _
      // Predicated region
      $region25: #{generator_forward.1} parent=11 // pred_check
        %p507 = pneg %p137
      $region26: #{generator_forward.1} parent=11 // pred_check_branch
        %509 = sbr.rel (%p507) target = $region28
      $region27: #{generator_forward.1} parent=11 // pred_region
        _
      $region28: #{generator_forward.1} parent=11 // pred_fallthru
        _
      // Predicated region
      $region29: #{generator_forward.1} parent=11 // pred_check
        %p510 = pneg %p158
      $region30: #{generator_forward.1} parent=11 // pred_check_branch
        %512 = sbr.rel (%p510) target = $region32
      $region31: #{generator_forward.1} parent=11 // pred_region
        _
      $region32: #{generator_forward.1} parent=11 // pred_fallthru
        _
      // Predicated region
      $region33: #{generator_forward.1} parent=11 // pred_check
        %p513 = pneg %p179
      $region34: #{generator_forward.1} parent=11 // pred_check_branch
        %515 = sbr.rel (%p513) target = $region36
      $region35: #{generator_forward.1} parent=11 // pred_region
        _
      $region36: #{generator_forward.1} parent=11 // pred_fallthru
        _
      // Predicated region
      $region37: #{generator_forward.1} parent=11 // pred_check
        %p516 = pneg %p200
      $region38: #{generator_forward.1} parent=11 // pred_check_branch
        %518 = sbr.rel (%p516) target = $region40
      $region39: #{generator_forward.1} parent=11 // pred_region
        _
      $region40: #{generator_forward.1} parent=11 // pred_fallthru
        _
      // Predicated region
      $region41: #{generator_forward.1} parent=11 // pred_check
        %p519 = pneg %p221
      $region42: #{generator_forward.1} parent=11 // pred_check_branch
        %521 = sbr.rel (%p519) target = $region44
      $region43: #{generator_forward.1} parent=11 // pred_region
        _
      $region44: #{generator_forward.1} parent=11 // pred_fallthru
        _
      // Predicated region
      $region45: #{generator_forward.1} parent=11 // pred_check
        %p522 = pneg %p242
      $region46: #{generator_forward.1} parent=11 // pred_check_branch
        %524 = sbr.rel (%p522) target = $region48
      $region47: #{generator_forward.1} parent=11 // pred_region
        _
      $region48: #{generator_forward.1} parent=11 // pred_fallthru
        _
      // Predicated region
      $region49: #{generator_forward.1} parent=11 // pred_check
        %p525 = pneg %p263
      $region50: #{generator_forward.1} parent=11 // pred_check_branch
        %527 = sbr.rel (%p525) target = $region52
      $region51: #{generator_forward.1} parent=11 // pred_region
        _
      $region52: #{generator_forward.1} parent=11 // pred_fallthru
        _
      // Predicated region
      $region53: #{generator_forward.1} parent=11 // pred_check
        %p528 = pneg %p284
      $region54: #{generator_forward.1} parent=11 // pred_check_branch
        %530 = sbr.rel (%p528) target = $region56
      $region55: #{generator_forward.1} parent=11 // pred_region
        _
      $region56: #{generator_forward.1} parent=11 // pred_fallthru
        _
      // Predicated region
      $region57: #{generator_forward.1} parent=11 // pred_check
        %p531 = pneg %p305
      $region58: #{generator_forward.1} parent=11 // pred_check_branch
        %533 = sbr.rel (%p531) target = $region60
      $region59: #{generator_forward.1} parent=11 // pred_region
        _
      $region60: #{generator_forward.1} parent=11 // pred_fallthru
        _
      // Predicated region
      $region61: #{generator_forward.1} parent=11 // pred_check
        %p534 = pneg %p326
      $region62: #{generator_forward.1} parent=11 // pred_check_branch
        %536 = sbr.rel (%p534) target = $region64
      $region63: #{generator_forward.1} parent=11 // pred_region
        _
      $region64: #{generator_forward.1} parent=11 // pred_fallthru
        _
      // Predicated region
      $region65: #{generator_forward.1} parent=11 // pred_check
        %p537 = pneg %p347
      $region66: #{generator_forward.1} parent=11 // pred_check_branch
        %539 = sbr.rel (%p537) target = $region68
      $region67: #{generator_forward.1} parent=11 // pred_region
        _
      $region68: #{generator_forward.1} parent=11 // pred_fallthru
        _
      // Predicated region
      $region69: #{generator_forward.1} parent=11 // pred_check
        %p540 = pneg %p368
      $region70: #{generator_forward.1} parent=11 // pred_check_branch
        %542 = sbr.rel (%p540) target = $region72
      $region71: #{generator_forward.1} parent=11 // pred_region
        _
      $region72: #{generator_forward.1} parent=11 // pred_fallthru
        _
      // Predicated region
      $region73: #{generator_forward.1} parent=11 // pred_check
        %p543 = pneg %p389
      $region74: #{generator_forward.1} parent=11 // pred_check_branch
        %545 = sbr.rel (%p543) target = $region76
      $region75: #{generator_forward.1} parent=11 // pred_region
        _
      $region76: #{generator_forward.1} parent=11 // pred_fallthru
        _
      // Predicated region
      $region77: #{generator_forward.1} parent=11 // pred_check
        %p546 = pneg %p410
      $region78: #{generator_forward.1} parent=11 // pred_check_branch
        %548 = sbr.rel (%p546) target = $region80
      $region79: #{generator_forward.1} parent=11 // pred_region
        _
      $region80: #{generator_forward.1} parent=11 // pred_fallthru
        _
      // Predicated region
      $region81: #{generator_forward.1} parent=11 // pred_check
        %p549 = pneg %p431
      $region82: #{generator_forward.1} parent=11 // pred_check_branch
        %551 = sbr.rel (%p549) target = $region84
      $region83: #{generator_forward.1} parent=11 // pred_region
        _
      $region84: #{generator_forward.1} parent=11 // pred_fallthru
        _
    $region12: #{generator_forward.1} parent=5 // pred_fallthru
      _
    %p552 = scmp.lt.s32.totalorder %s27, 2
    // Predicated region
    $region85: #{generator_forward.1} parent=5 // pred_check
      %p553 = pneg %p552
    $region86: #{generator_forward.1} parent=5 // pred_check_branch
      %555 = sbr.rel (%p553) target = $region88
    $region87: #{generator_forward.1} parent=5 // pred_region
      // Predicated region
      $region89: #{generator_forward.1} parent=87 // pred_check
        %p556 = pneg %p47
      $region90: #{generator_forward.1} parent=87 // pred_check_branch
        %558 = sbr.rel (%p556) target = $region92
      $region91: #{generator_forward.1} parent=87 // pred_region
        %s559 = smul.u32 2, %s27
        %p560 = scmp.lt.s32.totalorder %s559, 3
        %s561 = scalar_select %p560, %s559, 3
        %s562 = smul.addr %s561, 2
        %s563 = scalar_lea.vmem %s0, %s562
        %s564 = smul.u32 2, %s27
      $region92: #{generator_forward.1} parent=87 // pred_fallthru
        _
    $region88: #{generator_forward.1} parent=5 // pred_fallthru
      _
    %p565 = scmp.le.s32.totalorder 1, %s27
    %p566 = scmp.lt.s32.totalorder %s27, 3
    %p567 = pnand %p565, %p566
    %p568 = pneg %p567
    // Predicated region
    $region93: #{generator_forward.1} parent=5 // pred_check
      _
    $region94: #{generator_forward.1} parent=5 // pred_check_branch
      %570 = sbr.rel (%p567) target = $region96
    $region95: #{generator_forward.1} parent=5 // pred_region
      %s571 = ssub.s32 %s27, 1
      %s572 = smul.u32 2, %s32
      %p573 = scmp.lt.s32.totalorder %s572, 3
      %s574 = scalar_select %p573, %s572, 3
      %s575 = smul.addr %s574, 2
      %s576 = scalar_lea.vmem %s0, %s575
      %p577 = pneg %p53
      %p578 = pneg %p50
      %p579 = pneg %p74
      %p580 = pneg %p71
      %p581 = pneg %p95
      %p582 = pneg %p92
      %p583 = pneg %p116
      %p584 = pneg %p113
      %p585 = pneg %p137
      %p586 = pneg %p134
      %p587 = pneg %p158
      %p588 = pneg %p155
      %p589 = pneg %p179
      %p590 = pneg %p176
      %p591 = pneg %p200
      %p592 = pneg %p197
      %p593 = pneg %p221
      %p594 = pneg %p218
      %p595 = pneg %p242
      %p596 = pneg %p239
      %p597 = pneg %p263
      %p598 = pneg %p260
      %p599 = pneg %p284
      %p600 = pneg %p281
      %p601 = pneg %p305
      %p602 = pneg %p302
      %p603 = pneg %p326
      %p604 = pneg %p323
      %p605 = pneg %p347
      %p606 = pneg %p344
      %p607 = pneg %p368
      %p608 = pneg %p365
      %p609 = pneg %p389
      %p610 = pneg %p386
      %p611 = pneg %p410
      %p612 = pneg %p407
      %p613 = pneg %p431
      %p614 = pneg %p428
      %p615 = pneg %p457
      %p616 = pneg %p454
      %p617 = scmp.lt.s32.totalorder %s32, 1
      %s618 = scalar_select %p617, %s32, 1
      %s619 = smul.addr %s618, 4
      %s620 = smul.addr %s619, 8
      %s621 = scalar_lea.vmem %s19, %s620
      %p622 = pneg %p483
      %p623 = pneg %p480
      %s624 = smul.u32 2, %s32
      %p625 = scmp.lt.s32.totalorder %s624, 3
      %s626 = scalar_select %p625, %s624, 3
      %s627 = smul.addr %s626, 4
      %s628 = scalar_lea.vmem %s20, %s627
      %s629 = smul.u32 2, %s32
      %p630 = scmp.lt.s32.totalorder %s629, 3
      %s631 = scalar_select %p630, %s629, 3
      %s632 = smul.addr %s631, 2
      %s633 = scalar_lea.vmem %s0, %s632
      %s634 = smul.u32 2, %s32
      %p635 = scmp.lt.s32.totalorder %s32, 1
      %s636 = scalar_select %p635, %s32, 1
      %s637 = smul.addr %s636, 4
      %s638 = smul.addr %s637, 8
      %s639 = scalar_lea.vmem %s19, %s638
      %s640 = smul.u32 2, %s32
      %p641 = scmp.lt.s32.totalorder %s640, 3
      %s642 = scalar_select %p641, %s640, 3
      %s643 = smul.addr %s642, 4
      %s644 = scalar_lea.vmem %s20, %s643
      %s645 = smul.u32 2, %s32
      %v647 = vld [vmem:[%s1] sm:$0xff]
      %v648 = vld [vmem:[%s1 + $0x8] sm:$0x11]
      %v649 = vld [vmem:[%s2] sm:$0xf]
      %v650 = vld [vmem:[%s2 + $0x4] sm:$0x1]
      %v651 = vld [vmem:[%s633] sm:$0xf]
      %vm652 = vcmask 132096
      %653 = vst.msk [vmem:[#allocation2] sm:$0x3] %vm652, 0
      %vm654 = vcmask 271496
      %655 = vst.msk [vmem:[#allocation2 + $0x8] sm:$0x3] %vm654, 0
      %657 = vst [vmem:[#allocation1] ss:$2 sm:$0xff] %v651
      %v658 = vld.sshfl [vmem:[#allocation1] sm:$0xff pattern:$0x75643120]
      %660 = vrot.lane.b32.xlu0 %v658, 17
      %v661 = vpop.permute.xlu0 %660
      %v662 = vrot.slane %v661, 4
      %vm663 = vcmask 138240
      %v664 = vsel %vm663, %v662, %v661
      %vm667 = vcmask 1041544
      %vm668 = vcmask 1045508
      %vm669 = vmor %vm668, %vm667
      %670 = vst.msk [vmem:[#allocation2] sm:$0x33] %vm669, %v664
      %671 = vst.msk [vmem:[#allocation2 + $0x8] sm:$0x3] %vm652, %v662
      %v672 = vld [vmem:[#allocation2] sm:$0x33]
      %v674 = vunpack.c.l.b16 %v647
      %v675 = vunpack.c.h.b16 %v647
      %v676 = vpack.c.b16 %v674, %v674
      %v677 = vpack.c.b16 %v675, %v675
      %v679 = vpack.i.b16 %v676, %v676
      %v681 = vperm.slane %v679, 0
      %v683 = vpack.i.b16 %v677, %v677
      %v685 = vperm.slane %v683, 0
      %v686 = vunpack.c.l.bf16 %v672
      %v687 = vunpack.c.h.bf16 %v672
      %v688 = vunpack.c.l.bf16 %v681
      %v689 = vunpack.c.l.bf16 %v685
      %v690 = vmul.f32 %v686, %v688
      %v691 = vmul.f32 %v687, %v689
      %v692 = vpack.c.bf16 %v691, %v690
      %v693 = vld [vmem:[#allocation2 + $0x8] sm:$0x3]
      %v694 = vshrl.u32 %v676, 16
      %v695 = vpack.i.b16 %v694, %v694
      %v697 = vperm.slane %v695, 0
      %v698 = vshrl.u32 %v677, 16
      %v699 = vpack.i.b16 %v698, %v698
      %v701 = vperm.slane %v699, 0
      %v702 = vunpack.c.l.bf16 %v693
      %v703 = vunpack.c.l.bf16 %v697
      %v704 = vunpack.c.l.bf16 %v701
      %707 = vrot.lane.b32.xlu0 %v703, 1
      %v708 = vpop.permute.xlu0 %707
      %709 = vrot.lane.b32.xlu0 %v704, 1
      %v710 = vpop.permute.xlu0 %709
      %vm711 = vcmask 7168
      %v712 = vsel %vm711, %v708, %v710
      %v716 = vmul.f32 %v686, %v708
      %v717 = vmul.f32 %v687, %v712
      %v718 = vmul.f32 %v702, %v710
      %v719 = vpack.c.bf16 %v717, %v716
      %v720 = vpack.c.bf16 %v718, %v718
      %v721 = vperm.slane %v679, 1
      %v722 = vperm.slane %v683, 1
      %v723 = vunpack.c.l.bf16 %v721
      %v724 = vunpack.c.l.bf16 %v722
      %727 = vrot.lane.b32.xlu0 %v723, 2
      %v728 = vpop.permute.xlu0 %727
      %729 = vrot.lane.b32.xlu0 %v724, 2
      %v730 = vpop.permute.xlu0 %729
      %vm731 = vcmask 15360
      %v732 = vsel %vm731, %v728, %v730
      %v736 = vmul.f32 %v686, %v728
      %v737 = vmul.f32 %v687, %v732
      %v738 = vmul.f32 %v702, %v730
      %v739 = vpack.c.bf16 %v737, %v736
      %v740 = vpack.c.bf16 %v738, %v738
      %v741 = vperm.slane %v695, 1
      %v742 = vperm.slane %v699, 1
      %v743 = vunpack.c.l.bf16 %v741
      %v744 = vunpack.c.l.bf16 %v742
      %747 = vrot.lane.b32.xlu0 %v743, 16
      %v748 = vpop.permute.xlu0 %747
      %749 = vrot.lane.b32.xlu0 %v744, 16
      %v750 = vpop.permute.xlu0 %749
      %vm751 = vcmask 130048
      %v752 = vsel %vm751, %v748, %v750
      %v756 = vmul.f32 %v686, %v748
      %v757 = vmul.f32 %v687, %v752
      %v758 = vmul.f32 %v702, %v750
      %v759 = vpack.c.bf16 %v757, %v756
      %v760 = vpack.c.bf16 %v758, %v758
      %v761 = vperm.slane %v679, 2
      %v762 = vperm.slane %v683, 2
      %v763 = vunpack.c.l.bf16 %v761
      %v764 = vunpack.c.l.bf16 %v762
      %767 = vrot.lane.b32.xlu0 %v763, 17
      %v768 = vpop.permute.xlu0 %767
      %769 = vrot.lane.b32.xlu0 %v764, 17
      %v770 = vpop.permute.xlu0 %769
      %vm771 = vcmask 138240
      %v772 = vsel %vm771, %v768, %v770
      %v776 = vmul.f32 %v686, %v768
      %v777 = vmul.f32 %v687, %v772
      %v778 = vmul.f32 %v702, %v770
      %v779 = vpack.c.bf16 %v777, %v776
      %v780 = vpack.c.bf16 %v778, %v778
      %v781 = vperm.slane %v695, 2
      %v782 = vperm.slane %v699, 2
      %v783 = vunpack.c.l.bf16 %v781
      %v784 = vunpack.c.l.bf16 %v782
      %787 = vrot.lane.b32.xlu0 %v783, 18
      %v788 = vpop.permute.xlu0 %787
      %789 = vrot.lane.b32.xlu0 %v784, 18
      %v790 = vpop.permute.xlu0 %789
      %vm791 = vcmask 146432
      %v792 = vsel %vm791, %v788, %v790
      %v796 = vmul.f32 %v686, %v788
      %v797 = vmul.f32 %v687, %v792
      %v798 = vmul.f32 %v702, %v790
      %v799 = vpack.c.bf16 %v797, %v796
      %v800 = vpack.c.bf16 %v798, %v798
      %v801 = vperm.slane %v679, 3
      %v802 = vperm.slane %v683, 3
      %v803 = vunpack.c.l.bf16 %v801
      %v804 = vunpack.c.l.bf16 %v802
      %807 = vrot.lane.b32.xlu0 %v803, 32
      %v808 = vpop.permute.xlu0 %807
      %809 = vrot.lane.b32.xlu0 %v804, 32
      %v810 = vpop.permute.xlu0 %809
      %vm811 = vcmask 261120
      %v812 = vsel %vm811, %v808, %v810
      %v816 = vmul.f32 %v686, %v808
      %v817 = vmul.f32 %v687, %v812
      %v818 = vmul.f32 %v702, %v810
      %v819 = vpack.c.bf16 %v817, %v816
      %v820 = vpack.c.bf16 %v818, %v818
      %v821 = vperm.slane %v695, 3
      %v822 = vperm.slane %v699, 3
      %v823 = vunpack.c.l.bf16 %v821
      %v824 = vunpack.c.l.bf16 %v822
      %827 = vrot.lane.b32.xlu0 %v823, 33
      %v828 = vpop.permute.xlu0 %827
      %829 = vrot.lane.b32.xlu0 %v824, 33
      %v830 = vpop.permute.xlu0 %829
      %vm831 = vcmask 269312
      %v832 = vsel %vm831, %v828, %v830
      %v836 = vmul.f32 %v686, %v828
      %v837 = vmul.f32 %v687, %v832
      %v838 = vmul.f32 %v702, %v830
      %v839 = vpack.c.bf16 %v837, %v836
      %v840 = vpack.c.bf16 %v838, %v838
      %v842 = vunpack.c.l.b16 %v648
      %v843 = vunpack.c.h.b16 %v648
      %v844 = vpack.c.b16 %v842, %v842
      %v845 = vpack.c.b16 %v843, %v843
      %v847 = vpack.i.b16 %v844, %v844
      %v849 = vperm.slane %v847, 0
      %v851 = vpack.i.b16 %v845, %v845
      %v853 = vperm.slane %v851, 0
      %v854 = vunpack.c.l.bf16 %v849
      %v855 = vunpack.c.l.bf16 %v853
      %858 = vrot.lane.b32.xlu0 %v854, 34
      %v859 = vpop.permute.xlu0 %858
      %860 = vrot.lane.b32.xlu0 %v855, 34
      %v861 = vpop.permute.xlu0 %860
      %vm862 = vcmask 277504
      %v863 = vsel %vm862, %v859, %v861
      %v867 = vmul.f32 %v686, %v859
      %v868 = vmul.f32 %v687, %v863
      %v869 = vmul.f32 %v702, %v861
      %v870 = vpack.c.bf16 %v868, %v867
      %v871 = vpack.c.bf16 %v869, %v869
      %v873 = vunpack.c.l.b16 %v692
      %v874 = vunpack.c.h.b16 %v692
      %v875 = vpack.c.b16 %v873, %v873
      %v876 = vpack.c.b16 %v874, %v874
      %v879 = vunpack.c.l.b16 %v719
      %v880 = vunpack.c.h.b16 %v719
      %v881 = vunpack.c.l.b16 %v720
      %v882 = vpack.c.b16 %v879, %v879
      %v883 = vpack.c.b16 %v880, %v880
      %v884 = vpack.c.b16 %v881, %v881
      %v885 = vrot.slane %v882, 6
      %v886 = vrot.slane %v883, 6
      %v887 = vrot.slane %v884, 6
      %888 = vrot.lane.b32.xlu0 %v885, 127
      %v889 = vpop.permute.xlu0 %888
      %890 = vrot.lane.b32.xlu0 %v886, 127
      %v891 = vpop.permute.xlu0 %890
      %892 = vrot.lane.b32.xlu0 %v887, 127
      %v893 = vpop.permute.xlu0 %892
      %vm894 = vcmask 1039360
      %v895 = vsel %vm894, %v889, %v891
      %v896 = vsel %vm894, %v891, %v893
      %v899 = vunpack.c.l.b16 %v739
      %v900 = vunpack.c.h.b16 %v739
      %v901 = vunpack.c.l.b16 %v740
      %v902 = vpack.c.b16 %v899, %v899
      %v903 = vpack.c.b16 %v900, %v900
      %v904 = vpack.c.b16 %v901, %v901
      %905 = vrot.lane.b32.xlu0 %v902, 126
      %v906 = vpop.permute.xlu0 %905
      %907 = vrot.lane.b32.xlu0 %v903, 126
      %v908 = vpop.permute.xlu0 %907
      %909 = vrot.lane.b32.xlu0 %v904, 126
      %v910 = vpop.permute.xlu0 %909
      %vm911 = vcmask 1031168
      %v912 = vsel %vm911, %v906, %v908
      %v913 = vsel %vm911, %v908, %v910
      %v916 = vunpack.c.l.b16 %v759
      %v917 = vunpack.c.h.b16 %v759
      %v918 = vunpack.c.l.b16 %v760
      %v919 = vpack.c.b16 %v916, %v916
      %v920 = vpack.c.b16 %v917, %v917
      %v921 = vpack.c.b16 %v918, %v918
      %v922 = vrot.slane %v919, 2
      %v923 = vrot.slane %v920, 2
      %v924 = vrot.slane %v921, 2
      %925 = vrot.lane.b32.xlu0 %v922, 112
      %v926 = vpop.permute.xlu0 %925
      %927 = vrot.lane.b32.xlu0 %v923, 112
      %v928 = vpop.permute.xlu0 %927
      %929 = vrot.lane.b32.xlu0 %v924, 112
      %v930 = vpop.permute.xlu0 %929
      %vm931 = vcmask 916480
      %v932 = vsel %vm931, %v926, %v928
      %v933 = vsel %vm931, %v928, %v930
      %v936 = vunpack.c.l.b16 %v779
      %v937 = vunpack.c.h.b16 %v779
      %v938 = vunpack.c.l.b16 %v780
      %v939 = vpack.c.b16 %v936, %v936
      %v940 = vpack.c.b16 %v937, %v937
      %v941 = vpack.c.b16 %v938, %v938
      %942 = vrot.lane.b32.xlu0 %v939, 111
      %v943 = vpop.permute.xlu0 %942
      %944 = vrot.lane.b32.xlu0 %v940, 111
      %v945 = vpop.permute.xlu0 %944
      %946 = vrot.lane.b32.xlu0 %v941, 111
      %v947 = vpop.permute.xlu0 %946
      %vm948 = vcmask 908288
      %v949 = vsel %vm948, %v943, %v945
      %v950 = vsel %vm948, %v945, %v947
      %v953 = vunpack.c.l.b16 %v799
      %v954 = vunpack.c.h.b16 %v799
      %v955 = vunpack.c.l.b16 %v800
      %v956 = vpack.c.b16 %v953, %v953
      %v957 = vpack.c.b16 %v954, %v954
      %v958 = vpack.c.b16 %v955, %v955
      %v959 = vrot.slane %v956, 6
      %v960 = vrot.slane %v957, 6
      %v961 = vrot.slane %v958, 6
      %962 = vrot.lane.b32.xlu0 %v959, 110
      %v963 = vpop.permute.xlu0 %962
      %964 = vrot.lane.b32.xlu0 %v960, 110
      %v965 = vpop.permute.xlu0 %964
      %966 = vrot.lane.b32.xlu0 %v961, 110
      %v967 = vpop.permute.xlu0 %966
      %vm968 = vcmask 900096
      %v969 = vsel %vm968, %v963, %v965
      %v970 = vsel %vm968, %v965, %v967
      %v973 = vunpack.c.l.b16 %v819
      %v974 = vunpack.c.h.b16 %v819
      %v975 = vunpack.c.l.b16 %v820
      %v976 = vpack.c.b16 %v973, %v973
      %v977 = vpack.c.b16 %v974, %v974
      %v978 = vpack.c.b16 %v975, %v975
      %979 = vrot.lane.b32.xlu0 %v976, 96
      %v980 = vpop.permute.xlu0 %979
      %981 = vrot.lane.b32.xlu0 %v977, 96
      %v982 = vpop.permute.xlu0 %981
      %983 = vrot.lane.b32.xlu0 %v978, 96
      %v984 = vpop.permute.xlu0 %983
      %vm985 = vcmask 785408
      %v986 = vsel %vm985, %v980, %v982
      %v987 = vsel %vm985, %v982, %v984
      %v990 = vunpack.c.l.b16 %v839
      %v991 = vunpack.c.h.b16 %v839
      %v992 = vunpack.c.l.b16 %v840
      %v993 = vpack.c.b16 %v990, %v990
      %v994 = vpack.c.b16 %v991, %v991
      %v995 = vpack.c.b16 %v992, %v992
      %v996 = vrot.slane %v993, 2
      %v997 = vrot.slane %v994, 2
      %v998 = vrot.slane %v995, 2
      %999 = vrot.lane.b32.xlu0 %v996, 95
      %v1000 = vpop.permute.xlu0 %999
      %1001 = vrot.lane.b32.xlu0 %v997, 95
      %v1002 = vpop.permute.xlu0 %1001
      %1003 = vrot.lane.b32.xlu0 %v998, 95
      %v1004 = vpop.permute.xlu0 %1003
      %vm1005 = vcmask 777216
      %v1006 = vsel %vm1005, %v1000, %v1002
      %v1007 = vsel %vm1005, %v1002, %v1004
      %v1010 = vunpack.c.l.b16 %v870
      %v1011 = vunpack.c.h.b16 %v870
      %v1012 = vunpack.c.l.b16 %v871
      %v1013 = vpack.c.b16 %v1010, %v1010
      %v1014 = vpack.c.b16 %v1011, %v1011
      %v1015 = vpack.c.b16 %v1012, %v1012
      %1016 = vrot.lane.b32.xlu0 %v1013, 94
      %v1017 = vpop.permute.xlu0 %1016
      %1018 = vrot.lane.b32.xlu0 %v1014, 94
      %v1019 = vpop.permute.xlu0 %1018
      %1020 = vrot.lane.b32.xlu0 %v1015, 94
      %v1021 = vpop.permute.xlu0 %1020
      %vm1022 = vcmask 769024
      %v1023 = vsel %vm1022, %v1017, %v1019
      %v1024 = vsel %vm1022, %v1019, %v1021
      %vm1025 = vcmask 1041408
      %v1028 = vsel %vm1025, %v875, %v895
      %v1031 = vsel %vm1025, %v876, %v896
      %vm1032 = vcmask 1043456
      %v1034 = vsel %vm1032, %v1028, %v912
      %v1036 = vsel %vm1032, %v1031, %v913
      %vm1037 = vcmask 1045504
      %v1039 = vsel %vm1037, %v1034, %v932
      %v1042 = vsel %vm1037, %v1036, %v933
      %v1046 = vsel %vm1025, %v949, %v969
      %v1049 = vsel %vm1025, %v950, %v970
      %v1051 = vsel %vm1032, %v1046, %v986
      %v1053 = vsel %vm1032, %v1049, %v987
      %v1055 = vsel %vm1037, %v1051, %v1006
      %v1058 = vsel %vm1037, %v1053, %v1007
      %v1060 = vld [vmem:[%s3] sm:$0xf]
      %v1061 = vld [vmem:[%s3 + $0x4] sm:$0xf]
      %v1064 = vunpack.c.l.b16 %v1060
      %v1065 = vunpack.c.l.b16 %v1061
      %v1066 = vpack.c.b16 %v1065, %v1064
      %vm1067 = vcmask 293888
      %v1069 = vsel %vm1067, %v1066, 0
      %v1072 = vsel %vm1025, %v1023, 0
      %v1075 = vsel %vm1025, %v1024, 0
      %1077 = vmatpush.bf16.msra.mxu0 0
      %1078 = vmatpush.bf16.msra.mxu0 0
      %1079 = vmatpush.bf16.msra.mxu0 0
      %1080 = vmatpush.bf16.msra.mxu0 0
      %1081 = vmatpush.bf16.msra.mxu0 0
      %1082 = vmatpush.bf16.msra.mxu0 %v1072
      %1083 = vmatpush.bf16.msra.mxu0 %v1055
      %1084 = vmatpush.bf16.msra.mxu0 %v1039
      %1085 = vmatmul.bf16.gmra.mxu0 %v1069
      %v1086 = vpop.f32.mrf.mxu0
      %v1087 = vadd.f32 0.0, %v1086
      %v1088 = vpop.f32.mrf.mxu0
      %v1089 = vadd.f32 0.0, %v1088
      %1090 = vdwg.mxu0
      %1091 = vmatpush.bf16.msra.mxu0 0
      %1092 = vmatpush.bf16.msra.mxu0 0
      %1093 = vmatpush.bf16.msra.mxu0 0
      %1094 = vmatpush.bf16.msra.mxu0 0
      %1095 = vmatpush.bf16.msra.mxu0 0
      %1096 = vmatpush.bf16.msra.mxu0 %v1075
      %1097 = vmatpush.bf16.msra.mxu0 %v1058
      %1098 = vmatpush.bf16.msra.mxu0 %v1042
      %1099 = vmatmul.bf16.gmra.mxu0 %v1069
      %v1100 = vpop.f32.mrf.mxu0
      %v1101 = vadd.f32 0.0, %v1100
      %v1102 = vpop.f32.mrf.mxu0
      %v1103 = vadd.f32 0.0, %v1102
      %1104 = vdwg.mxu0
      %v1105 = vpack.c.bf16 %v1089, %v1087
      %v1106 = vpack.c.bf16 %v1103, %v1101
      %v1107 = vld [vmem:[%s5] sm:$0xf]
      %v1108 = vld [vmem:[%s5 + $0x4] sm:$0xf]
      %v1109 = vld [vmem:[%s5 + $0x8] sm:$0xf]
      %v1110 = vld [vmem:[%s5 + $0xc] sm:$0xf]
      %v1111 = vld [vmem:[%s5 + $0x10] sm:$0xf]
      %v1112 = vld [vmem:[%s5 + $0x14] sm:$0xf]
      %v1113 = vld [vmem:[%s5 + $0x18] sm:$0xf]
      %v1114 = vld [vmem:[%s5 + $0x1c] sm:$0xf]
      %v1115 = vld [vmem:[%s5 + $0x20] sm:$0xf]
      %v1116 = vld [vmem:[%s5 + $0x24] sm:$0xf]
      %v1117 = vld [vmem:[%s5 + $0x28] sm:$0xf]
      %v1118 = vld [vmem:[%s5 + $0x2c] sm:$0xf]
      %v1119 = vld [vmem:[%s5 + $0x30] sm:$0xf]
      %v1120 = vld [vmem:[%s5 + $0x34] sm:$0xf]
      %v1121 = vld [vmem:[%s5 + $0x38] sm:$0xf]
      %v1122 = vld [vmem:[%s5 + $0x3c] sm:$0xf]
      %v1123 = vld [vmem:[%s5 + $0x40] sm:$0xf]
      %v1124 = vld [vmem:[%s5 + $0x44] sm:$0xf]
      %v1125 = vld [vmem:[%s5 + $0x48] sm:$0xf]
      %v1126 = vld [vmem:[%s5 + $0x4c] sm:$0xf]
      %v1127 = vld [vmem:[%s5 + $0x50] sm:$0xf]
      %v1128 = vld [vmem:[%s5 + $0x54] sm:$0xf]
      %v1129 = vld [vmem:[%s5 + $0x58] sm:$0xf]
      %v1130 = vld [vmem:[%s5 + $0x5c] sm:$0xf]
      %v1131 = vld [vmem:[%s5 + $0x60] sm:$0xf]
      %v1132 = vld [vmem:[%s5 + $0x64] sm:$0xf]
      %v1133 = vld [vmem:[%s5 + $0x68] sm:$0xf]
      %v1134 = vld [vmem:[%s5 + $0x6c] sm:$0xf]
      %v1135 = vld [vmem:[%s5 + $0x70] sm:$0xf]
      %v1136 = vld [vmem:[%s5 + $0x74] sm:$0xf]
      %v1137 = vld [vmem:[%s5 + $0x78] sm:$0xf]
      %v1138 = vld [vmem:[%s5 + $0x7c] sm:$0xf]
      %v1139 = vld [vmem:[%s4] sm:$0xff]
      %v1140 = vld [vmem:[%s4 + $0x8] sm:$0xff]
      %1142 = vset.pattern.permute.xlu0 0
      %1143 = vperm.xlu0 %1142, %v1139
      %v1144 = vpop.permute.xlu0 %1143
      %1147 = vset.pattern.permute.xlu0 0
      %1148 = vperm.xlu0 %1147, %v1140
      %v1149 = vpop.permute.xlu0 %1148
      %v1183 = vunpack.c.l.b16 %v1107
      %v1184 = vunpack.c.l.b16 %v1108
      %v1185 = vunpack.c.l.b16 %v1109
      %v1186 = vunpack.c.l.b16 %v1110
      %v1187 = vunpack.c.l.b16 %v1111
      %v1188 = vunpack.c.l.b16 %v1112
      %v1189 = vunpack.c.l.b16 %v1113
      %v1190 = vunpack.c.l.b16 %v1114
      %v1191 = vunpack.c.l.b16 %v1115
      %v1192 = vunpack.c.l.b16 %v1116
      %v1193 = vunpack.c.l.b16 %v1117
      %v1194 = vunpack.c.l.b16 %v1118
      %v1195 = vunpack.c.l.b16 %v1119
      %v1196 = vunpack.c.l.b16 %v1120
      %v1197 = vunpack.c.l.b16 %v1121
      %v1198 = vunpack.c.l.b16 %v1122
      %v1199 = vunpack.c.l.b16 %v1123
      %v1200 = vunpack.c.l.b16 %v1124
      %v1201 = vunpack.c.l.b16 %v1125
      %v1202 = vunpack.c.l.b16 %v1126
      %v1203 = vunpack.c.l.b16 %v1127
      %v1204 = vunpack.c.l.b16 %v1128
      %v1205 = vunpack.c.l.b16 %v1129
      %v1206 = vunpack.c.l.b16 %v1130
      %v1207 = vunpack.c.l.b16 %v1131
      %v1208 = vunpack.c.l.b16 %v1132
      %v1209 = vunpack.c.l.b16 %v1133
      %v1210 = vunpack.c.l.b16 %v1134
      %v1211 = vunpack.c.l.b16 %v1135
      %v1212 = vunpack.c.l.b16 %v1136
      %v1213 = vunpack.c.l.b16 %v1137
      %v1214 = vunpack.c.l.b16 %v1138
      %v1215 = vpack.c.b16 %v1184, %v1183
      %v1216 = vpack.c.b16 %v1186, %v1185
      %v1217 = vpack.c.b16 %v1188, %v1187
      %v1218 = vpack.c.b16 %v1190, %v1189
      %v1219 = vpack.c.b16 %v1192, %v1191
      %v1220 = vpack.c.b16 %v1194, %v1193
      %v1221 = vpack.c.b16 %v1196, %v1195
      %v1222 = vpack.c.b16 %v1198, %v1197
      %v1223 = vpack.c.b16 %v1200, %v1199
      %v1224 = vpack.c.b16 %v1202, %v1201
      %v1225 = vpack.c.b16 %v1204, %v1203
      %v1226 = vpack.c.b16 %v1206, %v1205
      %v1227 = vpack.c.b16 %v1208, %v1207
      %v1228 = vpack.c.b16 %v1210, %v1209
      %v1229 = vpack.c.b16 %v1212, %v1211
      %v1230 = vpack.c.b16 %v1214, %v1213
      %1247 = vmatpush.bf16.msra.mxu0 %v1222
      %1248 = vmatpush.bf16.msra.mxu0 %v1221
      %1249 = vmatpush.bf16.msra.mxu0 %v1220
      %1250 = vmatpush.bf16.msra.mxu0 %v1219
      %1251 = vmatpush.bf16.msra.mxu0 %v1218
      %1252 = vmatpush.bf16.msra.mxu0 %v1217
      %1253 = vmatpush.bf16.msra.mxu0 %v1216
      %1254 = vmatpush.bf16.msra.mxu0 %v1215
      %1255 = vmatmul.bf16.gmra.mxu0 %v1105
      %v1256 = vpop.f32.mrf.mxu0
      %v1257 = vadd.f32 %v1144, %v1256
      %v1258 = vpop.f32.mrf.mxu0
      %v1259 = vadd.f32 %v1149, %v1258
      %1260 = vdwg.mxu0
      %1261 = vmatpush.bf16.msra.mxu0 %v1230
      %1262 = vmatpush.bf16.msra.mxu0 %v1229
      %1263 = vmatpush.bf16.msra.mxu0 %v1228
      %1264 = vmatpush.bf16.msra.mxu0 %v1227
      %1265 = vmatpush.bf16.msra.mxu0 %v1226
      %1266 = vmatpush.bf16.msra.mxu0 %v1225
      %1267 = vmatpush.bf16.msra.mxu0 %v1224
      %1268 = vmatpush.bf16.msra.mxu0 %v1223
      %1269 = vmatmul.bf16.gmra.mxu0 %v1106
      %v1270 = vpop.f32.mrf.mxu0
      %v1271 = vadd.f32 %v1257, %v1270
      %v1272 = vpop.f32.mrf.mxu0
      %v1273 = vadd.f32 %v1259, %v1272
      %1274 = vdwg.mxu0
      %v1275 = vmax.f32 %v1271, 0.0
      %v1276 = vmax.f32 %v1273, 0.0
      %vm1277 = vcmask 68608
      %1278 = vst.msk [vmem:[#allocation2] sm:$0xf] %vm1277, 0
      %1279 = vst.msk [vmem:[#allocation2 + $0xc] sm:$0xf] %vm1277, 0
      %vm1280 = vcmask 667208
      %1281 = vst.msk [vmem:[#allocation2] sm:$0xf] %vm1280, 0
      %1282 = vst.msk [vmem:[#allocation2 + $0xc] sm:$0xf] %vm1280, 0
      %v1283 = vpack.c.bf16 %v1275, %v1275
      %v1284 = vpack.c.bf16 %v1276, %v1276
      %1287 = vrot.lane.b32.xlu0 %v1283, 9
      %v1288 = vpop.permute.xlu0 %1287
      %1289 = vrot.lane.b32.xlu0 %v1284, 9
      %v1290 = vpop.permute.xlu0 %1289
      %vm1293 = vcmask 592968
      %1294 = vst.msk [vmem:[#allocation2] sm:$0xf] %vm1293, %v1288
      %1295 = vst.msk [vmem:[#allocation2 + $0xc] sm:$0xf] %vm1293, %v1290
      %v1296 = vld [vmem:[#allocation2] sm:$0xf]
      %v1297 = vld [vmem:[#allocation2 + $0xc] sm:$0xf]
      %v1299 = vpack.i.b16 %v649, %v649
      %v1301 = vperm.slane %v1299, 0
      %v1302 = vunpack.c.l.bf16 %v1296
      %v1303 = vunpack.c.l.bf16 %v1297
      %v1304 = vunpack.c.l.bf16 %v1301
      %v1305 = vmul.f32 %v1302, %v1304
      %v1306 = vmul.f32 %v1303, %v1304
      %v1307 = vpack.c.bf16 %v1305, %v1305
      %v1308 = vpack.c.bf16 %v1306, %v1306
      %v1309 = vshrl.u32 %v649, 16
      %v1310 = vpack.i.b16 %v1309, %v1309
      %v1312 = vperm.slane %v1310, 0
      %v1313 = vunpack.c.l.bf16 %v1312
      %1315 = vrot.lane.b32.xlu0 %v1313, 1
      %v1316 = vpop.permute.xlu0 %1315
      %v1318 = vmul.f32 %v1302, %v1316
      %v1319 = vmul.f32 %v1303, %v1316
      %v1320 = vpack.c.bf16 %v1318, %v1318
      %v1321 = vpack.c.bf16 %v1319, %v1319
      %v1322 = vperm.slane %v1299, 1
      %v1323 = vunpack.c.l.bf16 %v1322
      %1325 = vrot.lane.b32.xlu0 %v1323, 2
      %v1326 = vpop.permute.xlu0 %1325
      %v1328 = vmul.f32 %v1302, %v1326
      %v1329 = vmul.f32 %v1303, %v1326
      %v1330 = vpack.c.bf16 %v1328, %v1328
      %v1331 = vpack.c.bf16 %v1329, %v1329
      %v1332 = vperm.slane %v1310, 1
      %v1333 = vunpack.c.l.bf16 %v1332
      %1335 = vrot.lane.b32.xlu0 %v1333, 8
      %v1336 = vpop.permute.xlu0 %1335
      %v1338 = vmul.f32 %v1302, %v1336
      %v1339 = vmul.f32 %v1303, %v1336
      %v1340 = vpack.c.bf16 %v1338, %v1338
      %v1341 = vpack.c.bf16 %v1339, %v1339
      %v1342 = vperm.slane %v1299, 2
      %v1343 = vunpack.c.l.bf16 %v1342
      %1345 = vrot.lane.b32.xlu0 %v1343, 9
      %v1346 = vpop.permute.xlu0 %1345
      %v1348 = vmul.f32 %v1302, %v1346
      %v1349 = vmul.f32 %v1303, %v1346
      %v1350 = vpack.c.bf16 %v1348, %v1348
      %v1351 = vpack.c.bf16 %v1349, %v1349
      %v1352 = vperm.slane %v1310, 2
      %v1353 = vunpack.c.l.bf16 %v1352
      %1355 = vrot.lane.b32.xlu0 %v1353, 10
      %v1356 = vpop.permute.xlu0 %1355
      %v1358 = vmul.f32 %v1302, %v1356
      %v1359 = vmul.f32 %v1303, %v1356
      %v1360 = vpack.c.bf16 %v1358, %v1358
      %v1361 = vpack.c.bf16 %v1359, %v1359
      %v1362 = vperm.slane %v1299, 3
      %v1363 = vunpack.c.l.bf16 %v1362
      %1365 = vrot.lane.b32.xlu0 %v1363, 16
      %v1366 = vpop.permute.xlu0 %1365
      %v1368 = vmul.f32 %v1302, %v1366
      %v1369 = vmul.f32 %v1303, %v1366
      %v1370 = vpack.c.bf16 %v1368, %v1368
      %v1371 = vpack.c.bf16 %v1369, %v1369
      %v1372 = vperm.slane %v1310, 3
      %v1373 = vunpack.c.l.bf16 %v1372
      %1375 = vrot.lane.b32.xlu0 %v1373, 17
      %v1376 = vpop.permute.xlu0 %1375
      %v1378 = vmul.f32 %v1302, %v1376
      %v1379 = vmul.f32 %v1303, %v1376
      %v1380 = vpack.c.bf16 %v1378, %v1378
      %v1381 = vpack.c.bf16 %v1379, %v1379
      %v1383 = vpack.i.b16 %v650, %v650
      %v1385 = vperm.slane %v1383, 0
      %v1386 = vunpack.c.l.bf16 %v1385
      %1388 = vrot.lane.b32.xlu0 %v1386, 18
      %v1389 = vpop.permute.xlu0 %1388
      %v1391 = vmul.f32 %v1302, %v1389
      %v1392 = vmul.f32 %v1303, %v1389
      %v1393 = vpack.c.bf16 %v1391, %v1391
      %v1394 = vpack.c.bf16 %v1392, %v1392
      %v1397 = vunpack.c.l.b16 %v1307
      %v1398 = vunpack.c.l.b16 %v1308
      %v1399 = vpack.c.b16 %v1398, %v1397
      %v1403 = vunpack.c.l.b16 %v1320
      %v1404 = vunpack.c.l.b16 %v1321
      %v1405 = vpack.c.b16 %v1404, %v1403
      %1406 = vrot.lane.b32.xlu0 %v1405, 127
      %v1407 = vpop.permute.xlu0 %1406
      %v1411 = vunpack.c.l.b16 %v1330
      %v1412 = vunpack.c.l.b16 %v1331
      %v1413 = vpack.c.b16 %v1412, %v1411
      %1414 = vrot.lane.b32.xlu0 %v1413, 126
      %v1415 = vpop.permute.xlu0 %1414
      %v1419 = vunpack.c.l.b16 %v1340
      %v1420 = vunpack.c.l.b16 %v1341
      %v1421 = vpack.c.b16 %v1420, %v1419
      %1422 = vrot.lane.b32.xlu0 %v1421, 120
      %v1423 = vpop.permute.xlu0 %1422
      %v1427 = vunpack.c.l.b16 %v1350
      %v1428 = vunpack.c.l.b16 %v1351
      %v1429 = vpack.c.b16 %v1428, %v1427
      %1430 = vrot.lane.b32.xlu0 %v1429, 119
      %v1431 = vpop.permute.xlu0 %1430
      %v1435 = vunpack.c.l.b16 %v1360
      %v1436 = vunpack.c.l.b16 %v1361
      %v1437 = vpack.c.b16 %v1436, %v1435
      %1438 = vrot.lane.b32.xlu0 %v1437, 118
      %v1439 = vpop.permute.xlu0 %1438
      %v1443 = vunpack.c.l.b16 %v1370
      %v1444 = vunpack.c.l.b16 %v1371
      %v1445 = vpack.c.b16 %v1444, %v1443
      %1446 = vrot.lane.b32.xlu0 %v1445, 112
      %v1447 = vpop.permute.xlu0 %1446
      %v1451 = vunpack.c.l.b16 %v1380
      %v1452 = vunpack.c.l.b16 %v1381
      %v1453 = vpack.c.b16 %v1452, %v1451
      %1454 = vrot.lane.b32.xlu0 %v1453, 111
      %v1455 = vpop.permute.xlu0 %1454
      %v1459 = vunpack.c.l.b16 %v1393
      %v1460 = vunpack.c.l.b16 %v1394
      %v1461 = vpack.c.b16 %v1460, %v1459
      %1462 = vrot.lane.b32.xlu0 %v1461, 110
      %v1463 = vpop.permute.xlu0 %1462
      %v1465 = vld [vmem:[%s6] sm:$0xff]
      %v1466 = vld [vmem:[%s6 + $0x8] sm:$0xff]
      %v1467 = vld [vmem:[%s6 + $0x10] sm:$0xff]
      %v1468 = vld [vmem:[%s6 + $0x18] sm:$0xff]
      %v1473 = vunpack.c.l.b16 %v1465
      %v1474 = vunpack.c.h.b16 %v1465
      %v1475 = vunpack.c.l.b16 %v1466
      %v1476 = vunpack.c.h.b16 %v1466
      %v1477 = vunpack.c.l.b16 %v1467
      %v1478 = vunpack.c.h.b16 %v1467
      %v1479 = vunpack.c.l.b16 %v1468
      %v1480 = vunpack.c.h.b16 %v1468
      %v1481 = vpack.c.b16 %v1475, %v1473
      %v1482 = vpack.c.b16 %v1476, %v1474
      %v1483 = vpack.c.b16 %v1479, %v1477
      %v1484 = vpack.c.b16 %v1480, %v1478
      %v1488 = vsel %vm751, %v1482, 0
      %v1491 = vsel %vm751, %v1484, 0
      %1493 = vmatpush.bf16.msra.mxu0 %v1455
      %1494 = vmatpush.bf16.msra.mxu0 %v1447
      %1495 = vmatpush.bf16.msra.mxu0 %v1439
      %1496 = vmatpush.bf16.msra.mxu0 %v1431
      %1497 = vmatpush.bf16.msra.mxu0 %v1423
      %1498 = vmatpush.bf16.msra.mxu0 %v1415
      %1499 = vmatpush.bf16.msra.mxu0 %v1407
      %1500 = vmatpush.bf16.msra.mxu0 %v1399
      %1501 = vmatmul.bf16.gmra.mxu0 %v1481
      %v1502 = vpop.f32.mrf.mxu0
      %v1503 = vadd.f32 0.0, %v1502
      %v1504 = vpop.f32.mrf.mxu0
      %v1505 = vadd.f32 0.0, %v1504
      %1506 = vmatmul.bf16.gmra.mxu0 %v1483
      %v1507 = vpop.f32.mrf.mxu0
      %v1508 = vadd.f32 0.0, %v1507
      %v1509 = vpop.f32.mrf.mxu0
      %v1510 = vadd.f32 0.0, %v1509
      %1511 = vdwg.mxu0
      %1512 = vmatpush.bf16.msra.mxu0 0
      %1513 = vmatpush.bf16.msra.mxu0 0
      %1514 = vmatpush.bf16.msra.mxu0 0
      %1515 = vmatpush.bf16.msra.mxu0 0
      %1516 = vmatpush.bf16.msra.mxu0 0
      %1517 = vmatpush.bf16.msra.mxu0 0
      %1518 = vmatpush.bf16.msra.mxu0 0
      %1519 = vmatpush.bf16.msra.mxu0 %v1463
      %1520 = vmatmul.bf16.gmra.mxu0 %v1488
      %v1521 = vpop.f32.mrf.mxu0
      %v1522 = vadd.f32 %v1503, %v1521
      %v1523 = vpop.f32.mrf.mxu0
      %v1524 = vadd.f32 %v1505, %v1523
      %1525 = vmatmul.bf16.gmra.mxu0 %v1491
      %v1526 = vpop.f32.mrf.mxu0
      %v1527 = vadd.f32 %v1508, %v1526
      %v1528 = vpop.f32.mrf.mxu0
      %v1529 = vadd.f32 %v1510, %v1528
      %1530 = vdwg.mxu0
      %v1531 = vpack.c.bf16 %v1524, %v1522
      %v1532 = vpack.c.bf16 %v1529, %v1527
      %v1533 = vld [vmem:[%s8] sm:$0xf]
      %v1534 = vld [vmem:[%s8 + $0x4] sm:$0xf]
      %v1535 = vld [vmem:[%s8 + $0x8] sm:$0xf]
      %v1536 = vld [vmem:[%s8 + $0xc] sm:$0xf]
      %v1537 = vld [vmem:[%s8 + $0x10] sm:$0xf]
      %v1538 = vld [vmem:[%s8 + $0x14] sm:$0xf]
      %v1539 = vld [vmem:[%s8 + $0x18] sm:$0xf]
      %v1540 = vld [vmem:[%s8 + $0x1c] sm:$0xf]
      %v1541 = vld [vmem:[%s7] sm:$0xff]
      %v1542 = vld [vmem:[%s7 + $0x8] sm:$0xff]
      %v1543 = vld [vmem:[%s7 + $0x10] sm:$0xff]
      %v1544 = vld [vmem:[%s7 + $0x18] sm:$0xff]
      %1546 = vset.pattern.permute.xlu0 0
      %1547 = vperm.xlu0 %1546, %v1541
      %v1548 = vpop.permute.xlu0 %1547
      %1551 = vset.pattern.permute.xlu0 0
      %1552 = vperm.xlu0 %1551, %v1542
      %v1553 = vpop.permute.xlu0 %1552
      %1556 = vset.pattern.permute.xlu0 0
      %1557 = vperm.xlu0 %1556, %v1543
      %v1558 = vpop.permute.xlu0 %1557
      %1561 = vset.pattern.permute.xlu0 0
      %1562 = vperm.xlu0 %1561, %v1544
      %v1563 = vpop.permute.xlu0 %1562
      %v1573 = vunpack.c.l.b16 %v1533
      %v1574 = vunpack.c.l.b16 %v1534
      %v1575 = vunpack.c.l.b16 %v1535
      %v1576 = vunpack.c.l.b16 %v1536
      %v1577 = vunpack.c.l.b16 %v1537
      %v1578 = vunpack.c.l.b16 %v1538
      %v1579 = vunpack.c.l.b16 %v1539
      %v1580 = vunpack.c.l.b16 %v1540
      %v1581 = vpack.c.b16 %v1574, %v1573
      %v1582 = vpack.c.b16 %v1576, %v1575
      %v1583 = vpack.c.b16 %v1578, %v1577
      %v1584 = vpack.c.b16 %v1580, %v1579
      %vm1589 = vcmask 523264
      %v1591 = vsel %vm1589, %v1531, 0
      %v1594 = vsel %vm1589, %v1532, 0
      %1596 = vmatpush.bf16.msra.mxu0 0
      %1597 = vmatpush.bf16.msra.mxu0 0
      %1598 = vmatpush.bf16.msra.mxu0 0
      %1599 = vmatpush.bf16.msra.mxu0 0
      %1600 = vmatpush.bf16.msra.mxu0 %v1584
      %1601 = vmatpush.bf16.msra.mxu0 %v1583
      %1602 = vmatpush.bf16.msra.mxu0 %v1582
      %1603 = vmatpush.bf16.msra.mxu0 %v1581
      %1604 = vmatmul.bf16.gmra.mxu0 %v1591
      %v1605 = vpop.f32.mrf.mxu0
      %v1606 = vadd.f32 %v1548, %v1605
      %v1607 = vpop.f32.mrf.mxu0
      %v1608 = vadd.f32 %v1553, %v1607
      %1609 = vmatmul.bf16.gmra.mxu0 %v1594
      %v1610 = vpop.f32.mrf.mxu0
      %v1611 = vadd.f32 %v1558, %v1610
      %v1612 = vpop.f32.mrf.mxu0
      %v1613 = vadd.f32 %v1563, %v1612
      %1614 = vdwg.mxu0
      %v1615 = vmax.f32 %v1606, 0.0
      %v1616 = vmax.f32 %v1608, 0.0
      %v1617 = vmax.f32 %v1611, 0.0
      %v1618 = vmax.f32 %v1613, 0.0
      %1619 = vst.msk [vmem:[#allocation3] sm:$0xff] %vm711, %v1615
      %1620 = vst.msk [vmem:[#allocation3 + $0x8] sm:$0xff] %vm711, %v1616
      %1621 = vst.msk [vmem:[#allocation3 + $0x10] sm:$0xff] %vm711, %v1617
      %1622 = vst.msk [vmem:[#allocation3 + $0x18] sm:$0xff] %vm711, %v1618
      %1627 = vrot.lane.b32.xlu0 %v1615, 127
      %v1628 = vpop.permute.xlu0 %1627
      %1629 = vrot.lane.b32.xlu0 %v1616, 127
      %v1630 = vpop.permute.xlu0 %1629
      %1631 = vrot.lane.b32.xlu0 %v1617, 127
      %v1632 = vpop.permute.xlu0 %1631
      %1633 = vrot.lane.b32.xlu0 %v1618, 127
      %v1634 = vpop.permute.xlu0 %1633
      %1639 = vst.msk [vmem:[#allocation3 + $0x20] sm:$0xff] %vm711, %v1628
      %1640 = vst.msk [vmem:[#allocation3 + $0x28] sm:$0xff] %vm711, %v1630
      %1641 = vst.msk [vmem:[#allocation3 + $0x30] sm:$0xff] %vm711, %v1632
      %1642 = vst.msk [vmem:[#allocation3 + $0x38] sm:$0xff] %vm711, %v1634
      %1643 = vrot.lane.b32.xlu0 %v1615, 126
      %v1644 = vpop.permute.xlu0 %1643
      %1645 = vrot.lane.b32.xlu0 %v1616, 126
      %v1646 = vpop.permute.xlu0 %1645
      %1647 = vrot.lane.b32.xlu0 %v1617, 126
      %v1648 = vpop.permute.xlu0 %1647
      %1649 = vrot.lane.b32.xlu0 %v1618, 126
      %v1650 = vpop.permute.xlu0 %1649
      %1655 = vst.msk [vmem:[#allocation3 + $0x40] sm:$0xff] %vm711, %v1644
      %1656 = vst.msk [vmem:[#allocation3 + $0x48] sm:$0xff] %vm711, %v1646
      %1657 = vst.msk [vmem:[#allocation3 + $0x50] sm:$0xff] %vm711, %v1648
      %1658 = vst.msk [vmem:[#allocation3 + $0x58] sm:$0xff] %vm711, %v1650
      %1659 = vrot.lane.b32.xlu0 %v1615, 125
      %v1660 = vpop.permute.xlu0 %1659
      %1661 = vrot.lane.b32.xlu0 %v1616, 125
      %v1662 = vpop.permute.xlu0 %1661
      %1663 = vrot.lane.b32.xlu0 %v1617, 125
      %v1664 = vpop.permute.xlu0 %1663
      %1665 = vrot.lane.b32.xlu0 %v1618, 125
      %v1666 = vpop.permute.xlu0 %1665
      %1671 = vst.msk [vmem:[#allocation3 + $0x60] sm:$0xff] %vm711, %v1660
      %1672 = vst.msk [vmem:[#allocation3 + $0x68] sm:$0xff] %vm711, %v1662
      %1673 = vst.msk [vmem:[#allocation3 + $0x70] sm:$0xff] %vm711, %v1664
      %1674 = vst.msk [vmem:[#allocation3 + $0x78] sm:$0xff] %vm711, %v1666
      %1675 = vrot.lane.b32.xlu0 %v1615, 124
      %v1676 = vpop.permute.xlu0 %1675
      %1677 = vrot.lane.b32.xlu0 %v1616, 124
      %v1678 = vpop.permute.xlu0 %1677
      %1679 = vrot.lane.b32.xlu0 %v1617, 124
      %v1680 = vpop.permute.xlu0 %1679
      %1681 = vrot.lane.b32.xlu0 %v1618, 124
      %v1682 = vpop.permute.xlu0 %1681
      %1687 = vst.msk [vmem:[#allocation3 + $0x80] sm:$0xff] %vm711, %v1676
      %1688 = vst.msk [vmem:[#allocation3 + $0x88] sm:$0xff] %vm711, %v1678
      %1689 = vst.msk [vmem:[#allocation3 + $0x90] sm:$0xff] %vm711, %v1680
      %1690 = vst.msk [vmem:[#allocation3 + $0x98] sm:$0xff] %vm711, %v1682
      %1691 = vrot.lane.b32.xlu0 %v1615, 123
      %v1692 = vpop.permute.xlu0 %1691
      %1693 = vrot.lane.b32.xlu0 %v1616, 123
      %v1694 = vpop.permute.xlu0 %1693
      %1695 = vrot.lane.b32.xlu0 %v1617, 123
      %v1696 = vpop.permute.xlu0 %1695
      %1697 = vrot.lane.b32.xlu0 %v1618, 123
      %v1698 = vpop.permute.xlu0 %1697
      %1703 = vst.msk [vmem:[#allocation3 + $0xa0] sm:$0xff] %vm711, %v1692
      %1704 = vst.msk [vmem:[#allocation3 + $0xa8] sm:$0xff] %vm711, %v1694
      %1705 = vst.msk [vmem:[#allocation3 + $0xb0] sm:$0xff] %vm711, %v1696
      %1706 = vst.msk [vmem:[#allocation3 + $0xb8] sm:$0xff] %vm711, %v1698
      %1707 = vrot.lane.b32.xlu0 %v1615, 122
      %v1708 = vpop.permute.xlu0 %1707
      %1709 = vrot.lane.b32.xlu0 %v1616, 122
      %v1710 = vpop.permute.xlu0 %1709
      %1711 = vrot.lane.b32.xlu0 %v1617, 122
      %v1712 = vpop.permute.xlu0 %1711
      %1713 = vrot.lane.b32.xlu0 %v1618, 122
      %v1714 = vpop.permute.xlu0 %1713
      %1719 = vst.msk [vmem:[#allocation3 + $0xc0] sm:$0xff] %vm711, %v1708
      %1720 = vst.msk [vmem:[#allocation3 + $0xc8] sm:$0xff] %vm711, %v1710
      %1721 = vst.msk [vmem:[#allocation3 + $0xd0] sm:$0xff] %vm711, %v1712
      %1722 = vst.msk [vmem:[#allocation3 + $0xd8] sm:$0xff] %vm711, %v1714
      %1723 = vrot.lane.b32.xlu0 %v1615, 121
      %v1724 = vpop.permute.xlu0 %1723
      %1725 = vrot.lane.b32.xlu0 %v1616, 121
      %v1726 = vpop.permute.xlu0 %1725
      %1727 = vrot.lane.b32.xlu0 %v1617, 121
      %v1728 = vpop.permute.xlu0 %1727
      %1729 = vrot.lane.b32.xlu0 %v1618, 121
      %v1730 = vpop.permute.xlu0 %1729
      %1735 = vst.msk [vmem:[#allocation3 + $0xe0] sm:$0xff] %vm711, %v1724
      %1736 = vst.msk [vmem:[#allocation3 + $0xe8] sm:$0xff] %vm711, %v1726
      %1737 = vst.msk [vmem:[#allocation3 + $0xf0] sm:$0xff] %vm711, %v1728
      %1738 = vst.msk [vmem:[#allocation3 + $0xf8] sm:$0xff] %vm711, %v1730
      %1739 = vrot.lane.b32.xlu0 %v1615, 120
      %v1740 = vpop.permute.xlu0 %1739
      %1741 = vrot.lane.b32.xlu0 %v1616, 120
      %v1742 = vpop.permute.xlu0 %1741
      %1743 = vrot.lane.b32.xlu0 %v1617, 120
      %v1744 = vpop.permute.xlu0 %1743
      %1745 = vrot.lane.b32.xlu0 %v1618, 120
      %v1746 = vpop.permute.xlu0 %1745
      %1751 = vst.msk [vmem:[#allocation3 + $0x100] sm:$0xff] %vm711, %v1740
      %1752 = vst.msk [vmem:[#allocation3 + $0x108] sm:$0xff] %vm711, %v1742
      %1753 = vst.msk [vmem:[#allocation3 + $0x110] sm:$0xff] %vm711, %v1744
      %1754 = vst.msk [vmem:[#allocation3 + $0x118] sm:$0xff] %vm711, %v1746
      %1755 = vrot.lane.b32.xlu0 %v1615, 119
      %v1756 = vpop.permute.xlu0 %1755
      %1757 = vrot.lane.b32.xlu0 %v1616, 119
      %v1758 = vpop.permute.xlu0 %1757
      %1759 = vrot.lane.b32.xlu0 %v1617, 119
      %v1760 = vpop.permute.xlu0 %1759
      %1761 = vrot.lane.b32.xlu0 %v1618, 119
      %v1762 = vpop.permute.xlu0 %1761
      %1767 = vst.msk [vmem:[#allocation3 + $0x120] sm:$0xff] %vm711, %v1756
      %1768 = vst.msk [vmem:[#allocation3 + $0x128] sm:$0xff] %vm711, %v1758
      %1769 = vst.msk [vmem:[#allocation3 + $0x130] sm:$0xff] %vm711, %v1760
      %1770 = vst.msk [vmem:[#allocation3 + $0x138] sm:$0xff] %vm711, %v1762
      %1771 = vrot.lane.b32.xlu0 %v1615, 118
      %v1772 = vpop.permute.xlu0 %1771
      %1773 = vrot.lane.b32.xlu0 %v1616, 118
      %v1774 = vpop.permute.xlu0 %1773
      %1775 = vrot.lane.b32.xlu0 %v1617, 118
      %v1776 = vpop.permute.xlu0 %1775
      %1777 = vrot.lane.b32.xlu0 %v1618, 118
      %v1778 = vpop.permute.xlu0 %1777
      %1783 = vst.msk [vmem:[#allocation3 + $0x140] sm:$0xff] %vm711, %v1772
      %1784 = vst.msk [vmem:[#allocation3 + $0x148] sm:$0xff] %vm711, %v1774
      %1785 = vst.msk [vmem:[#allocation3 + $0x150] sm:$0xff] %vm711, %v1776
      %1786 = vst.msk [vmem:[#allocation3 + $0x158] sm:$0xff] %vm711, %v1778
      %1787 = vrot.lane.b32.xlu0 %v1615, 117
      %v1788 = vpop.permute.xlu0 %1787
      %1789 = vrot.lane.b32.xlu0 %v1616, 117
      %v1790 = vpop.permute.xlu0 %1789
      %1791 = vrot.lane.b32.xlu0 %v1617, 117
      %v1792 = vpop.permute.xlu0 %1791
      %1793 = vrot.lane.b32.xlu0 %v1618, 117
      %v1794 = vpop.permute.xlu0 %1793
      %1799 = vst.msk [vmem:[#allocation3 + $0x160] sm:$0xff] %vm711, %v1788
      %1800 = vst.msk [vmem:[#allocation3 + $0x168] sm:$0xff] %vm711, %v1790
      %1801 = vst.msk [vmem:[#allocation3 + $0x170] sm:$0xff] %vm711, %v1792
      %1802 = vst.msk [vmem:[#allocation3 + $0x178] sm:$0xff] %vm711, %v1794
      %1803 = vrot.lane.b32.xlu0 %v1615, 116
      %v1804 = vpop.permute.xlu0 %1803
      %1805 = vrot.lane.b32.xlu0 %v1616, 116
      %v1806 = vpop.permute.xlu0 %1805
      %1807 = vrot.lane.b32.xlu0 %v1617, 116
      %v1808 = vpop.permute.xlu0 %1807
      %1809 = vrot.lane.b32.xlu0 %v1618, 116
      %v1810 = vpop.permute.xlu0 %1809
      %1815 = vst.msk [vmem:[#allocation3 + $0x180] sm:$0xff] %vm711, %v1804
      %1816 = vst.msk [vmem:[#allocation3 + $0x188] sm:$0xff] %vm711, %v1806
      %1817 = vst.msk [vmem:[#allocation3 + $0x190] sm:$0xff] %vm711, %v1808
      %1818 = vst.msk [vmem:[#allocation3 + $0x198] sm:$0xff] %vm711, %v1810
      %1819 = vrot.lane.b32.xlu0 %v1615, 115
      %v1820 = vpop.permute.xlu0 %1819
      %1821 = vrot.lane.b32.xlu0 %v1616, 115
      %v1822 = vpop.permute.xlu0 %1821
      %1823 = vrot.lane.b32.xlu0 %v1617, 115
      %v1824 = vpop.permute.xlu0 %1823
      %1825 = vrot.lane.b32.xlu0 %v1618, 115
      %v1826 = vpop.permute.xlu0 %1825
      %1831 = vst.msk [vmem:[#allocation3 + $0x1a0] sm:$0xff] %vm711, %v1820
      %1832 = vst.msk [vmem:[#allocation3 + $0x1a8] sm:$0xff] %vm711, %v1822
      %1833 = vst.msk [vmem:[#allocation3 + $0x1b0] sm:$0xff] %vm711, %v1824
      %1834 = vst.msk [vmem:[#allocation3 + $0x1b8] sm:$0xff] %vm711, %v1826
      %1835 = vrot.lane.b32.xlu0 %v1615, 114
      %v1836 = vpop.permute.xlu0 %1835
      %1837 = vrot.lane.b32.xlu0 %v1616, 114
      %v1838 = vpop.permute.xlu0 %1837
      %1839 = vrot.lane.b32.xlu0 %v1617, 114
      %v1840 = vpop.permute.xlu0 %1839
      %1841 = vrot.lane.b32.xlu0 %v1618, 114
      %v1842 = vpop.permute.xlu0 %1841
      %1847 = vst.msk [vmem:[#allocation3 + $0x1c0] sm:$0xff] %vm711, %v1836
      %1848 = vst.msk [vmem:[#allocation3 + $0x1c8] sm:$0xff] %vm711, %v1838
      %1849 = vst.msk [vmem:[#allocation3 + $0x1d0] sm:$0xff] %vm711, %v1840
      %1850 = vst.msk [vmem:[#allocation3 + $0x1d8] sm:$0xff] %vm711, %v1842
      %1851 = vrot.lane.b32.xlu0 %v1615, 113
      %v1852 = vpop.permute.xlu0 %1851
      %1853 = vrot.lane.b32.xlu0 %v1616, 113
      %v1854 = vpop.permute.xlu0 %1853
      %1855 = vrot.lane.b32.xlu0 %v1617, 113
      %v1856 = vpop.permute.xlu0 %1855
      %1857 = vrot.lane.b32.xlu0 %v1618, 113
      %v1858 = vpop.permute.xlu0 %1857
      %1863 = vst.msk [vmem:[#allocation3 + $0x1e0] sm:$0xff] %vm711, %v1852
      %1864 = vst.msk [vmem:[#allocation3 + $0x1e8] sm:$0xff] %vm711, %v1854
      %1865 = vst.msk [vmem:[#allocation3 + $0x1f0] sm:$0xff] %vm711, %v1856
      %1866 = vst.msk [vmem:[#allocation3 + $0x1f8] sm:$0xff] %vm711, %v1858
      %v1867 = vld [vmem:[%s9] sm:$0xff]
      %v1868 = vld [vmem:[%s9 + $0x8] sm:$0xff]
      %v1869 = vld [vmem:[%s9 + $0x10] sm:$0xff]
      %v1870 = vld [vmem:[%s9 + $0x18] sm:$0xff]
      %v1871 = vld [vmem:[%s9 + $0x20] sm:$0xff]
      %v1872 = vld [vmem:[%s9 + $0x28] sm:$0xff]
      %v1873 = vld [vmem:[%s9 + $0x30] sm:$0xff]
      %v1874 = vld [vmem:[%s9 + $0x38] sm:$0xff]
      %v1875 = vld [vmem:[#allocation3] sm:$0xff]
      %v1876 = vld [vmem:[#allocation3 + $0x8] sm:$0xff]
      %v1877 = vld [vmem:[#allocation3 + $0x10] sm:$0xff]
      %v1878 = vld [vmem:[#allocation3 + $0x18] sm:$0xff]
      %v1879 = vld [vmem:[#allocation3 + $0x20] sm:$0xff]
      %v1880 = vld [vmem:[#allocation3 + $0x28] sm:$0xff]
      %v1881 = vld [vmem:[#allocation3 + $0x30] sm:$0xff]
      %v1882 = vld [vmem:[#allocation3 + $0x38] sm:$0xff]
      %v1883 = vld [vmem:[#allocation3 + $0x40] sm:$0xff]
      %v1884 = vld [vmem:[#allocation3 + $0x48] sm:$0xff]
      %v1885 = vld [vmem:[#allocation3 + $0x50] sm:$0xff]
      %v1886 = vld [vmem:[#allocation3 + $0x58] sm:$0xff]
      %v1887 = vld [vmem:[#allocation3 + $0x60] sm:$0xff]
      %v1888 = vld [vmem:[#allocation3 + $0x68] sm:$0xff]
      %v1889 = vld [vmem:[#allocation3 + $0x70] sm:$0xff]
      %v1890 = vld [vmem:[#allocation3 + $0x78] sm:$0xff]
      %v1891 = vld [vmem:[#allocation3 + $0x80] sm:$0xff]
      %v1892 = vld [vmem:[#allocation3 + $0x88] sm:$0xff]
      %v1893 = vld [vmem:[#allocation3 + $0x90] sm:$0xff]
      %v1894 = vld [vmem:[#allocation3 + $0x98] sm:$0xff]
      %v1895 = vld [vmem:[#allocation3 + $0xa0] sm:$0xff]
      %v1896 = vld [vmem:[#allocation3 + $0xa8] sm:$0xff]
      %v1897 = vld [vmem:[#allocation3 + $0xb0] sm:$0xff]
      %v1898 = vld [vmem:[#allocation3 + $0xb8] sm:$0xff]
      %v1899 = vld [vmem:[#allocation3 + $0xc0] sm:$0xff]
      %v1900 = vld [vmem:[#allocation3 + $0xc8] sm:$0xff]
      %v1901 = vld [vmem:[#allocation3 + $0xd0] sm:$0xff]
      %v1902 = vld [vmem:[#allocation3 + $0xd8] sm:$0xff]
      %v1903 = vld [vmem:[#allocation3 + $0xe0] sm:$0xff]
      %v1904 = vld [vmem:[#allocation3 + $0xe8] sm:$0xff]
      %v1905 = vld [vmem:[#allocation3 + $0xf0] sm:$0xff]
      %v1906 = vld [vmem:[#allocation3 + $0xf8] sm:$0xff]
      %v1907 = vld [vmem:[#allocation3 + $0x100] sm:$0xff]
      %v1908 = vld [vmem:[#allocation3 + $0x108] sm:$0xff]
      %v1909 = vld [vmem:[#allocation3 + $0x110] sm:$0xff]
      %v1910 = vld [vmem:[#allocation3 + $0x118] sm:$0xff]
      %v1911 = vld [vmem:[#allocation3 + $0x120] sm:$0xff]
      %v1912 = vld [vmem:[#allocation3 + $0x128] sm:$0xff]
      %v1913 = vld [vmem:[#allocation3 + $0x130] sm:$0xff]
      %v1914 = vld [vmem:[#allocation3 + $0x138] sm:$0xff]
      %v1915 = vld [vmem:[#allocation3 + $0x140] sm:$0xff]
      %v1916 = vld [vmem:[#allocation3 + $0x148] sm:$0xff]
      %v1917 = vld [vmem:[#allocation3 + $0x150] sm:$0xff]
      %v1918 = vld [vmem:[#allocation3 + $0x158] sm:$0xff]
      %v1919 = vld [vmem:[#allocation3 + $0x160] sm:$0xff]
      %v1920 = vld [vmem:[#allocation3 + $0x168] sm:$0xff]
      %v1921 = vld [vmem:[#allocation3 + $0x170] sm:$0xff]
      %v1922 = vld [vmem:[#allocation3 + $0x178] sm:$0xff]
      %v1923 = vld [vmem:[#allocation3 + $0x180] sm:$0xff]
      %v1924 = vld [vmem:[#allocation3 + $0x188] sm:$0xff]
      %v1925 = vld [vmem:[#allocation3 + $0x190] sm:$0xff]
      %v1926 = vld [vmem:[#allocation3 + $0x198] sm:$0xff]
      %v1927 = vld [vmem:[#allocation3 + $0x1a0] sm:$0xff]
      %v1928 = vld [vmem:[#allocation3 + $0x1a8] sm:$0xff]
      %v1929 = vld [vmem:[#allocation3 + $0x1b0] sm:$0xff]
      %v1930 = vld [vmem:[#allocation3 + $0x1b8] sm:$0xff]
      %v1931 = vld [vmem:[#allocation3 + $0x1c0] sm:$0xff]
      %v1932 = vld [vmem:[#allocation3 + $0x1c8] sm:$0xff]
      %v1933 = vld [vmem:[#allocation3 + $0x1d0] sm:$0xff]
      %v1934 = vld [vmem:[#allocation3 + $0x1d8] sm:$0xff]
      %v1935 = vld [vmem:[#allocation3 + $0x1e0] sm:$0xff]
      %v1936 = vld [vmem:[#allocation3 + $0x1e8] sm:$0xff]
      %v1937 = vld [vmem:[#allocation3 + $0x1f0] sm:$0xff]
      %v1938 = vld [vmem:[#allocation3 + $0x1f8] sm:$0xff]
      %v1939 = vpack.c.bf16 %v1876, %v1875
      %v1940 = vpack.c.bf16 %v1878, %v1877
      %v1941 = vpack.c.bf16 %v1880, %v1879
      %v1942 = vpack.c.bf16 %v1882, %v1881
      %v1943 = vpack.c.bf16 %v1884, %v1883
      %v1944 = vpack.c.bf16 %v1886, %v1885
      %v1945 = vpack.c.bf16 %v1888, %v1887
      %v1946 = vpack.c.bf16 %v1890, %v1889
      %v1947 = vpack.c.bf16 %v1892, %v1891
      %v1948 = vpack.c.bf16 %v1894, %v1893
      %v1949 = vpack.c.bf16 %v1896, %v1895
      %v1950 = vpack.c.bf16 %v1898, %v1897
      %v1951 = vpack.c.bf16 %v1900, %v1899
      %v1952 = vpack.c.bf16 %v1902, %v1901
      %v1953 = vpack.c.bf16 %v1904, %v1903
      %v1954 = vpack.c.bf16 %v1906, %v1905
      %v1955 = vpack.c.bf16 %v1908, %v1907
      %v1956 = vpack.c.bf16 %v1910, %v1909
      %v1957 = vpack.c.bf16 %v1912, %v1911
      %v1958 = vpack.c.bf16 %v1914, %v1913
      %v1959 = vpack.c.bf16 %v1916, %v1915
      %v1960 = vpack.c.bf16 %v1918, %v1917
      %v1961 = vpack.c.bf16 %v1920, %v1919
      %v1962 = vpack.c.bf16 %v1922, %v1921
      %v1963 = vpack.c.bf16 %v1924, %v1923
      %v1964 = vpack.c.bf16 %v1926, %v1925
      %v1965 = vpack.c.bf16 %v1928, %v1927
      %v1966 = vpack.c.bf16 %v1930, %v1929
      %v1967 = vpack.c.bf16 %v1932, %v1931
      %v1968 = vpack.c.bf16 %v1934, %v1933
      %v1969 = vpack.c.bf16 %v1936, %v1935
      %v1970 = vpack.c.bf16 %v1938, %v1937
      %v1971 = vld [vmem:[%s10] sm:$0xff]
      %v1972 = vld [vmem:[%s10 + $0x8] sm:$0xff]
      %v1973 = vld [vmem:[%s10 + $0x10] sm:$0xff]
      %v1974 = vld [vmem:[%s10 + $0x18] sm:$0xff]
      %v1983 = vunpack.c.l.b16 %v1867
      %v1984 = vunpack.c.h.b16 %v1867
      %v1985 = vunpack.c.l.b16 %v1868
      %v1986 = vunpack.c.h.b16 %v1868
      %v1987 = vunpack.c.l.b16 %v1869
      %v1988 = vunpack.c.h.b16 %v1869
      %v1989 = vunpack.c.l.b16 %v1870
      %v1990 = vunpack.c.h.b16 %v1870
      %v1991 = vunpack.c.l.b16 %v1871
      %v1992 = vunpack.c.h.b16 %v1871
      %v1993 = vunpack.c.l.b16 %v1872
      %v1994 = vunpack.c.h.b16 %v1872
      %v1995 = vunpack.c.l.b16 %v1873
      %v1996 = vunpack.c.h.b16 %v1873
      %v1997 = vunpack.c.l.b16 %v1874
      %v1998 = vunpack.c.h.b16 %v1874
      %v1999 = vpack.c.b16 %v1987, %v1983
      %v2000 = vpack.c.b16 %v1988, %v1984
      %v2001 = vpack.c.b16 %v1989, %v1985
      %v2002 = vpack.c.b16 %v1990, %v1986
      %v2003 = vpack.c.b16 %v1995, %v1991
      %v2004 = vpack.c.b16 %v1996, %v1992
      %v2005 = vpack.c.b16 %v1997, %v1993
      %v2006 = vpack.c.b16 %v1998, %v1994
      %2015 = vmatpush.bf16.msra.mxu0 %v1946
      %2016 = vmatpush.bf16.msra.mxu0 %v1945
      %2017 = vmatpush.bf16.msra.mxu0 %v1944
      %2018 = vmatpush.bf16.msra.mxu0 %v1943
      %2019 = vmatpush.bf16.msra.mxu0 %v1942
      %2020 = vmatpush.bf16.msra.mxu0 %v1941
      %2021 = vmatpush.bf16.msra.mxu0 %v1940
      %2022 = vmatpush.bf16.msra.mxu0 %v1939
      %2023 = vmatmul.bf16.gmra.mxu0 %v1999
      %v2024 = vpop.f32.mrf.mxu0
      %v2025 = vadd.f32 %v1971, %v2024
      %v2026 = vpop.f32.mrf.mxu0
      %v2027 = vadd.f32 %v1972, %v2026
      %2028 = vmatmul.bf16.gmra.mxu0 %v2003
      %v2029 = vpop.f32.mrf.mxu0
      %v2030 = vadd.f32 %v1973, %v2029
      %v2031 = vpop.f32.mrf.mxu0
      %v2032 = vadd.f32 %v1974, %v2031
      %2033 = vdwg.mxu0
      %2034 = vmatpush.bf16.msra.mxu0 %v1954
      %2035 = vmatpush.bf16.msra.mxu0 %v1953
      %2036 = vmatpush.bf16.msra.mxu0 %v1952
      %2037 = vmatpush.bf16.msra.mxu0 %v1951
      %2038 = vmatpush.bf16.msra.mxu0 %v1950
      %2039 = vmatpush.bf16.msra.mxu0 %v1949
      %2040 = vmatpush.bf16.msra.mxu0 %v1948
      %2041 = vmatpush.bf16.msra.mxu0 %v1947
      %2042 = vmatmul.bf16.gmra.mxu0 %v2000
      %v2043 = vpop.f32.mrf.mxu0
      %v2044 = vadd.f32 %v2025, %v2043
      %v2045 = vpop.f32.mrf.mxu0
      %v2046 = vadd.f32 %v2027, %v2045
      %2047 = vmatmul.bf16.gmra.mxu0 %v2004
      %v2048 = vpop.f32.mrf.mxu0
      %v2049 = vadd.f32 %v2030, %v2048
      %v2050 = vpop.f32.mrf.mxu0
      %v2051 = vadd.f32 %v2032, %v2050
      %2052 = vdwg.mxu0
      %2053 = vmatpush.bf16.msra.mxu0 %v1962
      %2054 = vmatpush.bf16.msra.mxu0 %v1961
      %2055 = vmatpush.bf16.msra.mxu0 %v1960
      %2056 = vmatpush.bf16.msra.mxu0 %v1959
      %2057 = vmatpush.bf16.msra.mxu0 %v1958
      %2058 = vmatpush.bf16.msra.mxu0 %v1957
      %2059 = vmatpush.bf16.msra.mxu0 %v1956
      %2060 = vmatpush.bf16.msra.mxu0 %v1955
      %2061 = vmatmul.bf16.gmra.mxu0 %v2001
      %v2062 = vpop.f32.mrf.mxu0
      %v2063 = vadd.f32 %v2044, %v2062
      %v2064 = vpop.f32.mrf.mxu0
      %v2065 = vadd.f32 %v2046, %v2064
      %2066 = vmatmul.bf16.gmra.mxu0 %v2005
      %v2067 = vpop.f32.mrf.mxu0
      %v2068 = vadd.f32 %v2049, %v2067
      %v2069 = vpop.f32.mrf.mxu0
      %v2070 = vadd.f32 %v2051, %v2069
      %2071 = vdwg.mxu0
      %2072 = vmatpush.bf16.msra.mxu0 %v1970
      %2073 = vmatpush.bf16.msra.mxu0 %v1969
      %2074 = vmatpush.bf16.msra.mxu0 %v1968
      %2075 = vmatpush.bf16.msra.mxu0 %v1967
      %2076 = vmatpush.bf16.msra.mxu0 %v1966
      %2077 = vmatpush.bf16.msra.mxu0 %v1965
      %2078 = vmatpush.bf16.msra.mxu0 %v1964
      %2079 = vmatpush.bf16.msra.mxu0 %v1963
      %2080 = vmatmul.bf16.gmra.mxu0 %v2002
      %v2081 = vpop.f32.mrf.mxu0
      %v2082 = vadd.f32 %v2063, %v2081
      %v2083 = vpop.f32.mrf.mxu0
      %v2084 = vadd.f32 %v2065, %v2083
      %2085 = vmatmul.bf16.gmra.mxu0 %v2006
      %v2086 = vpop.f32.mrf.mxu0
      %v2087 = vadd.f32 %v2068, %v2086
      %v2088 = vpop.f32.mrf.mxu0
      %v2089 = vadd.f32 %v2070, %v2088
      %2090 = vdwg.mxu0
      %2091 = vst.msk [vmem:[%s639] sm:$0xff] %vm711, %v2082
      %2092 = vst.msk [vmem:[%s639 + $0x8] sm:$0xff] %vm711, %v2084
      %2093 = vst.msk [vmem:[%s639 + $0x10] sm:$0xff] %vm711, %v2087
      %2094 = vst.msk [vmem:[%s639 + $0x18] sm:$0xff] %vm711, %v2089
      %v2095 = vpack.c.bf16 %v2084, %v2082
      %v2096 = vpack.c.bf16 %v2089, %v2087
      %v2097 = vld [vmem:[%s12] sm:$0xff]
      %v2098 = vld [vmem:[%s12 + $0x8] sm:$0xff]
      %v2099 = vld [vmem:[%s12 + $0x10] sm:$0xff]
      %v2100 = vld [vmem:[%s12 + $0x18] sm:$0xff]
      %v2101 = vld [vmem:[%s12 + $0x20] sm:$0xff]
      %v2102 = vld [vmem:[%s12 + $0x28] sm:$0xff]
      %v2103 = vld [vmem:[%s12 + $0x30] sm:$0xff]
      %v2104 = vld [vmem:[%s12 + $0x38] sm:$0xff]
      %v2105 = vld [vmem:[%s11] sm:$0xf]
      %v2106 = vld [vmem:[%s11 + $0x4] sm:$0xf]
      %v2107 = vld [vmem:[%s11 + $0x8] sm:$0xf]
      %v2108 = vld [vmem:[%s11 + $0xc] sm:$0xf]
      %v2109 = vld [vmem:[%s11 + $0x10] sm:$0xf]
      %v2110 = vld [vmem:[%s11 + $0x14] sm:$0xf]
      %v2111 = vld [vmem:[%s11 + $0x18] sm:$0xf]
      %v2112 = vld [vmem:[%s11 + $0x1c] sm:$0xf]
      %v2121 = vunpack.c.l.b16 %v2105
      %v2122 = vunpack.c.l.b16 %v2106
      %v2123 = vunpack.c.l.b16 %v2107
      %v2124 = vunpack.c.l.b16 %v2108
      %v2125 = vunpack.c.l.b16 %v2109
      %v2126 = vunpack.c.l.b16 %v2110
      %v2127 = vunpack.c.l.b16 %v2111
      %v2128 = vunpack.c.l.b16 %v2112
      %v2129 = vpack.c.b16 %v2122, %v2121
      %v2130 = vpack.c.b16 %v2124, %v2123
      %v2131 = vpack.c.b16 %v2126, %v2125
      %v2132 = vpack.c.b16 %v2128, %v2127
      %v2134 = vsel %vm811, %v2129, 0
      %v2137 = vsel %vm811, %v2130, 0
      %v2140 = vsel %vm811, %v2131, 0
      %v2143 = vsel %vm811, %v2132, 0
      %2145 = vmatpush.bf16.msra.mxu0 0
      %2146 = vmatpush.bf16.msra.mxu0 0
      %2147 = vmatpush.bf16.msra.mxu0 0
      %2148 = vmatpush.bf16.msra.mxu0 0
      %2149 = vmatpush.bf16.msra.mxu0 0
      %2150 = vmatpush.bf16.msra.mxu0 0
      %2151 = vmatpush.bf16.msra.mxu0 %v2096
      %2152 = vmatpush.bf16.msra.mxu0 %v2095
      %2153 = vmatmul.bf16.gmra.mxu0 %v2134
      %v2154 = vpop.f32.mrf.mxu0
      %v2155 = vadd.f32 %v2097, %v2154
      %v2156 = vpop.f32.mrf.mxu0
      %v2157 = vadd.f32 %v2098, %v2156
      %2158 = vmatmul.bf16.gmra.mxu0 %v2137
      %v2159 = vpop.f32.mrf.mxu0
      %v2160 = vadd.f32 %v2099, %v2159
      %v2161 = vpop.f32.mrf.mxu0
      %v2162 = vadd.f32 %v2100, %v2161
      %2163 = vmatmul.bf16.gmra.mxu0 %v2140
      %v2164 = vpop.f32.mrf.mxu0
      %v2165 = vadd.f32 %v2101, %v2164
      %v2166 = vpop.f32.mrf.mxu0
      %v2167 = vadd.f32 %v2102, %v2166
      %2168 = vmatmul.bf16.gmra.mxu0 %v2143
      %v2169 = vpop.f32.mrf.mxu0
      %v2170 = vadd.f32 %v2103, %v2169
      %v2171 = vpop.f32.mrf.mxu0
      %v2172 = vadd.f32 %v2104, %v2171
      %2173 = vdwg.mxu0
      %v2174 = vmax.f32 %v2155, 0.0
      %v2175 = vmax.f32 %v2157, 0.0
      %v2176 = vmax.f32 %v2160, 0.0
      %v2177 = vmax.f32 %v2162, 0.0
      %v2178 = vmax.f32 %v2165, 0.0
      %v2179 = vmax.f32 %v2167, 0.0
      %v2180 = vmax.f32 %v2170, 0.0
      %v2181 = vmax.f32 %v2172, 0.0
      %2182 = vst.msk [vmem:[#allocation4] sm:$0xff] %vm711, %v2174
      %2183 = vst.msk [vmem:[#allocation4 + $0x8] sm:$0xff] %vm711, %v2175
      %2184 = vst.msk [vmem:[#allocation4 + $0x10] sm:$0xff] %vm711, %v2176
      %2185 = vst.msk [vmem:[#allocation4 + $0x18] sm:$0xff] %vm711, %v2177
      %2186 = vst.msk [vmem:[#allocation4 + $0x20] sm:$0xff] %vm711, %v2178
      %2187 = vst.msk [vmem:[#allocation4 + $0x28] sm:$0xff] %vm711, %v2179
      %2188 = vst.msk [vmem:[#allocation4 + $0x30] sm:$0xff] %vm711, %v2180
      %2189 = vst.msk [vmem:[#allocation4 + $0x38] sm:$0xff] %vm711, %v2181
      %s2190 = scalar_lea.vmem %s11, 32
      %v2191 = vld [vmem:[%s2190] sm:$0xf]
      %v2192 = vld [vmem:[%s2190 + $0x4] sm:$0xf]
      %v2193 = vld [vmem:[%s2190 + $0x8] sm:$0xf]
      %v2194 = vld [vmem:[%s2190 + $0xc] sm:$0xf]
      %v2195 = vld [vmem:[%s2190 + $0x10] sm:$0xf]
      %v2196 = vld [vmem:[%s2190 + $0x14] sm:$0xf]
      %v2197 = vld [vmem:[%s2190 + $0x18] sm:$0xf]
      %v2198 = vld [vmem:[%s2190 + $0x1c] sm:$0xf]
      %v2207 = vunpack.c.l.b16 %v2191
      %v2208 = vunpack.c.l.b16 %v2192
      %v2209 = vunpack.c.l.b16 %v2193
      %v2210 = vunpack.c.l.b16 %v2194
      %v2211 = vunpack.c.l.b16 %v2195
      %v2212 = vunpack.c.l.b16 %v2196
      %v2213 = vunpack.c.l.b16 %v2197
      %v2214 = vunpack.c.l.b16 %v2198
      %v2215 = vpack.c.b16 %v2208, %v2207
      %v2216 = vpack.c.b16 %v2210, %v2209
      %v2217 = vpack.c.b16 %v2212, %v2211
      %v2218 = vpack.c.b16 %v2214, %v2213
      %2227 = vrot.lane.b32.xlu0 %v2097, 127
      %v2228 = vpop.permute.xlu0 %2227
      %2229 = vrot.lane.b32.xlu0 %v2098, 127
      %v2230 = vpop.permute.xlu0 %2229
      %2231 = vrot.lane.b32.xlu0 %v2099, 127
      %v2232 = vpop.permute.xlu0 %2231
      %2233 = vrot.lane.b32.xlu0 %v2100, 127
      %v2234 = vpop.permute.xlu0 %2233
      %2235 = vrot.lane.b32.xlu0 %v2101, 127
      %v2236 = vpop.permute.xlu0 %2235
      %2237 = vrot.lane.b32.xlu0 %v2102, 127
      %v2238 = vpop.permute.xlu0 %2237
      %2239 = vrot.lane.b32.xlu0 %v2103, 127
      %v2240 = vpop.permute.xlu0 %2239
      %2241 = vrot.lane.b32.xlu0 %v2104, 127
      %v2242 = vpop.permute.xlu0 %2241
      %v2252 = vsel %vm811, %v2215, 0
      %v2255 = vsel %vm811, %v2216, 0
      %v2258 = vsel %vm811, %v2217, 0
      %v2261 = vsel %vm811, %v2218, 0
      %2263 = vmatpush.bf16.msra.mxu0 0
      %2264 = vmatpush.bf16.msra.mxu0 0
      %2265 = vmatpush.bf16.msra.mxu0 0
      %2266 = vmatpush.bf16.msra.mxu0 0
      %2267 = vmatpush.bf16.msra.mxu0 0
      %2268 = vmatpush.bf16.msra.mxu0 0
      %2269 = vmatpush.bf16.msra.mxu0 %v2096
      %2270 = vmatpush.bf16.msra.mxu0 %v2095
      %2271 = vmatmul.bf16.gmra.mxu0 %v2252
      %v2272 = vpop.f32.mrf.mxu0
      %v2273 = vadd.f32 %v2228, %v2272
      %v2274 = vpop.f32.mrf.mxu0
      %v2275 = vadd.f32 %v2230, %v2274
      %2276 = vmatmul.bf16.gmra.mxu0 %v2255
      %v2277 = vpop.f32.mrf.mxu0
      %v2278 = vadd.f32 %v2232, %v2277
      %v2279 = vpop.f32.mrf.mxu0
      %v2280 = vadd.f32 %v2234, %v2279
      %2281 = vmatmul.bf16.gmra.mxu0 %v2258
      %v2282 = vpop.f32.mrf.mxu0
      %v2283 = vadd.f32 %v2236, %v2282
      %v2284 = vpop.f32.mrf.mxu0
      %v2285 = vadd.f32 %v2238, %v2284
      %2286 = vmatmul.bf16.gmra.mxu0 %v2261
      %v2287 = vpop.f32.mrf.mxu0
      %v2288 = vadd.f32 %v2240, %v2287
      %v2289 = vpop.f32.mrf.mxu0
      %v2290 = vadd.f32 %v2242, %v2289
      %2291 = vdwg.mxu0
      %v2292 = vmax.f32 %v2273, 0.0
      %v2293 = vmax.f32 %v2275, 0.0
      %v2294 = vmax.f32 %v2278, 0.0
      %v2295 = vmax.f32 %v2280, 0.0
      %v2296 = vmax.f32 %v2283, 0.0
      %v2297 = vmax.f32 %v2285, 0.0
      %v2298 = vmax.f32 %v2288, 0.0
      %v2299 = vmax.f32 %v2290, 0.0
      %2308 = vrot.lane.b32.xlu0 %v2292, 1
      %v2309 = vpop.permute.xlu0 %2308
      %2310 = vrot.lane.b32.xlu0 %v2293, 1
      %v2311 = vpop.permute.xlu0 %2310
      %2312 = vrot.lane.b32.xlu0 %v2294, 1
      %v2313 = vpop.permute.xlu0 %2312
      %2314 = vrot.lane.b32.xlu0 %v2295, 1
      %v2315 = vpop.permute.xlu0 %2314
      %2316 = vrot.lane.b32.xlu0 %v2296, 1
      %v2317 = vpop.permute.xlu0 %2316
      %2318 = vrot.lane.b32.xlu0 %v2297, 1
      %v2319 = vpop.permute.xlu0 %2318
      %2320 = vrot.lane.b32.xlu0 %v2298, 1
      %v2321 = vpop.permute.xlu0 %2320
      %2322 = vrot.lane.b32.xlu0 %v2299, 1
      %v2323 = vpop.permute.xlu0 %2322
      %vm2332 = vcmask 15368
      %2333 = vst.msk [vmem:[#allocation4] sm:$0xff] %vm2332, %v2309
      %2334 = vst.msk [vmem:[#allocation4 + $0x8] sm:$0xff] %vm2332, %v2311
      %2335 = vst.msk [vmem:[#allocation4 + $0x10] sm:$0xff] %vm2332, %v2313
      %2336 = vst.msk [vmem:[#allocation4 + $0x18] sm:$0xff] %vm2332, %v2315
      %2337 = vst.msk [vmem:[#allocation4 + $0x20] sm:$0xff] %vm2332, %v2317
      %2338 = vst.msk [vmem:[#allocation4 + $0x28] sm:$0xff] %vm2332, %v2319
      %2339 = vst.msk [vmem:[#allocation4 + $0x30] sm:$0xff] %vm2332, %v2321
      %2340 = vst.msk [vmem:[#allocation4 + $0x38] sm:$0xff] %vm2332, %v2323
      %s2341 = scalar_lea.vmem %s11, 64
      %v2342 = vld [vmem:[%s2341] sm:$0xf]
      %v2343 = vld [vmem:[%s2341 + $0x4] sm:$0xf]
      %v2344 = vld [vmem:[%s2341 + $0x8] sm:$0xf]
      %v2345 = vld [vmem:[%s2341 + $0xc] sm:$0xf]
      %v2346 = vld [vmem:[%s2341 + $0x10] sm:$0xf]
      %v2347 = vld [vmem:[%s2341 + $0x14] sm:$0xf]
      %v2348 = vld [vmem:[%s2341 + $0x18] sm:$0xf]
      %v2349 = vld [vmem:[%s2341 + $0x1c] sm:$0xf]
      %v2358 = vunpack.c.l.b16 %v2342
      %v2359 = vunpack.c.l.b16 %v2343
      %v2360 = vunpack.c.l.b16 %v2344
      %v2361 = vunpack.c.l.b16 %v2345
      %v2362 = vunpack.c.l.b16 %v2346
      %v2363 = vunpack.c.l.b16 %v2347
      %v2364 = vunpack.c.l.b16 %v2348
      %v2365 = vunpack.c.l.b16 %v2349
      %v2366 = vpack.c.b16 %v2359, %v2358
      %v2367 = vpack.c.b16 %v2361, %v2360
      %v2368 = vpack.c.b16 %v2363, %v2362
      %v2369 = vpack.c.b16 %v2365, %v2364
      %2370 = vrot.lane.b32.xlu0 %v2097, 126
      %v2371 = vpop.permute.xlu0 %2370
      %2372 = vrot.lane.b32.xlu0 %v2098, 126
      %v2373 = vpop.permute.xlu0 %2372
      %2374 = vrot.lane.b32.xlu0 %v2099, 126
      %v2375 = vpop.permute.xlu0 %2374
      %2376 = vrot.lane.b32.xlu0 %v2100, 126
      %v2377 = vpop.permute.xlu0 %2376
      %2378 = vrot.lane.b32.xlu0 %v2101, 126
      %v2379 = vpop.permute.xlu0 %2378
      %2380 = vrot.lane.b32.xlu0 %v2102, 126
      %v2381 = vpop.permute.xlu0 %2380
      %2382 = vrot.lane.b32.xlu0 %v2103, 126
      %v2383 = vpop.permute.xlu0 %2382
      %2384 = vrot.lane.b32.xlu0 %v2104, 126
      %v2385 = vpop.permute.xlu0 %2384
      %v2395 = vsel %vm811, %v2366, 0
      %v2398 = vsel %vm811, %v2367, 0
      %v2401 = vsel %vm811, %v2368, 0
      %v2404 = vsel %vm811, %v2369, 0
      %2406 = vmatpush.bf16.msra.mxu0 0
      %2407 = vmatpush.bf16.msra.mxu0 0
      %2408 = vmatpush.bf16.msra.mxu0 0
      %2409 = vmatpush.bf16.msra.mxu0 0
      %2410 = vmatpush.bf16.msra.mxu0 0
      %2411 = vmatpush.bf16.msra.mxu0 0
      %2412 = vmatpush.bf16.msra.mxu0 %v2096
      %2413 = vmatpush.bf16.msra.mxu0 %v2095
      %2414 = vmatmul.bf16.gmra.mxu0 %v2395
      %v2415 = vpop.f32.mrf.mxu0
      %v2416 = vadd.f32 %v2371, %v2415
      %v2417 = vpop.f32.mrf.mxu0
      %v2418 = vadd.f32 %v2373, %v2417
      %2419 = vmatmul.bf16.gmra.mxu0 %v2398
      %v2420 = vpop.f32.mrf.mxu0
      %v2421 = vadd.f32 %v2375, %v2420
      %v2422 = vpop.f32.mrf.mxu0
      %v2423 = vadd.f32 %v2377, %v2422
      %2424 = vmatmul.bf16.gmra.mxu0 %v2401
      %v2425 = vpop.f32.mrf.mxu0
      %v2426 = vadd.f32 %v2379, %v2425
      %v2427 = vpop.f32.mrf.mxu0
      %v2428 = vadd.f32 %v2381, %v2427
      %2429 = vmatmul.bf16.gmra.mxu0 %v2404
      %v2430 = vpop.f32.mrf.mxu0
      %v2431 = vadd.f32 %v2383, %v2430
      %v2432 = vpop.f32.mrf.mxu0
      %v2433 = vadd.f32 %v2385, %v2432
      %2434 = vdwg.mxu0
      %v2435 = vmax.f32 %v2416, 0.0
      %v2436 = vmax.f32 %v2418, 0.0
      %v2437 = vmax.f32 %v2421, 0.0
      %v2438 = vmax.f32 %v2423, 0.0
      %v2439 = vmax.f32 %v2426, 0.0
      %v2440 = vmax.f32 %v2428, 0.0
      %v2441 = vmax.f32 %v2431, 0.0
      %v2442 = vmax.f32 %v2433, 0.0
      %2451 = vrot.lane.b32.xlu0 %v2435, 2
      %v2452 = vpop.permute.xlu0 %2451
      %2453 = vrot.lane.b32.xlu0 %v2436, 2
      %v2454 = vpop.permute.xlu0 %2453
      %2455 = vrot.lane.b32.xlu0 %v2437, 2
      %v2456 = vpop.permute.xlu0 %2455
      %2457 = vrot.lane.b32.xlu0 %v2438, 2
      %v2458 = vpop.permute.xlu0 %2457
      %2459 = vrot.lane.b32.xlu0 %v2439, 2
      %v2460 = vpop.permute.xlu0 %2459
      %2461 = vrot.lane.b32.xlu0 %v2440, 2
      %v2462 = vpop.permute.xlu0 %2461
      %2463 = vrot.lane.b32.xlu0 %v2441, 2
      %v2464 = vpop.permute.xlu0 %2463
      %2465 = vrot.lane.b32.xlu0 %v2442, 2
      %v2466 = vpop.permute.xlu0 %2465
      %vm2475 = vcmask 23568
      %2476 = vst.msk [vmem:[#allocation4] sm:$0xff] %vm2475, %v2452
      %2477 = vst.msk [vmem:[#allocation4 + $0x8] sm:$0xff] %vm2475, %v2454
      %2478 = vst.msk [vmem:[#allocation4 + $0x10] sm:$0xff] %vm2475, %v2456
      %2479 = vst.msk [vmem:[#allocation4 + $0x18] sm:$0xff] %vm2475, %v2458
      %2480 = vst.msk [vmem:[#allocation4 + $0x20] sm:$0xff] %vm2475, %v2460
      %2481 = vst.msk [vmem:[#allocation4 + $0x28] sm:$0xff] %vm2475, %v2462
      %2482 = vst.msk [vmem:[#allocation4 + $0x30] sm:$0xff] %vm2475, %v2464
      %2483 = vst.msk [vmem:[#allocation4 + $0x38] sm:$0xff] %vm2475, %v2466
      %s2484 = scalar_lea.vmem %s11, 96
      %v2485 = vld [vmem:[%s2484] sm:$0xf]
      %v2486 = vld [vmem:[%s2484 + $0x4] sm:$0xf]
      %v2487 = vld [vmem:[%s2484 + $0x8] sm:$0xf]
      %v2488 = vld [vmem:[%s2484 + $0xc] sm:$0xf]
      %v2489 = vld [vmem:[%s2484 + $0x10] sm:$0xf]
      %v2490 = vld [vmem:[%s2484 + $0x14] sm:$0xf]
      %v2491 = vld [vmem:[%s2484 + $0x18] sm:$0xf]
      %v2492 = vld [vmem:[%s2484 + $0x1c] sm:$0xf]
      %v2501 = vunpack.c.l.b16 %v2485
      %v2502 = vunpack.c.l.b16 %v2486
      %v2503 = vunpack.c.l.b16 %v2487
      %v2504 = vunpack.c.l.b16 %v2488
      %v2505 = vunpack.c.l.b16 %v2489
      %v2506 = vunpack.c.l.b16 %v2490
      %v2507 = vunpack.c.l.b16 %v2491
      %v2508 = vunpack.c.l.b16 %v2492
      %v2509 = vpack.c.b16 %v2502, %v2501
      %v2510 = vpack.c.b16 %v2504, %v2503
      %v2511 = vpack.c.b16 %v2506, %v2505
      %v2512 = vpack.c.b16 %v2508, %v2507
      %2513 = vrot.lane.b32.xlu0 %v2097, 125
      %v2514 = vpop.permute.xlu0 %2513
      %2515 = vrot.lane.b32.xlu0 %v2098, 125
      %v2516 = vpop.permute.xlu0 %2515
      %2517 = vrot.lane.b32.xlu0 %v2099, 125
      %v2518 = vpop.permute.xlu0 %2517
      %2519 = vrot.lane.b32.xlu0 %v2100, 125
      %v2520 = vpop.permute.xlu0 %2519
      %2521 = vrot.lane.b32.xlu0 %v2101, 125
      %v2522 = vpop.permute.xlu0 %2521
      %2523 = vrot.lane.b32.xlu0 %v2102, 125
      %v2524 = vpop.permute.xlu0 %2523
      %2525 = vrot.lane.b32.xlu0 %v2103, 125
      %v2526 = vpop.permute.xlu0 %2525
      %2527 = vrot.lane.b32.xlu0 %v2104, 125
      %v2528 = vpop.permute.xlu0 %2527
      %v2538 = vsel %vm811, %v2509, 0
      %v2541 = vsel %vm811, %v2510, 0
      %v2544 = vsel %vm811, %v2511, 0
      %v2547 = vsel %vm811, %v2512, 0
      %2549 = vmatpush.bf16.msra.mxu0 0
      %2550 = vmatpush.bf16.msra.mxu0 0
      %2551 = vmatpush.bf16.msra.mxu0 0
      %2552 = vmatpush.bf16.msra.mxu0 0
      %2553 = vmatpush.bf16.msra.mxu0 0
      %2554 = vmatpush.bf16.msra.mxu0 0
      %2555 = vmatpush.bf16.msra.mxu0 %v2096
      %2556 = vmatpush.bf16.msra.mxu0 %v2095
      %2557 = vmatmul.bf16.gmra.mxu0 %v2538
      %v2558 = vpop.f32.mrf.mxu0
      %v2559 = vadd.f32 %v2514, %v2558
      %v2560 = vpop.f32.mrf.mxu0
      %v2561 = vadd.f32 %v2516, %v2560
      %2562 = vmatmul.bf16.gmra.mxu0 %v2541
      %v2563 = vpop.f32.mrf.mxu0
      %v2564 = vadd.f32 %v2518, %v2563
      %v2565 = vpop.f32.mrf.mxu0
      %v2566 = vadd.f32 %v2520, %v2565
      %2567 = vmatmul.bf16.gmra.mxu0 %v2544
      %v2568 = vpop.f32.mrf.mxu0
      %v2569 = vadd.f32 %v2522, %v2568
      %v2570 = vpop.f32.mrf.mxu0
      %v2571 = vadd.f32 %v2524, %v2570
      %2572 = vmatmul.bf16.gmra.mxu0 %v2547
      %v2573 = vpop.f32.mrf.mxu0
      %v2574 = vadd.f32 %v2526, %v2573
      %v2575 = vpop.f32.mrf.mxu0
      %v2576 = vadd.f32 %v2528, %v2575
      %2577 = vdwg.mxu0
      %v2578 = vmax.f32 %v2559, 0.0
      %v2579 = vmax.f32 %v2561, 0.0
      %v2580 = vmax.f32 %v2564, 0.0
      %v2581 = vmax.f32 %v2566, 0.0
      %v2582 = vmax.f32 %v2569, 0.0
      %v2583 = vmax.f32 %v2571, 0.0
      %v2584 = vmax.f32 %v2574, 0.0
      %v2585 = vmax.f32 %v2576, 0.0
      %2594 = vrot.lane.b32.xlu0 %v2578, 3
      %v2595 = vpop.permute.xlu0 %2594
      %2596 = vrot.lane.b32.xlu0 %v2579, 3
      %v2597 = vpop.permute.xlu0 %2596
      %2598 = vrot.lane.b32.xlu0 %v2580, 3
      %v2599 = vpop.permute.xlu0 %2598
      %2600 = vrot.lane.b32.xlu0 %v2581, 3
      %v2601 = vpop.permute.xlu0 %2600
      %2602 = vrot.lane.b32.xlu0 %v2582, 3
      %v2603 = vpop.permute.xlu0 %2602
      %2604 = vrot.lane.b32.xlu0 %v2583, 3
      %v2605 = vpop.permute.xlu0 %2604
      %2606 = vrot.lane.b32.xlu0 %v2584, 3
      %v2607 = vpop.permute.xlu0 %2606
      %2608 = vrot.lane.b32.xlu0 %v2585, 3
      %v2609 = vpop.permute.xlu0 %2608
      %vm2618 = vcmask 31768
      %2619 = vst.msk [vmem:[#allocation4] sm:$0xff] %vm2618, %v2595
      %2620 = vst.msk [vmem:[#allocation4 + $0x8] sm:$0xff] %vm2618, %v2597
      %2621 = vst.msk [vmem:[#allocation4 + $0x10] sm:$0xff] %vm2618, %v2599
      %2622 = vst.msk [vmem:[#allocation4 + $0x18] sm:$0xff] %vm2618, %v2601
      %2623 = vst.msk [vmem:[#allocation4 + $0x20] sm:$0xff] %vm2618, %v2603
      %2624 = vst.msk [vmem:[#allocation4 + $0x28] sm:$0xff] %vm2618, %v2605
      %2625 = vst.msk [vmem:[#allocation4 + $0x30] sm:$0xff] %vm2618, %v2607
      %2626 = vst.msk [vmem:[#allocation4 + $0x38] sm:$0xff] %vm2618, %v2609
      %s2627 = scalar_lea.vmem %s11, 128
      %v2628 = vld [vmem:[%s2627] sm:$0xf]
      %v2629 = vld [vmem:[%s2627 + $0x4] sm:$0xf]
      %v2630 = vld [vmem:[%s2627 + $0x8] sm:$0xf]
      %v2631 = vld [vmem:[%s2627 + $0xc] sm:$0xf]
      %v2632 = vld [vmem:[%s2627 + $0x10] sm:$0xf]
      %v2633 = vld [vmem:[%s2627 + $0x14] sm:$0xf]
      %v2634 = vld [vmem:[%s2627 + $0x18] sm:$0xf]
      %v2635 = vld [vmem:[%s2627 + $0x1c] sm:$0xf]
      %v2644 = vunpack.c.l.b16 %v2628
      %v2645 = vunpack.c.l.b16 %v2629
      %v2646 = vunpack.c.l.b16 %v2630
      %v2647 = vunpack.c.l.b16 %v2631
      %v2648 = vunpack.c.l.b16 %v2632
      %v2649 = vunpack.c.l.b16 %v2633
      %v2650 = vunpack.c.l.b16 %v2634
      %v2651 = vunpack.c.l.b16 %v2635
      %v2652 = vpack.c.b16 %v2645, %v2644
      %v2653 = vpack.c.b16 %v2647, %v2646
      %v2654 = vpack.c.b16 %v2649, %v2648
      %v2655 = vpack.c.b16 %v2651, %v2650
      %2656 = vrot.lane.b32.xlu0 %v2097, 124
      %v2657 = vpop.permute.xlu0 %2656
      %2658 = vrot.lane.b32.xlu0 %v2098, 124
      %v2659 = vpop.permute.xlu0 %2658
      %2660 = vrot.lane.b32.xlu0 %v2099, 124
      %v2661 = vpop.permute.xlu0 %2660
      %2662 = vrot.lane.b32.xlu0 %v2100, 124
      %v2663 = vpop.permute.xlu0 %2662
      %2664 = vrot.lane.b32.xlu0 %v2101, 124
      %v2665 = vpop.permute.xlu0 %2664
      %2666 = vrot.lane.b32.xlu0 %v2102, 124
      %v2667 = vpop.permute.xlu0 %2666
      %2668 = vrot.lane.b32.xlu0 %v2103, 124
      %v2669 = vpop.permute.xlu0 %2668
      %2670 = vrot.lane.b32.xlu0 %v2104, 124
      %v2671 = vpop.permute.xlu0 %2670
      %v2681 = vsel %vm811, %v2652, 0
      %v2684 = vsel %vm811, %v2653, 0
      %v2687 = vsel %vm811, %v2654, 0
      %v2690 = vsel %vm811, %v2655, 0
      %2692 = vmatpush.bf16.msra.mxu0 0
      %2693 = vmatpush.bf16.msra.mxu0 0
      %2694 = vmatpush.bf16.msra.mxu0 0
      %2695 = vmatpush.bf16.msra.mxu0 0
      %2696 = vmatpush.bf16.msra.mxu0 0
      %2697 = vmatpush.bf16.msra.mxu0 0
      %2698 = vmatpush.bf16.msra.mxu0 %v2096
      %2699 = vmatpush.bf16.msra.mxu0 %v2095
      %2700 = vmatmul.bf16.gmra.mxu0 %v2681
      %v2701 = vpop.f32.mrf.mxu0
      %v2702 = vadd.f32 %v2657, %v2701
      %v2703 = vpop.f32.mrf.mxu0
      %v2704 = vadd.f32 %v2659, %v2703
      %2705 = vmatmul.bf16.gmra.mxu0 %v2684
      %v2706 = vpop.f32.mrf.mxu0
      %v2707 = vadd.f32 %v2661, %v2706
      %v2708 = vpop.f32.mrf.mxu0
      %v2709 = vadd.f32 %v2663, %v2708
      %2710 = vmatmul.bf16.gmra.mxu0 %v2687
      %v2711 = vpop.f32.mrf.mxu0
      %v2712 = vadd.f32 %v2665, %v2711
      %v2713 = vpop.f32.mrf.mxu0
      %v2714 = vadd.f32 %v2667, %v2713
      %2715 = vmatmul.bf16.gmra.mxu0 %v2690
      %v2716 = vpop.f32.mrf.mxu0
      %v2717 = vadd.f32 %v2669, %v2716
      %v2718 = vpop.f32.mrf.mxu0
      %v2719 = vadd.f32 %v2671, %v2718
      %2720 = vdwg.mxu0
      %v2721 = vmax.f32 %v2702, 0.0
      %v2722 = vmax.f32 %v2704, 0.0
      %v2723 = vmax.f32 %v2707, 0.0
      %v2724 = vmax.f32 %v2709, 0.0
      %v2725 = vmax.f32 %v2712, 0.0
      %v2726 = vmax.f32 %v2714, 0.0
      %v2727 = vmax.f32 %v2717, 0.0
      %v2728 = vmax.f32 %v2719, 0.0
      %2737 = vrot.lane.b32.xlu0 %v2721, 4
      %v2738 = vpop.permute.xlu0 %2737
      %2739 = vrot.lane.b32.xlu0 %v2722, 4
      %v2740 = vpop.permute.xlu0 %2739
      %2741 = vrot.lane.b32.xlu0 %v2723, 4
      %v2742 = vpop.permute.xlu0 %2741
      %2743 = vrot.lane.b32.xlu0 %v2724, 4
      %v2744 = vpop.permute.xlu0 %2743
      %2745 = vrot.lane.b32.xlu0 %v2725, 4
      %v2746 = vpop.permute.xlu0 %2745
      %2747 = vrot.lane.b32.xlu0 %v2726, 4
      %v2748 = vpop.permute.xlu0 %2747
      %2749 = vrot.lane.b32.xlu0 %v2727, 4
      %v2750 = vpop.permute.xlu0 %2749
      %2751 = vrot.lane.b32.xlu0 %v2728, 4
      %v2752 = vpop.permute.xlu0 %2751
      %vm2761 = vcmask 39968
      %2762 = vst.msk [vmem:[#allocation4] sm:$0xff] %vm2761, %v2738
      %2763 = vst.msk [vmem:[#allocation4 + $0x8] sm:$0xff] %vm2761, %v2740
      %2764 = vst.msk [vmem:[#allocation4 + $0x10] sm:$0xff] %vm2761, %v2742
      %2765 = vst.msk [vmem:[#allocation4 + $0x18] sm:$0xff] %vm2761, %v2744
      %2766 = vst.msk [vmem:[#allocation4 + $0x20] sm:$0xff] %vm2761, %v2746
      %2767 = vst.msk [vmem:[#allocation4 + $0x28] sm:$0xff] %vm2761, %v2748
      %2768 = vst.msk [vmem:[#allocation4 + $0x30] sm:$0xff] %vm2761, %v2750
      %2769 = vst.msk [vmem:[#allocation4 + $0x38] sm:$0xff] %vm2761, %v2752
      %s2770 = scalar_lea.vmem %s11, 160
      %v2771 = vld [vmem:[%s2770] sm:$0xf]
      %v2772 = vld [vmem:[%s2770 + $0x4] sm:$0xf]
      %v2773 = vld [vmem:[%s2770 + $0x8] sm:$0xf]
      %v2774 = vld [vmem:[%s2770 + $0xc] sm:$0xf]
      %v2775 = vld [vmem:[%s2770 + $0x10] sm:$0xf]
      %v2776 = vld [vmem:[%s2770 + $0x14] sm:$0xf]
      %v2777 = vld [vmem:[%s2770 + $0x18] sm:$0xf]
      %v2778 = vld [vmem:[%s2770 + $0x1c] sm:$0xf]
      %v2787 = vunpack.c.l.b16 %v2771
      %v2788 = vunpack.c.l.b16 %v2772
      %v2789 = vunpack.c.l.b16 %v2773
      %v2790 = vunpack.c.l.b16 %v2774
      %v2791 = vunpack.c.l.b16 %v2775
      %v2792 = vunpack.c.l.b16 %v2776
      %v2793 = vunpack.c.l.b16 %v2777
      %v2794 = vunpack.c.l.b16 %v2778
      %v2795 = vpack.c.b16 %v2788, %v2787
      %v2796 = vpack.c.b16 %v2790, %v2789
      %v2797 = vpack.c.b16 %v2792, %v2791
      %v2798 = vpack.c.b16 %v2794, %v2793
      %2799 = vrot.lane.b32.xlu0 %v2097, 123
      %v2800 = vpop.permute.xlu0 %2799
      %2801 = vrot.lane.b32.xlu0 %v2098, 123
      %v2802 = vpop.permute.xlu0 %2801
      %2803 = vrot.lane.b32.xlu0 %v2099, 123
      %v2804 = vpop.permute.xlu0 %2803
      %2805 = vrot.lane.b32.xlu0 %v2100, 123
      %v2806 = vpop.permute.xlu0 %2805
      %2807 = vrot.lane.b32.xlu0 %v2101, 123
      %v2808 = vpop.permute.xlu0 %2807
      %2809 = vrot.lane.b32.xlu0 %v2102, 123
      %v2810 = vpop.permute.xlu0 %2809
      %2811 = vrot.lane.b32.xlu0 %v2103, 123
      %v2812 = vpop.permute.xlu0 %2811
      %2813 = vrot.lane.b32.xlu0 %v2104, 123
      %v2814 = vpop.permute.xlu0 %2813
      %v2824 = vsel %vm811, %v2795, 0
      %v2827 = vsel %vm811, %v2796, 0
      %v2830 = vsel %vm811, %v2797, 0
      %v2833 = vsel %vm811, %v2798, 0
      %2835 = vmatpush.bf16.msra.mxu0 0
      %2836 = vmatpush.bf16.msra.mxu0 0
      %2837 = vmatpush.bf16.msra.mxu0 0
      %2838 = vmatpush.bf16.msra.mxu0 0
      %2839 = vmatpush.bf16.msra.mxu0 0
      %2840 = vmatpush.bf16.msra.mxu0 0
      %2841 = vmatpush.bf16.msra.mxu0 %v2096
      %2842 = vmatpush.bf16.msra.mxu0 %v2095
      %2843 = vmatmul.bf16.gmra.mxu0 %v2824
      %v2844 = vpop.f32.mrf.mxu0
      %v2845 = vadd.f32 %v2800, %v2844
      %v2846 = vpop.f32.mrf.mxu0
      %v2847 = vadd.f32 %v2802, %v2846
      %2848 = vmatmul.bf16.gmra.mxu0 %v2827
      %v2849 = vpop.f32.mrf.mxu0
      %v2850 = vadd.f32 %v2804, %v2849
      %v2851 = vpop.f32.mrf.mxu0
      %v2852 = vadd.f32 %v2806, %v2851
      %2853 = vmatmul.bf16.gmra.mxu0 %v2830
      %v2854 = vpop.f32.mrf.mxu0
      %v2855 = vadd.f32 %v2808, %v2854
      %v2856 = vpop.f32.mrf.mxu0
      %v2857 = vadd.f32 %v2810, %v2856
      %2858 = vmatmul.bf16.gmra.mxu0 %v2833
      %v2859 = vpop.f32.mrf.mxu0
      %v2860 = vadd.f32 %v2812, %v2859
      %v2861 = vpop.f32.mrf.mxu0
      %v2862 = vadd.f32 %v2814, %v2861
      %2863 = vdwg.mxu0
      %v2864 = vmax.f32 %v2845, 0.0
      %v2865 = vmax.f32 %v2847, 0.0
      %v2866 = vmax.f32 %v2850, 0.0
      %v2867 = vmax.f32 %v2852, 0.0
      %v2868 = vmax.f32 %v2855, 0.0
      %v2869 = vmax.f32 %v2857, 0.0
      %v2870 = vmax.f32 %v2860, 0.0
      %v2871 = vmax.f32 %v2862, 0.0
      %2880 = vrot.lane.b32.xlu0 %v2864, 5
      %v2881 = vpop.permute.xlu0 %2880
      %2882 = vrot.lane.b32.xlu0 %v2865, 5
      %v2883 = vpop.permute.xlu0 %2882
      %2884 = vrot.lane.b32.xlu0 %v2866, 5
      %v2885 = vpop.permute.xlu0 %2884
      %2886 = vrot.lane.b32.xlu0 %v2867, 5
      %v2887 = vpop.permute.xlu0 %2886
      %2888 = vrot.lane.b32.xlu0 %v2868, 5
      %v2889 = vpop.permute.xlu0 %2888
      %2890 = vrot.lane.b32.xlu0 %v2869, 5
      %v2891 = vpop.permute.xlu0 %2890
      %2892 = vrot.lane.b32.xlu0 %v2870, 5
      %v2893 = vpop.permute.xlu0 %2892
      %2894 = vrot.lane.b32.xlu0 %v2871, 5
      %v2895 = vpop.permute.xlu0 %2894
      %vm2904 = vcmask 48168
      %2905 = vst.msk [vmem:[#allocation4] sm:$0xff] %vm2904, %v2881
      %2906 = vst.msk [vmem:[#allocation4 + $0x8] sm:$0xff] %vm2904, %v2883
      %2907 = vst.msk [vmem:[#allocation4 + $0x10] sm:$0xff] %vm2904, %v2885
      %2908 = vst.msk [vmem:[#allocation4 + $0x18] sm:$0xff] %vm2904, %v2887
      %2909 = vst.msk [vmem:[#allocation4 + $0x20] sm:$0xff] %vm2904, %v2889
      %2910 = vst.msk [vmem:[#allocation4 + $0x28] sm:$0xff] %vm2904, %v2891
      %2911 = vst.msk [vmem:[#allocation4 + $0x30] sm:$0xff] %vm2904, %v2893
      %2912 = vst.msk [vmem:[#allocation4 + $0x38] sm:$0xff] %vm2904, %v2895
      %s2913 = scalar_lea.vmem %s11, 192
      %v2914 = vld [vmem:[%s2913] sm:$0xf]
      %v2915 = vld [vmem:[%s2913 + $0x4] sm:$0xf]
      %v2916 = vld [vmem:[%s2913 + $0x8] sm:$0xf]
      %v2917 = vld [vmem:[%s2913 + $0xc] sm:$0xf]
      %v2918 = vld [vmem:[%s2913 + $0x10] sm:$0xf]
      %v2919 = vld [vmem:[%s2913 + $0x14] sm:$0xf]
      %v2920 = vld [vmem:[%s2913 + $0x18] sm:$0xf]
      %v2921 = vld [vmem:[%s2913 + $0x1c] sm:$0xf]
      %v2930 = vunpack.c.l.b16 %v2914
      %v2931 = vunpack.c.l.b16 %v2915
      %v2932 = vunpack.c.l.b16 %v2916
      %v2933 = vunpack.c.l.b16 %v2917
      %v2934 = vunpack.c.l.b16 %v2918
      %v2935 = vunpack.c.l.b16 %v2919
      %v2936 = vunpack.c.l.b16 %v2920
      %v2937 = vunpack.c.l.b16 %v2921
      %v2938 = vpack.c.b16 %v2931, %v2930
      %v2939 = vpack.c.b16 %v2933, %v2932
      %v2940 = vpack.c.b16 %v2935, %v2934
      %v2941 = vpack.c.b16 %v2937, %v2936
      %2942 = vrot.lane.b32.xlu0 %v2097, 122
      %v2943 = vpop.permute.xlu0 %2942
      %2944 = vrot.lane.b32.xlu0 %v2098, 122
      %v2945 = vpop.permute.xlu0 %2944
      %2946 = vrot.lane.b32.xlu0 %v2099, 122
      %v2947 = vpop.permute.xlu0 %2946
      %2948 = vrot.lane.b32.xlu0 %v2100, 122
      %v2949 = vpop.permute.xlu0 %2948
      %2950 = vrot.lane.b32.xlu0 %v2101, 122
      %v2951 = vpop.permute.xlu0 %2950
      %2952 = vrot.lane.b32.xlu0 %v2102, 122
      %v2953 = vpop.permute.xlu0 %2952
      %2954 = vrot.lane.b32.xlu0 %v2103, 122
      %v2955 = vpop.permute.xlu0 %2954
      %2956 = vrot.lane.b32.xlu0 %v2104, 122
      %v2957 = vpop.permute.xlu0 %2956
      %v2967 = vsel %vm811, %v2938, 0
      %v2970 = vsel %vm811, %v2939, 0
      %v2973 = vsel %vm811, %v2940, 0
      %v2976 = vsel %vm811, %v2941, 0
      %2978 = vmatpush.bf16.msra.mxu0 0
      %2979 = vmatpush.bf16.msra.mxu0 0
      %2980 = vmatpush.bf16.msra.mxu0 0
      %2981 = vmatpush.bf16.msra.mxu0 0
      %2982 = vmatpush.bf16.msra.mxu0 0
      %2983 = vmatpush.bf16.msra.mxu0 0
      %2984 = vmatpush.bf16.msra.mxu0 %v2096
      %2985 = vmatpush.bf16.msra.mxu0 %v2095
      %2986 = vmatmul.bf16.gmra.mxu0 %v2967
      %v2987 = vpop.f32.mrf.mxu0
      %v2988 = vadd.f32 %v2943, %v2987
      %v2989 = vpop.f32.mrf.mxu0
      %v2990 = vadd.f32 %v2945, %v2989
      %2991 = vmatmul.bf16.gmra.mxu0 %v2970
      %v2992 = vpop.f32.mrf.mxu0
      %v2993 = vadd.f32 %v2947, %v2992
      %v2994 = vpop.f32.mrf.mxu0
      %v2995 = vadd.f32 %v2949, %v2994
      %2996 = vmatmul.bf16.gmra.mxu0 %v2973
      %v2997 = vpop.f32.mrf.mxu0
      %v2998 = vadd.f32 %v2951, %v2997
      %v2999 = vpop.f32.mrf.mxu0
      %v3000 = vadd.f32 %v2953, %v2999
      %3001 = vmatmul.bf16.gmra.mxu0 %v2976
      %v3002 = vpop.f32.mrf.mxu0
      %v3003 = vadd.f32 %v2955, %v3002
      %v3004 = vpop.f32.mrf.mxu0
      %v3005 = vadd.f32 %v2957, %v3004
      %3006 = vdwg.mxu0
      %v3007 = vmax.f32 %v2988, 0.0
      %v3008 = vmax.f32 %v2990, 0.0
      %v3009 = vmax.f32 %v2993, 0.0
      %v3010 = vmax.f32 %v2995, 0.0
      %v3011 = vmax.f32 %v2998, 0.0
      %v3012 = vmax.f32 %v3000, 0.0
      %v3013 = vmax.f32 %v3003, 0.0
      %v3014 = vmax.f32 %v3005, 0.0
      %3023 = vrot.lane.b32.xlu0 %v3007, 6
      %v3024 = vpop.permute.xlu0 %3023
      %3025 = vrot.lane.b32.xlu0 %v3008, 6
      %v3026 = vpop.permute.xlu0 %3025
      %3027 = vrot.lane.b32.xlu0 %v3009, 6
      %v3028 = vpop.permute.xlu0 %3027
      %3029 = vrot.lane.b32.xlu0 %v3010, 6
      %v3030 = vpop.permute.xlu0 %3029
      %3031 = vrot.lane.b32.xlu0 %v3011, 6
      %v3032 = vpop.permute.xlu0 %3031
      %3033 = vrot.lane.b32.xlu0 %v3012, 6
      %v3034 = vpop.permute.xlu0 %3033
      %3035 = vrot.lane.b32.xlu0 %v3013, 6
      %v3036 = vpop.permute.xlu0 %3035
      %3037 = vrot.lane.b32.xlu0 %v3014, 6
      %v3038 = vpop.permute.xlu0 %3037
      %vm3047 = vcmask 56368
      %3048 = vst.msk [vmem:[#allocation4] sm:$0xff] %vm3047, %v3024
      %3049 = vst.msk [vmem:[#allocation4 + $0x8] sm:$0xff] %vm3047, %v3026
      %3050 = vst.msk [vmem:[#allocation4 + $0x10] sm:$0xff] %vm3047, %v3028
      %3051 = vst.msk [vmem:[#allocation4 + $0x18] sm:$0xff] %vm3047, %v3030
      %3052 = vst.msk [vmem:[#allocation4 + $0x20] sm:$0xff] %vm3047, %v3032
      %3053 = vst.msk [vmem:[#allocation4 + $0x28] sm:$0xff] %vm3047, %v3034
      %3054 = vst.msk [vmem:[#allocation4 + $0x30] sm:$0xff] %vm3047, %v3036
      %3055 = vst.msk [vmem:[#allocation4 + $0x38] sm:$0xff] %vm3047, %v3038
      %s3056 = scalar_lea.vmem %s11, 224
      %v3057 = vld [vmem:[%s3056] sm:$0xf]
      %v3058 = vld [vmem:[%s3056 + $0x4] sm:$0xf]
      %v3059 = vld [vmem:[%s3056 + $0x8] sm:$0xf]
      %v3060 = vld [vmem:[%s3056 + $0xc] sm:$0xf]
      %v3061 = vld [vmem:[%s3056 + $0x10] sm:$0xf]
      %v3062 = vld [vmem:[%s3056 + $0x14] sm:$0xf]
      %v3063 = vld [vmem:[%s3056 + $0x18] sm:$0xf]
      %v3064 = vld [vmem:[%s3056 + $0x1c] sm:$0xf]
      %v3073 = vunpack.c.l.b16 %v3057
      %v3074 = vunpack.c.l.b16 %v3058
      %v3075 = vunpack.c.l.b16 %v3059
      %v3076 = vunpack.c.l.b16 %v3060
      %v3077 = vunpack.c.l.b16 %v3061
      %v3078 = vunpack.c.l.b16 %v3062
      %v3079 = vunpack.c.l.b16 %v3063
      %v3080 = vunpack.c.l.b16 %v3064
      %v3081 = vpack.c.b16 %v3074, %v3073
      %v3082 = vpack.c.b16 %v3076, %v3075
      %v3083 = vpack.c.b16 %v3078, %v3077
      %v3084 = vpack.c.b16 %v3080, %v3079
      %3085 = vrot.lane.b32.xlu0 %v2097, 121
      %v3086 = vpop.permute.xlu0 %3085
      %3087 = vrot.lane.b32.xlu0 %v2098, 121
      %v3088 = vpop.permute.xlu0 %3087
      %3089 = vrot.lane.b32.xlu0 %v2099, 121
      %v3090 = vpop.permute.xlu0 %3089
      %3091 = vrot.lane.b32.xlu0 %v2100, 121
      %v3092 = vpop.permute.xlu0 %3091
      %3093 = vrot.lane.b32.xlu0 %v2101, 121
      %v3094 = vpop.permute.xlu0 %3093
      %3095 = vrot.lane.b32.xlu0 %v2102, 121
      %v3096 = vpop.permute.xlu0 %3095
      %3097 = vrot.lane.b32.xlu0 %v2103, 121
      %v3098 = vpop.permute.xlu0 %3097
      %3099 = vrot.lane.b32.xlu0 %v2104, 121
      %v3100 = vpop.permute.xlu0 %3099
      %v3110 = vsel %vm811, %v3081, 0
      %v3113 = vsel %vm811, %v3082, 0
      %v3116 = vsel %vm811, %v3083, 0
      %v3119 = vsel %vm811, %v3084, 0
      %3121 = vmatpush.bf16.msra.mxu0 0
      %3122 = vmatpush.bf16.msra.mxu0 0
      %3123 = vmatpush.bf16.msra.mxu0 0
      %3124 = vmatpush.bf16.msra.mxu0 0
      %3125 = vmatpush.bf16.msra.mxu0 0
      %3126 = vmatpush.bf16.msra.mxu0 0
      %3127 = vmatpush.bf16.msra.mxu0 %v2096
      %3128 = vmatpush.bf16.msra.mxu0 %v2095
      %3129 = vmatmul.bf16.gmra.mxu0 %v3110
      %v3130 = vpop.f32.mrf.mxu0
      %v3131 = vadd.f32 %v3086, %v3130
      %v3132 = vpop.f32.mrf.mxu0
      %v3133 = vadd.f32 %v3088, %v3132
      %3134 = vmatmul.bf16.gmra.mxu0 %v3113
      %v3135 = vpop.f32.mrf.mxu0
      %v3136 = vadd.f32 %v3090, %v3135
      %v3137 = vpop.f32.mrf.mxu0
      %v3138 = vadd.f32 %v3092, %v3137
      %3139 = vmatmul.bf16.gmra.mxu0 %v3116
      %v3140 = vpop.f32.mrf.mxu0
      %v3141 = vadd.f32 %v3094, %v3140
      %v3142 = vpop.f32.mrf.mxu0
      %v3143 = vadd.f32 %v3096, %v3142
      %3144 = vmatmul.bf16.gmra.mxu0 %v3119
      %v3145 = vpop.f32.mrf.mxu0
      %v3146 = vadd.f32 %v3098, %v3145
      %v3147 = vpop.f32.mrf.mxu0
      %v3148 = vadd.f32 %v3100, %v3147
      %3149 = vdwg.mxu0
      %v3150 = vmax.f32 %v3131, 0.0
      %v3151 = vmax.f32 %v3133, 0.0
      %v3152 = vmax.f32 %v3136, 0.0
      %v3153 = vmax.f32 %v3138, 0.0
      %v3154 = vmax.f32 %v3141, 0.0
      %v3155 = vmax.f32 %v3143, 0.0
      %v3156 = vmax.f32 %v3146, 0.0
      %v3157 = vmax.f32 %v3148, 0.0
      %3166 = vrot.lane.b32.xlu0 %v3150, 7
      %v3167 = vpop.permute.xlu0 %3166
      %3168 = vrot.lane.b32.xlu0 %v3151, 7
      %v3169 = vpop.permute.xlu0 %3168
      %3170 = vrot.lane.b32.xlu0 %v3152, 7
      %v3171 = vpop.permute.xlu0 %3170
      %3172 = vrot.lane.b32.xlu0 %v3153, 7
      %v3173 = vpop.permute.xlu0 %3172
      %3174 = vrot.lane.b32.xlu0 %v3154, 7
      %v3175 = vpop.permute.xlu0 %3174
      %3176 = vrot.lane.b32.xlu0 %v3155, 7
      %v3177 = vpop.permute.xlu0 %3176
      %3178 = vrot.lane.b32.xlu0 %v3156, 7
      %v3179 = vpop.permute.xlu0 %3178
      %3180 = vrot.lane.b32.xlu0 %v3157, 7
      %v3181 = vpop.permute.xlu0 %3180
      %vm3190 = vcmask 64568
      %3191 = vst.msk [vmem:[#allocation4] sm:$0xff] %vm3190, %v3167
      %3192 = vst.msk [vmem:[#allocation4 + $0x8] sm:$0xff] %vm3190, %v3169
      %3193 = vst.msk [vmem:[#allocation4 + $0x10] sm:$0xff] %vm3190, %v3171
      %3194 = vst.msk [vmem:[#allocation4 + $0x18] sm:$0xff] %vm3190, %v3173
      %3195 = vst.msk [vmem:[#allocation4 + $0x20] sm:$0xff] %vm3190, %v3175
      %3196 = vst.msk [vmem:[#allocation4 + $0x28] sm:$0xff] %vm3190, %v3177
      %3197 = vst.msk [vmem:[#allocation4 + $0x30] sm:$0xff] %vm3190, %v3179
      %3198 = vst.msk [vmem:[#allocation4 + $0x38] sm:$0xff] %vm3190, %v3181
      %s3199 = scalar_lea.vmem %s11, 256
      %v3200 = vld [vmem:[%s3199] sm:$0xf]
      %v3201 = vld [vmem:[%s3199 + $0x4] sm:$0xf]
      %v3202 = vld [vmem:[%s3199 + $0x8] sm:$0xf]
      %v3203 = vld [vmem:[%s3199 + $0xc] sm:$0xf]
      %v3204 = vld [vmem:[%s3199 + $0x10] sm:$0xf]
      %v3205 = vld [vmem:[%s3199 + $0x14] sm:$0xf]
      %v3206 = vld [vmem:[%s3199 + $0x18] sm:$0xf]
      %v3207 = vld [vmem:[%s3199 + $0x1c] sm:$0xf]
      %v3216 = vunpack.c.l.b16 %v3200
      %v3217 = vunpack.c.l.b16 %v3201
      %v3218 = vunpack.c.l.b16 %v3202
      %v3219 = vunpack.c.l.b16 %v3203
      %v3220 = vunpack.c.l.b16 %v3204
      %v3221 = vunpack.c.l.b16 %v3205
      %v3222 = vunpack.c.l.b16 %v3206
      %v3223 = vunpack.c.l.b16 %v3207
      %v3224 = vpack.c.b16 %v3217, %v3216
      %v3225 = vpack.c.b16 %v3219, %v3218
      %v3226 = vpack.c.b16 %v3221, %v3220
      %v3227 = vpack.c.b16 %v3223, %v3222
      %3228 = vrot.lane.b32.xlu0 %v2097, 120
      %v3229 = vpop.permute.xlu0 %3228
      %3230 = vrot.lane.b32.xlu0 %v2098, 120
      %v3231 = vpop.permute.xlu0 %3230
      %3232 = vrot.lane.b32.xlu0 %v2099, 120
      %v3233 = vpop.permute.xlu0 %3232
      %3234 = vrot.lane.b32.xlu0 %v2100, 120
      %v3235 = vpop.permute.xlu0 %3234
      %3236 = vrot.lane.b32.xlu0 %v2101, 120
      %v3237 = vpop.permute.xlu0 %3236
      %3238 = vrot.lane.b32.xlu0 %v2102, 120
      %v3239 = vpop.permute.xlu0 %3238
      %3240 = vrot.lane.b32.xlu0 %v2103, 120
      %v3241 = vpop.permute.xlu0 %3240
      %3242 = vrot.lane.b32.xlu0 %v2104, 120
      %v3243 = vpop.permute.xlu0 %3242
      %v3253 = vsel %vm811, %v3224, 0
      %v3256 = vsel %vm811, %v3225, 0
      %v3259 = vsel %vm811, %v3226, 0
      %v3262 = vsel %vm811, %v3227, 0
      %3264 = vmatpush.bf16.msra.mxu0 0
      %3265 = vmatpush.bf16.msra.mxu0 0
      %3266 = vmatpush.bf16.msra.mxu0 0
      %3267 = vmatpush.bf16.msra.mxu0 0
      %3268 = vmatpush.bf16.msra.mxu0 0
      %3269 = vmatpush.bf16.msra.mxu0 0
      %3270 = vmatpush.bf16.msra.mxu0 %v2096
      %3271 = vmatpush.bf16.msra.mxu0 %v2095
      %3272 = vmatmul.bf16.gmra.mxu0 %v3253
      %v3273 = vpop.f32.mrf.mxu0
      %v3274 = vadd.f32 %v3229, %v3273
      %v3275 = vpop.f32.mrf.mxu0
      %v3276 = vadd.f32 %v3231, %v3275
      %3277 = vmatmul.bf16.gmra.mxu0 %v3256
      %v3278 = vpop.f32.mrf.mxu0
      %v3279 = vadd.f32 %v3233, %v3278
      %v3280 = vpop.f32.mrf.mxu0
      %v3281 = vadd.f32 %v3235, %v3280
      %3282 = vmatmul.bf16.gmra.mxu0 %v3259
      %v3283 = vpop.f32.mrf.mxu0
      %v3284 = vadd.f32 %v3237, %v3283
      %v3285 = vpop.f32.mrf.mxu0
      %v3286 = vadd.f32 %v3239, %v3285
      %3287 = vmatmul.bf16.gmra.mxu0 %v3262
      %v3288 = vpop.f32.mrf.mxu0
      %v3289 = vadd.f32 %v3241, %v3288
      %v3290 = vpop.f32.mrf.mxu0
      %v3291 = vadd.f32 %v3243, %v3290
      %3292 = vdwg.mxu0
      %v3293 = vmax.f32 %v3274, 0.0
      %v3294 = vmax.f32 %v3276, 0.0
      %v3295 = vmax.f32 %v3279, 0.0
      %v3296 = vmax.f32 %v3281, 0.0
      %v3297 = vmax.f32 %v3284, 0.0
      %v3298 = vmax.f32 %v3286, 0.0
      %v3299 = vmax.f32 %v3289, 0.0
      %v3300 = vmax.f32 %v3291, 0.0
      %3309 = vrot.lane.b32.xlu0 %v3293, 8
      %v3310 = vpop.permute.xlu0 %3309
      %3311 = vrot.lane.b32.xlu0 %v3294, 8
      %v3312 = vpop.permute.xlu0 %3311
      %3313 = vrot.lane.b32.xlu0 %v3295, 8
      %v3314 = vpop.permute.xlu0 %3313
      %3315 = vrot.lane.b32.xlu0 %v3296, 8
      %v3316 = vpop.permute.xlu0 %3315
      %3317 = vrot.lane.b32.xlu0 %v3297, 8
      %v3318 = vpop.permute.xlu0 %3317
      %3319 = vrot.lane.b32.xlu0 %v3298, 8
      %v3320 = vpop.permute.xlu0 %3319
      %3321 = vrot.lane.b32.xlu0 %v3299, 8
      %v3322 = vpop.permute.xlu0 %3321
      %3323 = vrot.lane.b32.xlu0 %v3300, 8
      %v3324 = vpop.permute.xlu0 %3323
      %vm3333 = vcmask 72768
      %3334 = vst.msk [vmem:[#allocation4] sm:$0xff] %vm3333, %v3310
      %3335 = vst.msk [vmem:[#allocation4 + $0x8] sm:$0xff] %vm3333, %v3312
      %3336 = vst.msk [vmem:[#allocation4 + $0x10] sm:$0xff] %vm3333, %v3314
      %3337 = vst.msk [vmem:[#allocation4 + $0x18] sm:$0xff] %vm3333, %v3316
      %3338 = vst.msk [vmem:[#allocation4 + $0x20] sm:$0xff] %vm3333, %v3318
      %3339 = vst.msk [vmem:[#allocation4 + $0x28] sm:$0xff] %vm3333, %v3320
      %3340 = vst.msk [vmem:[#allocation4 + $0x30] sm:$0xff] %vm3333, %v3322
      %3341 = vst.msk [vmem:[#allocation4 + $0x38] sm:$0xff] %vm3333, %v3324
      %s3342 = scalar_lea.vmem %s11, 288
      %v3343 = vld [vmem:[%s3342] sm:$0xf]
      %v3344 = vld [vmem:[%s3342 + $0x4] sm:$0xf]
      %v3345 = vld [vmem:[%s3342 + $0x8] sm:$0xf]
      %v3346 = vld [vmem:[%s3342 + $0xc] sm:$0xf]
      %v3347 = vld [vmem:[%s3342 + $0x10] sm:$0xf]
      %v3348 = vld [vmem:[%s3342 + $0x14] sm:$0xf]
      %v3349 = vld [vmem:[%s3342 + $0x18] sm:$0xf]
      %v3350 = vld [vmem:[%s3342 + $0x1c] sm:$0xf]
      %v3359 = vunpack.c.l.b16 %v3343
      %v3360 = vunpack.c.l.b16 %v3344
      %v3361 = vunpack.c.l.b16 %v3345
      %v3362 = vunpack.c.l.b16 %v3346
      %v3363 = vunpack.c.l.b16 %v3347
      %v3364 = vunpack.c.l.b16 %v3348
      %v3365 = vunpack.c.l.b16 %v3349
      %v3366 = vunpack.c.l.b16 %v3350
      %v3367 = vpack.c.b16 %v3360, %v3359
      %v3368 = vpack.c.b16 %v3362, %v3361
      %v3369 = vpack.c.b16 %v3364, %v3363
      %v3370 = vpack.c.b16 %v3366, %v3365
      %3371 = vrot.lane.b32.xlu0 %v2097, 119
      %v3372 = vpop.permute.xlu0 %3371
      %3373 = vrot.lane.b32.xlu0 %v2098, 119
      %v3374 = vpop.permute.xlu0 %3373
      %3375 = vrot.lane.b32.xlu0 %v2099, 119
      %v3376 = vpop.permute.xlu0 %3375
      %3377 = vrot.lane.b32.xlu0 %v2100, 119
      %v3378 = vpop.permute.xlu0 %3377
      %3379 = vrot.lane.b32.xlu0 %v2101, 119
      %v3380 = vpop.permute.xlu0 %3379
      %3381 = vrot.lane.b32.xlu0 %v2102, 119
      %v3382 = vpop.permute.xlu0 %3381
      %3383 = vrot.lane.b32.xlu0 %v2103, 119
      %v3384 = vpop.permute.xlu0 %3383
      %3385 = vrot.lane.b32.xlu0 %v2104, 119
      %v3386 = vpop.permute.xlu0 %3385
      %v3396 = vsel %vm811, %v3367, 0
      %v3399 = vsel %vm811, %v3368, 0
      %v3402 = vsel %vm811, %v3369, 0
      %v3405 = vsel %vm811, %v3370, 0
      %3407 = vmatpush.bf16.msra.mxu0 0
      %3408 = vmatpush.bf16.msra.mxu0 0
      %3409 = vmatpush.bf16.msra.mxu0 0
      %3410 = vmatpush.bf16.msra.mxu0 0
      %3411 = vmatpush.bf16.msra.mxu0 0
      %3412 = vmatpush.bf16.msra.mxu0 0
      %3413 = vmatpush.bf16.msra.mxu0 %v2096
      %3414 = vmatpush.bf16.msra.mxu0 %v2095
      %3415 = vmatmul.bf16.gmra.mxu0 %v3396
      %v3416 = vpop.f32.mrf.mxu0
      %v3417 = vadd.f32 %v3372, %v3416
      %v3418 = vpop.f32.mrf.mxu0
      %v3419 = vadd.f32 %v3374, %v3418
      %3420 = vmatmul.bf16.gmra.mxu0 %v3399
      %v3421 = vpop.f32.mrf.mxu0
      %v3422 = vadd.f32 %v3376, %v3421
      %v3423 = vpop.f32.mrf.mxu0
      %v3424 = vadd.f32 %v3378, %v3423
      %3425 = vmatmul.bf16.gmra.mxu0 %v3402
      %v3426 = vpop.f32.mrf.mxu0
      %v3427 = vadd.f32 %v3380, %v3426
      %v3428 = vpop.f32.mrf.mxu0
      %v3429 = vadd.f32 %v3382, %v3428
      %3430 = vmatmul.bf16.gmra.mxu0 %v3405
      %v3431 = vpop.f32.mrf.mxu0
      %v3432 = vadd.f32 %v3384, %v3431
      %v3433 = vpop.f32.mrf.mxu0
      %v3434 = vadd.f32 %v3386, %v3433
      %3435 = vdwg.mxu0
      %v3436 = vmax.f32 %v3417, 0.0
      %v3437 = vmax.f32 %v3419, 0.0
      %v3438 = vmax.f32 %v3422, 0.0
      %v3439 = vmax.f32 %v3424, 0.0
      %v3440 = vmax.f32 %v3427, 0.0
      %v3441 = vmax.f32 %v3429, 0.0
      %v3442 = vmax.f32 %v3432, 0.0
      %v3443 = vmax.f32 %v3434, 0.0
      %3452 = vrot.lane.b32.xlu0 %v3436, 9
      %v3453 = vpop.permute.xlu0 %3452
      %3454 = vrot.lane.b32.xlu0 %v3437, 9
      %v3455 = vpop.permute.xlu0 %3454
      %3456 = vrot.lane.b32.xlu0 %v3438, 9
      %v3457 = vpop.permute.xlu0 %3456
      %3458 = vrot.lane.b32.xlu0 %v3439, 9
      %v3459 = vpop.permute.xlu0 %3458
      %3460 = vrot.lane.b32.xlu0 %v3440, 9
      %v3461 = vpop.permute.xlu0 %3460
      %3462 = vrot.lane.b32.xlu0 %v3441, 9
      %v3463 = vpop.permute.xlu0 %3462
      %3464 = vrot.lane.b32.xlu0 %v3442, 9
      %v3465 = vpop.permute.xlu0 %3464
      %3466 = vrot.lane.b32.xlu0 %v3443, 9
      %v3467 = vpop.permute.xlu0 %3466
      %vm3476 = vcmask 80968
      %3477 = vst.msk [vmem:[#allocation4] sm:$0xff] %vm3476, %v3453
      %3478 = vst.msk [vmem:[#allocation4 + $0x8] sm:$0xff] %vm3476, %v3455
      %3479 = vst.msk [vmem:[#allocation4 + $0x10] sm:$0xff] %vm3476, %v3457
      %3480 = vst.msk [vmem:[#allocation4 + $0x18] sm:$0xff] %vm3476, %v3459
      %3481 = vst.msk [vmem:[#allocation4 + $0x20] sm:$0xff] %vm3476, %v3461
      %3482 = vst.msk [vmem:[#allocation4 + $0x28] sm:$0xff] %vm3476, %v3463
      %3483 = vst.msk [vmem:[#allocation4 + $0x30] sm:$0xff] %vm3476, %v3465
      %3484 = vst.msk [vmem:[#allocation4 + $0x38] sm:$0xff] %vm3476, %v3467
      %s3485 = scalar_lea.vmem %s11, 320
      %v3486 = vld [vmem:[%s3485] sm:$0xf]
      %v3487 = vld [vmem:[%s3485 + $0x4] sm:$0xf]
      %v3488 = vld [vmem:[%s3485 + $0x8] sm:$0xf]
      %v3489 = vld [vmem:[%s3485 + $0xc] sm:$0xf]
      %v3490 = vld [vmem:[%s3485 + $0x10] sm:$0xf]
      %v3491 = vld [vmem:[%s3485 + $0x14] sm:$0xf]
      %v3492 = vld [vmem:[%s3485 + $0x18] sm:$0xf]
      %v3493 = vld [vmem:[%s3485 + $0x1c] sm:$0xf]
      %v3502 = vunpack.c.l.b16 %v3486
      %v3503 = vunpack.c.l.b16 %v3487
      %v3504 = vunpack.c.l.b16 %v3488
      %v3505 = vunpack.c.l.b16 %v3489
      %v3506 = vunpack.c.l.b16 %v3490
      %v3507 = vunpack.c.l.b16 %v3491
      %v3508 = vunpack.c.l.b16 %v3492
      %v3509 = vunpack.c.l.b16 %v3493
      %v3510 = vpack.c.b16 %v3503, %v3502
      %v3511 = vpack.c.b16 %v3505, %v3504
      %v3512 = vpack.c.b16 %v3507, %v3506
      %v3513 = vpack.c.b16 %v3509, %v3508
      %3514 = vrot.lane.b32.xlu0 %v2097, 118
      %v3515 = vpop.permute.xlu0 %3514
      %3516 = vrot.lane.b32.xlu0 %v2098, 118
      %v3517 = vpop.permute.xlu0 %3516
      %3518 = vrot.lane.b32.xlu0 %v2099, 118
      %v3519 = vpop.permute.xlu0 %3518
      %3520 = vrot.lane.b32.xlu0 %v2100, 118
      %v3521 = vpop.permute.xlu0 %3520
      %3522 = vrot.lane.b32.xlu0 %v2101, 118
      %v3523 = vpop.permute.xlu0 %3522
      %3524 = vrot.lane.b32.xlu0 %v2102, 118
      %v3525 = vpop.permute.xlu0 %3524
      %3526 = vrot.lane.b32.xlu0 %v2103, 118
      %v3527 = vpop.permute.xlu0 %3526
      %3528 = vrot.lane.b32.xlu0 %v2104, 118
      %v3529 = vpop.permute.xlu0 %3528
      %v3539 = vsel %vm811, %v3510, 0
      %v3542 = vsel %vm811, %v3511, 0
      %v3545 = vsel %vm811, %v3512, 0
      %v3548 = vsel %vm811, %v3513, 0
      %3550 = vmatpush.bf16.msra.mxu0 0
      %3551 = vmatpush.bf16.msra.mxu0 0
      %3552 = vmatpush.bf16.msra.mxu0 0
      %3553 = vmatpush.bf16.msra.mxu0 0
      %3554 = vmatpush.bf16.msra.mxu0 0
      %3555 = vmatpush.bf16.msra.mxu0 0
      %3556 = vmatpush.bf16.msra.mxu0 %v2096
      %3557 = vmatpush.bf16.msra.mxu0 %v2095
      %3558 = vmatmul.bf16.gmra.mxu0 %v3539
      %v3559 = vpop.f32.mrf.mxu0
      %v3560 = vadd.f32 %v3515, %v3559
      %v3561 = vpop.f32.mrf.mxu0
      %v3562 = vadd.f32 %v3517, %v3561
      %3563 = vmatmul.bf16.gmra.mxu0 %v3542
      %v3564 = vpop.f32.mrf.mxu0
      %v3565 = vadd.f32 %v3519, %v3564
      %v3566 = vpop.f32.mrf.mxu0
      %v3567 = vadd.f32 %v3521, %v3566
      %3568 = vmatmul.bf16.gmra.mxu0 %v3545
      %v3569 = vpop.f32.mrf.mxu0
      %v3570 = vadd.f32 %v3523, %v3569
      %v3571 = vpop.f32.mrf.mxu0
      %v3572 = vadd.f32 %v3525, %v3571
      %3573 = vmatmul.bf16.gmra.mxu0 %v3548
      %v3574 = vpop.f32.mrf.mxu0
      %v3575 = vadd.f32 %v3527, %v3574
      %v3576 = vpop.f32.mrf.mxu0
      %v3577 = vadd.f32 %v3529, %v3576
      %3578 = vdwg.mxu0
      %v3579 = vmax.f32 %v3560, 0.0
      %v3580 = vmax.f32 %v3562, 0.0
      %v3581 = vmax.f32 %v3565, 0.0
      %v3582 = vmax.f32 %v3567, 0.0
      %v3583 = vmax.f32 %v3570, 0.0
      %v3584 = vmax.f32 %v3572, 0.0
      %v3585 = vmax.f32 %v3575, 0.0
      %v3586 = vmax.f32 %v3577, 0.0
      %3595 = vrot.lane.b32.xlu0 %v3579, 10
      %v3596 = vpop.permute.xlu0 %3595
      %3597 = vrot.lane.b32.xlu0 %v3580, 10
      %v3598 = vpop.permute.xlu0 %3597
      %3599 = vrot.lane.b32.xlu0 %v3581, 10
      %v3600 = vpop.permute.xlu0 %3599
      %3601 = vrot.lane.b32.xlu0 %v3582, 10
      %v3602 = vpop.permute.xlu0 %3601
      %3603 = vrot.lane.b32.xlu0 %v3583, 10
      %v3604 = vpop.permute.xlu0 %3603
      %3605 = vrot.lane.b32.xlu0 %v3584, 10
      %v3606 = vpop.permute.xlu0 %3605
      %3607 = vrot.lane.b32.xlu0 %v3585, 10
      %v3608 = vpop.permute.xlu0 %3607
      %3609 = vrot.lane.b32.xlu0 %v3586, 10
      %v3610 = vpop.permute.xlu0 %3609
      %vm3619 = vcmask 89168
      %3620 = vst.msk [vmem:[#allocation4] sm:$0xff] %vm3619, %v3596
      %3621 = vst.msk [vmem:[#allocation4 + $0x8] sm:$0xff] %vm3619, %v3598
      %3622 = vst.msk [vmem:[#allocation4 + $0x10] sm:$0xff] %vm3619, %v3600
      %3623 = vst.msk [vmem:[#allocation4 + $0x18] sm:$0xff] %vm3619, %v3602
      %3624 = vst.msk [vmem:[#allocation4 + $0x20] sm:$0xff] %vm3619, %v3604
      %3625 = vst.msk [vmem:[#allocation4 + $0x28] sm:$0xff] %vm3619, %v3606
      %3626 = vst.msk [vmem:[#allocation4 + $0x30] sm:$0xff] %vm3619, %v3608
      %3627 = vst.msk [vmem:[#allocation4 + $0x38] sm:$0xff] %vm3619, %v3610
      %s3628 = scalar_lea.vmem %s11, 352
      %v3629 = vld [vmem:[%s3628] sm:$0xf]
      %v3630 = vld [vmem:[%s3628 + $0x4] sm:$0xf]
      %v3631 = vld [vmem:[%s3628 + $0x8] sm:$0xf]
      %v3632 = vld [vmem:[%s3628 + $0xc] sm:$0xf]
      %v3633 = vld [vmem:[%s3628 + $0x10] sm:$0xf]
      %v3634 = vld [vmem:[%s3628 + $0x14] sm:$0xf]
      %v3635 = vld [vmem:[%s3628 + $0x18] sm:$0xf]
      %v3636 = vld [vmem:[%s3628 + $0x1c] sm:$0xf]
      %v3645 = vunpack.c.l.b16 %v3629
      %v3646 = vunpack.c.l.b16 %v3630
      %v3647 = vunpack.c.l.b16 %v3631
      %v3648 = vunpack.c.l.b16 %v3632
      %v3649 = vunpack.c.l.b16 %v3633
      %v3650 = vunpack.c.l.b16 %v3634
      %v3651 = vunpack.c.l.b16 %v3635
      %v3652 = vunpack.c.l.b16 %v3636
      %v3653 = vpack.c.b16 %v3646, %v3645
      %v3654 = vpack.c.b16 %v3648, %v3647
      %v3655 = vpack.c.b16 %v3650, %v3649
      %v3656 = vpack.c.b16 %v3652, %v3651
      %3657 = vrot.lane.b32.xlu0 %v2097, 117
      %v3658 = vpop.permute.xlu0 %3657
      %3659 = vrot.lane.b32.xlu0 %v2098, 117
      %v3660 = vpop.permute.xlu0 %3659
      %3661 = vrot.lane.b32.xlu0 %v2099, 117
      %v3662 = vpop.permute.xlu0 %3661
      %3663 = vrot.lane.b32.xlu0 %v2100, 117
      %v3664 = vpop.permute.xlu0 %3663
      %3665 = vrot.lane.b32.xlu0 %v2101, 117
      %v3666 = vpop.permute.xlu0 %3665
      %3667 = vrot.lane.b32.xlu0 %v2102, 117
      %v3668 = vpop.permute.xlu0 %3667
      %3669 = vrot.lane.b32.xlu0 %v2103, 117
      %v3670 = vpop.permute.xlu0 %3669
      %3671 = vrot.lane.b32.xlu0 %v2104, 117
      %v3672 = vpop.permute.xlu0 %3671
      %v3682 = vsel %vm811, %v3653, 0
      %v3685 = vsel %vm811, %v3654, 0
      %v3688 = vsel %vm811, %v3655, 0
      %v3691 = vsel %vm811, %v3656, 0
      %3693 = vmatpush.bf16.msra.mxu0 0
      %3694 = vmatpush.bf16.msra.mxu0 0
      %3695 = vmatpush.bf16.msra.mxu0 0
      %3696 = vmatpush.bf16.msra.mxu0 0
      %3697 = vmatpush.bf16.msra.mxu0 0
      %3698 = vmatpush.bf16.msra.mxu0 0
      %3699 = vmatpush.bf16.msra.mxu0 %v2096
      %3700 = vmatpush.bf16.msra.mxu0 %v2095
      %3701 = vmatmul.bf16.gmra.mxu0 %v3682
      %v3702 = vpop.f32.mrf.mxu0
      %v3703 = vadd.f32 %v3658, %v3702
      %v3704 = vpop.f32.mrf.mxu0
      %v3705 = vadd.f32 %v3660, %v3704
      %3706 = vmatmul.bf16.gmra.mxu0 %v3685
      %v3707 = vpop.f32.mrf.mxu0
      %v3708 = vadd.f32 %v3662, %v3707
      %v3709 = vpop.f32.mrf.mxu0
      %v3710 = vadd.f32 %v3664, %v3709
      %3711 = vmatmul.bf16.gmra.mxu0 %v3688
      %v3712 = vpop.f32.mrf.mxu0
      %v3713 = vadd.f32 %v3666, %v3712
      %v3714 = vpop.f32.mrf.mxu0
      %v3715 = vadd.f32 %v3668, %v3714
      %3716 = vmatmul.bf16.gmra.mxu0 %v3691
      %v3717 = vpop.f32.mrf.mxu0
      %v3718 = vadd.f32 %v3670, %v3717
      %v3719 = vpop.f32.mrf.mxu0
      %v3720 = vadd.f32 %v3672, %v3719
      %3721 = vdwg.mxu0
      %v3722 = vmax.f32 %v3703, 0.0
      %v3723 = vmax.f32 %v3705, 0.0
      %v3724 = vmax.f32 %v3708, 0.0
      %v3725 = vmax.f32 %v3710, 0.0
      %v3726 = vmax.f32 %v3713, 0.0
      %v3727 = vmax.f32 %v3715, 0.0
      %v3728 = vmax.f32 %v3718, 0.0
      %v3729 = vmax.f32 %v3720, 0.0
      %3738 = vrot.lane.b32.xlu0 %v3722, 11
      %v3739 = vpop.permute.xlu0 %3738
      %3740 = vrot.lane.b32.xlu0 %v3723, 11
      %v3741 = vpop.permute.xlu0 %3740
      %3742 = vrot.lane.b32.xlu0 %v3724, 11
      %v3743 = vpop.permute.xlu0 %3742
      %3744 = vrot.lane.b32.xlu0 %v3725, 11
      %v3745 = vpop.permute.xlu0 %3744
      %3746 = vrot.lane.b32.xlu0 %v3726, 11
      %v3747 = vpop.permute.xlu0 %3746
      %3748 = vrot.lane.b32.xlu0 %v3727, 11
      %v3749 = vpop.permute.xlu0 %3748
      %3750 = vrot.lane.b32.xlu0 %v3728, 11
      %v3751 = vpop.permute.xlu0 %3750
      %3752 = vrot.lane.b32.xlu0 %v3729, 11
      %v3753 = vpop.permute.xlu0 %3752
      %vm3762 = vcmask 97368
      %3763 = vst.msk [vmem:[#allocation4] sm:$0xff] %vm3762, %v3739
      %3764 = vst.msk [vmem:[#allocation4 + $0x8] sm:$0xff] %vm3762, %v3741
      %3765 = vst.msk [vmem:[#allocation4 + $0x10] sm:$0xff] %vm3762, %v3743
      %3766 = vst.msk [vmem:[#allocation4 + $0x18] sm:$0xff] %vm3762, %v3745
      %3767 = vst.msk [vmem:[#allocation4 + $0x20] sm:$0xff] %vm3762, %v3747
      %3768 = vst.msk [vmem:[#allocation4 + $0x28] sm:$0xff] %vm3762, %v3749
      %3769 = vst.msk [vmem:[#allocation4 + $0x30] sm:$0xff] %vm3762, %v3751
      %3770 = vst.msk [vmem:[#allocation4 + $0x38] sm:$0xff] %vm3762, %v3753
      %s3771 = scalar_lea.vmem %s11, 384
      %v3772 = vld [vmem:[%s3771] sm:$0xf]
      %v3773 = vld [vmem:[%s3771 + $0x4] sm:$0xf]
      %v3774 = vld [vmem:[%s3771 + $0x8] sm:$0xf]
      %v3775 = vld [vmem:[%s3771 + $0xc] sm:$0xf]
      %v3776 = vld [vmem:[%s3771 + $0x10] sm:$0xf]
      %v3777 = vld [vmem:[%s3771 + $0x14] sm:$0xf]
      %v3778 = vld [vmem:[%s3771 + $0x18] sm:$0xf]
      %v3779 = vld [vmem:[%s3771 + $0x1c] sm:$0xf]
      %v3788 = vunpack.c.l.b16 %v3772
      %v3789 = vunpack.c.l.b16 %v3773
      %v3790 = vunpack.c.l.b16 %v3774
      %v3791 = vunpack.c.l.b16 %v3775
      %v3792 = vunpack.c.l.b16 %v3776
      %v3793 = vunpack.c.l.b16 %v3777
      %v3794 = vunpack.c.l.b16 %v3778
      %v3795 = vunpack.c.l.b16 %v3779
      %v3796 = vpack.c.b16 %v3789, %v3788
      %v3797 = vpack.c.b16 %v3791, %v3790
      %v3798 = vpack.c.b16 %v3793, %v3792
      %v3799 = vpack.c.b16 %v3795, %v3794
      %3800 = vrot.lane.b32.xlu0 %v2097, 116
      %v3801 = vpop.permute.xlu0 %3800
      %3802 = vrot.lane.b32.xlu0 %v2098, 116
      %v3803 = vpop.permute.xlu0 %3802
      %3804 = vrot.lane.b32.xlu0 %v2099, 116
      %v3805 = vpop.permute.xlu0 %3804
      %3806 = vrot.lane.b32.xlu0 %v2100, 116
      %v3807 = vpop.permute.xlu0 %3806
      %3808 = vrot.lane.b32.xlu0 %v2101, 116
      %v3809 = vpop.permute.xlu0 %3808
      %3810 = vrot.lane.b32.xlu0 %v2102, 116
      %v3811 = vpop.permute.xlu0 %3810
      %3812 = vrot.lane.b32.xlu0 %v2103, 116
      %v3813 = vpop.permute.xlu0 %3812
      %3814 = vrot.lane.b32.xlu0 %v2104, 116
      %v3815 = vpop.permute.xlu0 %3814
      %v3825 = vsel %vm811, %v3796, 0
      %v3828 = vsel %vm811, %v3797, 0
      %v3831 = vsel %vm811, %v3798, 0
      %v3834 = vsel %vm811, %v3799, 0
      %3836 = vmatpush.bf16.msra.mxu0 0
      %3837 = vmatpush.bf16.msra.mxu0 0
      %3838 = vmatpush.bf16.msra.mxu0 0
      %3839 = vmatpush.bf16.msra.mxu0 0
      %3840 = vmatpush.bf16.msra.mxu0 0
      %3841 = vmatpush.bf16.msra.mxu0 0
      %3842 = vmatpush.bf16.msra.mxu0 %v2096
      %3843 = vmatpush.bf16.msra.mxu0 %v2095
      %3844 = vmatmul.bf16.gmra.mxu0 %v3825
      %v3845 = vpop.f32.mrf.mxu0
      %v3846 = vadd.f32 %v3801, %v3845
      %v3847 = vpop.f32.mrf.mxu0
      %v3848 = vadd.f32 %v3803, %v3847
      %3849 = vmatmul.bf16.gmra.mxu0 %v3828
      %v3850 = vpop.f32.mrf.mxu0
      %v3851 = vadd.f32 %v3805, %v3850
      %v3852 = vpop.f32.mrf.mxu0
      %v3853 = vadd.f32 %v3807, %v3852
      %3854 = vmatmul.bf16.gmra.mxu0 %v3831
      %v3855 = vpop.f32.mrf.mxu0
      %v3856 = vadd.f32 %v3809, %v3855
      %v3857 = vpop.f32.mrf.mxu0
      %v3858 = vadd.f32 %v3811, %v3857
      %3859 = vmatmul.bf16.gmra.mxu0 %v3834
      %v3860 = vpop.f32.mrf.mxu0
      %v3861 = vadd.f32 %v3813, %v3860
      %v3862 = vpop.f32.mrf.mxu0
      %v3863 = vadd.f32 %v3815, %v3862
      %3864 = vdwg.mxu0
      %v3865 = vmax.f32 %v3846, 0.0
      %v3866 = vmax.f32 %v3848, 0.0
      %v3867 = vmax.f32 %v3851, 0.0
      %v3868 = vmax.f32 %v3853, 0.0
      %v3869 = vmax.f32 %v3856, 0.0
      %v3870 = vmax.f32 %v3858, 0.0
      %v3871 = vmax.f32 %v3861, 0.0
      %v3872 = vmax.f32 %v3863, 0.0
      %3881 = vrot.lane.b32.xlu0 %v3865, 12
      %v3882 = vpop.permute.xlu0 %3881
      %3883 = vrot.lane.b32.xlu0 %v3866, 12
      %v3884 = vpop.permute.xlu0 %3883
      %3885 = vrot.lane.b32.xlu0 %v3867, 12
      %v3886 = vpop.permute.xlu0 %3885
      %3887 = vrot.lane.b32.xlu0 %v3868, 12
      %v3888 = vpop.permute.xlu0 %3887
      %3889 = vrot.lane.b32.xlu0 %v3869, 12
      %v3890 = vpop.permute.xlu0 %3889
      %3891 = vrot.lane.b32.xlu0 %v3870, 12
      %v3892 = vpop.permute.xlu0 %3891
      %3893 = vrot.lane.b32.xlu0 %v3871, 12
      %v3894 = vpop.permute.xlu0 %3893
      %3895 = vrot.lane.b32.xlu0 %v3872, 12
      %v3896 = vpop.permute.xlu0 %3895
      %vm3905 = vcmask 105568
      %3906 = vst.msk [vmem:[#allocation4] sm:$0xff] %vm3905, %v3882
      %3907 = vst.msk [vmem:[#allocation4 + $0x8] sm:$0xff] %vm3905, %v3884
      %3908 = vst.msk [vmem:[#allocation4 + $0x10] sm:$0xff] %vm3905, %v3886
      %3909 = vst.msk [vmem:[#allocation4 + $0x18] sm:$0xff] %vm3905, %v3888
      %3910 = vst.msk [vmem:[#allocation4 + $0x20] sm:$0xff] %vm3905, %v3890
      %3911 = vst.msk [vmem:[#allocation4 + $0x28] sm:$0xff] %vm3905, %v3892
      %3912 = vst.msk [vmem:[#allocation4 + $0x30] sm:$0xff] %vm3905, %v3894
      %3913 = vst.msk [vmem:[#allocation4 + $0x38] sm:$0xff] %vm3905, %v3896
      %s3914 = scalar_lea.vmem %s11, 416
      %v3915 = vld [vmem:[%s3914] sm:$0xf]
      %v3916 = vld [vmem:[%s3914 + $0x4] sm:$0xf]
      %v3917 = vld [vmem:[%s3914 + $0x8] sm:$0xf]
      %v3918 = vld [vmem:[%s3914 + $0xc] sm:$0xf]
      %v3919 = vld [vmem:[%s3914 + $0x10] sm:$0xf]
      %v3920 = vld [vmem:[%s3914 + $0x14] sm:$0xf]
      %v3921 = vld [vmem:[%s3914 + $0x18] sm:$0xf]
      %v3922 = vld [vmem:[%s3914 + $0x1c] sm:$0xf]
      %v3931 = vunpack.c.l.b16 %v3915
      %v3932 = vunpack.c.l.b16 %v3916
      %v3933 = vunpack.c.l.b16 %v3917
      %v3934 = vunpack.c.l.b16 %v3918
      %v3935 = vunpack.c.l.b16 %v3919
      %v3936 = vunpack.c.l.b16 %v3920
      %v3937 = vunpack.c.l.b16 %v3921
      %v3938 = vunpack.c.l.b16 %v3922
      %v3939 = vpack.c.b16 %v3932, %v3931
      %v3940 = vpack.c.b16 %v3934, %v3933
      %v3941 = vpack.c.b16 %v3936, %v3935
      %v3942 = vpack.c.b16 %v3938, %v3937
      %3943 = vrot.lane.b32.xlu0 %v2097, 115
      %v3944 = vpop.permute.xlu0 %3943
      %3945 = vrot.lane.b32.xlu0 %v2098, 115
      %v3946 = vpop.permute.xlu0 %3945
      %3947 = vrot.lane.b32.xlu0 %v2099, 115
      %v3948 = vpop.permute.xlu0 %3947
      %3949 = vrot.lane.b32.xlu0 %v2100, 115
      %v3950 = vpop.permute.xlu0 %3949
      %3951 = vrot.lane.b32.xlu0 %v2101, 115
      %v3952 = vpop.permute.xlu0 %3951
      %3953 = vrot.lane.b32.xlu0 %v2102, 115
      %v3954 = vpop.permute.xlu0 %3953
      %3955 = vrot.lane.b32.xlu0 %v2103, 115
      %v3956 = vpop.permute.xlu0 %3955
      %3957 = vrot.lane.b32.xlu0 %v2104, 115
      %v3958 = vpop.permute.xlu0 %3957
      %v3968 = vsel %vm811, %v3939, 0
      %v3971 = vsel %vm811, %v3940, 0
      %v3974 = vsel %vm811, %v3941, 0
      %v3977 = vsel %vm811, %v3942, 0
      %3979 = vmatpush.bf16.msra.mxu0 0
      %3980 = vmatpush.bf16.msra.mxu0 0
      %3981 = vmatpush.bf16.msra.mxu0 0
      %3982 = vmatpush.bf16.msra.mxu0 0
      %3983 = vmatpush.bf16.msra.mxu0 0
      %3984 = vmatpush.bf16.msra.mxu0 0
      %3985 = vmatpush.bf16.msra.mxu0 %v2096
      %3986 = vmatpush.bf16.msra.mxu0 %v2095
      %3987 = vmatmul.bf16.gmra.mxu0 %v3968
      %v3988 = vpop.f32.mrf.mxu0
      %v3989 = vadd.f32 %v3944, %v3988
      %v3990 = vpop.f32.mrf.mxu0
      %v3991 = vadd.f32 %v3946, %v3990
      %3992 = vmatmul.bf16.gmra.mxu0 %v3971
      %v3993 = vpop.f32.mrf.mxu0
      %v3994 = vadd.f32 %v3948, %v3993
      %v3995 = vpop.f32.mrf.mxu0
      %v3996 = vadd.f32 %v3950, %v3995
      %3997 = vmatmul.bf16.gmra.mxu0 %v3974
      %v3998 = vpop.f32.mrf.mxu0
      %v3999 = vadd.f32 %v3952, %v3998
      %v4000 = vpop.f32.mrf.mxu0
      %v4001 = vadd.f32 %v3954, %v4000
      %4002 = vmatmul.bf16.gmra.mxu0 %v3977
      %v4003 = vpop.f32.mrf.mxu0
      %v4004 = vadd.f32 %v3956, %v4003
      %v4005 = vpop.f32.mrf.mxu0
      %v4006 = vadd.f32 %v3958, %v4005
      %4007 = vdwg.mxu0
      %v4008 = vmax.f32 %v3989, 0.0
      %v4009 = vmax.f32 %v3991, 0.0
      %v4010 = vmax.f32 %v3994, 0.0
      %v4011 = vmax.f32 %v3996, 0.0
      %v4012 = vmax.f32 %v3999, 0.0
      %v4013 = vmax.f32 %v4001, 0.0
      %v4014 = vmax.f32 %v4004, 0.0
      %v4015 = vmax.f32 %v4006, 0.0
      %4024 = vrot.lane.b32.xlu0 %v4008, 13
      %v4025 = vpop.permute.xlu0 %4024
      %4026 = vrot.lane.b32.xlu0 %v4009, 13
      %v4027 = vpop.permute.xlu0 %4026
      %4028 = vrot.lane.b32.xlu0 %v4010, 13
      %v4029 = vpop.permute.xlu0 %4028
      %4030 = vrot.lane.b32.xlu0 %v4011, 13
      %v4031 = vpop.permute.xlu0 %4030
      %4032 = vrot.lane.b32.xlu0 %v4012, 13
      %v4033 = vpop.permute.xlu0 %4032
      %4034 = vrot.lane.b32.xlu0 %v4013, 13
      %v4035 = vpop.permute.xlu0 %4034
      %4036 = vrot.lane.b32.xlu0 %v4014, 13
      %v4037 = vpop.permute.xlu0 %4036
      %4038 = vrot.lane.b32.xlu0 %v4015, 13
      %v4039 = vpop.permute.xlu0 %4038
      %vm4048 = vcmask 113768
      %4049 = vst.msk [vmem:[#allocation4] sm:$0xff] %vm4048, %v4025
      %4050 = vst.msk [vmem:[#allocation4 + $0x8] sm:$0xff] %vm4048, %v4027
      %4051 = vst.msk [vmem:[#allocation4 + $0x10] sm:$0xff] %vm4048, %v4029
      %4052 = vst.msk [vmem:[#allocation4 + $0x18] sm:$0xff] %vm4048, %v4031
      %4053 = vst.msk [vmem:[#allocation4 + $0x20] sm:$0xff] %vm4048, %v4033
      %4054 = vst.msk [vmem:[#allocation4 + $0x28] sm:$0xff] %vm4048, %v4035
      %4055 = vst.msk [vmem:[#allocation4 + $0x30] sm:$0xff] %vm4048, %v4037
      %4056 = vst.msk [vmem:[#allocation4 + $0x38] sm:$0xff] %vm4048, %v4039
      %s4057 = scalar_lea.vmem %s11, 448
      %v4058 = vld [vmem:[%s4057] sm:$0xf]
      %v4059 = vld [vmem:[%s4057 + $0x4] sm:$0xf]
      %v4060 = vld [vmem:[%s4057 + $0x8] sm:$0xf]
      %v4061 = vld [vmem:[%s4057 + $0xc] sm:$0xf]
      %v4062 = vld [vmem:[%s4057 + $0x10] sm:$0xf]
      %v4063 = vld [vmem:[%s4057 + $0x14] sm:$0xf]
      %v4064 = vld [vmem:[%s4057 + $0x18] sm:$0xf]
      %v4065 = vld [vmem:[%s4057 + $0x1c] sm:$0xf]
      %v4074 = vunpack.c.l.b16 %v4058
      %v4075 = vunpack.c.l.b16 %v4059
      %v4076 = vunpack.c.l.b16 %v4060
      %v4077 = vunpack.c.l.b16 %v4061
      %v4078 = vunpack.c.l.b16 %v4062
      %v4079 = vunpack.c.l.b16 %v4063
      %v4080 = vunpack.c.l.b16 %v4064
      %v4081 = vunpack.c.l.b16 %v4065
      %v4082 = vpack.c.b16 %v4075, %v4074
      %v4083 = vpack.c.b16 %v4077, %v4076
      %v4084 = vpack.c.b16 %v4079, %v4078
      %v4085 = vpack.c.b16 %v4081, %v4080
      %4086 = vrot.lane.b32.xlu0 %v2097, 114
      %v4087 = vpop.permute.xlu0 %4086
      %4088 = vrot.lane.b32.xlu0 %v2098, 114
      %v4089 = vpop.permute.xlu0 %4088
      %4090 = vrot.lane.b32.xlu0 %v2099, 114
      %v4091 = vpop.permute.xlu0 %4090
      %4092 = vrot.lane.b32.xlu0 %v2100, 114
      %v4093 = vpop.permute.xlu0 %4092
      %4094 = vrot.lane.b32.xlu0 %v2101, 114
      %v4095 = vpop.permute.xlu0 %4094
      %4096 = vrot.lane.b32.xlu0 %v2102, 114
      %v4097 = vpop.permute.xlu0 %4096
      %4098 = vrot.lane.b32.xlu0 %v2103, 114
      %v4099 = vpop.permute.xlu0 %4098
      %4100 = vrot.lane.b32.xlu0 %v2104, 114
      %v4101 = vpop.permute.xlu0 %4100
      %v4111 = vsel %vm811, %v4082, 0
      %v4114 = vsel %vm811, %v4083, 0
      %v4117 = vsel %vm811, %v4084, 0
      %v4120 = vsel %vm811, %v4085, 0
      %4122 = vmatpush.bf16.msra.mxu0 0
      %4123 = vmatpush.bf16.msra.mxu0 0
      %4124 = vmatpush.bf16.msra.mxu0 0
      %4125 = vmatpush.bf16.msra.mxu0 0
      %4126 = vmatpush.bf16.msra.mxu0 0
      %4127 = vmatpush.bf16.msra.mxu0 0
      %4128 = vmatpush.bf16.msra.mxu0 %v2096
      %4129 = vmatpush.bf16.msra.mxu0 %v2095
      %4130 = vmatmul.bf16.gmra.mxu0 %v4111
      %v4131 = vpop.f32.mrf.mxu0
      %v4132 = vadd.f32 %v4087, %v4131
      %v4133 = vpop.f32.mrf.mxu0
      %v4134 = vadd.f32 %v4089, %v4133
      %4135 = vmatmul.bf16.gmra.mxu0 %v4114
      %v4136 = vpop.f32.mrf.mxu0
      %v4137 = vadd.f32 %v4091, %v4136
      %v4138 = vpop.f32.mrf.mxu0
      %v4139 = vadd.f32 %v4093, %v4138
      %4140 = vmatmul.bf16.gmra.mxu0 %v4117
      %v4141 = vpop.f32.mrf.mxu0
      %v4142 = vadd.f32 %v4095, %v4141
      %v4143 = vpop.f32.mrf.mxu0
      %v4144 = vadd.f32 %v4097, %v4143
      %4145 = vmatmul.bf16.gmra.mxu0 %v4120
      %v4146 = vpop.f32.mrf.mxu0
      %v4147 = vadd.f32 %v4099, %v4146
      %v4148 = vpop.f32.mrf.mxu0
      %v4149 = vadd.f32 %v4101, %v4148
      %4150 = vdwg.mxu0
      %v4151 = vmax.f32 %v4132, 0.0
      %v4152 = vmax.f32 %v4134, 0.0
      %v4153 = vmax.f32 %v4137, 0.0
      %v4154 = vmax.f32 %v4139, 0.0
      %v4155 = vmax.f32 %v4142, 0.0
      %v4156 = vmax.f32 %v4144, 0.0
      %v4157 = vmax.f32 %v4147, 0.0
      %v4158 = vmax.f32 %v4149, 0.0
      %4167 = vrot.lane.b32.xlu0 %v4151, 14
      %v4168 = vpop.permute.xlu0 %4167
      %4169 = vrot.lane.b32.xlu0 %v4152, 14
      %v4170 = vpop.permute.xlu0 %4169
      %4171 = vrot.lane.b32.xlu0 %v4153, 14
      %v4172 = vpop.permute.xlu0 %4171
      %4173 = vrot.lane.b32.xlu0 %v4154, 14
      %v4174 = vpop.permute.xlu0 %4173
      %4175 = vrot.lane.b32.xlu0 %v4155, 14
      %v4176 = vpop.permute.xlu0 %4175
      %4177 = vrot.lane.b32.xlu0 %v4156, 14
      %v4178 = vpop.permute.xlu0 %4177
      %4179 = vrot.lane.b32.xlu0 %v4157, 14
      %v4180 = vpop.permute.xlu0 %4179
      %4181 = vrot.lane.b32.xlu0 %v4158, 14
      %v4182 = vpop.permute.xlu0 %4181
      %vm4191 = vcmask 121968
      %4192 = vst.msk [vmem:[#allocation4] sm:$0xff] %vm4191, %v4168
      %4193 = vst.msk [vmem:[#allocation4 + $0x8] sm:$0xff] %vm4191, %v4170
      %4194 = vst.msk [vmem:[#allocation4 + $0x10] sm:$0xff] %vm4191, %v4172
      %4195 = vst.msk [vmem:[#allocation4 + $0x18] sm:$0xff] %vm4191, %v4174
      %4196 = vst.msk [vmem:[#allocation4 + $0x20] sm:$0xff] %vm4191, %v4176
      %4197 = vst.msk [vmem:[#allocation4 + $0x28] sm:$0xff] %vm4191, %v4178
      %4198 = vst.msk [vmem:[#allocation4 + $0x30] sm:$0xff] %vm4191, %v4180
      %4199 = vst.msk [vmem:[#allocation4 + $0x38] sm:$0xff] %vm4191, %v4182
      %s4200 = scalar_lea.vmem %s11, 480
      %v4201 = vld [vmem:[%s4200] sm:$0xf]
      %v4202 = vld [vmem:[%s4200 + $0x4] sm:$0xf]
      %v4203 = vld [vmem:[%s4200 + $0x8] sm:$0xf]
      %v4204 = vld [vmem:[%s4200 + $0xc] sm:$0xf]
      %v4205 = vld [vmem:[%s4200 + $0x10] sm:$0xf]
      %v4206 = vld [vmem:[%s4200 + $0x14] sm:$0xf]
      %v4207 = vld [vmem:[%s4200 + $0x18] sm:$0xf]
      %v4208 = vld [vmem:[%s4200 + $0x1c] sm:$0xf]
      %v4217 = vunpack.c.l.b16 %v4201
      %v4218 = vunpack.c.l.b16 %v4202
      %v4219 = vunpack.c.l.b16 %v4203
      %v4220 = vunpack.c.l.b16 %v4204
      %v4221 = vunpack.c.l.b16 %v4205
      %v4222 = vunpack.c.l.b16 %v4206
      %v4223 = vunpack.c.l.b16 %v4207
      %v4224 = vunpack.c.l.b16 %v4208
      %v4225 = vpack.c.b16 %v4218, %v4217
      %v4226 = vpack.c.b16 %v4220, %v4219
      %v4227 = vpack.c.b16 %v4222, %v4221
      %v4228 = vpack.c.b16 %v4224, %v4223
      %4229 = vrot.lane.b32.xlu0 %v2097, 113
      %v4230 = vpop.permute.xlu0 %4229
      %4231 = vrot.lane.b32.xlu0 %v2098, 113
      %v4232 = vpop.permute.xlu0 %4231
      %4233 = vrot.lane.b32.xlu0 %v2099, 113
      %v4234 = vpop.permute.xlu0 %4233
      %4235 = vrot.lane.b32.xlu0 %v2100, 113
      %v4236 = vpop.permute.xlu0 %4235
      %4237 = vrot.lane.b32.xlu0 %v2101, 113
      %v4238 = vpop.permute.xlu0 %4237
      %4239 = vrot.lane.b32.xlu0 %v2102, 113
      %v4240 = vpop.permute.xlu0 %4239
      %4241 = vrot.lane.b32.xlu0 %v2103, 113
      %v4242 = vpop.permute.xlu0 %4241
      %4243 = vrot.lane.b32.xlu0 %v2104, 113
      %v4244 = vpop.permute.xlu0 %4243
      %v4254 = vsel %vm811, %v4225, 0
      %v4257 = vsel %vm811, %v4226, 0
      %v4260 = vsel %vm811, %v4227, 0
      %v4263 = vsel %vm811, %v4228, 0
      %4265 = vmatpush.bf16.msra.mxu0 0
      %4266 = vmatpush.bf16.msra.mxu0 0
      %4267 = vmatpush.bf16.msra.mxu0 0
      %4268 = vmatpush.bf16.msra.mxu0 0
      %4269 = vmatpush.bf16.msra.mxu0 0
      %4270 = vmatpush.bf16.msra.mxu0 0
      %4271 = vmatpush.bf16.msra.mxu0 %v2096
      %4272 = vmatpush.bf16.msra.mxu0 %v2095
      %4273 = vmatmul.bf16.gmra.mxu0 %v4254
      %v4274 = vpop.f32.mrf.mxu0
      %v4275 = vadd.f32 %v4230, %v4274
      %v4276 = vpop.f32.mrf.mxu0
      %v4277 = vadd.f32 %v4232, %v4276
      %4278 = vmatmul.bf16.gmra.mxu0 %v4257
      %v4279 = vpop.f32.mrf.mxu0
      %v4280 = vadd.f32 %v4234, %v4279
      %v4281 = vpop.f32.mrf.mxu0
      %v4282 = vadd.f32 %v4236, %v4281
      %4283 = vmatmul.bf16.gmra.mxu0 %v4260
      %v4284 = vpop.f32.mrf.mxu0
      %v4285 = vadd.f32 %v4238, %v4284
      %v4286 = vpop.f32.mrf.mxu0
      %v4287 = vadd.f32 %v4240, %v4286
      %4288 = vmatmul.bf16.gmra.mxu0 %v4263
      %v4289 = vpop.f32.mrf.mxu0
      %v4290 = vadd.f32 %v4242, %v4289
      %v4291 = vpop.f32.mrf.mxu0
      %v4292 = vadd.f32 %v4244, %v4291
      %4293 = vdwg.mxu0
      %v4294 = vmax.f32 %v4275, 0.0
      %v4295 = vmax.f32 %v4277, 0.0
      %v4296 = vmax.f32 %v4280, 0.0
      %v4297 = vmax.f32 %v4282, 0.0
      %v4298 = vmax.f32 %v4285, 0.0
      %v4299 = vmax.f32 %v4287, 0.0
      %v4300 = vmax.f32 %v4290, 0.0
      %v4301 = vmax.f32 %v4292, 0.0
      %4310 = vrot.lane.b32.xlu0 %v4294, 15
      %v4311 = vpop.permute.xlu0 %4310
      %4312 = vrot.lane.b32.xlu0 %v4295, 15
      %v4313 = vpop.permute.xlu0 %4312
      %4314 = vrot.lane.b32.xlu0 %v4296, 15
      %v4315 = vpop.permute.xlu0 %4314
      %4316 = vrot.lane.b32.xlu0 %v4297, 15
      %v4317 = vpop.permute.xlu0 %4316
      %4318 = vrot.lane.b32.xlu0 %v4298, 15
      %v4319 = vpop.permute.xlu0 %4318
      %4320 = vrot.lane.b32.xlu0 %v4299, 15
      %v4321 = vpop.permute.xlu0 %4320
      %4322 = vrot.lane.b32.xlu0 %v4300, 15
      %v4323 = vpop.permute.xlu0 %4322
      %4324 = vrot.lane.b32.xlu0 %v4301, 15
      %v4325 = vpop.permute.xlu0 %4324
      %vm4334 = vcmask 130168
      %4335 = vst.msk [vmem:[#allocation4] sm:$0xff] %vm4334, %v4311
      %4336 = vst.msk [vmem:[#allocation4 + $0x8] sm:$0xff] %vm4334, %v4313
      %4337 = vst.msk [vmem:[#allocation4 + $0x10] sm:$0xff] %vm4334, %v4315
      %4338 = vst.msk [vmem:[#allocation4 + $0x18] sm:$0xff] %vm4334, %v4317
      %4339 = vst.msk [vmem:[#allocation4 + $0x20] sm:$0xff] %vm4334, %v4319
      %4340 = vst.msk [vmem:[#allocation4 + $0x28] sm:$0xff] %vm4334, %v4321
      %4341 = vst.msk [vmem:[#allocation4 + $0x30] sm:$0xff] %vm4334, %v4323
      %4342 = vst.msk [vmem:[#allocation4 + $0x38] sm:$0xff] %vm4334, %v4325
      %v4343 = vld [vmem:[#allocation4] sm:$0xff]
      %v4344 = vld [vmem:[#allocation4 + $0x8] sm:$0xff]
      %v4345 = vld [vmem:[#allocation4 + $0x10] sm:$0xff]
      %v4346 = vld [vmem:[#allocation4 + $0x18] sm:$0xff]
      %v4347 = vld [vmem:[#allocation4 + $0x20] sm:$0xff]
      %v4348 = vld [vmem:[#allocation4 + $0x28] sm:$0xff]
      %v4349 = vld [vmem:[#allocation4 + $0x30] sm:$0xff]
      %v4350 = vld [vmem:[#allocation4 + $0x38] sm:$0xff]
      %v4351 = vpack.c.bf16 %v4344, %v4343
      %v4352 = vpack.c.bf16 %v4346, %v4345
      %v4353 = vpack.c.bf16 %v4348, %v4347
      %v4354 = vpack.c.bf16 %v4350, %v4349
      %v4355 = vld [vmem:[%s13] sm:$0xf]
      %v4356 = vld [vmem:[%s13 + $0x4] sm:$0xf]
      %v4359 = vunpack.c.l.b16 %v4355
      %v4360 = vunpack.c.l.b16 %v4356
      %v4361 = vpack.c.b16 %v4360, %v4359
      %v4364 = vsel %vm751, %v4351, 0
      %v4367 = vsel %vm751, %v4352, 0
      %v4370 = vsel %vm751, %v4353, 0
      %v4373 = vsel %vm751, %v4354, 0
      %4375 = vmatpush.bf16.msra.mxu0 0
      %4376 = vmatpush.bf16.msra.mxu0 0
      %4377 = vmatpush.bf16.msra.mxu0 0
      %4378 = vmatpush.bf16.msra.mxu0 0
      %4379 = vmatpush.bf16.msra.mxu0 0
      %4380 = vmatpush.bf16.msra.mxu0 0
      %4381 = vmatpush.bf16.msra.mxu0 0
      %4382 = vmatpush.bf16.msra.mxu0 %v4361
      %4383 = vmatmul.bf16.gmra.mxu0 %v4364
      %v4384 = vpop.f32.mrf.mxu0
      %v4385 = vadd.f32 0.0, %v4384
      %v4386 = vpop.f32.mrf.mxu0
      %v4387 = vadd.f32 0.0, %v4386
      %4388 = vmatmul.bf16.gmra.mxu0 %v4367
      %v4389 = vpop.f32.mrf.mxu0
      %v4390 = vadd.f32 0.0, %v4389
      %v4391 = vpop.f32.mrf.mxu0
      %v4392 = vadd.f32 0.0, %v4391
      %4393 = vmatmul.bf16.gmra.mxu0 %v4370
      %v4394 = vpop.f32.mrf.mxu0
      %v4395 = vadd.f32 0.0, %v4394
      %v4396 = vpop.f32.mrf.mxu0
      %v4397 = vadd.f32 0.0, %v4396
      %4398 = vmatmul.bf16.gmra.mxu0 %v4373
      %v4399 = vpop.f32.mrf.mxu0
      %v4400 = vadd.f32 0.0, %v4399
      %v4401 = vpop.f32.mrf.mxu0
      %v4402 = vadd.f32 0.0, %v4401
      %4403 = vdwg.mxu0
      %4404 = vst.msk [vmem:[#allocation2] sm:$0xf] %vm1277, 0
      %4405 = vst.msk [vmem:[#allocation2 + $0xc] sm:$0xf] %vm1277, 0
      %4406 = vst.msk [vmem:[#allocation2 + $0x18] sm:$0xf] %vm1277, 0
      %4407 = vst.msk [vmem:[#allocation2 + $0x24] sm:$0xf] %vm1277, 0
      %4408 = vst.msk [vmem:[#allocation2 + $0x30] sm:$0xf] %vm1277, 0
      %4409 = vst.msk [vmem:[#allocation2 + $0x3c] sm:$0xf] %vm1277, 0
      %4410 = vst.msk [vmem:[#allocation2 + $0x48] sm:$0xf] %vm1277, 0
      %4411 = vst.msk [vmem:[#allocation2 + $0x54] sm:$0xf] %vm1277, 0
      %4412 = vst.msk [vmem:[#allocation2] sm:$0xf] %vm1280, 0
      %4413 = vst.msk [vmem:[#allocation2 + $0xc] sm:$0xf] %vm1280, 0
      %4414 = vst.msk [vmem:[#allocation2 + $0x18] sm:$0xf] %vm1280, 0
      %4415 = vst.msk [vmem:[#allocation2 + $0x24] sm:$0xf] %vm1280, 0
      %4416 = vst.msk [vmem:[#allocation2 + $0x30] sm:$0xf] %vm1280, 0
      %4417 = vst.msk [vmem:[#allocation2 + $0x3c] sm:$0xf] %vm1280, 0
      %4418 = vst.msk [vmem:[#allocation2 + $0x48] sm:$0xf] %vm1280, 0
      %4419 = vst.msk [vmem:[#allocation2 + $0x54] sm:$0xf] %vm1280, 0
      %v4420 = vpack.c.bf16 %v4385, %v4385
      %v4421 = vpack.c.bf16 %v4387, %v4387
      %v4422 = vpack.c.bf16 %v4390, %v4390
      %v4423 = vpack.c.bf16 %v4392, %v4392
      %v4424 = vpack.c.bf16 %v4395, %v4395
      %v4425 = vpack.c.bf16 %v4397, %v4397
      %v4426 = vpack.c.bf16 %v4400, %v4400
      %v4427 = vpack.c.bf16 %v4402, %v4402
      %4436 = vrot.lane.b32.xlu0 %v4420, 9
      %v4437 = vpop.permute.xlu0 %4436
      %4438 = vrot.lane.b32.xlu0 %v4421, 9
      %v4439 = vpop.permute.xlu0 %4438
      %4440 = vrot.lane.b32.xlu0 %v4422, 9
      %v4441 = vpop.permute.xlu0 %4440
      %4442 = vrot.lane.b32.xlu0 %v4423, 9
      %v4443 = vpop.permute.xlu0 %4442
      %4444 = vrot.lane.b32.xlu0 %v4424, 9
      %v4445 = vpop.permute.xlu0 %4444
      %4446 = vrot.lane.b32.xlu0 %v4425, 9
      %v4447 = vpop.permute.xlu0 %4446
      %4448 = vrot.lane.b32.xlu0 %v4426, 9
      %v4449 = vpop.permute.xlu0 %4448
      %4450 = vrot.lane.b32.xlu0 %v4427, 9
      %v4451 = vpop.permute.xlu0 %4450
      %4460 = vst.msk [vmem:[#allocation2] sm:$0xf] %vm1293, %v4437
      %4461 = vst.msk [vmem:[#allocation2 + $0xc] sm:$0xf] %vm1293, %v4439
      %4462 = vst.msk [vmem:[#allocation2 + $0x18] sm:$0xf] %vm1293, %v4441
      %4463 = vst.msk [vmem:[#allocation2 + $0x24] sm:$0xf] %vm1293, %v4443
      %4464 = vst.msk [vmem:[#allocation2 + $0x30] sm:$0xf] %vm1293, %v4445
      %4465 = vst.msk [vmem:[#allocation2 + $0x3c] sm:$0xf] %vm1293, %v4447
      %4466 = vst.msk [vmem:[#allocation2 + $0x48] sm:$0xf] %vm1293, %v4449
      %4467 = vst.msk [vmem:[#allocation2 + $0x54] sm:$0xf] %vm1293, %v4451
      %v4468 = vld [vmem:[#allocation2] sm:$0xf]
      %v4469 = vld [vmem:[#allocation2 + $0xc] sm:$0xf]
      %v4470 = vld [vmem:[#allocation2 + $0x18] sm:$0xf]
      %v4471 = vld [vmem:[#allocation2 + $0x24] sm:$0xf]
      %v4472 = vld [vmem:[#allocation2 + $0x30] sm:$0xf]
      %v4473 = vld [vmem:[#allocation2 + $0x3c] sm:$0xf]
      %v4474 = vld [vmem:[#allocation2 + $0x48] sm:$0xf]
      %v4475 = vld [vmem:[#allocation2 + $0x54] sm:$0xf]
      %v4476 = vunpack.c.l.bf16 %v4468
      %v4477 = vunpack.c.l.bf16 %v4469
      %v4478 = vunpack.c.l.bf16 %v4470
      %v4479 = vunpack.c.l.bf16 %v4471
      %v4480 = vunpack.c.l.bf16 %v4472
      %v4481 = vunpack.c.l.bf16 %v4473
      %v4482 = vunpack.c.l.bf16 %v4474
      %v4483 = vunpack.c.l.bf16 %v4475
      %v4484 = vmul.f32 %v4476, %v1304
      %v4485 = vmul.f32 %v4477, %v1304
      %v4486 = vmul.f32 %v4478, %v1304
      %v4487 = vmul.f32 %v4479, %v1304
      %v4488 = vmul.f32 %v4480, %v1304
      %v4489 = vmul.f32 %v4481, %v1304
      %v4490 = vmul.f32 %v4482, %v1304
      %v4491 = vmul.f32 %v4483, %v1304
      %v4492 = vpack.c.bf16 %v4484, %v4484
      %v4493 = vpack.c.bf16 %v4485, %v4485
      %v4494 = vpack.c.bf16 %v4486, %v4486
      %v4495 = vpack.c.bf16 %v4487, %v4487
      %v4496 = vpack.c.bf16 %v4488, %v4488
      %v4497 = vpack.c.bf16 %v4489, %v4489
      %v4498 = vpack.c.bf16 %v4490, %v4490
      %v4499 = vpack.c.bf16 %v4491, %v4491
      %v4500 = vmul.f32 %v4476, %v1316
      %v4501 = vmul.f32 %v4477, %v1316
      %v4502 = vmul.f32 %v4478, %v1316
      %v4503 = vmul.f32 %v4479, %v1316
      %v4504 = vmul.f32 %v4480, %v1316
      %v4505 = vmul.f32 %v4481, %v1316
      %v4506 = vmul.f32 %v4482, %v1316
      %v4507 = vmul.f32 %v4483, %v1316
      %v4508 = vpack.c.bf16 %v4500, %v4500
      %v4509 = vpack.c.bf16 %v4501, %v4501
      %v4510 = vpack.c.bf16 %v4502, %v4502
      %v4511 = vpack.c.bf16 %v4503, %v4503
      %v4512 = vpack.c.bf16 %v4504, %v4504
      %v4513 = vpack.c.bf16 %v4505, %v4505
      %v4514 = vpack.c.bf16 %v4506, %v4506
      %v4515 = vpack.c.bf16 %v4507, %v4507
      %v4516 = vmul.f32 %v4476, %v1326
      %v4517 = vmul.f32 %v4477, %v1326
      %v4518 = vmul.f32 %v4478, %v1326
      %v4519 = vmul.f32 %v4479, %v1326
      %v4520 = vmul.f32 %v4480, %v1326
      %v4521 = vmul.f32 %v4481, %v1326
      %v4522 = vmul.f32 %v4482, %v1326
      %v4523 = vmul.f32 %v4483, %v1326
      %v4524 = vpack.c.bf16 %v4516, %v4516
      %v4525 = vpack.c.bf16 %v4517, %v4517
      %v4526 = vpack.c.bf16 %v4518, %v4518
      %v4527 = vpack.c.bf16 %v4519, %v4519
      %v4528 = vpack.c.bf16 %v4520, %v4520
      %v4529 = vpack.c.bf16 %v4521, %v4521
      %v4530 = vpack.c.bf16 %v4522, %v4522
      %v4531 = vpack.c.bf16 %v4523, %v4523
      %v4532 = vmul.f32 %v4476, %v1336
      %v4533 = vmul.f32 %v4477, %v1336
      %v4534 = vmul.f32 %v4478, %v1336
      %v4535 = vmul.f32 %v4479, %v1336
      %v4536 = vmul.f32 %v4480, %v1336
      %v4537 = vmul.f32 %v4481, %v1336
      %v4538 = vmul.f32 %v4482, %v1336
      %v4539 = vmul.f32 %v4483, %v1336
      %v4540 = vpack.c.bf16 %v4532, %v4532
      %v4541 = vpack.c.bf16 %v4533, %v4533
      %v4542 = vpack.c.bf16 %v4534, %v4534
      %v4543 = vpack.c.bf16 %v4535, %v4535
      %v4544 = vpack.c.bf16 %v4536, %v4536
      %v4545 = vpack.c.bf16 %v4537, %v4537
      %v4546 = vpack.c.bf16 %v4538, %v4538
      %v4547 = vpack.c.bf16 %v4539, %v4539
      %v4548 = vmul.f32 %v4476, %v1346
      %v4549 = vmul.f32 %v4477, %v1346
      %v4550 = vmul.f32 %v4478, %v1346
      %v4551 = vmul.f32 %v4479, %v1346
      %v4552 = vmul.f32 %v4480, %v1346
      %v4553 = vmul.f32 %v4481, %v1346
      %v4554 = vmul.f32 %v4482, %v1346
      %v4555 = vmul.f32 %v4483, %v1346
      %v4556 = vpack.c.bf16 %v4548, %v4548
      %v4557 = vpack.c.bf16 %v4549, %v4549
      %v4558 = vpack.c.bf16 %v4550, %v4550
      %v4559 = vpack.c.bf16 %v4551, %v4551
      %v4560 = vpack.c.bf16 %v4552, %v4552
      %v4561 = vpack.c.bf16 %v4553, %v4553
      %v4562 = vpack.c.bf16 %v4554, %v4554
      %v4563 = vpack.c.bf16 %v4555, %v4555
      %v4564 = vmul.f32 %v4476, %v1356
      %v4565 = vmul.f32 %v4477, %v1356
      %v4566 = vmul.f32 %v4478, %v1356
      %v4567 = vmul.f32 %v4479, %v1356
      %v4568 = vmul.f32 %v4480, %v1356
      %v4569 = vmul.f32 %v4481, %v1356
      %v4570 = vmul.f32 %v4482, %v1356
      %v4571 = vmul.f32 %v4483, %v1356
      %v4572 = vpack.c.bf16 %v4564, %v4564
      %v4573 = vpack.c.bf16 %v4565, %v4565
      %v4574 = vpack.c.bf16 %v4566, %v4566
      %v4575 = vpack.c.bf16 %v4567, %v4567
      %v4576 = vpack.c.bf16 %v4568, %v4568
      %v4577 = vpack.c.bf16 %v4569, %v4569
      %v4578 = vpack.c.bf16 %v4570, %v4570
      %v4579 = vpack.c.bf16 %v4571, %v4571
      %v4580 = vmul.f32 %v4476, %v1366
      %v4581 = vmul.f32 %v4477, %v1366
      %v4582 = vmul.f32 %v4478, %v1366
      %v4583 = vmul.f32 %v4479, %v1366
      %v4584 = vmul.f32 %v4480, %v1366
      %v4585 = vmul.f32 %v4481, %v1366
      %v4586 = vmul.f32 %v4482, %v1366
      %v4587 = vmul.f32 %v4483, %v1366
      %v4588 = vpack.c.bf16 %v4580, %v4580
      %v4589 = vpack.c.bf16 %v4581, %v4581
      %v4590 = vpack.c.bf16 %v4582, %v4582
      %v4591 = vpack.c.bf16 %v4583, %v4583
      %v4592 = vpack.c.bf16 %v4584, %v4584
      %v4593 = vpack.c.bf16 %v4585, %v4585
      %v4594 = vpack.c.bf16 %v4586, %v4586
      %v4595 = vpack.c.bf16 %v4587, %v4587
      %v4596 = vmul.f32 %v4476, %v1376
      %v4597 = vmul.f32 %v4477, %v1376
      %v4598 = vmul.f32 %v4478, %v1376
      %v4599 = vmul.f32 %v4479, %v1376
      %v4600 = vmul.f32 %v4480, %v1376
      %v4601 = vmul.f32 %v4481, %v1376
      %v4602 = vmul.f32 %v4482, %v1376
      %v4603 = vmul.f32 %v4483, %v1376
      %v4604 = vpack.c.bf16 %v4596, %v4596
      %v4605 = vpack.c.bf16 %v4597, %v4597
      %v4606 = vpack.c.bf16 %v4598, %v4598
      %v4607 = vpack.c.bf16 %v4599, %v4599
      %v4608 = vpack.c.bf16 %v4600, %v4600
      %v4609 = vpack.c.bf16 %v4601, %v4601
      %v4610 = vpack.c.bf16 %v4602, %v4602
      %v4611 = vpack.c.bf16 %v4603, %v4603
      %v4612 = vmul.f32 %v4476, %v1389
      %v4613 = vmul.f32 %v4477, %v1389
      %v4614 = vmul.f32 %v4478, %v1389
      %v4615 = vmul.f32 %v4479, %v1389
      %v4616 = vmul.f32 %v4480, %v1389
      %v4617 = vmul.f32 %v4481, %v1389
      %v4618 = vmul.f32 %v4482, %v1389
      %v4619 = vmul.f32 %v4483, %v1389
      %v4620 = vpack.c.bf16 %v4612, %v4612
      %v4621 = vpack.c.bf16 %v4613, %v4613
      %v4622 = vpack.c.bf16 %v4614, %v4614
      %v4623 = vpack.c.bf16 %v4615, %v4615
      %v4624 = vpack.c.bf16 %v4616, %v4616
      %v4625 = vpack.c.bf16 %v4617, %v4617
      %v4626 = vpack.c.bf16 %v4618, %v4618
      %v4627 = vpack.c.bf16 %v4619, %v4619
      %v4636 = vunpack.c.l.b16 %v4492
      %v4637 = vunpack.c.l.b16 %v4493
      %v4638 = vunpack.c.l.b16 %v4494
      %v4639 = vunpack.c.l.b16 %v4495
      %v4640 = vunpack.c.l.b16 %v4496
      %v4641 = vunpack.c.l.b16 %v4497
      %v4642 = vunpack.c.l.b16 %v4498
      %v4643 = vunpack.c.l.b16 %v4499
      %v4644 = vpack.c.b16 %v4637, %v4636
      %v4645 = vpack.c.b16 %v4639, %v4638
      %v4646 = vpack.c.b16 %v4641, %v4640
      %v4647 = vpack.c.b16 %v4643, %v4642
      %v4660 = vunpack.c.l.b16 %v4508
      %v4661 = vunpack.c.l.b16 %v4509
      %v4662 = vunpack.c.l.b16 %v4510
      %v4663 = vunpack.c.l.b16 %v4511
      %v4664 = vunpack.c.l.b16 %v4512
      %v4665 = vunpack.c.l.b16 %v4513
      %v4666 = vunpack.c.l.b16 %v4514
      %v4667 = vunpack.c.l.b16 %v4515
      %v4668 = vpack.c.b16 %v4661, %v4660
      %v4669 = vpack.c.b16 %v4663, %v4662
      %v4670 = vpack.c.b16 %v4665, %v4664
      %v4671 = vpack.c.b16 %v4667, %v4666
      %4672 = vrot.lane.b32.xlu0 %v4668, 127
      %v4673 = vpop.permute.xlu0 %4672
      %4674 = vrot.lane.b32.xlu0 %v4669, 127
      %v4675 = vpop.permute.xlu0 %4674
      %4676 = vrot.lane.b32.xlu0 %v4670, 127
      %v4677 = vpop.permute.xlu0 %4676
      %4678 = vrot.lane.b32.xlu0 %v4671, 127
      %v4679 = vpop.permute.xlu0 %4678
      %v4692 = vunpack.c.l.b16 %v4524
      %v4693 = vunpack.c.l.b16 %v4525
      %v4694 = vunpack.c.l.b16 %v4526
      %v4695 = vunpack.c.l.b16 %v4527
      %v4696 = vunpack.c.l.b16 %v4528
      %v4697 = vunpack.c.l.b16 %v4529
      %v4698 = vunpack.c.l.b16 %v4530
      %v4699 = vunpack.c.l.b16 %v4531
      %v4700 = vpack.c.b16 %v4693, %v4692
      %v4701 = vpack.c.b16 %v4695, %v4694
      %v4702 = vpack.c.b16 %v4697, %v4696
      %v4703 = vpack.c.b16 %v4699, %v4698
      %4704 = vrot.lane.b32.xlu0 %v4700, 126
      %v4705 = vpop.permute.xlu0 %4704
      %4706 = vrot.lane.b32.xlu0 %v4701, 126
      %v4707 = vpop.permute.xlu0 %4706
      %4708 = vrot.lane.b32.xlu0 %v4702, 126
      %v4709 = vpop.permute.xlu0 %4708
      %4710 = vrot.lane.b32.xlu0 %v4703, 126
      %v4711 = vpop.permute.xlu0 %4710
      %v4724 = vunpack.c.l.b16 %v4540
      %v4725 = vunpack.c.l.b16 %v4541
      %v4726 = vunpack.c.l.b16 %v4542
      %v4727 = vunpack.c.l.b16 %v4543
      %v4728 = vunpack.c.l.b16 %v4544
      %v4729 = vunpack.c.l.b16 %v4545
      %v4730 = vunpack.c.l.b16 %v4546
      %v4731 = vunpack.c.l.b16 %v4547
      %v4732 = vpack.c.b16 %v4725, %v4724
      %v4733 = vpack.c.b16 %v4727, %v4726
      %v4734 = vpack.c.b16 %v4729, %v4728
      %v4735 = vpack.c.b16 %v4731, %v4730
      %4736 = vrot.lane.b32.xlu0 %v4732, 120
      %v4737 = vpop.permute.xlu0 %4736
      %4738 = vrot.lane.b32.xlu0 %v4733, 120
      %v4739 = vpop.permute.xlu0 %4738
      %4740 = vrot.lane.b32.xlu0 %v4734, 120
      %v4741 = vpop.permute.xlu0 %4740
      %4742 = vrot.lane.b32.xlu0 %v4735, 120
      %v4743 = vpop.permute.xlu0 %4742
      %v4756 = vunpack.c.l.b16 %v4556
      %v4757 = vunpack.c.l.b16 %v4557
      %v4758 = vunpack.c.l.b16 %v4558
      %v4759 = vunpack.c.l.b16 %v4559
      %v4760 = vunpack.c.l.b16 %v4560
      %v4761 = vunpack.c.l.b16 %v4561
      %v4762 = vunpack.c.l.b16 %v4562
      %v4763 = vunpack.c.l.b16 %v4563
      %v4764 = vpack.c.b16 %v4757, %v4756
      %v4765 = vpack.c.b16 %v4759, %v4758
      %v4766 = vpack.c.b16 %v4761, %v4760
      %v4767 = vpack.c.b16 %v4763, %v4762
      %4768 = vrot.lane.b32.xlu0 %v4764, 119
      %v4769 = vpop.permute.xlu0 %4768
      %4770 = vrot.lane.b32.xlu0 %v4765, 119
      %v4771 = vpop.permute.xlu0 %4770
      %4772 = vrot.lane.b32.xlu0 %v4766, 119
      %v4773 = vpop.permute.xlu0 %4772
      %4774 = vrot.lane.b32.xlu0 %v4767, 119
      %v4775 = vpop.permute.xlu0 %4774
      %v4788 = vunpack.c.l.b16 %v4572
      %v4789 = vunpack.c.l.b16 %v4573
      %v4790 = vunpack.c.l.b16 %v4574
      %v4791 = vunpack.c.l.b16 %v4575
      %v4792 = vunpack.c.l.b16 %v4576
      %v4793 = vunpack.c.l.b16 %v4577
      %v4794 = vunpack.c.l.b16 %v4578
      %v4795 = vunpack.c.l.b16 %v4579
      %v4796 = vpack.c.b16 %v4789, %v4788
      %v4797 = vpack.c.b16 %v4791, %v4790
      %v4798 = vpack.c.b16 %v4793, %v4792
      %v4799 = vpack.c.b16 %v4795, %v4794
      %4800 = vrot.lane.b32.xlu0 %v4796, 118
      %v4801 = vpop.permute.xlu0 %4800
      %4802 = vrot.lane.b32.xlu0 %v4797, 118
      %v4803 = vpop.permute.xlu0 %4802
      %4804 = vrot.lane.b32.xlu0 %v4798, 118
      %v4805 = vpop.permute.xlu0 %4804
      %4806 = vrot.lane.b32.xlu0 %v4799, 118
      %v4807 = vpop.permute.xlu0 %4806
      %v4820 = vunpack.c.l.b16 %v4588
      %v4821 = vunpack.c.l.b16 %v4589
      %v4822 = vunpack.c.l.b16 %v4590
      %v4823 = vunpack.c.l.b16 %v4591
      %v4824 = vunpack.c.l.b16 %v4592
      %v4825 = vunpack.c.l.b16 %v4593
      %v4826 = vunpack.c.l.b16 %v4594
      %v4827 = vunpack.c.l.b16 %v4595
      %v4828 = vpack.c.b16 %v4821, %v4820
      %v4829 = vpack.c.b16 %v4823, %v4822
      %v4830 = vpack.c.b16 %v4825, %v4824
      %v4831 = vpack.c.b16 %v4827, %v4826
      %4832 = vrot.lane.b32.xlu0 %v4828, 112
      %v4833 = vpop.permute.xlu0 %4832
      %4834 = vrot.lane.b32.xlu0 %v4829, 112
      %v4835 = vpop.permute.xlu0 %4834
      %4836 = vrot.lane.b32.xlu0 %v4830, 112
      %v4837 = vpop.permute.xlu0 %4836
      %4838 = vrot.lane.b32.xlu0 %v4831, 112
      %v4839 = vpop.permute.xlu0 %4838
      %v4852 = vunpack.c.l.b16 %v4604
      %v4853 = vunpack.c.l.b16 %v4605
      %v4854 = vunpack.c.l.b16 %v4606
      %v4855 = vunpack.c.l.b16 %v4607
      %v4856 = vunpack.c.l.b16 %v4608
      %v4857 = vunpack.c.l.b16 %v4609
      %v4858 = vunpack.c.l.b16 %v4610
      %v4859 = vunpack.c.l.b16 %v4611
      %v4860 = vpack.c.b16 %v4853, %v4852
      %v4861 = vpack.c.b16 %v4855, %v4854
      %v4862 = vpack.c.b16 %v4857, %v4856
      %v4863 = vpack.c.b16 %v4859, %v4858
      %4864 = vrot.lane.b32.xlu0 %v4860, 111
      %v4865 = vpop.permute.xlu0 %4864
      %4866 = vrot.lane.b32.xlu0 %v4861, 111
      %v4867 = vpop.permute.xlu0 %4866
      %4868 = vrot.lane.b32.xlu0 %v4862, 111
      %v4869 = vpop.permute.xlu0 %4868
      %4870 = vrot.lane.b32.xlu0 %v4863, 111
      %v4871 = vpop.permute.xlu0 %4870
      %v4884 = vunpack.c.l.b16 %v4620
      %v4885 = vunpack.c.l.b16 %v4621
      %v4886 = vunpack.c.l.b16 %v4622
      %v4887 = vunpack.c.l.b16 %v4623
      %v4888 = vunpack.c.l.b16 %v4624
      %v4889 = vunpack.c.l.b16 %v4625
      %v4890 = vunpack.c.l.b16 %v4626
      %v4891 = vunpack.c.l.b16 %v4627
      %v4892 = vpack.c.b16 %v4885, %v4884
      %v4893 = vpack.c.b16 %v4887, %v4886
      %v4894 = vpack.c.b16 %v4889, %v4888
      %v4895 = vpack.c.b16 %v4891, %v4890
      %4896 = vrot.lane.b32.xlu0 %v4892, 110
      %v4897 = vpop.permute.xlu0 %4896
      %4898 = vrot.lane.b32.xlu0 %v4893, 110
      %v4899 = vpop.permute.xlu0 %4898
      %4900 = vrot.lane.b32.xlu0 %v4894, 110
      %v4901 = vpop.permute.xlu0 %4900
      %4902 = vrot.lane.b32.xlu0 %v4895, 110
      %v4903 = vpop.permute.xlu0 %4902
      %v4908 = vld [vmem:[%s14] sm:$0xff]
      %v4909 = vld [vmem:[%s14 + $0x8] sm:$0xff]
      %v4910 = vld [vmem:[%s14 + $0x10] sm:$0xf]
      %v4911 = vld [vmem:[%s14 + $0x14] sm:$0xff]
      %v4912 = vld [vmem:[%s14 + $0x1c] sm:$0xff]
      %v4913 = vld [vmem:[%s14 + $0x24] sm:$0xf]
      %v4914 = vld [vmem:[%s14 + $0x28] sm:$0xff]
      %v4915 = vld [vmem:[%s14 + $0x30] sm:$0xff]
      %v4916 = vld [vmem:[%s14 + $0x38] sm:$0xf]
      %v4917 = vld [vmem:[%s14 + $0x3c] sm:$0xff]
      %v4918 = vld [vmem:[%s14 + $0x44] sm:$0xff]
      %v4919 = vld [vmem:[%s14 + $0x4c] sm:$0xf]
      %v4920 = vld [vmem:[%s15] sm:$0xff]
      %v4921 = vld [vmem:[%s15 + $0x8] sm:$0xff]
      %v4922 = vld [vmem:[%s15 + $0x10] sm:$0xff]
      %v4923 = vld [vmem:[%s15 + $0x18] sm:$0xff]
      %4925 = vset.pattern.permute.xlu0 0
      %4926 = vperm.xlu0 %4925, %v4920
      %v4927 = vpop.permute.xlu0 %4926
      %4930 = vset.pattern.permute.xlu0 0
      %4931 = vperm.xlu0 %4930, %v4921
      %v4932 = vpop.permute.xlu0 %4931
      %4935 = vset.pattern.permute.xlu0 0
      %4936 = vperm.xlu0 %4935, %v4922
      %v4937 = vpop.permute.xlu0 %4936
      %4940 = vset.pattern.permute.xlu0 0
      %4941 = vperm.xlu0 %4940, %v4923
      %v4942 = vpop.permute.xlu0 %4941
      %v4956 = vunpack.c.l.b16 %v4908
      %v4957 = vunpack.c.h.b16 %v4908
      %v4958 = vunpack.c.l.b16 %v4909
      %v4959 = vunpack.c.h.b16 %v4909
      %v4960 = vunpack.c.l.b16 %v4910
      %v4961 = vunpack.c.l.b16 %v4911
      %v4962 = vunpack.c.h.b16 %v4911
      %v4963 = vunpack.c.l.b16 %v4912
      %v4964 = vunpack.c.h.b16 %v4912
      %v4965 = vunpack.c.l.b16 %v4913
      %v4966 = vunpack.c.l.b16 %v4914
      %v4967 = vunpack.c.h.b16 %v4914
      %v4968 = vunpack.c.l.b16 %v4915
      %v4969 = vunpack.c.h.b16 %v4915
      %v4970 = vunpack.c.l.b16 %v4916
      %v4971 = vunpack.c.l.b16 %v4917
      %v4972 = vunpack.c.h.b16 %v4917
      %v4973 = vunpack.c.l.b16 %v4918
      %v4974 = vunpack.c.h.b16 %v4918
      %v4975 = vunpack.c.l.b16 %v4919
      %v4976 = vpack.c.b16 %v4961, %v4956
      %v4977 = vpack.c.b16 %v4962, %v4957
      %v4978 = vpack.c.b16 %v4963, %v4958
      %v4979 = vpack.c.b16 %v4964, %v4959
      %v4980 = vpack.c.b16 %v4965, %v4960
      %v4981 = vpack.c.b16 %v4971, %v4966
      %v4982 = vpack.c.b16 %v4972, %v4967
      %v4983 = vpack.c.b16 %v4973, %v4968
      %v4984 = vpack.c.b16 %v4974, %v4969
      %v4985 = vpack.c.b16 %v4975, %v4970
      %v4995 = vsel %vm1589, %v4980, 0
      %v4998 = vsel %vm1589, %v4985, 0
      %5000 = vmatpush.bf16.msra.mxu0 %v4679
      %5001 = vmatpush.bf16.msra.mxu0 %v4677
      %5002 = vmatpush.bf16.msra.mxu0 %v4675
      %5003 = vmatpush.bf16.msra.mxu0 %v4673
      %5004 = vmatpush.bf16.msra.mxu0 %v4647
      %5005 = vmatpush.bf16.msra.mxu0 %v4646
      %5006 = vmatpush.bf16.msra.mxu0 %v4645
      %5007 = vmatpush.bf16.msra.mxu0 %v4644
      %5008 = vmatmul.bf16.gmra.mxu0 %v4976
      %v5009 = vpop.f32.mrf.mxu0
      %v5010 = vadd.f32 %v4927, %v5009
      %v5011 = vpop.f32.mrf.mxu0
      %v5012 = vadd.f32 %v4932, %v5011
      %5013 = vmatmul.bf16.gmra.mxu0 %v4981
      %v5014 = vpop.f32.mrf.mxu0
      %v5015 = vadd.f32 %v4937, %v5014
      %v5016 = vpop.f32.mrf.mxu0
      %v5017 = vadd.f32 %v4942, %v5016
      %5018 = vdwg.mxu0
      %5019 = vmatpush.bf16.msra.mxu0 %v4743
      %5020 = vmatpush.bf16.msra.mxu0 %v4741
      %5021 = vmatpush.bf16.msra.mxu0 %v4739
      %5022 = vmatpush.bf16.msra.mxu0 %v4737
      %5023 = vmatpush.bf16.msra.mxu0 %v4711
      %5024 = vmatpush.bf16.msra.mxu0 %v4709
      %5025 = vmatpush.bf16.msra.mxu0 %v4707
      %5026 = vmatpush.bf16.msra.mxu0 %v4705
      %5027 = vmatmul.bf16.gmra.mxu0 %v4977
      %v5028 = vpop.f32.mrf.mxu0
      %v5029 = vadd.f32 %v5010, %v5028
      %v5030 = vpop.f32.mrf.mxu0
      %v5031 = vadd.f32 %v5012, %v5030
      %5032 = vmatmul.bf16.gmra.mxu0 %v4982
      %v5033 = vpop.f32.mrf.mxu0
      %v5034 = vadd.f32 %v5015, %v5033
      %v5035 = vpop.f32.mrf.mxu0
      %v5036 = vadd.f32 %v5017, %v5035
      %5037 = vdwg.mxu0
      %5038 = vmatpush.bf16.msra.mxu0 %v4807
      %5039 = vmatpush.bf16.msra.mxu0 %v4805
      %5040 = vmatpush.bf16.msra.mxu0 %v4803
      %5041 = vmatpush.bf16.msra.mxu0 %v4801
      %5042 = vmatpush.bf16.msra.mxu0 %v4775
      %5043 = vmatpush.bf16.msra.mxu0 %v4773
      %5044 = vmatpush.bf16.msra.mxu0 %v4771
      %5045 = vmatpush.bf16.msra.mxu0 %v4769
      %5046 = vmatmul.bf16.gmra.mxu0 %v4978
      %v5047 = vpop.f32.mrf.mxu0
      %v5048 = vadd.f32 %v5029, %v5047
      %v5049 = vpop.f32.mrf.mxu0
      %v5050 = vadd.f32 %v5031, %v5049
      %5051 = vmatmul.bf16.gmra.mxu0 %v4983
      %v5052 = vpop.f32.mrf.mxu0
      %v5053 = vadd.f32 %v5034, %v5052
      %v5054 = vpop.f32.mrf.mxu0
      %v5055 = vadd.f32 %v5036, %v5054
      %5056 = vdwg.mxu0
      %5057 = vmatpush.bf16.msra.mxu0 %v4871
      %5058 = vmatpush.bf16.msra.mxu0 %v4869
      %5059 = vmatpush.bf16.msra.mxu0 %v4867
      %5060 = vmatpush.bf16.msra.mxu0 %v4865
      %5061 = vmatpush.bf16.msra.mxu0 %v4839
      %5062 = vmatpush.bf16.msra.mxu0 %v4837
      %5063 = vmatpush.bf16.msra.mxu0 %v4835
      %5064 = vmatpush.bf16.msra.mxu0 %v4833
      %5065 = vmatmul.bf16.gmra.mxu0 %v4979
      %v5066 = vpop.f32.mrf.mxu0
      %v5067 = vadd.f32 %v5048, %v5066
      %v5068 = vpop.f32.mrf.mxu0
      %v5069 = vadd.f32 %v5050, %v5068
      %5070 = vmatmul.bf16.gmra.mxu0 %v4984
      %v5071 = vpop.f32.mrf.mxu0
      %v5072 = vadd.f32 %v5053, %v5071
      %v5073 = vpop.f32.mrf.mxu0
      %v5074 = vadd.f32 %v5055, %v5073
      %5075 = vdwg.mxu0
      %5076 = vmatpush.bf16.msra.mxu0 0
      %5077 = vmatpush.bf16.msra.mxu0 0
      %5078 = vmatpush.bf16.msra.mxu0 0
      %5079 = vmatpush.bf16.msra.mxu0 0
      %5080 = vmatpush.bf16.msra.mxu0 %v4903
      %5081 = vmatpush.bf16.msra.mxu0 %v4901
      %5082 = vmatpush.bf16.msra.mxu0 %v4899
      %5083 = vmatpush.bf16.msra.mxu0 %v4897
      %5084 = vmatmul.bf16.gmra.mxu0 %v4995
      %v5085 = vpop.f32.mrf.mxu0
      %v5086 = vadd.f32 %v5067, %v5085
      %v5087 = vpop.f32.mrf.mxu0
      %v5088 = vadd.f32 %v5069, %v5087
      %5089 = vmatmul.bf16.gmra.mxu0 %v4998
      %v5090 = vpop.f32.mrf.mxu0
      %v5091 = vadd.f32 %v5072, %v5090
      %v5092 = vpop.f32.mrf.mxu0
      %v5093 = vadd.f32 %v5074, %v5092
      %5094 = vdwg.mxu0
      %v5095 = vmax.f32 %v5086, 0.0
      %v5096 = vmax.f32 %v5088, 0.0
      %v5097 = vmax.f32 %v5091, 0.0
      %v5098 = vmax.f32 %v5093, 0.0
      %v5099 = vpack.c.bf16 %v5096, %v5095
      %v5100 = vpack.c.bf16 %v5098, %v5097
      %v5101 = vld [vmem:[%s16] sm:$0xff]
      %v5102 = vld [vmem:[%s16 + $0x8] sm:$0xff]
      %v5103 = vld [vmem:[%s16 + $0x10] sm:$0xff]
      %v5104 = vld [vmem:[%s16 + $0x18] sm:$0xff]
      %v5105 = vld [vmem:[%s16 + $0x20] sm:$0xff]
      %v5106 = vld [vmem:[%s16 + $0x28] sm:$0xff]
      %v5107 = vld [vmem:[%s16 + $0x30] sm:$0xff]
      %v5108 = vld [vmem:[%s16 + $0x38] sm:$0xff]
      %v5117 = vunpack.c.l.b16 %v5101
      %v5118 = vunpack.c.h.b16 %v5101
      %v5119 = vunpack.c.l.b16 %v5102
      %v5120 = vunpack.c.h.b16 %v5102
      %v5121 = vunpack.c.l.b16 %v5103
      %v5122 = vunpack.c.h.b16 %v5103
      %v5123 = vunpack.c.l.b16 %v5104
      %v5124 = vunpack.c.h.b16 %v5104
      %v5125 = vunpack.c.l.b16 %v5105
      %v5126 = vunpack.c.h.b16 %v5105
      %v5127 = vunpack.c.l.b16 %v5106
      %v5128 = vunpack.c.h.b16 %v5106
      %v5129 = vunpack.c.l.b16 %v5107
      %v5130 = vunpack.c.h.b16 %v5107
      %v5131 = vunpack.c.l.b16 %v5108
      %v5132 = vunpack.c.h.b16 %v5108
      %v5133 = vpack.c.b16 %v5119, %v5117
      %v5134 = vpack.c.b16 %v5120, %v5118
      %v5135 = vpack.c.b16 %v5123, %v5121
      %v5136 = vpack.c.b16 %v5124, %v5122
      %v5137 = vpack.c.b16 %v5127, %v5125
      %v5138 = vpack.c.b16 %v5128, %v5126
      %v5139 = vpack.c.b16 %v5131, %v5129
      %v5140 = vpack.c.b16 %v5132, %v5130
      %v5150 = vsel %vm1589, %v5099, 0
      %v5153 = vsel %vm1589, %v5100, 0
      %5155 = vmatpush.bf16.msra.mxu0 0
      %5156 = vmatpush.bf16.msra.mxu0 0
      %5157 = vmatpush.bf16.msra.mxu0 0
      %5158 = vmatpush.bf16.msra.mxu0 0
      %5159 = vmatpush.bf16.msra.mxu0 %v5139
      %5160 = vmatpush.bf16.msra.mxu0 %v5137
      %5161 = vmatpush.bf16.msra.mxu0 %v5135
      %5162 = vmatpush.bf16.msra.mxu0 %v5133
      %5163 = vmatmul.bf16.gmra.mxu0 %v5150
      %v5164 = vpop.f32.mrf.mxu0
      %v5165 = vadd.f32 0.0, %v5164
      %v5166 = vpop.f32.mrf.mxu0
      %v5167 = vadd.f32 0.0, %v5166
      %5168 = vmatmul.bf16.gmra.mxu0 %v5153
      %v5169 = vpop.f32.mrf.mxu0
      %v5170 = vadd.f32 0.0, %v5169
      %v5171 = vpop.f32.mrf.mxu0
      %v5172 = vadd.f32 0.0, %v5171
      %5173 = vdwg.mxu0
      %5174 = vmatpush.bf16.msra.mxu0 0
      %5175 = vmatpush.bf16.msra.mxu0 0
      %5176 = vmatpush.bf16.msra.mxu0 0
      %5177 = vmatpush.bf16.msra.mxu0 0
      %5178 = vmatpush.bf16.msra.mxu0 %v5140
      %5179 = vmatpush.bf16.msra.mxu0 %v5138
      %5180 = vmatpush.bf16.msra.mxu0 %v5136
      %5181 = vmatpush.bf16.msra.mxu0 %v5134
      %5182 = vmatmul.bf16.gmra.mxu0 %v5150
      %v5183 = vpop.f32.mrf.mxu0
      %v5184 = vadd.f32 0.0, %v5183
      %v5185 = vpop.f32.mrf.mxu0
      %v5186 = vadd.f32 0.0, %v5185
      %5187 = vmatmul.bf16.gmra.mxu0 %v5153
      %v5188 = vpop.f32.mrf.mxu0
      %v5189 = vadd.f32 0.0, %v5188
      %v5190 = vpop.f32.mrf.mxu0
      %v5191 = vadd.f32 0.0, %v5190
      %5192 = vdwg.mxu0
      %vm5193 = vcmask 134144
      %5194 = vst.msk [vmem:[#allocation2] sm:$0xf] %vm5193, 0
      %5195 = vst.msk [vmem:[#allocation2 + $0xc] sm:$0xf] %vm5193, 0
      %5196 = vst.msk [vmem:[#allocation2 + $0x18] sm:$0xf] %vm5193, 0
      %5197 = vst.msk [vmem:[#allocation2 + $0x24] sm:$0xf] %vm5193, 0
      %vm5198 = vcmask 273544
      %5199 = vst.msk [vmem:[#allocation2 + $0x8] sm:$0xf] %vm5198, 0
      %5200 = vst.msk [vmem:[#allocation2 + $0x14] sm:$0xf] %vm5198, 0
      %5201 = vst.msk [vmem:[#allocation2 + $0x20] sm:$0xf] %vm5198, 0
      %5202 = vst.msk [vmem:[#allocation2 + $0x2c] sm:$0xf] %vm5198, 0
      %v5203 = vpack.c.bf16 %v5184, %v5165
      %v5204 = vpack.c.bf16 %v5186, %v5167
      %v5205 = vpack.c.bf16 %v5189, %v5170
      %v5206 = vpack.c.bf16 %v5191, %v5172
      %5211 = vrot.lane.b32.xlu0 %v5203, 17
      %v5212 = vpop.permute.xlu0 %5211
      %5213 = vrot.lane.b32.xlu0 %v5204, 17
      %v5214 = vpop.permute.xlu0 %5213
      %5215 = vrot.lane.b32.xlu0 %v5205, 17
      %v5216 = vpop.permute.xlu0 %5215
      %5217 = vrot.lane.b32.xlu0 %v5206, 17
      %v5218 = vpop.permute.xlu0 %5217
      %v5219 = vrot.slane %v5212, 4
      %v5220 = vrot.slane %v5214, 4
      %v5221 = vrot.slane %v5216, 4
      %v5222 = vrot.slane %v5218, 4
      %v5223 = vsel %vm663, %v5219, %v5212
      %v5224 = vsel %vm663, %v5220, %v5214
      %v5225 = vsel %vm663, %v5221, %v5216
      %v5226 = vsel %vm663, %v5222, %v5218
      %vm5235 = vcmask 1043592
      %vm5236 = vcmask 1047556
      %vm5237 = vmor %vm5236, %vm5235
      %5238 = vst.msk [vmem:[#allocation2] sm:$0xff] %vm5237, %v5223
      %5239 = vst.msk [vmem:[#allocation2 + $0x8] sm:$0xf] %vm5193, %v5219
      %5240 = vst.msk [vmem:[#allocation2 + $0xc] sm:$0xff] %vm5237, %v5224
      %5241 = vst.msk [vmem:[#allocation2 + $0x14] sm:$0xf] %vm5193, %v5220
      %5242 = vst.msk [vmem:[#allocation2 + $0x18] sm:$0xff] %vm5237, %v5225
      %5243 = vst.msk [vmem:[#allocation2 + $0x20] sm:$0xf] %vm5193, %v5221
      %5244 = vst.msk [vmem:[#allocation2 + $0x24] sm:$0xff] %vm5237, %v5226
      %5245 = vst.msk [vmem:[#allocation2 + $0x2c] sm:$0xf] %vm5193, %v5222
      %v5246 = vld [vmem:[#allocation2] sm:$0xff]
      %v5247 = vld [vmem:[#allocation2 + $0xc] sm:$0xff]
      %v5248 = vld [vmem:[#allocation2 + $0x18] sm:$0xff]
      %v5249 = vld [vmem:[#allocation2 + $0x24] sm:$0xff]
      %v5250 = vunpack.c.l.bf16 %v5246
      %v5251 = vunpack.c.h.bf16 %v5246
      %v5252 = vunpack.c.l.bf16 %v5247
      %v5253 = vunpack.c.h.bf16 %v5247
      %v5254 = vunpack.c.l.bf16 %v5248
      %v5255 = vunpack.c.h.bf16 %v5248
      %v5256 = vunpack.c.l.bf16 %v5249
      %v5257 = vunpack.c.h.bf16 %v5249
      %v5258 = vmul.f32 %v5250, %v688
      %v5259 = vmul.f32 %v5251, %v689
      %v5260 = vmul.f32 %v5252, %v688
      %v5261 = vmul.f32 %v5253, %v689
      %v5262 = vmul.f32 %v5254, %v688
      %v5263 = vmul.f32 %v5255, %v689
      %v5264 = vmul.f32 %v5256, %v688
      %v5265 = vmul.f32 %v5257, %v689
      %v5266 = vpack.c.bf16 %v5259, %v5258
      %v5267 = vpack.c.bf16 %v5261, %v5260
      %v5268 = vpack.c.bf16 %v5263, %v5262
      %v5269 = vpack.c.bf16 %v5265, %v5264
      %v5270 = vld [vmem:[#allocation2 + $0x8] sm:$0xf]
      %v5271 = vld [vmem:[#allocation2 + $0x14] sm:$0xf]
      %v5272 = vld [vmem:[#allocation2 + $0x20] sm:$0xf]
      %v5273 = vld [vmem:[#allocation2 + $0x2c] sm:$0xf]
      %v5274 = vunpack.c.l.bf16 %v5270
      %v5275 = vunpack.c.l.bf16 %v5271
      %v5276 = vunpack.c.l.bf16 %v5272
      %v5277 = vunpack.c.l.bf16 %v5273
      %v5278 = vmul.f32 %v5250, %v708
      %v5279 = vmul.f32 %v5251, %v712
      %v5280 = vmul.f32 %v5274, %v710
      %v5281 = vmul.f32 %v5252, %v708
      %v5282 = vmul.f32 %v5253, %v712
      %v5283 = vmul.f32 %v5275, %v710
      %v5284 = vmul.f32 %v5254, %v708
      %v5285 = vmul.f32 %v5255, %v712
      %v5286 = vmul.f32 %v5276, %v710
      %v5287 = vmul.f32 %v5256, %v708
      %v5288 = vmul.f32 %v5257, %v712
      %v5289 = vmul.f32 %v5277, %v710
      %v5290 = vpack.c.bf16 %v5279, %v5278
      %v5291 = vpack.c.bf16 %v5280, %v5280
      %v5292 = vpack.c.bf16 %v5282, %v5281
      %v5293 = vpack.c.bf16 %v5283, %v5283
      %v5294 = vpack.c.bf16 %v5285, %v5284
      %v5295 = vpack.c.bf16 %v5286, %v5286
      %v5296 = vpack.c.bf16 %v5288, %v5287
      %v5297 = vpack.c.bf16 %v5289, %v5289
      %v5298 = vmul.f32 %v5250, %v728
      %v5299 = vmul.f32 %v5251, %v732
      %v5300 = vmul.f32 %v5274, %v730
      %v5301 = vmul.f32 %v5252, %v728
      %v5302 = vmul.f32 %v5253, %v732
      %v5303 = vmul.f32 %v5275, %v730
      %v5304 = vmul.f32 %v5254, %v728
      %v5305 = vmul.f32 %v5255, %v732
      %v5306 = vmul.f32 %v5276, %v730
      %v5307 = vmul.f32 %v5256, %v728
      %v5308 = vmul.f32 %v5257, %v732
      %v5309 = vmul.f32 %v5277, %v730
      %v5310 = vpack.c.bf16 %v5299, %v5298
      %v5311 = vpack.c.bf16 %v5300, %v5300
      %v5312 = vpack.c.bf16 %v5302, %v5301
      %v5313 = vpack.c.bf16 %v5303, %v5303
      %v5314 = vpack.c.bf16 %v5305, %v5304
      %v5315 = vpack.c.bf16 %v5306, %v5306
      %v5316 = vpack.c.bf16 %v5308, %v5307
      %v5317 = vpack.c.bf16 %v5309, %v5309
      %v5318 = vmul.f32 %v5250, %v748
      %v5319 = vmul.f32 %v5251, %v752
      %v5320 = vmul.f32 %v5274, %v750
      %v5321 = vmul.f32 %v5252, %v748
      %v5322 = vmul.f32 %v5253, %v752
      %v5323 = vmul.f32 %v5275, %v750
      %v5324 = vmul.f32 %v5254, %v748
      %v5325 = vmul.f32 %v5255, %v752
      %v5326 = vmul.f32 %v5276, %v750
      %v5327 = vmul.f32 %v5256, %v748
      %v5328 = vmul.f32 %v5257, %v752
      %v5329 = vmul.f32 %v5277, %v750
      %v5330 = vpack.c.bf16 %v5319, %v5318
      %v5331 = vpack.c.bf16 %v5320, %v5320
      %v5332 = vpack.c.bf16 %v5322, %v5321
      %v5333 = vpack.c.bf16 %v5323, %v5323
      %v5334 = vpack.c.bf16 %v5325, %v5324
      %v5335 = vpack.c.bf16 %v5326, %v5326
      %v5336 = vpack.c.bf16 %v5328, %v5327
      %v5337 = vpack.c.bf16 %v5329, %v5329
      %v5338 = vmul.f32 %v5250, %v768
      %v5339 = vmul.f32 %v5251, %v772
      %v5340 = vmul.f32 %v5274, %v770
      %v5341 = vmul.f32 %v5252, %v768
      %v5342 = vmul.f32 %v5253, %v772
      %v5343 = vmul.f32 %v5275, %v770
      %v5344 = vmul.f32 %v5254, %v768
      %v5345 = vmul.f32 %v5255, %v772
      %v5346 = vmul.f32 %v5276, %v770
      %v5347 = vmul.f32 %v5256, %v768
      %v5348 = vmul.f32 %v5257, %v772
      %v5349 = vmul.f32 %v5277, %v770
      %v5350 = vpack.c.bf16 %v5339, %v5338
      %v5351 = vpack.c.bf16 %v5340, %v5340
      %v5352 = vpack.c.bf16 %v5342, %v5341
      %v5353 = vpack.c.bf16 %v5343, %v5343
      %v5354 = vpack.c.bf16 %v5345, %v5344
      %v5355 = vpack.c.bf16 %v5346, %v5346
      %v5356 = vpack.c.bf16 %v5348, %v5347
      %v5357 = vpack.c.bf16 %v5349, %v5349
      %v5358 = vmul.f32 %v5250, %v788
      %v5359 = vmul.f32 %v5251, %v792
      %v5360 = vmul.f32 %v5274, %v790
      %v5361 = vmul.f32 %v5252, %v788
      %v5362 = vmul.f32 %v5253, %v792
      %v5363 = vmul.f32 %v5275, %v790
      %v5364 = vmul.f32 %v5254, %v788
      %v5365 = vmul.f32 %v5255, %v792
      %v5366 = vmul.f32 %v5276, %v790
      %v5367 = vmul.f32 %v5256, %v788
      %v5368 = vmul.f32 %v5257, %v792
      %v5369 = vmul.f32 %v5277, %v790
      %v5370 = vpack.c.bf16 %v5359, %v5358
      %v5371 = vpack.c.bf16 %v5360, %v5360
      %v5372 = vpack.c.bf16 %v5362, %v5361
      %v5373 = vpack.c.bf16 %v5363, %v5363
      %v5374 = vpack.c.bf16 %v5365, %v5364
      %v5375 = vpack.c.bf16 %v5366, %v5366
      %v5376 = vpack.c.bf16 %v5368, %v5367
      %v5377 = vpack.c.bf16 %v5369, %v5369
      %v5378 = vmul.f32 %v5250, %v808
      %v5379 = vmul.f32 %v5251, %v812
      %v5380 = vmul.f32 %v5274, %v810
      %v5381 = vmul.f32 %v5252, %v808
      %v5382 = vmul.f32 %v5253, %v812
      %v5383 = vmul.f32 %v5275, %v810
      %v5384 = vmul.f32 %v5254, %v808
      %v5385 = vmul.f32 %v5255, %v812
      %v5386 = vmul.f32 %v5276, %v810
      %v5387 = vmul.f32 %v5256, %v808
      %v5388 = vmul.f32 %v5257, %v812
      %v5389 = vmul.f32 %v5277, %v810
      %v5390 = vpack.c.bf16 %v5379, %v5378
      %v5391 = vpack.c.bf16 %v5380, %v5380
      %v5392 = vpack.c.bf16 %v5382, %v5381
      %v5393 = vpack.c.bf16 %v5383, %v5383
      %v5394 = vpack.c.bf16 %v5385, %v5384
      %v5395 = vpack.c.bf16 %v5386, %v5386
      %v5396 = vpack.c.bf16 %v5388, %v5387
      %v5397 = vpack.c.bf16 %v5389, %v5389
      %v5398 = vmul.f32 %v5250, %v828
      %v5399 = vmul.f32 %v5251, %v832
      %v5400 = vmul.f32 %v5274, %v830
      %v5401 = vmul.f32 %v5252, %v828
      %v5402 = vmul.f32 %v5253, %v832
      %v5403 = vmul.f32 %v5275, %v830
      %v5404 = vmul.f32 %v5254, %v828
      %v5405 = vmul.f32 %v5255, %v832
      %v5406 = vmul.f32 %v5276, %v830
      %v5407 = vmul.f32 %v5256, %v828
      %v5408 = vmul.f32 %v5257, %v832
      %v5409 = vmul.f32 %v5277, %v830
      %v5410 = vpack.c.bf16 %v5399, %v5398
      %v5411 = vpack.c.bf16 %v5400, %v5400
      %v5412 = vpack.c.bf16 %v5402, %v5401
      %v5413 = vpack.c.bf16 %v5403, %v5403
      %v5414 = vpack.c.bf16 %v5405, %v5404
      %v5415 = vpack.c.bf16 %v5406, %v5406
      %v5416 = vpack.c.bf16 %v5408, %v5407
      %v5417 = vpack.c.bf16 %v5409, %v5409
      %v5418 = vmul.f32 %v5250, %v859
      %v5419 = vmul.f32 %v5251, %v863
      %v5420 = vmul.f32 %v5274, %v861
      %v5421 = vmul.f32 %v5252, %v859
      %v5422 = vmul.f32 %v5253, %v863
      %v5423 = vmul.f32 %v5275, %v861
      %v5424 = vmul.f32 %v5254, %v859
      %v5425 = vmul.f32 %v5255, %v863
      %v5426 = vmul.f32 %v5276, %v861
      %v5427 = vmul.f32 %v5256, %v859
      %v5428 = vmul.f32 %v5257, %v863
      %v5429 = vmul.f32 %v5277, %v861
      %v5430 = vpack.c.bf16 %v5419, %v5418
      %v5431 = vpack.c.bf16 %v5420, %v5420
      %v5432 = vpack.c.bf16 %v5422, %v5421
      %v5433 = vpack.c.bf16 %v5423, %v5423
      %v5434 = vpack.c.bf16 %v5425, %v5424
      %v5435 = vpack.c.bf16 %v5426, %v5426
      %v5436 = vpack.c.bf16 %v5428, %v5427
      %v5437 = vpack.c.bf16 %v5429, %v5429
      %v5442 = vunpack.c.l.b16 %v5266
      %v5443 = vunpack.c.h.b16 %v5266
      %v5444 = vunpack.c.l.b16 %v5267
      %v5445 = vunpack.c.h.b16 %v5267
      %v5446 = vunpack.c.l.b16 %v5268
      %v5447 = vunpack.c.h.b16 %v5268
      %v5448 = vunpack.c.l.b16 %v5269
      %v5449 = vunpack.c.h.b16 %v5269
      %v5450 = vpack.c.b16 %v5444, %v5442
      %v5451 = vpack.c.b16 %v5445, %v5443
      %v5452 = vpack.c.b16 %v5448, %v5446
      %v5453 = vpack.c.b16 %v5449, %v5447
      %v5466 = vunpack.c.l.b16 %v5290
      %v5467 = vunpack.c.h.b16 %v5290
      %v5468 = vunpack.c.l.b16 %v5291
      %v5469 = vunpack.c.l.b16 %v5292
      %v5470 = vunpack.c.h.b16 %v5292
      %v5471 = vunpack.c.l.b16 %v5293
      %v5472 = vunpack.c.l.b16 %v5294
      %v5473 = vunpack.c.h.b16 %v5294
      %v5474 = vunpack.c.l.b16 %v5295
      %v5475 = vunpack.c.l.b16 %v5296
      %v5476 = vunpack.c.h.b16 %v5296
      %v5477 = vunpack.c.l.b16 %v5297
      %v5478 = vpack.c.b16 %v5469, %v5466
      %v5479 = vpack.c.b16 %v5470, %v5467
      %v5480 = vpack.c.b16 %v5471, %v5468
      %v5481 = vpack.c.b16 %v5475, %v5472
      %v5482 = vpack.c.b16 %v5476, %v5473
      %v5483 = vpack.c.b16 %v5477, %v5474
      %5484 = vrot.lane.b32.xlu0 %v5478, 127
      %v5485 = vpop.permute.xlu0 %5484
      %5486 = vrot.lane.b32.xlu0 %v5479, 127
      %v5487 = vpop.permute.xlu0 %5486
      %5488 = vrot.lane.b32.xlu0 %v5480, 127
      %v5489 = vpop.permute.xlu0 %5488
      %5490 = vrot.lane.b32.xlu0 %v5481, 127
      %v5491 = vpop.permute.xlu0 %5490
      %5492 = vrot.lane.b32.xlu0 %v5482, 127
      %v5493 = vpop.permute.xlu0 %5492
      %5494 = vrot.lane.b32.xlu0 %v5483, 127
      %v5495 = vpop.permute.xlu0 %5494
      %v5496 = vsel %vm894, %v5485, %v5487
      %v5497 = vsel %vm894, %v5487, %v5489
      %v5498 = vsel %vm894, %v5491, %v5493
      %v5499 = vsel %vm894, %v5493, %v5495
      %v5512 = vunpack.c.l.b16 %v5310
      %v5513 = vunpack.c.h.b16 %v5310
      %v5514 = vunpack.c.l.b16 %v5311
      %v5515 = vunpack.c.l.b16 %v5312
      %v5516 = vunpack.c.h.b16 %v5312
      %v5517 = vunpack.c.l.b16 %v5313
      %v5518 = vunpack.c.l.b16 %v5314
      %v5519 = vunpack.c.h.b16 %v5314
      %v5520 = vunpack.c.l.b16 %v5315
      %v5521 = vunpack.c.l.b16 %v5316
      %v5522 = vunpack.c.h.b16 %v5316
      %v5523 = vunpack.c.l.b16 %v5317
      %v5524 = vpack.c.b16 %v5515, %v5512
      %v5525 = vpack.c.b16 %v5516, %v5513
      %v5526 = vpack.c.b16 %v5517, %v5514
      %v5527 = vpack.c.b16 %v5521, %v5518
      %v5528 = vpack.c.b16 %v5522, %v5519
      %v5529 = vpack.c.b16 %v5523, %v5520
      %5530 = vrot.lane.b32.xlu0 %v5524, 126
      %v5531 = vpop.permute.xlu0 %5530
      %5532 = vrot.lane.b32.xlu0 %v5525, 126
      %v5533 = vpop.permute.xlu0 %5532
      %5534 = vrot.lane.b32.xlu0 %v5526, 126
      %v5535 = vpop.permute.xlu0 %5534
      %5536 = vrot.lane.b32.xlu0 %v5527, 126
      %v5537 = vpop.permute.xlu0 %5536
      %5538 = vrot.lane.b32.xlu0 %v5528, 126
      %v5539 = vpop.permute.xlu0 %5538
      %5540 = vrot.lane.b32.xlu0 %v5529, 126
      %v5541 = vpop.permute.xlu0 %5540
      %v5542 = vsel %vm911, %v5531, %v5533
      %v5543 = vsel %vm911, %v5533, %v5535
      %v5544 = vsel %vm911, %v5537, %v5539
      %v5545 = vsel %vm911, %v5539, %v5541
      %v5558 = vunpack.c.l.b16 %v5330
      %v5559 = vunpack.c.h.b16 %v5330
      %v5560 = vunpack.c.l.b16 %v5331
      %v5561 = vunpack.c.l.b16 %v5332
      %v5562 = vunpack.c.h.b16 %v5332
      %v5563 = vunpack.c.l.b16 %v5333
      %v5564 = vunpack.c.l.b16 %v5334
      %v5565 = vunpack.c.h.b16 %v5334
      %v5566 = vunpack.c.l.b16 %v5335
      %v5567 = vunpack.c.l.b16 %v5336
      %v5568 = vunpack.c.h.b16 %v5336
      %v5569 = vunpack.c.l.b16 %v5337
      %v5570 = vpack.c.b16 %v5561, %v5558
      %v5571 = vpack.c.b16 %v5562, %v5559
      %v5572 = vpack.c.b16 %v5563, %v5560
      %v5573 = vpack.c.b16 %v5567, %v5564
      %v5574 = vpack.c.b16 %v5568, %v5565
      %v5575 = vpack.c.b16 %v5569, %v5566
      %5576 = vrot.lane.b32.xlu0 %v5570, 112
      %v5577 = vpop.permute.xlu0 %5576
      %5578 = vrot.lane.b32.xlu0 %v5571, 112
      %v5579 = vpop.permute.xlu0 %5578
      %5580 = vrot.lane.b32.xlu0 %v5572, 112
      %v5581 = vpop.permute.xlu0 %5580
      %5582 = vrot.lane.b32.xlu0 %v5573, 112
      %v5583 = vpop.permute.xlu0 %5582
      %5584 = vrot.lane.b32.xlu0 %v5574, 112
      %v5585 = vpop.permute.xlu0 %5584
      %5586 = vrot.lane.b32.xlu0 %v5575, 112
      %v5587 = vpop.permute.xlu0 %5586
      %v5588 = vsel %vm931, %v5577, %v5579
      %v5589 = vsel %vm931, %v5579, %v5581
      %v5590 = vsel %vm931, %v5583, %v5585
      %v5591 = vsel %vm931, %v5585, %v5587
      %v5604 = vunpack.c.l.b16 %v5350
      %v5605 = vunpack.c.h.b16 %v5350
      %v5606 = vunpack.c.l.b16 %v5351
      %v5607 = vunpack.c.l.b16 %v5352
      %v5608 = vunpack.c.h.b16 %v5352
      %v5609 = vunpack.c.l.b16 %v5353
      %v5610 = vunpack.c.l.b16 %v5354
      %v5611 = vunpack.c.h.b16 %v5354
      %v5612 = vunpack.c.l.b16 %v5355
      %v5613 = vunpack.c.l.b16 %v5356
      %v5614 = vunpack.c.h.b16 %v5356
      %v5615 = vunpack.c.l.b16 %v5357
      %v5616 = vpack.c.b16 %v5607, %v5604
      %v5617 = vpack.c.b16 %v5608, %v5605
      %v5618 = vpack.c.b16 %v5609, %v5606
      %v5619 = vpack.c.b16 %v5613, %v5610
      %v5620 = vpack.c.b16 %v5614, %v5611
      %v5621 = vpack.c.b16 %v5615, %v5612
      %5622 = vrot.lane.b32.xlu0 %v5616, 111
      %v5623 = vpop.permute.xlu0 %5622
      %5624 = vrot.lane.b32.xlu0 %v5617, 111
      %v5625 = vpop.permute.xlu0 %5624
      %5626 = vrot.lane.b32.xlu0 %v5618, 111
      %v5627 = vpop.permute.xlu0 %5626
      %5628 = vrot.lane.b32.xlu0 %v5619, 111
      %v5629 = vpop.permute.xlu0 %5628
      %5630 = vrot.lane.b32.xlu0 %v5620, 111
      %v5631 = vpop.permute.xlu0 %5630
      %5632 = vrot.lane.b32.xlu0 %v5621, 111
      %v5633 = vpop.permute.xlu0 %5632
      %v5634 = vsel %vm948, %v5623, %v5625
      %v5635 = vsel %vm948, %v5625, %v5627
      %v5636 = vsel %vm948, %v5629, %v5631
      %v5637 = vsel %vm948, %v5631, %v5633
      %v5650 = vunpack.c.l.b16 %v5370
      %v5651 = vunpack.c.h.b16 %v5370
      %v5652 = vunpack.c.l.b16 %v5371
      %v5653 = vunpack.c.l.b16 %v5372
      %v5654 = vunpack.c.h.b16 %v5372
      %v5655 = vunpack.c.l.b16 %v5373
      %v5656 = vunpack.c.l.b16 %v5374
      %v5657 = vunpack.c.h.b16 %v5374
      %v5658 = vunpack.c.l.b16 %v5375
      %v5659 = vunpack.c.l.b16 %v5376
      %v5660 = vunpack.c.h.b16 %v5376
      %v5661 = vunpack.c.l.b16 %v5377
      %v5662 = vpack.c.b16 %v5653, %v5650
      %v5663 = vpack.c.b16 %v5654, %v5651
      %v5664 = vpack.c.b16 %v5655, %v5652
      %v5665 = vpack.c.b16 %v5659, %v5656
      %v5666 = vpack.c.b16 %v5660, %v5657
      %v5667 = vpack.c.b16 %v5661, %v5658
      %5668 = vrot.lane.b32.xlu0 %v5662, 110
      %v5669 = vpop.permute.xlu0 %5668
      %5670 = vrot.lane.b32.xlu0 %v5663, 110
      %v5671 = vpop.permute.xlu0 %5670
      %5672 = vrot.lane.b32.xlu0 %v5664, 110
      %v5673 = vpop.permute.xlu0 %5672
      %5674 = vrot.lane.b32.xlu0 %v5665, 110
      %v5675 = vpop.permute.xlu0 %5674
      %5676 = vrot.lane.b32.xlu0 %v5666, 110
      %v5677 = vpop.permute.xlu0 %5676
      %5678 = vrot.lane.b32.xlu0 %v5667, 110
      %v5679 = vpop.permute.xlu0 %5678
      %v5680 = vsel %vm968, %v5669, %v5671
      %v5681 = vsel %vm968, %v5671, %v5673
      %v5682 = vsel %vm968, %v5675, %v5677
      %v5683 = vsel %vm968, %v5677, %v5679
      %v5696 = vunpack.c.l.b16 %v5390
      %v5697 = vunpack.c.h.b16 %v5390
      %v5698 = vunpack.c.l.b16 %v5391
      %v5699 = vunpack.c.l.b16 %v5392
      %v5700 = vunpack.c.h.b16 %v5392
      %v5701 = vunpack.c.l.b16 %v5393
      %v5702 = vunpack.c.l.b16 %v5394
      %v5703 = vunpack.c.h.b16 %v5394
      %v5704 = vunpack.c.l.b16 %v5395
      %v5705 = vunpack.c.l.b16 %v5396
      %v5706 = vunpack.c.h.b16 %v5396
      %v5707 = vunpack.c.l.b16 %v5397
      %v5708 = vpack.c.b16 %v5699, %v5696
      %v5709 = vpack.c.b16 %v5700, %v5697
      %v5710 = vpack.c.b16 %v5701, %v5698
      %v5711 = vpack.c.b16 %v5705, %v5702
      %v5712 = vpack.c.b16 %v5706, %v5703
      %v5713 = vpack.c.b16 %v5707, %v5704
      %5714 = vrot.lane.b32.xlu0 %v5708, 96
      %v5715 = vpop.permute.xlu0 %5714
      %5716 = vrot.lane.b32.xlu0 %v5709, 96
      %v5717 = vpop.permute.xlu0 %5716
      %5718 = vrot.lane.b32.xlu0 %v5710, 96
      %v5719 = vpop.permute.xlu0 %5718
      %5720 = vrot.lane.b32.xlu0 %v5711, 96
      %v5721 = vpop.permute.xlu0 %5720
      %5722 = vrot.lane.b32.xlu0 %v5712, 96
      %v5723 = vpop.permute.xlu0 %5722
      %5724 = vrot.lane.b32.xlu0 %v5713, 96
      %v5725 = vpop.permute.xlu0 %5724
      %v5726 = vsel %vm985, %v5715, %v5717
      %v5727 = vsel %vm985, %v5717, %v5719
      %v5728 = vsel %vm985, %v5721, %v5723
      %v5729 = vsel %vm985, %v5723, %v5725
      %v5742 = vunpack.c.l.b16 %v5410
      %v5743 = vunpack.c.h.b16 %v5410
      %v5744 = vunpack.c.l.b16 %v5411
      %v5745 = vunpack.c.l.b16 %v5412
      %v5746 = vunpack.c.h.b16 %v5412
      %v5747 = vunpack.c.l.b16 %v5413
      %v5748 = vunpack.c.l.b16 %v5414
      %v5749 = vunpack.c.h.b16 %v5414
      %v5750 = vunpack.c.l.b16 %v5415
      %v5751 = vunpack.c.l.b16 %v5416
      %v5752 = vunpack.c.h.b16 %v5416
      %v5753 = vunpack.c.l.b16 %v5417
      %v5754 = vpack.c.b16 %v5745, %v5742
      %v5755 = vpack.c.b16 %v5746, %v5743
      %v5756 = vpack.c.b16 %v5747, %v5744
      %v5757 = vpack.c.b16 %v5751, %v5748
      %v5758 = vpack.c.b16 %v5752, %v5749
      %v5759 = vpack.c.b16 %v5753, %v5750
      %5760 = vrot.lane.b32.xlu0 %v5754, 95
      %v5761 = vpop.permute.xlu0 %5760
      %5762 = vrot.lane.b32.xlu0 %v5755, 95
      %v5763 = vpop.permute.xlu0 %5762
      %5764 = vrot.lane.b32.xlu0 %v5756, 95
      %v5765 = vpop.permute.xlu0 %5764
      %5766 = vrot.lane.b32.xlu0 %v5757, 95
      %v5767 = vpop.permute.xlu0 %5766
      %5768 = vrot.lane.b32.xlu0 %v5758, 95
      %v5769 = vpop.permute.xlu0 %5768
      %5770 = vrot.lane.b32.xlu0 %v5759, 95
      %v5771 = vpop.permute.xlu0 %5770
      %v5772 = vsel %vm1005, %v5761, %v5763
      %v5773 = vsel %vm1005, %v5763, %v5765
      %v5774 = vsel %vm1005, %v5767, %v5769
      %v5775 = vsel %vm1005, %v5769, %v5771
      %v5788 = vunpack.c.l.b16 %v5430
      %v5789 = vunpack.c.h.b16 %v5430
      %v5790 = vunpack.c.l.b16 %v5431
      %v5791 = vunpack.c.l.b16 %v5432
      %v5792 = vunpack.c.h.b16 %v5432
      %v5793 = vunpack.c.l.b16 %v5433
      %v5794 = vunpack.c.l.b16 %v5434
      %v5795 = vunpack.c.h.b16 %v5434
      %v5796 = vunpack.c.l.b16 %v5435
      %v5797 = vunpack.c.l.b16 %v5436
      %v5798 = vunpack.c.h.b16 %v5436
      %v5799 = vunpack.c.l.b16 %v5437
      %v5800 = vpack.c.b16 %v5791, %v5788
      %v5801 = vpack.c.b16 %v5792, %v5789
      %v5802 = vpack.c.b16 %v5793, %v5790
      %v5803 = vpack.c.b16 %v5797, %v5794
      %v5804 = vpack.c.b16 %v5798, %v5795
      %v5805 = vpack.c.b16 %v5799, %v5796
      %5806 = vrot.lane.b32.xlu0 %v5800, 94
      %v5807 = vpop.permute.xlu0 %5806
      %5808 = vrot.lane.b32.xlu0 %v5801, 94
      %v5809 = vpop.permute.xlu0 %5808
      %5810 = vrot.lane.b32.xlu0 %v5802, 94
      %v5811 = vpop.permute.xlu0 %5810
      %5812 = vrot.lane.b32.xlu0 %v5803, 94
      %v5813 = vpop.permute.xlu0 %5812
      %5814 = vrot.lane.b32.xlu0 %v5804, 94
      %v5815 = vpop.permute.xlu0 %5814
      %5816 = vrot.lane.b32.xlu0 %v5805, 94
      %v5817 = vpop.permute.xlu0 %5816
      %v5818 = vsel %vm1022, %v5807, %v5809
      %v5819 = vsel %vm1022, %v5809, %v5811
      %v5820 = vsel %vm1022, %v5813, %v5815
      %v5821 = vsel %vm1022, %v5815, %v5817
      %v5826 = vld [vmem:[%s17] sm:$0x3f]
      %v5827 = vld [vmem:[%s18] sm:$0xf]
      %5829 = vset.pattern.permute.xlu0 0
      %5830 = vperm.xlu0 %5829, %v5827
      %v5831 = vpop.permute.xlu0 %5830
      %5834 = vst [vmem:[#allocation1] ss:$4 sm:$0xff] %v5826
      %v5835 = vld.sshfl [vmem:[#allocation1] sm:$0xff pattern:$0x73625140]
      %v5836 = vld.sshfl [vmem:[#allocation1 + $0x8] sm:$0xff pattern:$0x73625140]
      %v5837 = vld.sshfl [vmem:[#allocation1 + $0x10] sm:$0xff pattern:$0x73625140]
      %v5840 = vsel %vm811, %v5837, 0
      %5842 = vmatpush.bf16.msra.mxu0 %v5590
      %5843 = vmatpush.bf16.msra.mxu0 %v5588
      %5844 = vmatpush.bf16.msra.mxu0 %v5544
      %5845 = vmatpush.bf16.msra.mxu0 %v5542
      %5846 = vmatpush.bf16.msra.mxu0 %v5498
      %5847 = vmatpush.bf16.msra.mxu0 %v5496
      %5848 = vmatpush.bf16.msra.mxu0 %v5452
      %5849 = vmatpush.bf16.msra.mxu0 %v5450
      %5850 = vmatmul.bf16.gmra.mxu0 %v5835
      %v5851 = vpop.f32.mrf.mxu0
      %v5852 = vadd.f32 %v5831, %v5851
      %v5853 = vpop.f32.mrf.mxu0
      %5854 = vdwg.mxu0
      %5855 = vmatpush.bf16.msra.mxu0 %v5774
      %5856 = vmatpush.bf16.msra.mxu0 %v5772
      %5857 = vmatpush.bf16.msra.mxu0 %v5728
      %5858 = vmatpush.bf16.msra.mxu0 %v5726
      %5859 = vmatpush.bf16.msra.mxu0 %v5682
      %5860 = vmatpush.bf16.msra.mxu0 %v5680
      %5861 = vmatpush.bf16.msra.mxu0 %v5636
      %5862 = vmatpush.bf16.msra.mxu0 %v5634
      %5863 = vmatmul.bf16.gmra.mxu0 %v5836
      %v5864 = vpop.f32.mrf.mxu0
      %v5865 = vadd.f32 %v5852, %v5864
      %v5866 = vpop.f32.mrf.mxu0
      %5867 = vdwg.mxu0
      %5868 = vmatpush.bf16.msra.mxu0 0
      %5869 = vmatpush.bf16.msra.mxu0 0
      %5870 = vmatpush.bf16.msra.mxu0 0
      %5871 = vmatpush.bf16.msra.mxu0 0
      %5872 = vmatpush.bf16.msra.mxu0 0
      %5873 = vmatpush.bf16.msra.mxu0 0
      %5874 = vmatpush.bf16.msra.mxu0 %v5820
      %5875 = vmatpush.bf16.msra.mxu0 %v5818
      %5876 = vmatmul.bf16.gmra.mxu0 %v5840
      %v5877 = vpop.f32.mrf.mxu0
      %v5878 = vadd.f32 %v5865, %v5877
      %v5879 = vpop.f32.mrf.mxu0
      %5880 = vdwg.mxu0
      %5881 = vmatpush.bf16.msra.mxu0 %v5591
      %5882 = vmatpush.bf16.msra.mxu0 %v5589
      %5883 = vmatpush.bf16.msra.mxu0 %v5545
      %5884 = vmatpush.bf16.msra.mxu0 %v5543
      %5885 = vmatpush.bf16.msra.mxu0 %v5499
      %5886 = vmatpush.bf16.msra.mxu0 %v5497
      %5887 = vmatpush.bf16.msra.mxu0 %v5453
      %5888 = vmatpush.bf16.msra.mxu0 %v5451
      %5889 = vmatmul.bf16.gmra.mxu0 %v5835
      %v5890 = vpop.f32.mrf.mxu0
      %v5891 = vadd.f32 %v5831, %v5890
      %v5892 = vpop.f32.mrf.mxu0
      %5893 = vdwg.mxu0
      %5894 = vmatpush.bf16.msra.mxu0 %v5775
      %5895 = vmatpush.bf16.msra.mxu0 %v5773
      %5896 = vmatpush.bf16.msra.mxu0 %v5729
      %5897 = vmatpush.bf16.msra.mxu0 %v5727
      %5898 = vmatpush.bf16.msra.mxu0 %v5683
      %5899 = vmatpush.bf16.msra.mxu0 %v5681
      %5900 = vmatpush.bf16.msra.mxu0 %v5637
      %5901 = vmatpush.bf16.msra.mxu0 %v5635
      %5902 = vmatmul.bf16.gmra.mxu0 %v5836
      %v5903 = vpop.f32.mrf.mxu0
      %v5904 = vadd.f32 %v5891, %v5903
      %v5905 = vpop.f32.mrf.mxu0
      %5906 = vdwg.mxu0
      %5907 = vmatpush.bf16.msra.mxu0 0
      %5908 = vmatpush.bf16.msra.mxu0 0
      %5909 = vmatpush.bf16.msra.mxu0 0
      %5910 = vmatpush.bf16.msra.mxu0 0
      %5911 = vmatpush.bf16.msra.mxu0 0
      %5912 = vmatpush.bf16.msra.mxu0 0
      %5913 = vmatpush.bf16.msra.mxu0 %v5821
      %5914 = vmatpush.bf16.msra.mxu0 %v5819
      %5915 = vmatmul.bf16.gmra.mxu0 %v5840
      %v5916 = vpop.f32.mrf.mxu0
      %v5917 = vadd.f32 %v5904, %v5916
      %v5918 = vpop.f32.mrf.mxu0
      %5919 = vdwg.mxu0
      %v5920 = vtanh.pop %v5878
      %v5921 = vtanh.pop %v5917
      %v5924 = vrot.slane %v5921, 4
      %v5925 = vsel %vm1032, %v5920, %v5924
      %5927 = vst [vmem:[%s644] sm:$0xff] %v5925
      %p5928 = scmp.lt.s32.totalorder %s32, 1
      %s5929 = scalar_select %p5928, %s32, 1
      %s5930 = smul.addr %s5929, 4
      %s5931 = smul.addr %s5930, 8
      %s5932 = scalar_lea.vmem %s19, %s5931
      %s5933 = smul.u32 2, %s32
      %p5934 = scmp.lt.s32.totalorder %s5933, 3
      %s5935 = scalar_select %p5934, %s5933, 3
      %s5936 = smul.addr %s5935, 4
      %s5937 = scalar_lea.vmem %s20, %s5936
      // Predicated region
      $region97: #{generator_forward.1} parent=95 // pred_check
        %p5938 = pneg %p454
      $region98: #{generator_forward.1} parent=95 // pred_check_branch
        %5940 = sbr.rel (%p5938) target = $region100
      $region99: #{generator_forward.1} parent=95 // pred_region
        _
      $region100: #{generator_forward.1} parent=95 // pred_fallthru
        _
      // Predicated region
      $region101: #{generator_forward.1} parent=95 // pred_check
        %p5941 = pneg %p480
      $region102: #{generator_forward.1} parent=95 // pred_check_branch
        %5943 = sbr.rel (%p5941) target = $region104
      $region103: #{generator_forward.1} parent=95 // pred_region
        %s5944 = smul.u32 2, %s32
      $region104: #{generator_forward.1} parent=95 // pred_fallthru
        _
    $region96: #{generator_forward.1} parent=5 // pred_fallthru
      _
    %p5945 = scmp.le.s32.totalorder 2, %s27
    // Predicated region
    $region105: #{generator_forward.1} parent=5 // pred_check
      %p5946 = pneg %p5945
    $region106: #{generator_forward.1} parent=5 // pred_check_branch
      %5948 = sbr.rel (%p5946) target = $region108
    $region107: #{generator_forward.1} parent=5 // pred_region
      %s5949 = ssub.s32 %s27, 2
      // Predicated region
      $region109: #{generator_forward.1} parent=107 // pred_check
        %p5950 = pneg %p460
      $region110: #{generator_forward.1} parent=107 // pred_check_branch
        %5952 = sbr.rel (%p5950) target = $region112
      $region111: #{generator_forward.1} parent=107 // pred_region
        %p5953 = scmp.lt.s32.totalorder %s33, 1
        %s5954 = scalar_select %p5953, %s33, 1
        %s5955 = smul.addr %s5954, 4
        %s5956 = smul.addr %s5955, 8
        %s5957 = scalar_lea.vmem %s19, %s5956
      $region112: #{generator_forward.1} parent=107 // pred_fallthru
        _
      // Predicated region
      $region113: #{generator_forward.1} parent=107 // pred_check
        %p5958 = pneg %p486
      $region114: #{generator_forward.1} parent=107 // pred_check_branch
        %5960 = sbr.rel (%p5958) target = $region116
      $region115: #{generator_forward.1} parent=107 // pred_region
        %s5961 = smul.u32 2, %s33
        %p5962 = scmp.lt.s32.totalorder %s5961, 3
        %s5963 = scalar_select %p5962, %s5961, 3
        %s5964 = smul.addr %s5963, 4
        %s5965 = scalar_lea.vmem %s20, %s5964
      $region116: #{generator_forward.1} parent=107 // pred_fallthru
        _
    $region108: #{generator_forward.1} parent=5 // pred_fallthru
      _
  $region6: #{generator_forward.1} parent=0 // loop_footer
    %s31 = sadd.s32 1, %s27
  $region7: #{generator_forward.1} parent=0 // loop_footer_branch
    %26 = sbr.rel target = $region3
  $region8: #{generator_forward.1} parent=0 // loop_exit
    _

</llo_original>
